<compile_context>
chip_gen: v5e
topology: v5e:2x2
jax: 0.10.0
libtpu: 0.0.40
codegen_flags: <defaults>
</compile_context>

<pallas_src>
import functools
import math

import jax
import jax.numpy as jnp
from jax.experimental import pallas as pl
from jax.experimental.pallas import tpu as pltpu

ACT_DT = jnp.bfloat16   # activation dtype between kernels / MXU operand dtype
WGT_DT = jnp.bfloat16   # weight dtype (biases stay f32)
VMEM_LIMIT = 48 * 1024 * 1024   # safe on v5e/v6e (128 MiB) and v7x (64 MiB)


def _cparams(sem):
    return pltpu.CompilerParams(dimension_semantics=sem,
                                vmem_limit_bytes=VMEM_LIMIT)


def _tile(dim, pref):
    """Largest aligned tile: `pref` if it divides `dim`, else the full dim."""
    if dim >= pref and dim % pref == 0:
        return pref
    return dim


def _group(bh):
    """Heads-per-attention-block (must divide B*H)."""
    for g in (8, 4, 2, 1):
        if bh % g == 0:
            return g
    return 1


# ----------------------------- tiled linear ---------------------------------

def _linear_kernel(x_ref, w_ref, b_ref, o_ref, acc_ref, *, activation):
    k = pl.program_id(2)

    @pl.when(k == 0)
    def _():
        acc_ref[...] = jnp.broadcast_to(b_ref[...], acc_ref.shape)

    acc_ref[...] += jnp.dot(x_ref[...], w_ref[...],
                            preferred_element_type=jnp.float32)

    @pl.when(k == pl.num_programs(2) - 1)
    def _():
        y = acc_ref[...]
        if activation == "relu":
            y = jnp.maximum(y, 0.0)
        o_ref[...] = y.astype(o_ref.dtype)


def linear(x2d, w, b, activation=None, out_dtype=None):
    """(M, K)bf16 @ (K, N)bf16 + (N,)f32 -> (M, N), tiled + pipelined."""
    M, K = x2d.shape
    N = w.shape[1]
    out_dtype = out_dtype or ACT_DT
    tm, tn, tk = _tile(M, 256), _tile(N, 256), _tile(K, 512)
    kernel = functools.partial(_linear_kernel, activation=activation)
    return pl.pallas_call(
        kernel,
        out_shape=jax.ShapeDtypeStruct((M, N), out_dtype),
        grid=(M // tm, N // tn, K // tk),
        in_specs=[
            pl.BlockSpec((tm, tk), lambda i, j, kk: (i, kk)),
            pl.BlockSpec((tk, tn), lambda i, j, kk: (kk, j)),
            pl.BlockSpec((1, tn), lambda i, j, kk: (0, j)),
        ],
        out_specs=pl.BlockSpec((tm, tn), lambda i, j, kk: (i, j)),
        scratch_shapes=[pltpu.VMEM((tm, tn), jnp.float32)],
        compiler_params=_cparams(("parallel", "parallel", "arbitrary")),
    )(x2d, w, b.reshape(1, N).astype(jnp.float32))


# ------------------------------ fused FFN ------------------------------------

def _ffn_kernel(x_ref, w1_ref, b1_ref, w2_ref, b2_ref, o_ref, acc_ref):
    j = pl.program_id(1)

    @pl.when(j == 0)
    def _():
        acc_ref[...] = jnp.broadcast_to(b2_ref[...], acc_ref.shape)

    h = jnp.dot(x_ref[...], w1_ref[...],
                preferred_element_type=jnp.float32) + b1_ref[...]
    h = jnp.maximum(h, 0.0).astype(x_ref.dtype)           # bf16 for 2nd MXU matmul
    acc_ref[...] += jnp.dot(h, w2_ref[...],
                            preferred_element_type=jnp.float32)

    @pl.when(j == pl.num_programs(1) - 1)
    def _():
        o_ref[...] = acc_ref[...].astype(o_ref.dtype)


def ffn(x, p):
    """relu(x @ W1 + b1) @ W2 + b2, hidden activation kept in VMEM only."""
    B, S, K = x.shape
    M = B * S
    H = p["ffn1_w"].shape[1]
    tm, th = _tile(M, 256), _tile(H, 512)
    out = pl.pallas_call(
        _ffn_kernel,
        out_shape=jax.ShapeDtypeStruct((M, K), ACT_DT),
        grid=(M // tm, H // th),
        in_specs=[
            pl.BlockSpec((tm, K), lambda i, j: (i, 0)),
            pl.BlockSpec((K, th), lambda i, j: (0, j)),
            pl.BlockSpec((1, th), lambda i, j: (0, j)),
            pl.BlockSpec((th, K), lambda i, j: (j, 0)),
            pl.BlockSpec((1, K), lambda i, j: (0, 0)),
        ],
        out_specs=pl.BlockSpec((tm, K), lambda i, j: (i, 0)),
        scratch_shapes=[pltpu.VMEM((tm, K), jnp.float32)],
        compiler_params=_cparams(("parallel", "arbitrary")),
    )(x.reshape(M, K), p["ffn1_w"], p["ffn1_b"].reshape(1, H),
      p["ffn2_w"], p["ffn2_b"].reshape(1, K))
    return out.reshape(B, S, K)


# ------------------------- fused residual + LayerNorm ------------------------

def _add_ln_kernel(x_ref, y_ref, g_ref, b_ref, o_ref):
    s = x_ref[...].astype(jnp.float32) + y_ref[...].astype(jnp.float32)
    mu = jnp.mean(s, axis=-1, keepdims=True)
    var = jnp.mean(jnp.square(s - mu), axis=-1, keepdims=True)
    out = (s - mu) * jax.lax.rsqrt(var + 1e-5) * g_ref[...] + b_ref[...]
    o_ref[...] = out.astype(o_ref.dtype)


def add_ln(x, y, gamma, beta):
    B, S, K = x.shape
    M = B * S
    tm = _tile(M, 256)
    out = pl.pallas_call(
        _add_ln_kernel,
        out_shape=jax.ShapeDtypeStruct((M, K), ACT_DT),
        grid=(M // tm,),
        in_specs=[
            pl.BlockSpec((tm, K), lambda i: (i, 0)),
            pl.BlockSpec((tm, K), lambda i: (i, 0)),
            pl.BlockSpec((1, K), lambda i: (0, 0)),
            pl.BlockSpec((1, K), lambda i: (0, 0)),
        ],
        out_specs=pl.BlockSpec((tm, K), lambda i: (i, 0)),
        compiler_params=_cparams(("parallel",)),
    )(x.reshape(M, K), y.reshape(M, K),
      gamma.reshape(1, K), beta.reshape(1, K))
    return out.reshape(B, S, K)


# ---------------------- flash attention (multi-head blocks) ------------------

def _flash_attn_kernel(q_ref, k_ref, v_ref, o_ref, m_sc, l_sc, acc_sc,
                       *, causal, scale, tks):
    j = pl.program_id(1)

    @pl.when(j == 0)
    def _():
        m_sc[...] = jnp.full_like(m_sc, -1e30)
        l_sc[...] = jnp.zeros_like(l_sc)
        acc_sc[...] = jnp.zeros_like(acc_sc)

    s = jnp.einsum("gqd,gkd->gqk", q_ref[...], k_ref[...],
                   preferred_element_type=jnp.float32) * scale
    if causal:
        G, Sq, Tk = s.shape
        row = jax.lax.broadcasted_iota(jnp.int32, (G, Sq, Tk), 1)
        col = jax.lax.broadcasted_iota(jnp.int32, (G, Sq, Tk), 2) + j * tks
        s = jnp.where(col <= row, s, -1e30)

    m_new = jnp.maximum(m_sc[...], jnp.max(s, axis=-1, keepdims=True))
    alpha = jnp.exp(m_sc[...] - m_new)
    p = jnp.exp(s - m_new)
    l_sc[...] = alpha * l_sc[...] + jnp.sum(p, axis=-1, keepdims=True)
    acc_sc[...] = alpha * acc_sc[...] + jnp.einsum(
        "gqk,gkd->gqd", p.astype(v_ref.dtype), v_ref[...],
        preferred_element_type=jnp.float32)
    m_sc[...] = m_new

    @pl.when(j == pl.num_programs(1) - 1)
    def _():
        inv = pl.reciprocal(l_sc[...], approx=True)
        o_ref[...] = (acc_sc[...] * inv).astype(o_ref.dtype)


def attention(q, k, v, causal):
    """q: (B*H, Sq, d), k/v: (B*H, Sk, d) -> (B*H, Sq, d). Flash-style."""
    BH, Sq, d = q.shape
    Sk = k.shape[1]
    G = _group(BH)
    tks = _tile(Sk, 512)
    kernel = functools.partial(_flash_attn_kernel, causal=causal,
                               scale=1.0 / math.sqrt(d), tks=tks)
    return pl.pallas_call(
        kernel,
        out_shape=jax.ShapeDtypeStruct((BH, Sq, d), ACT_DT),
        grid=(BH // G, Sk // tks),
        in_specs=[
            pl.BlockSpec((G, Sq, d), lambda i, j: (i, 0, 0)),
            pl.BlockSpec((G, tks, d), lambda i, j: (i, j, 0)),
            pl.BlockSpec((G, tks, d), lambda i, j: (i, j, 0)),
        ],
        out_specs=pl.BlockSpec((G, Sq, d), lambda i, j: (i, 0, 0)),
        scratch_shapes=[pltpu.VMEM((G, Sq, 1), jnp.float32),
                        pltpu.VMEM((G, Sq, 1), jnp.float32),
                        pltpu.VMEM((G, Sq, d), jnp.float32)],
        compiler_params=_cparams(("parallel", "arbitrary")),
    )(q, k, v)


# ------------------ fused final projection + exact softmax -------------------

def _linear_softmax_kernel(x_ref, w_ref, b_ref, o_ref):
    # logits for the full vocab width of this row block (K is small, one dot).
    logits = jnp.dot(x_ref[...], w_ref[...],
                     preferred_element_type=jnp.float32) + b_ref[...]
    m = jnp.max(logits, axis=-1, keepdims=True)
    e = jnp.exp(logits - m)
    denom = jnp.sum(e, axis=-1, keepdims=True)
    o_ref[...] = (e / denom).astype(o_ref.dtype)   # exact normalization


def linear_softmax(x2d, w, b):
    """Fused fc + row-softmax.  Grid over row blocks only: each output block is
    written exactly once and normalization is exact (no output revisits, no
    approximate reciprocal on the output path)."""
    # TODO(synk): for very large vocab (>~64K) tile the vocab axis and stream;
    # at vocab<=10K the full-width block fits comfortably in VMEM.
    M, K = x2d.shape
    N = w.shape[1]
    tm = _tile(M, 128)
    return pl.pallas_call(
        _linear_softmax_kernel,
        out_shape=jax.ShapeDtypeStruct((M, N), jnp.float32),
        grid=(M // tm,),
        in_specs=[
            pl.BlockSpec((tm, K), lambda i: (i, 0)),
            pl.BlockSpec((K, N), lambda i: (0, 0)),
            pl.BlockSpec((1, N), lambda i: (0, 0)),
        ],
        out_specs=pl.BlockSpec((tm, N), lambda i: (i, 0)),
        compiler_params=_cparams(("parallel",)),
    )(x2d, w, b.reshape(1, N).astype(jnp.float32))


# --------------------------- parameters (glue) --------------------------------

def _dense(key, fan_in, fan_out):
    w = (jax.random.normal(key, (fan_in, fan_out), jnp.float32) * 0.02).astype(WGT_DT)
    b = jnp.zeros((fan_out,), jnp.float32)
    return w, b


def _ln(k):
    return jnp.ones((k,), jnp.float32), jnp.zeros((k,), jnp.float32)


def _block_params(key, k, n, cross):
    ks = jax.random.split(key, 8)
    p = {}
    p["qkv_w"], p["qkv_b"] = _dense(ks[0], k, 3 * k)      # fused Q/K/V projection
    p["o_w"], p["o_b"] = _dense(ks[1], k, k)
    p["ln1_g"], p["ln1_b"] = _ln(k)
    p["ffn1_w"], p["ffn1_b"] = _dense(ks[2], k, n * k)
    p["ffn2_w"], p["ffn2_b"] = _dense(ks[3], n * k, k)
    p["ln2_g"], p["ln2_b"] = _ln(k)
    if cross:
        p["q_w"], p["q_b"] = _dense(ks[4], k, k)
        p["kv_w"], p["kv_b"] = _dense(ks[5], k, 2 * k)    # fused cross K/V
        p["co_w"], p["co_b"] = _dense(ks[6], k, k)
        p["ln3_g"], p["ln3_b"] = _ln(k)
    return p


def init_transformer_params(key, n, k, heads, vocab_size, layers):
    keys = jax.random.split(key, 2 * layers + 3)
    fc_w, fc_b = _dense(keys[2 + 2 * layers], k, vocab_size)
    return {
        "enc_emb": jax.random.normal(keys[0], (vocab_size, k), jnp.float32) * 0.02,
        "dec_emb": jax.random.normal(keys[1], (vocab_size, k), jnp.float32) * 0.02,
        "enc_layers": [_block_params(keys[2 + i], k, n, cross=False)
                       for i in range(layers)],
        "dec_layers": [_block_params(keys[2 + layers + i], k, n, cross=True)
                       for i in range(layers)],
        "fc_w": fc_w, "fc_b": fc_b,
    }


def sinusoidal_pos(seq_len, k):
    pos = jnp.arange(seq_len)[:, None].astype(jnp.float32)
    i = jnp.arange(k // 2)[None, :].astype(jnp.float32)
    angle = pos / jnp.power(10000.0, 2.0 * i / k)
    pe = jnp.zeros((seq_len, k), jnp.float32)
    pe = pe.at[:, 0::2].set(jnp.sin(angle))
    pe = pe.at[:, 1::2].set(jnp.cos(angle))
    return pe


# ------------------------------ model forward ---------------------------------

def mha_self(x, p, heads, causal):
    B, S, K = x.shape
    d = K // heads
    qkv = linear(x.reshape(-1, K), p["qkv_w"], p["qkv_b"])          # (B*S, 3K)
    qkv = qkv.reshape(B, S, 3, heads, d).transpose(2, 0, 3, 1, 4)   # (3,B,H,S,d)
    q = qkv[0].reshape(B * heads, S, d)
    kk = qkv[1].reshape(B * heads, S, d)
    vv = qkv[2].reshape(B * heads, S, d)
    o = attention(q, kk, vv, causal=causal)
    o = o.reshape(B, heads, S, d).transpose(0, 2, 1, 3).reshape(B * S, K)
    return linear(o, p["o_w"], p["o_b"]).reshape(B, S, K)


def mha_cross(x_q, enc, p, heads):
    B, Sq, K = x_q.shape
    Sk = enc.shape[1]
    d = K // heads
    q = linear(x_q.reshape(-1, K), p["q_w"], p["q_b"])
    q = q.reshape(B, Sq, heads, d).transpose(0, 2, 1, 3).reshape(B * heads, Sq, d)
    kv = linear(enc.reshape(-1, K), p["kv_w"], p["kv_b"])           # (B*Sk, 2K)
    kv = kv.reshape(B, Sk, 2, heads, d).transpose(2, 0, 3, 1, 4)    # (2,B,H,Sk,d)
    kk = kv[0].reshape(B * heads, Sk, d)
    vv = kv[1].reshape(B * heads, Sk, d)
    o = attention(q, kk, vv, causal=False)
    o = o.reshape(B, heads, Sq, d).transpose(0, 2, 1, 3).reshape(B * Sq, K)
    return linear(o, p["co_w"], p["co_b"]).reshape(B, Sq, K)


def encoder_block(x, p, heads):
    x = add_ln(x, mha_self(x, p, heads, causal=False), p["ln1_g"], p["ln1_b"])
    x = add_ln(x, ffn(x, p), p["ln2_g"], p["ln2_b"])
    return x


def decoder_block(x, enc, p, heads):
    x = add_ln(x, mha_self(x, p, heads, causal=True), p["ln1_g"], p["ln1_b"])
    x = add_ln(x, mha_cross(x, enc, p, heads), p["ln3_g"], p["ln3_b"])
    x = add_ln(x, ffn(x, p), p["ln2_g"], p["ln2_b"])
    return x


def transformer_forward(params, inputs, outputs, *, heads):
    K = params["enc_emb"].shape[1]
    # Encoder (embedding gather + positional encoding are plain-JAX glue)
    x = (params["enc_emb"][inputs] + sinusoidal_pos(inputs.shape[1], K)[None]).astype(ACT_DT)
    for p in params["enc_layers"]:
        x = encoder_block(x, p, heads)
    enc_kv = x                   # encoder output serves as both key and value
    # Decoder
    y = (params["dec_emb"][outputs] + sinusoidal_pos(outputs.shape[1], K)[None]).astype(ACT_DT)
    for p in params["dec_layers"]:
        y = decoder_block(y, enc_kv, p, heads)
    # Final projection + fused exact softmax
    B, S, _ = y.shape
    out = linear_softmax(y.reshape(-1, K), params["fc_w"], params["fc_b"])
    return out.reshape(B, S, -1)


# --------------------------------- main ----------------------------------------

if __name__ == "__main__":
    # Small shapes consistent with the module's forward
    heads = 4
    b = 2
    sl1 = 16
    sl2 = 24
    vocab_size = 512
    k = 64
    n = 4          # FFN expansion factor
    layers = 2

    key = jax.random.PRNGKey(0)
    kp, ki, ko = jax.random.split(key, 3)
    params = init_transformer_params(kp, n, k, heads, vocab_size, layers)
    inputs = jax.random.randint(ki, (b, sl1), 1, vocab_size)
    outputs = jax.random.randint(ko, (b, sl2), 1, vocab_size)

    fwd = jax.jit(functools.partial(transformer_forward, heads=heads))
    out = fwd(params, inputs, outputs)
    out = jax.block_until_ready(out)

    assert out.shape == (b, sl2, vocab_size), out.shape
    row_sums = jax.block_until_ready(jnp.sum(out, axis=-1))
    assert bool(jnp.allclose(row_sums, 1.0, atol=2e-3)), "softmax rows must sum to 1"
    assert bool(jnp.all(jnp.isfinite(out))), "output must be finite"
    print("KERNEL_OK")
</pallas_src>

<mosaic_0001>
module attributes {stable_mosaic.version = 11 : i64} {
  func.func @_linear_kernel(%arg0: i32, %arg1: i32, %arg2: i32, %arg3: memref<48x64xbf16, #tpu.memory_space<vmem>>, %arg4: memref<64x192xbf16, #tpu.memory_space<vmem>>, %arg5: memref<1x192xf32, #tpu.memory_space<vmem>>, %arg6: memref<48x192xbf16, #tpu.memory_space<vmem>>, %arg7: memref<48x192xf32, #tpu.memory_space<vmem>>) attributes {dimension_semantics = [#tpu.dimension_semantics<parallel>, #tpu.dimension_semantics<parallel>, #tpu.dimension_semantics<arbitrary>], iteration_bounds = array<i64: 1, 1, 1>, scalar_prefetch = 0 : i64, scratch_operands = 1 : i64, tpu.core_type = #tpu.core_type<tc>, window_params = [{transform_indices = @transform_0, window_bounds = array<i64: 48, 64>}, {transform_indices = @transform_1, window_bounds = array<i64: 64, 192>}, {transform_indices = @transform_2, window_bounds = array<i64: 1, 192>}, {transform_indices = @transform_3, window_bounds = array<i64: 48, 192>}]} {
    %c0_i32 = arith.constant 0 : i32
    %0 = arith.cmpi eq, %arg2, %c0_i32 : i32
    %1 = arith.extui %0 : i1 to i32
    %c0_i32_0 = arith.constant 0 : i32
    %2 = arith.cmpi ne, %1, %c0_i32_0 : i32
    scf.if %2 {
      %c0_10 = arith.constant 0 : index
      %c0_11 = arith.constant 0 : index
      %12 = vector.load %arg5[%c0_10, %c0_11] : memref<1x192xf32, #tpu.memory_space<vmem>>, vector<1x192xf32>
      %13 = vector.shape_cast %12 : vector<1x192xf32> to vector<1x192xf32>
      %14 = vector.broadcast %13 : vector<1x192xf32> to vector<48x192xf32>
      %c0_12 = arith.constant 0 : index
      %c0_13 = arith.constant 0 : index
      %15 = vector.load %arg7[%c0_12, %c0_13] : memref<48x192xf32, #tpu.memory_space<vmem>>, vector<48x192xf32>
      tpu.vector_store %arg7[%c0_12, %c0_13], %14 {strides = array<i32>} : memref<48x192xf32, #tpu.memory_space<vmem>>, vector<48x192xf32>,
    } else {
    }
    %c0 = arith.constant 0 : index
    %c0_1 = arith.constant 0 : index
    %3 = vector.load %arg7[%c0, %c0_1] : memref<48x192xf32, #tpu.memory_space<vmem>>, vector<48x192xf32>
    %c0_2 = arith.constant 0 : index
    %c0_3 = arith.constant 0 : index
    %4 = vector.load %arg3[%c0_2, %c0_3] : memref<48x64xbf16, #tpu.memory_space<vmem>>, vector<48x64xbf16>
    %c0_4 = arith.constant 0 : index
    %c0_5 = arith.constant 0 : index
    %5 = vector.load %arg4[%c0_4, %c0_5] : memref<64x192xbf16, #tpu.memory_space<vmem>>, vector<64x192xbf16>
    %cst = arith.constant dense<0.000000e+00> : vector<48x192xf32>
    %6 = tpu.matmul %4, %5, %cst {dimension_numbers = #tpu.dot_dimension_numbers<[1], [0], [0], [1], [0, 0, 1, 1], [], []>} : vector<48x64xbf16>, vector<64x192xbf16>, vector<48x192xf32> -> vector<48x192xf32>
    %7 = arith.addf %3, %6 : vector<48x192xf32>
    %c0_6 = arith.constant 0 : index
    %c0_7 = arith.constant 0 : index
    %8 = vector.load %arg7[%c0_6, %c0_7] : memref<48x192xf32, #tpu.memory_space<vmem>>, vector<48x192xf32>
    tpu.vector_store %arg7[%c0_6, %c0_7], %7 {strides = array<i32>} : memref<48x192xf32, #tpu.memory_space<vmem>>, vector<48x192xf32>,
    %c0_i32_8 = arith.constant 0 : i32
    %9 = arith.cmpi eq, %arg2, %c0_i32_8 : i32
    %10 = arith.extui %9 : i1 to i32
    %c0_i32_9 = arith.constant 0 : i32
    %11 = arith.cmpi ne, %10, %c0_i32_9 : i32
    scf.if %11 {
      %c0_10 = arith.constant 0 : index
      %c0_11 = arith.constant 0 : index
      %12 = vector.load %arg7[%c0_10, %c0_11] : memref<48x192xf32, #tpu.memory_space<vmem>>, vector<48x192xf32>
      %13 = arith.truncf %12 : vector<48x192xf32> to vector<48x192xbf16>
      %c0_12 = arith.constant 0 : index
      %c0_13 = arith.constant 0 : index
      %14 = vector.load %arg6[%c0_12, %c0_13] : memref<48x192xbf16, #tpu.memory_space<vmem>>, vector<48x192xbf16>
      tpu.vector_store %arg6[%c0_12, %c0_13], %13 {strides = array<i32>} : memref<48x192xbf16, #tpu.memory_space<vmem>>, vector<48x192xbf16>,
    } else {
    }
    return
  }
  func.func @transform_0(%arg0: i32, %arg1: i32, %arg2: i32) -> (i32, i32) {
    %c0_i32 = arith.constant 0 : i32
    return %arg0, %arg2 : i32, i32
  }
  func.func @transform_1(%arg0: i32, %arg1: i32, %arg2: i32) -> (i32, i32) {
    %c0_i32 = arith.constant 0 : i32
    return %arg2, %arg1 : i32, i32
  }
  func.func @transform_2(%arg0: i32, %arg1: i32, %arg2: i32) -> (i32, i32) {
    %c0_i32 = arith.constant 0 : i32
    %c0_i32_0 = arith.constant 0 : i32
    return %c0_i32, %arg1 : i32, i32
  }
  func.func @transform_3(%arg0: i32, %arg1: i32, %arg2: i32) -> (i32, i32) {
    %c0_i32 = arith.constant 0 : i32
    return %arg0, %arg1 : i32, i32
  }
}

module attributes {stable_mosaic.version = 11 : i64} {
  func.func @_flash_attn_kernel(%arg0: i32, %arg1: i32, %arg2: memref<8x24x16xbf16, #tpu.memory_space<vmem>>, %arg3: memref<8x24x16xbf16, #tpu.memory_space<vmem>>, %arg4: memref<8x24x16xbf16, #tpu.memory_space<vmem>>, %arg5: memref<8x24x16xbf16, #tpu.memory_space<vmem>>, %arg6: memref<8x24x1xf32, #tpu.memory_space<vmem>>, %arg7: memref<8x24x1xf32, #tpu.memory_space<vmem>>, %arg8: memref<8x24x16xf32, #tpu.memory_space<vmem>>) attributes {dimension_semantics = [#tpu.dimension_semantics<parallel>, #tpu.dimension_semantics<arbitrary>], iteration_bounds = array<i64: 1, 1>, scalar_prefetch = 0 : i64, scratch_operands = 3 : i64, tpu.core_type = #tpu.core_type<tc>, window_params = [{transform_indices = @transform_0, window_bounds = array<i64: 8, 24, 16>}, {transform_indices = @transform_1, window_bounds = array<i64: 8, 24, 16>}, {transform_indices = @transform_2, window_bounds = array<i64: 8, 24, 16>}, {transform_indices = @transform_3, window_bounds = array<i64: 8, 24, 16>}]} {
    %c0_i32 = arith.constant 0 : i32
    %0 = arith.cmpi eq, %arg1, %c0_i32 : i32
    %1 = arith.extui %0 : i1 to i32
    %c0_i32_0 = arith.constant 0 : i32
    %2 = arith.cmpi ne, %1, %c0_i32_0 : i32
    scf.if %2 {
      %cst_37 = arith.constant -1.000000e+30 : f32
      %44 = vector.broadcast %cst_37 : f32 to vector<8x24x1xf32>
      %c0_38 = arith.constant 0 : index
      %c0_39 = arith.constant 0 : index
      %c0_40 = arith.constant 0 : index
      %45 = vector.load %arg6[%c0_38, %c0_39, %c0_40] : memref<8x24x1xf32, #tpu.memory_space<vmem>>, vector<8x24x1xf32>
      tpu.vector_store %arg6[%c0_38, %c0_39, %c0_40], %44 {strides = array<i32>} : memref<8x24x1xf32, #tpu.memory_space<vmem>>, vector<8x24x1xf32>,
      %cst_41 = arith.constant 0.000000e+00 : f32
      %46 = vector.broadcast %cst_41 : f32 to vector<8x24x1xf32>
      %c0_42 = arith.constant 0 : index
      %c0_43 = arith.constant 0 : index
      %c0_44 = arith.constant 0 : index
      %47 = vector.load %arg7[%c0_42, %c0_43, %c0_44] : memref<8x24x1xf32, #tpu.memory_space<vmem>>, vector<8x24x1xf32>
      tpu.vector_store %arg7[%c0_42, %c0_43, %c0_44], %46 {strides = array<i32>} : memref<8x24x1xf32, #tpu.memory_space<vmem>>, vector<8x24x1xf32>,
      %cst_45 = arith.constant 0.000000e+00 : f32
      %48 = vector.broadcast %cst_45 : f32 to vector<8x24x16xf32>
      %c0_46 = arith.constant 0 : index
      %c0_47 = arith.constant 0 : index
      %c0_48 = arith.constant 0 : index
      %49 = vector.load %arg8[%c0_46, %c0_47, %c0_48] : memref<8x24x16xf32, #tpu.memory_space<vmem>>, vector<8x24x16xf32>
      tpu.vector_store %arg8[%c0_46, %c0_47, %c0_48], %48 {strides = array<i32>} : memref<8x24x16xf32, #tpu.memory_space<vmem>>, vector<8x24x16xf32>,
    } else {
    }
    %c0 = arith.constant 0 : index
    %c0_1 = arith.constant 0 : index
    %c0_2 = arith.constant 0 : index
    %3 = vector.load %arg2[%c0, %c0_1, %c0_2] : memref<8x24x16xbf16, #tpu.memory_space<vmem>>, vector<8x24x16xbf16>
    %c0_3 = arith.constant 0 : index
    %c0_4 = arith.constant 0 : index
    %c0_5 = arith.constant 0 : index
    %4 = vector.load %arg3[%c0_3, %c0_4, %c0_5] : memref<8x24x16xbf16, #tpu.memory_space<vmem>>, vector<8x24x16xbf16>
    "tpu.trace_start"() <{level = 10 : i32, message = "gqd,gkd->gqk"}> : () -> ()
    %cst = arith.constant dense<0.000000e+00> : vector<8x24x24xf32>
    %5 = tpu.matmul %3, %4, %cst {dimension_numbers = #tpu.dot_dimension_numbers<[2], [2], [1], [1], [0, 0, 0, 1, 1, 1], [0], [0]>} : vector<8x24x16xbf16>, vector<8x24x16xbf16>, vector<8x24x24xf32> -> vector<8x24x24xf32>
    "tpu.trace_stop"() : () -> ()
    %cst_6 = arith.constant 2.500000e-01 : f32
    %6 = vector.broadcast %cst_6 : f32 to vector<8x24x24xf32>
    %7 = arith.mulf %5, %6 : vector<8x24x24xf32>
    %8 = tpu.iota {dimensions = array<i32: 1>} : vector<8x24x24xi32>
    %9 = tpu.iota {dimensions = array<i32: 2>} : vector<8x24x24xi32>
    %c24_i32 = arith.constant 24 : i32
    %10 = arith.muli %arg1, %c24_i32 : i32
    %11 = vector.broadcast %10 : i32 to vector<8x24x24xi32>
    %12 = arith.addi %9, %11 : vector<8x24x24xi32>
    %13 = arith.cmpi sle, %12, %8 : vector<8x24x24xi32>
    %cst_7 = arith.constant -1.000000e+30 : f32
    %14 = vector.broadcast %cst_7 : f32 to vector<8x24x24xf32>
    %15 = arith.select %13, %7, %14 : vector<8x24x24xi1>, vector<8x24x24xf32>
    %c0_8 = arith.constant 0 : index
    %c0_9 = arith.constant 0 : index
    %c0_10 = arith.constant 0 : index
    %16 = vector.load %arg6[%c0_8, %c0_9, %c0_10] : memref<8x24x1xf32, #tpu.memory_space<vmem>>, vector<8x24x1xf32>
    %cst_11 = arith.constant dense<0xFF800000> : vector<8x24xf32>
    %17 = vector.multi_reduction <maximumf>, %15, %cst_11 [2] : vector<8x24x24xf32> to vector<8x24xf32>
    %18 = vector.shape_cast %17 : vector<8x24xf32> to vector<8x24x1xf32>
    %19 = arith.maximumf %16, %18 : vector<8x24x1xf32>
    %c0_12 = arith.constant 0 : index
    %c0_13 = arith.constant 0 : index
    %c0_14 = arith.constant 0 : index
    %20 = vector.load %arg6[%c0_12, %c0_13, %c0_14] : memref<8x24x1xf32, #tpu.memory_space<vmem>>, vector<8x24x1xf32>
    %21 = arith.subf %20, %19 : vector<8x24x1xf32>
    %22 = math.exp %21 : vector<8x24x1xf32>
    %23 = vector.broadcast %19 : vector<8x24x1xf32> to vector<8x24x24xf32>
    %24 = arith.subf %15, %23 : vector<8x24x24xf32>
    %25 = math.exp %24 : vector<8x24x24xf32>
    %c0_15 = arith.constant 0 : index
    %c0_16 = arith.constant 0 : index
    %c0_17 = arith.constant 0 : index
    %26 = vector.load %arg7[%c0_15, %c0_16, %c0_17] : memref<8x24x1xf32, #tpu.memory_space<vmem>>, vector<8x24x1xf32>
    %27 = arith.mulf %22, %26 : vector<8x24x1xf32>
    %cst_18 = arith.constant dense<0.000000e+00> : vector<8x24xf32>
    %28 = vector.multi_reduction <add>, %25, %cst_18 [2] : vector<8x24x24xf32> to vector<8x24xf32>
    %29 = vector.shape_cast %28 : vector<8x24xf32> to vector<8x24x1xf32>
    %30 = arith.addf %27, %29 : vector<8x24x1xf32>
    %c0_19 = arith.constant 0 : index
    %c0_20 = arith.constant 0 : index
    %c0_21 = arith.constant 0 : index
    %31 = vector.load %arg7[%c0_19, %c0_20, %c0_21] : memref<8x24x1xf32, #tpu.memory_space<vmem>>, vector<8x24x1xf32>
    tpu.vector_store %arg7[%c0_19, %c0_20, %c0_21], %30 {strides = array<i32>} : memref<8x24x1xf32, #tpu.memory_space<vmem>>, vector<8x24x1xf32>,
    %c0_22 = arith.constant 0 : index
    %c0_23 = arith.constant 0 : index
    %c0_24 = arith.constant 0 : index
    %32 = vector.load %arg8[%c0_22, %c0_23, %c0_24] : memref<8x24x16xf32, #tpu.memory_space<vmem>>, vector<8x24x16xf32>
    %33 = vector.broadcast %22 : vector<8x24x1xf32> to vector<8x24x16xf32>
    %34 = arith.mulf %33, %32 : vector<8x24x16xf32>
    %35 = arith.truncf %25 : vector<8x24x24xf32> to vector<8x24x24xbf16>
    %c0_25 = arith.constant 0 : index
    %c0_26 = arith.constant 0 : index
    %c0_27 = arith.constant 0 : index
    %36 = vector.load %arg4[%c0_25, %c0_26, %c0_27] : memref<8x24x16xbf16, #tpu.memory_space<vmem>>, vector<8x24x16xbf16>
    "tpu.trace_start"() <{level = 10 : i32, message = "gqk,gkd->gqd"}> : () -> ()
    %cst_28 = arith.constant dense<0.000000e+00> : vector<8x24x16xf32>
    %37 = tpu.matmul %35, %36, %cst_28 {dimension_numbers = #tpu.dot_dimension_numbers<[2], [1], [1], [2], [0, 0, 0, 1, 1, 2], [0], [0]>} : vector<8x24x24xbf16>, vector<8x24x16xbf16>, vector<8x24x16xf32> -> vector<8x24x16xf32>
    "tpu.trace_stop"() : () -> ()
    %38 = arith.addf %34, %37 : vector<8x24x16xf32>
    %c0_29 = arith.constant 0 : index
    %c0_30 = arith.constant 0 : index
    %c0_31 = arith.constant 0 : index
    %39 = vector.load %arg8[%c0_29, %c0_30, %c0_31] : memref<8x24x16xf32, #tpu.memory_space<vmem>>, vector<8x24x16xf32>
    tpu.vector_store %arg8[%c0_29, %c0_30, %c0_31], %38 {strides = array<i32>} : memref<8x24x16xf32, #tpu.memory_space<vmem>>, vector<8x24x16xf32>,
    %c0_32 = arith.constant 0 : index
    %c0_33 = arith.constant 0 : index
    %c0_34 = arith.constant 0 : index
    %40 = vector.load %arg6[%c0_32, %c0_33, %c0_34] : memref<8x24x1xf32, #tpu.memory_space<vmem>>, vector<8x24x1xf32>
    tpu.vector_store %arg6[%c0_32, %c0_33, %c0_34], %19 {strides = array<i32>} : memref<8x24x1xf32, #tpu.memory_space<vmem>>, vector<8x24x1xf32>,
    %c0_i32_35 = arith.constant 0 : i32
    %41 = arith.cmpi eq, %arg1, %c0_i32_35 : i32
    %42 = arith.extui %41 : i1 to i32
    %c0_i32_36 = arith.constant 0 : i32
    %43 = arith.cmpi ne, %42, %c0_i32_36 : i32
    scf.if %43 {
      %c0_37 = arith.constant 0 : index
      %c0_38 = arith.constant 0 : index
      %c0_39 = arith.constant 0 : index
      %44 = vector.load %arg7[%c0_37, %c0_38, %c0_39] : memref<8x24x1xf32, #tpu.memory_space<vmem>>, vector<8x24x1xf32>
      %45 = tpu.reciprocal %44 {approx = true} : vector<8x24x1xf32> -> vector<8x24x1xf32>
      %c0_40 = arith.constant 0 : index
      %c0_41 = arith.constant 0 : index
      %c0_42 = arith.constant 0 : index
      %46 = vector.load %arg8[%c0_40, %c0_41, %c0_42] : memref<8x24x16xf32, #tpu.memory_space<vmem>>, vector<8x24x16xf32>
      %47 = vector.broadcast %45 : vector<8x24x1xf32> to vector<8x24x16xf32>
      %48 = arith.mulf %46, %47 : vector<8x24x16xf32>
      %49 = arith.truncf %48 : vector<8x24x16xf32> to vector<8x24x16xbf16>
      %c0_43 = arith.constant 0 : index
      %c0_44 = arith.constant 0 : index
      %c0_45 = arith.constant 0 : index
      %50 = vector.load %arg5[%c0_43, %c0_44, %c0_45] : memref<8x24x16xbf16, #tpu.memory_space<vmem>>, vector<8x24x16xbf16>
      tpu.vector_store %arg5[%c0_43, %c0_44, %c0_45], %49 {strides = array<i32>} : memref<8x24x16xbf16, #tpu.memory_space<vmem>>, vector<8x24x16xbf16>,
    } else {
    }
    return
  }
  func.func @transform_0(%arg0: i32, %arg1: i32) -> (i32, i32, i32) {
    %c0_i32 = arith.constant 0 : i32
    %c0_i32_0 = arith.constant 0 : i32
    %c0_i32_1 = arith.constant 0 : i32
    return %arg0, %c0_i32, %c0_i32_0 : i32, i32, i32
  }
  func.func @transform_1(%arg0: i32, %arg1: i32) -> (i32, i32, i32) {
    %c0_i32 = arith.constant 0 : i32
    %c0_i32_0 = arith.constant 0 : i32
    return %arg0, %arg1, %c0_i32 : i32, i32, i32
  }
  func.func @transform_2(%arg0: i32, %arg1: i32) -> (i32, i32, i32) {
    %c0_i32 = arith.constant 0 : i32
    %c0_i32_0 = arith.constant 0 : i32
    return %arg0, %arg1, %c0_i32 : i32, i32, i32
  }
  func.func @transform_3(%arg0: i32, %arg1: i32) -> (i32, i32, i32) {
    %c0_i32 = arith.constant 0 : i32
    %c0_i32_0 = arith.constant 0 : i32
    %c0_i32_1 = arith.constant 0 : i32
    return %arg0, %c0_i32, %c0_i32_0 : i32, i32, i32
  }
}

module attributes {stable_mosaic.version = 11 : i64} {
  func.func @_linear_kernel(%arg0: i32, %arg1: i32, %arg2: i32, %arg3: memref<48x64xbf16, #tpu.memory_space<vmem>>, %arg4: memref<64x64xbf16, #tpu.memory_space<vmem>>, %arg5: memref<1x64xf32, #tpu.memory_space<vmem>>, %arg6: memref<48x64xbf16, #tpu.memory_space<vmem>>, %arg7: memref<48x64xf32, #tpu.memory_space<vmem>>) attributes {dimension_semantics = [#tpu.dimension_semantics<parallel>, #tpu.dimension_semantics<parallel>, #tpu.dimension_semantics<arbitrary>], iteration_bounds = array<i64: 1, 1, 1>, scalar_prefetch = 0 : i64, scratch_operands = 1 : i64, tpu.core_type = #tpu.core_type<tc>, window_params = [{transform_indices = @transform_0, window_bounds = array<i64: 48, 64>}, {transform_indices = @transform_1, window_bounds = array<i64: 64, 64>}, {transform_indices = @transform_2, window_bounds = array<i64: 1, 64>}, {transform_indices = @transform_3, window_bounds = array<i64: 48, 64>}]} {
    %c0_i32 = arith.constant 0 : i32
    %0 = arith.cmpi eq, %arg2, %c0_i32 : i32
    %1 = arith.extui %0 : i1 to i32
    %c0_i32_0 = arith.constant 0 : i32
    %2 = arith.cmpi ne, %1, %c0_i32_0 : i32
    scf.if %2 {
      %c0_10 = arith.constant 0 : index
      %c0_11 = arith.constant 0 : index
      %12 = vector.load %arg5[%c0_10, %c0_11] : memref<1x64xf32, #tpu.memory_space<vmem>>, vector<1x64xf32>
      %13 = vector.shape_cast %12 : vector<1x64xf32> to vector<1x64xf32>
      %14 = vector.broadcast %13 : vector<1x64xf32> to vector<48x64xf32>
      %c0_12 = arith.constant 0 : index
      %c0_13 = arith.constant 0 : index
      %15 = vector.load %arg7[%c0_12, %c0_13] : memref<48x64xf32, #tpu.memory_space<vmem>>, vector<48x64xf32>
      tpu.vector_store %arg7[%c0_12, %c0_13], %14 {strides = array<i32>} : memref<48x64xf32, #tpu.memory_space<vmem>>, vector<48x64xf32>,
    } else {
    }
    %c0 = arith.constant 0 : index
    %c0_1 = arith.constant 0 : index
    %3 = vector.load %arg7[%c0, %c0_1] : memref<48x64xf32, #tpu.memory_space<vmem>>, vector<48x64xf32>
    %c0_2 = arith.constant 0 : index
    %c0_3 = arith.constant 0 : index
    %4 = vector.load %arg3[%c0_2, %c0_3] : memref<48x64xbf16, #tpu.memory_space<vmem>>, vector<48x64xbf16>
    %c0_4 = arith.constant 0 : index
    %c0_5 = arith.constant 0 : index
    %5 = vector.load %arg4[%c0_4, %c0_5] : memref<64x64xbf16, #tpu.memory_space<vmem>>, vector<64x64xbf16>
    %cst = arith.constant dense<0.000000e+00> : vector<48x64xf32>
    %6 = tpu.matmul %4, %5, %cst {dimension_numbers = #tpu.dot_dimension_numbers<[1], [0], [0], [1], [0, 0, 1, 1], [], []>} : vector<48x64xbf16>, vector<64x64xbf16>, vector<48x64xf32> -> vector<48x64xf32>
    %7 = arith.addf %3, %6 : vector<48x64xf32>
    %c0_6 = arith.constant 0 : index
    %c0_7 = arith.constant 0 : index
    %8 = vector.load %arg7[%c0_6, %c0_7] : memref<48x64xf32, #tpu.memory_space<vmem>>, vector<48x64xf32>
    tpu.vector_store %arg7[%c0_6, %c0_7], %7 {strides = array<i32>} : memref<48x64xf32, #tpu.memory_space<vmem>>, vector<48x64xf32>,
    %c0_i32_8 = arith.constant 0 : i32
    %9 = arith.cmpi eq, %arg2, %c0_i32_8 : i32
    %10 = arith.extui %9 : i1 to i32
    %c0_i32_9 = arith.constant 0 : i32
    %11 = arith.cmpi ne, %10, %c0_i32_9 : i32
    scf.if %11 {
      %c0_10 = arith.constant 0 : index
      %c0_11 = arith.constant 0 : index
      %12 = vector.load %arg7[%c0_10, %c0_11] : memref<48x64xf32, #tpu.memory_space<vmem>>, vector<48x64xf32>
      %13 = arith.truncf %12 : vector<48x64xf32> to vector<48x64xbf16>
      %c0_12 = arith.constant 0 : index
      %c0_13 = arith.constant 0 : index
      %14 = vector.load %arg6[%c0_12, %c0_13] : memref<48x64xbf16, #tpu.memory_space<vmem>>, vector<48x64xbf16>
      tpu.vector_store %arg6[%c0_12, %c0_13], %13 {strides = array<i32>} : memref<48x64xbf16, #tpu.memory_space<vmem>>, vector<48x64xbf16>,
    } else {
    }
    return
  }
  func.func @transform_0(%arg0: i32, %arg1: i32, %arg2: i32) -> (i32, i32) {
    %c0_i32 = arith.constant 0 : i32
    return %arg0, %arg2 : i32, i32
  }
  func.func @transform_1(%arg0: i32, %arg1: i32, %arg2: i32) -> (i32, i32) {
    %c0_i32 = arith.constant 0 : i32
    return %arg2, %arg1 : i32, i32
  }
  func.func @transform_2(%arg0: i32, %arg1: i32, %arg2: i32) -> (i32, i32) {
    %c0_i32 = arith.constant 0 : i32
    %c0_i32_0 = arith.constant 0 : i32
    return %c0_i32, %arg1 : i32, i32
  }
  func.func @transform_3(%arg0: i32, %arg1: i32, %arg2: i32) -> (i32, i32) {
    %c0_i32 = arith.constant 0 : i32
    return %arg0, %arg1 : i32, i32
  }
}

module attributes {stable_mosaic.version = 11 : i64} {
  func.func @_add_ln_kernel(%arg0: i32, %arg1: memref<48x64xbf16, #tpu.memory_space<vmem>>, %arg2: memref<48x64xbf16, #tpu.memory_space<vmem>>, %arg3: memref<1x64xf32, #tpu.memory_space<vmem>>, %arg4: memref<1x64xf32, #tpu.memory_space<vmem>>, %arg5: memref<48x64xbf16, #tpu.memory_space<vmem>>) attributes {dimension_semantics = [#tpu.dimension_semantics<parallel>], iteration_bounds = array<i64: 1>, scalar_prefetch = 0 : i64, scratch_operands = 0 : i64, tpu.core_type = #tpu.core_type<tc>, window_params = [{transform_indices = @transform_0, window_bounds = array<i64: 48, 64>}, {transform_indices = @transform_1, window_bounds = array<i64: 48, 64>}, {pipeline_mode = #tpu.pipeline_mode<synchronous>, transform_indices = @transform_2, window_bounds = array<i64: 1, 64>}, {pipeline_mode = #tpu.pipeline_mode<synchronous>, transform_indices = @transform_3, window_bounds = array<i64: 1, 64>}, {transform_indices = @transform_4, window_bounds = array<i64: 48, 64>}]} {
    %c0 = arith.constant 0 : index
    %c0_0 = arith.constant 0 : index
    %0 = vector.load %arg1[%c0, %c0_0] : memref<48x64xbf16, #tpu.memory_space<vmem>>, vector<48x64xbf16>
    %1 = arith.extf %0 : vector<48x64xbf16> to vector<48x64xf32>
    %c0_1 = arith.constant 0 : index
    %c0_2 = arith.constant 0 : index
    %2 = vector.load %arg2[%c0_1, %c0_2] : memref<48x64xbf16, #tpu.memory_space<vmem>>, vector<48x64xbf16>
    %3 = arith.extf %2 : vector<48x64xbf16> to vector<48x64xf32>
    %4 = arith.addf %1, %3 : vector<48x64xf32>
    %cst = arith.constant dense<0.000000e+00> : vector<48xf32>
    %5 = vector.multi_reduction <add>, %4, %cst [1] : vector<48x64xf32> to vector<48xf32>
    %6 = vector.shape_cast %5 : vector<48xf32> to vector<48x1xf32>
    %cst_3 = arith.constant 6.400000e+01 : f32
    %7 = vector.broadcast %cst_3 : f32 to vector<48x1xf32>
    %8 = arith.divf %6, %7 : vector<48x1xf32>
    %9 = vector.broadcast %8 : vector<48x1xf32> to vector<48x64xf32>
    %10 = arith.subf %4, %9 : vector<48x64xf32>
    %11 = arith.mulf %10, %10 : vector<48x64xf32>
    %cst_4 = arith.constant dense<0.000000e+00> : vector<48xf32>
    %12 = vector.multi_reduction <add>, %11, %cst_4 [1] : vector<48x64xf32> to vector<48xf32>
    %13 = vector.shape_cast %12 : vector<48xf32> to vector<48x1xf32>
    %cst_5 = arith.constant 6.400000e+01 : f32
    %14 = vector.broadcast %cst_5 : f32 to vector<48x1xf32>
    %15 = arith.divf %13, %14 : vector<48x1xf32>
    %16 = vector.broadcast %8 : vector<48x1xf32> to vector<48x64xf32>
    %17 = arith.subf %4, %16 : vector<48x64xf32>
    %cst_6 = arith.constant 9.99999974E-6 : f32
    %18 = vector.broadcast %cst_6 : f32 to vector<48x1xf32>
    %19 = arith.addf %15, %18 : vector<48x1xf32>
    %20 = math.rsqrt %19 : vector<48x1xf32>
    %21 = vector.broadcast %20 : vector<48x1xf32> to vector<48x64xf32>
    %22 = arith.mulf %17, %21 : vector<48x64xf32>
    %c0_7 = arith.constant 0 : index
    %c0_8 = arith.constant 0 : index
    %23 = vector.load %arg3[%c0_7, %c0_8] : memref<1x64xf32, #tpu.memory_space<vmem>>, vector<1x64xf32>
    %24 = vector.broadcast %23 : vector<1x64xf32> to vector<48x64xf32>
    %25 = arith.mulf %22, %24 : vector<48x64xf32>
    %c0_9 = arith.constant 0 : index
    %c0_10 = arith.constant 0 : index
    %26 = vector.load %arg4[%c0_9, %c0_10] : memref<1x64xf32, #tpu.memory_space<vmem>>, vector<1x64xf32>
    %27 = vector.broadcast %26 : vector<1x64xf32> to vector<48x64xf32>
    %28 = arith.addf %25, %27 : vector<48x64xf32>
    %29 = arith.truncf %28 : vector<48x64xf32> to vector<48x64xbf16>
    %c0_11 = arith.constant 0 : index
    %c0_12 = arith.constant 0 : index
    %30 = vector.load %arg5[%c0_11, %c0_12] : memref<48x64xbf16, #tpu.memory_space<vmem>>, vector<48x64xbf16>
    tpu.vector_store %arg5[%c0_11, %c0_12], %29 {strides = array<i32>} : memref<48x64xbf16, #tpu.memory_space<vmem>>, vector<48x64xbf16>,
    return
  }
  func.func @transform_0(%arg0: i32) -> (i32, i32) {
    %c0_i32 = arith.constant 0 : i32
    %c0_i32_0 = arith.constant 0 : i32
    return %arg0, %c0_i32 : i32, i32
  }
  func.func @transform_1(%arg0: i32) -> (i32, i32) {
    %c0_i32 = arith.constant 0 : i32
    %c0_i32_0 = arith.constant 0 : i32
    return %arg0, %c0_i32 : i32, i32
  }
  func.func @transform_2(%arg0: i32) -> (i32, i32) {
    %c0_i32 = arith.constant 0 : i32
    %c0_i32_0 = arith.constant 0 : i32
    %c0_i32_1 = arith.constant 0 : i32
    return %c0_i32, %c0_i32_0 : i32, i32
  }
  func.func @transform_3(%arg0: i32) -> (i32, i32) {
    %c0_i32 = arith.constant 0 : i32
    %c0_i32_0 = arith.constant 0 : i32
    %c0_i32_1 = arith.constant 0 : i32
    return %c0_i32, %c0_i32_0 : i32, i32
  }
  func.func @transform_4(%arg0: i32) -> (i32, i32) {
    %c0_i32 = arith.constant 0 : i32
    %c0_i32_0 = arith.constant 0 : i32
    return %arg0, %c0_i32 : i32, i32
  }
}

module attributes {stable_mosaic.version = 11 : i64} {
  func.func @_linear_kernel(%arg0: i32, %arg1: i32, %arg2: i32, %arg3: memref<32x64xbf16, #tpu.memory_space<vmem>>, %arg4: memref<64x192xbf16, #tpu.memory_space<vmem>>, %arg5: memref<1x192xf32, #tpu.memory_space<vmem>>, %arg6: memref<32x192xbf16, #tpu.memory_space<vmem>>, %arg7: memref<32x192xf32, #tpu.memory_space<vmem>>) attributes {dimension_semantics = [#tpu.dimension_semantics<parallel>, #tpu.dimension_semantics<parallel>, #tpu.dimension_semantics<arbitrary>], iteration_bounds = array<i64: 1, 1, 1>, scalar_prefetch = 0 : i64, scratch_operands = 1 : i64, tpu.core_type = #tpu.core_type<tc>, window_params = [{transform_indices = @transform_0, window_bounds = array<i64: 32, 64>}, {transform_indices = @transform_1, window_bounds = array<i64: 64, 192>}, {transform_indices = @transform_2, window_bounds = array<i64: 1, 192>}, {transform_indices = @transform_3, window_bounds = array<i64: 32, 192>}]} {
    %c0_i32 = arith.constant 0 : i32
    %0 = arith.cmpi eq, %arg2, %c0_i32 : i32
    %1 = arith.extui %0 : i1 to i32
    %c0_i32_0 = arith.constant 0 : i32
    %2 = arith.cmpi ne, %1, %c0_i32_0 : i32
    scf.if %2 {
      %c0_10 = arith.constant 0 : index
      %c0_11 = arith.constant 0 : index
      %12 = vector.load %arg5[%c0_10, %c0_11] : memref<1x192xf32, #tpu.memory_space<vmem>>, vector<1x192xf32>
      %13 = vector.shape_cast %12 : vector<1x192xf32> to vector<1x192xf32>
      %14 = vector.broadcast %13 : vector<1x192xf32> to vector<32x192xf32>
      %c0_12 = arith.constant 0 : index
      %c0_13 = arith.constant 0 : index
      %15 = vector.load %arg7[%c0_12, %c0_13] : memref<32x192xf32, #tpu.memory_space<vmem>>, vector<32x192xf32>
      tpu.vector_store %arg7[%c0_12, %c0_13], %14 {strides = array<i32>} : memref<32x192xf32, #tpu.memory_space<vmem>>, vector<32x192xf32>,
    } else {
    }
    %c0 = arith.constant 0 : index
    %c0_1 = arith.constant 0 : index
    %3 = vector.load %arg7[%c0, %c0_1] : memref<32x192xf32, #tpu.memory_space<vmem>>, vector<32x192xf32>
    %c0_2 = arith.constant 0 : index
    %c0_3 = arith.constant 0 : index
    %4 = vector.load %arg3[%c0_2, %c0_3] : memref<32x64xbf16, #tpu.memory_space<vmem>>, vector<32x64xbf16>
    %c0_4 = arith.constant 0 : index
    %c0_5 = arith.constant 0 : index
    %5 = vector.load %arg4[%c0_4, %c0_5] : memref<64x192xbf16, #tpu.memory_space<vmem>>, vector<64x192xbf16>
    %cst = arith.constant dense<0.000000e+00> : vector<32x192xf32>
    %6 = tpu.matmul %4, %5, %cst {dimension_numbers = #tpu.dot_dimension_numbers<[1], [0], [0], [1], [0, 0, 1, 1], [], []>} : vector<32x64xbf16>, vector<64x192xbf16>, vector<32x192xf32> -> vector<32x192xf32>
    %7 = arith.addf %3, %6 : vector<32x192xf32>
    %c0_6 = arith.constant 0 : index
    %c0_7 = arith.constant 0 : index
    %8 = vector.load %arg7[%c0_6, %c0_7] : memref<32x192xf32, #tpu.memory_space<vmem>>, vector<32x192xf32>
    tpu.vector_store %arg7[%c0_6, %c0_7], %7 {strides = array<i32>} : memref<32x192xf32, #tpu.memory_space<vmem>>, vector<32x192xf32>,
    %c0_i32_8 = arith.constant 0 : i32
    %9 = arith.cmpi eq, %arg2, %c0_i32_8 : i32
    %10 = arith.extui %9 : i1 to i32
    %c0_i32_9 = arith.constant 0 : i32
    %11 = arith.cmpi ne, %10, %c0_i32_9 : i32
    scf.if %11 {
      %c0_10 = arith.constant 0 : index
      %c0_11 = arith.constant 0 : index
      %12 = vector.load %arg7[%c0_10, %c0_11] : memref<32x192xf32, #tpu.memory_space<vmem>>, vector<32x192xf32>
      %13 = arith.truncf %12 : vector<32x192xf32> to vector<32x192xbf16>
      %c0_12 = arith.constant 0 : index
      %c0_13 = arith.constant 0 : index
      %14 = vector.load %arg6[%c0_12, %c0_13] : memref<32x192xbf16, #tpu.memory_space<vmem>>, vector<32x192xbf16>
      tpu.vector_store %arg6[%c0_12, %c0_13], %13 {strides = array<i32>} : memref<32x192xbf16, #tpu.memory_space<vmem>>, vector<32x192xbf16>,
    } else {
    }
    return
  }
  func.func @transform_0(%arg0: i32, %arg1: i32, %arg2: i32) -> (i32, i32) {
    %c0_i32 = arith.constant 0 : i32
    return %arg0, %arg2 : i32, i32
  }
  func.func @transform_1(%arg0: i32, %arg1: i32, %arg2: i32) -> (i32, i32) {
    %c0_i32 = arith.constant 0 : i32
    return %arg2, %arg1 : i32, i32
  }
  func.func @transform_2(%arg0: i32, %arg1: i32, %arg2: i32) -> (i32, i32) {
    %c0_i32 = arith.constant 0 : i32
    %c0_i32_0 = arith.constant 0 : i32
    return %c0_i32, %arg1 : i32, i32
  }
  func.func @transform_3(%arg0: i32, %arg1: i32, %arg2: i32) -> (i32, i32) {
    %c0_i32 = arith.constant 0 : i32
    return %arg0, %arg1 : i32, i32
  }
}

module attributes {stable_mosaic.version = 11 : i64} {
  func.func @_add_ln_kernel(%arg0: i32, %arg1: memref<32x64xbf16, #tpu.memory_space<vmem>>, %arg2: memref<32x64xbf16, #tpu.memory_space<vmem>>, %arg3: memref<1x64xf32, #tpu.memory_space<vmem>>, %arg4: memref<1x64xf32, #tpu.memory_space<vmem>>, %arg5: memref<32x64xbf16, #tpu.memory_space<vmem>>) attributes {dimension_semantics = [#tpu.dimension_semantics<parallel>], iteration_bounds = array<i64: 1>, scalar_prefetch = 0 : i64, scratch_operands = 0 : i64, tpu.core_type = #tpu.core_type<tc>, window_params = [{transform_indices = @transform_0, window_bounds = array<i64: 32, 64>}, {transform_indices = @transform_1, window_bounds = array<i64: 32, 64>}, {pipeline_mode = #tpu.pipeline_mode<synchronous>, transform_indices = @transform_2, window_bounds = array<i64: 1, 64>}, {pipeline_mode = #tpu.pipeline_mode<synchronous>, transform_indices = @transform_3, window_bounds = array<i64: 1, 64>}, {transform_indices = @transform_4, window_bounds = array<i64: 32, 64>}]} {
    %c0 = arith.constant 0 : index
    %c0_0 = arith.constant 0 : index
    %0 = vector.load %arg1[%c0, %c0_0] : memref<32x64xbf16, #tpu.memory_space<vmem>>, vector<32x64xbf16>
    %1 = arith.extf %0 : vector<32x64xbf16> to vector<32x64xf32>
    %c0_1 = arith.constant 0 : index
    %c0_2 = arith.constant 0 : index
    %2 = vector.load %arg2[%c0_1, %c0_2] : memref<32x64xbf16, #tpu.memory_space<vmem>>, vector<32x64xbf16>
    %3 = arith.extf %2 : vector<32x64xbf16> to vector<32x64xf32>
    %4 = arith.addf %1, %3 : vector<32x64xf32>
    %cst = arith.constant dense<0.000000e+00> : vector<32xf32>
    %5 = vector.multi_reduction <add>, %4, %cst [1] : vector<32x64xf32> to vector<32xf32>
    %6 = vector.shape_cast %5 : vector<32xf32> to vector<32x1xf32>
    %cst_3 = arith.constant 6.400000e+01 : f32
    %7 = vector.broadcast %cst_3 : f32 to vector<32x1xf32>
    %8 = arith.divf %6, %7 : vector<32x1xf32>
    %9 = vector.broadcast %8 : vector<32x1xf32> to vector<32x64xf32>
    %10 = arith.subf %4, %9 : vector<32x64xf32>
    %11 = arith.mulf %10, %10 : vector<32x64xf32>
    %cst_4 = arith.constant dense<0.000000e+00> : vector<32xf32>
    %12 = vector.multi_reduction <add>, %11, %cst_4 [1] : vector<32x64xf32> to vector<32xf32>
    %13 = vector.shape_cast %12 : vector<32xf32> to vector<32x1xf32>
    %cst_5 = arith.constant 6.400000e+01 : f32
    %14 = vector.broadcast %cst_5 : f32 to vector<32x1xf32>
    %15 = arith.divf %13, %14 : vector<32x1xf32>
    %16 = vector.broadcast %8 : vector<32x1xf32> to vector<32x64xf32>
    %17 = arith.subf %4, %16 : vector<32x64xf32>
    %cst_6 = arith.constant 9.99999974E-6 : f32
    %18 = vector.broadcast %cst_6 : f32 to vector<32x1xf32>
    %19 = arith.addf %15, %18 : vector<32x1xf32>
    %20 = math.rsqrt %19 : vector<32x1xf32>
    %21 = vector.broadcast %20 : vector<32x1xf32> to vector<32x64xf32>
    %22 = arith.mulf %17, %21 : vector<32x64xf32>
    %c0_7 = arith.constant 0 : index
    %c0_8 = arith.constant 0 : index
    %23 = vector.load %arg3[%c0_7, %c0_8] : memref<1x64xf32, #tpu.memory_space<vmem>>, vector<1x64xf32>
    %24 = vector.broadcast %23 : vector<1x64xf32> to vector<32x64xf32>
    %25 = arith.mulf %22, %24 : vector<32x64xf32>
    %c0_9 = arith.constant 0 : index
    %c0_10 = arith.constant 0 : index
    %26 = vector.load %arg4[%c0_9, %c0_10] : memref<1x64xf32, #tpu.memory_space<vmem>>, vector<1x64xf32>
    %27 = vector.broadcast %26 : vector<1x64xf32> to vector<32x64xf32>
    %28 = arith.addf %25, %27 : vector<32x64xf32>
    %29 = arith.truncf %28 : vector<32x64xf32> to vector<32x64xbf16>
    %c0_11 = arith.constant 0 : index
    %c0_12 = arith.constant 0 : index
    %30 = vector.load %arg5[%c0_11, %c0_12] : memref<32x64xbf16, #tpu.memory_space<vmem>>, vector<32x64xbf16>
    tpu.vector_store %arg5[%c0_11, %c0_12], %29 {strides = array<i32>} : memref<32x64xbf16, #tpu.memory_space<vmem>>, vector<32x64xbf16>,
    return
  }
  func.func @transform_0(%arg0: i32) -> (i32, i32) {
    %c0_i32 = arith.constant 0 : i32
    %c0_i32_0 = arith.constant 0 : i32
    return %arg0, %c0_i32 : i32, i32
  }
  func.func @transform_1(%arg0: i32) -> (i32, i32) {
    %c0_i32 = arith.constant 0 : i32
    %c0_i32_0 = arith.constant 0 : i32
    return %arg0, %c0_i32 : i32, i32
  }
  func.func @transform_2(%arg0: i32) -> (i32, i32) {
    %c0_i32 = arith.constant 0 : i32
    %c0_i32_0 = arith.constant 0 : i32
    %c0_i32_1 = arith.constant 0 : i32
    return %c0_i32, %c0_i32_0 : i32, i32
  }
  func.func @transform_3(%arg0: i32) -> (i32, i32) {
    %c0_i32 = arith.constant 0 : i32
    %c0_i32_0 = arith.constant 0 : i32
    %c0_i32_1 = arith.constant 0 : i32
    return %c0_i32, %c0_i32_0 : i32, i32
  }
  func.func @transform_4(%arg0: i32) -> (i32, i32) {
    %c0_i32 = arith.constant 0 : i32
    %c0_i32_0 = arith.constant 0 : i32
    return %arg0, %c0_i32 : i32, i32
  }
}

module attributes {stable_mosaic.version = 11 : i64} {
  func.func @_flash_attn_kernel(%arg0: i32, %arg1: i32, %arg2: memref<8x16x16xbf16, #tpu.memory_space<vmem>>, %arg3: memref<8x16x16xbf16, #tpu.memory_space<vmem>>, %arg4: memref<8x16x16xbf16, #tpu.memory_space<vmem>>, %arg5: memref<8x16x16xbf16, #tpu.memory_space<vmem>>, %arg6: memref<8x16x1xf32, #tpu.memory_space<vmem>>, %arg7: memref<8x16x1xf32, #tpu.memory_space<vmem>>, %arg8: memref<8x16x16xf32, #tpu.memory_space<vmem>>) attributes {dimension_semantics = [#tpu.dimension_semantics<parallel>, #tpu.dimension_semantics<arbitrary>], iteration_bounds = array<i64: 1, 1>, scalar_prefetch = 0 : i64, scratch_operands = 3 : i64, tpu.core_type = #tpu.core_type<tc>, window_params = [{transform_indices = @transform_0, window_bounds = array<i64: 8, 16, 16>}, {transform_indices = @transform_1, window_bounds = array<i64: 8, 16, 16>}, {transform_indices = @transform_2, window_bounds = array<i64: 8, 16, 16>}, {transform_indices = @transform_3, window_bounds = array<i64: 8, 16, 16>}]} {
    %c0_i32 = arith.constant 0 : i32
    %0 = arith.cmpi eq, %arg1, %c0_i32 : i32
    %1 = arith.extui %0 : i1 to i32
    %c0_i32_0 = arith.constant 0 : i32
    %2 = arith.cmpi ne, %1, %c0_i32_0 : i32
    scf.if %2 {
      %cst_36 = arith.constant -1.000000e+30 : f32
      %36 = vector.broadcast %cst_36 : f32 to vector<8x16x1xf32>
      %c0_37 = arith.constant 0 : index
      %c0_38 = arith.constant 0 : index
      %c0_39 = arith.constant 0 : index
      %37 = vector.load %arg6[%c0_37, %c0_38, %c0_39] : memref<8x16x1xf32, #tpu.memory_space<vmem>>, vector<8x16x1xf32>
      tpu.vector_store %arg6[%c0_37, %c0_38, %c0_39], %36 {strides = array<i32>} : memref<8x16x1xf32, #tpu.memory_space<vmem>>, vector<8x16x1xf32>,
      %cst_40 = arith.constant 0.000000e+00 : f32
      %38 = vector.broadcast %cst_40 : f32 to vector<8x16x1xf32>
      %c0_41 = arith.constant 0 : index
      %c0_42 = arith.constant 0 : index
      %c0_43 = arith.constant 0 : index
      %39 = vector.load %arg7[%c0_41, %c0_42, %c0_43] : memref<8x16x1xf32, #tpu.memory_space<vmem>>, vector<8x16x1xf32>
      tpu.vector_store %arg7[%c0_41, %c0_42, %c0_43], %38 {strides = array<i32>} : memref<8x16x1xf32, #tpu.memory_space<vmem>>, vector<8x16x1xf32>,
      %cst_44 = arith.constant 0.000000e+00 : f32
      %40 = vector.broadcast %cst_44 : f32 to vector<8x16x16xf32>
      %c0_45 = arith.constant 0 : index
      %c0_46 = arith.constant 0 : index
      %c0_47 = arith.constant 0 : index
      %41 = vector.load %arg8[%c0_45, %c0_46, %c0_47] : memref<8x16x16xf32, #tpu.memory_space<vmem>>, vector<8x16x16xf32>
      tpu.vector_store %arg8[%c0_45, %c0_46, %c0_47], %40 {strides = array<i32>} : memref<8x16x16xf32, #tpu.memory_space<vmem>>, vector<8x16x16xf32>,
    } else {
    }
    %c0 = arith.constant 0 : index
    %c0_1 = arith.constant 0 : index
    %c0_2 = arith.constant 0 : index
    %3 = vector.load %arg2[%c0, %c0_1, %c0_2] : memref<8x16x16xbf16, #tpu.memory_space<vmem>>, vector<8x16x16xbf16>
    %c0_3 = arith.constant 0 : index
    %c0_4 = arith.constant 0 : index
    %c0_5 = arith.constant 0 : index
    %4 = vector.load %arg3[%c0_3, %c0_4, %c0_5] : memref<8x16x16xbf16, #tpu.memory_space<vmem>>, vector<8x16x16xbf16>
    "tpu.trace_start"() <{level = 10 : i32, message = "gqd,gkd->gqk"}> : () -> ()
    %cst = arith.constant dense<0.000000e+00> : vector<8x16x16xf32>
    %5 = tpu.matmul %3, %4, %cst {dimension_numbers = #tpu.dot_dimension_numbers<[2], [2], [1], [1], [0, 0, 0, 1, 1, 1], [0], [0]>} : vector<8x16x16xbf16>, vector<8x16x16xbf16>, vector<8x16x16xf32> -> vector<8x16x16xf32>
    "tpu.trace_stop"() : () -> ()
    %cst_6 = arith.constant 2.500000e-01 : f32
    %6 = vector.broadcast %cst_6 : f32 to vector<8x16x16xf32>
    %7 = arith.mulf %5, %6 : vector<8x16x16xf32>
    %c0_7 = arith.constant 0 : index
    %c0_8 = arith.constant 0 : index
    %c0_9 = arith.constant 0 : index
    %8 = vector.load %arg6[%c0_7, %c0_8, %c0_9] : memref<8x16x1xf32, #tpu.memory_space<vmem>>, vector<8x16x1xf32>
    %cst_10 = arith.constant dense<0xFF800000> : vector<8x16xf32>
    %9 = vector.multi_reduction <maximumf>, %7, %cst_10 [2] : vector<8x16x16xf32> to vector<8x16xf32>
    %10 = vector.shape_cast %9 : vector<8x16xf32> to vector<8x16x1xf32>
    %11 = arith.maximumf %8, %10 : vector<8x16x1xf32>
    %c0_11 = arith.constant 0 : index
    %c0_12 = arith.constant 0 : index
    %c0_13 = arith.constant 0 : index
    %12 = vector.load %arg6[%c0_11, %c0_12, %c0_13] : memref<8x16x1xf32, #tpu.memory_space<vmem>>, vector<8x16x1xf32>
    %13 = arith.subf %12, %11 : vector<8x16x1xf32>
    %14 = math.exp %13 : vector<8x16x1xf32>
    %15 = vector.broadcast %11 : vector<8x16x1xf32> to vector<8x16x16xf32>
    %16 = arith.subf %7, %15 : vector<8x16x16xf32>
    %17 = math.exp %16 : vector<8x16x16xf32>
    %c0_14 = arith.constant 0 : index
    %c0_15 = arith.constant 0 : index
    %c0_16 = arith.constant 0 : index
    %18 = vector.load %arg7[%c0_14, %c0_15, %c0_16] : memref<8x16x1xf32, #tpu.memory_space<vmem>>, vector<8x16x1xf32>
    %19 = arith.mulf %14, %18 : vector<8x16x1xf32>
    %cst_17 = arith.constant dense<0.000000e+00> : vector<8x16xf32>
    %20 = vector.multi_reduction <add>, %17, %cst_17 [2] : vector<8x16x16xf32> to vector<8x16xf32>
    %21 = vector.shape_cast %20 : vector<8x16xf32> to vector<8x16x1xf32>
    %22 = arith.addf %19, %21 : vector<8x16x1xf32>
    %c0_18 = arith.constant 0 : index
    %c0_19 = arith.constant 0 : index
    %c0_20 = arith.constant 0 : index
    %23 = vector.load %arg7[%c0_18, %c0_19, %c0_20] : memref<8x16x1xf32, #tpu.memory_space<vmem>>, vector<8x16x1xf32>
    tpu.vector_store %arg7[%c0_18, %c0_19, %c0_20], %22 {strides = array<i32>} : memref<8x16x1xf32, #tpu.memory_space<vmem>>, vector<8x16x1xf32>,
    %c0_21 = arith.constant 0 : index
    %c0_22 = arith.constant 0 : index
    %c0_23 = arith.constant 0 : index
    %24 = vector.load %arg8[%c0_21, %c0_22, %c0_23] : memref<8x16x16xf32, #tpu.memory_space<vmem>>, vector<8x16x16xf32>
    %25 = vector.broadcast %14 : vector<8x16x1xf32> to vector<8x16x16xf32>
    %26 = arith.mulf %25, %24 : vector<8x16x16xf32>
    %27 = arith.truncf %17 : vector<8x16x16xf32> to vector<8x16x16xbf16>
    %c0_24 = arith.constant 0 : index
    %c0_25 = arith.constant 0 : index
    %c0_26 = arith.constant 0 : index
    %28 = vector.load %arg4[%c0_24, %c0_25, %c0_26] : memref<8x16x16xbf16, #tpu.memory_space<vmem>>, vector<8x16x16xbf16>
    "tpu.trace_start"() <{level = 10 : i32, message = "gqk,gkd->gqd"}> : () -> ()
    %cst_27 = arith.constant dense<0.000000e+00> : vector<8x16x16xf32>
    %29 = tpu.matmul %27, %28, %cst_27 {dimension_numbers = #tpu.dot_dimension_numbers<[2], [1], [1], [2], [0, 0, 0, 1, 1, 2], [0], [0]>} : vector<8x16x16xbf16>, vector<8x16x16xbf16>, vector<8x16x16xf32> -> vector<8x16x16xf32>
    "tpu.trace_stop"() : () -> ()
    %30 = arith.addf %26, %29 : vector<8x16x16xf32>
    %c0_28 = arith.constant 0 : index
    %c0_29 = arith.constant 0 : index
    %c0_30 = arith.constant 0 : index
    %31 = vector.load %arg8[%c0_28, %c0_29, %c0_30] : memref<8x16x16xf32, #tpu.memory_space<vmem>>, vector<8x16x16xf32>
    tpu.vector_store %arg8[%c0_28, %c0_29, %c0_30], %30 {strides = array<i32>} : memref<8x16x16xf32, #tpu.memory_space<vmem>>, vector<8x16x16xf32>,
    %c0_31 = arith.constant 0 : index
    %c0_32 = arith.constant 0 : index
    %c0_33 = arith.constant 0 : index
    %32 = vector.load %arg6[%c0_31, %c0_32, %c0_33] : memref<8x16x1xf32, #tpu.memory_space<vmem>>, vector<8x16x1xf32>
    tpu.vector_store %arg6[%c0_31, %c0_32, %c0_33], %11 {strides = array<i32>} : memref<8x16x1xf32, #tpu.memory_space<vmem>>, vector<8x16x1xf32>,
    %c0_i32_34 = arith.constant 0 : i32
    %33 = arith.cmpi eq, %arg1, %c0_i32_34 : i32
    %34 = arith.extui %33 : i1 to i32
    %c0_i32_35 = arith.constant 0 : i32
    %35 = arith.cmpi ne, %34, %c0_i32_35 : i32
    scf.if %35 {
      %c0_36 = arith.constant 0 : index
      %c0_37 = arith.constant 0 : index
      %c0_38 = arith.constant 0 : index
      %36 = vector.load %arg7[%c0_36, %c0_37, %c0_38] : memref<8x16x1xf32, #tpu.memory_space<vmem>>, vector<8x16x1xf32>
      %37 = tpu.reciprocal %36 {approx = true} : vector<8x16x1xf32> -> vector<8x16x1xf32>
      %c0_39 = arith.constant 0 : index
      %c0_40 = arith.constant 0 : index
      %c0_41 = arith.constant 0 : index
      %38 = vector.load %arg8[%c0_39, %c0_40, %c0_41] : memref<8x16x16xf32, #tpu.memory_space<vmem>>, vector<8x16x16xf32>
      %39 = vector.broadcast %37 : vector<8x16x1xf32> to vector<8x16x16xf32>
      %40 = arith.mulf %38, %39 : vector<8x16x16xf32>
      %41 = arith.truncf %40 : vector<8x16x16xf32> to vector<8x16x16xbf16>
      %c0_42 = arith.constant 0 : index
      %c0_43 = arith.constant 0 : index
      %c0_44 = arith.constant 0 : index
      %42 = vector.load %arg5[%c0_42, %c0_43, %c0_44] : memref<8x16x16xbf16, #tpu.memory_space<vmem>>, vector<8x16x16xbf16>
      tpu.vector_store %arg5[%c0_42, %c0_43, %c0_44], %41 {strides = array<i32>} : memref<8x16x16xbf16, #tpu.memory_space<vmem>>, vector<8x16x16xbf16>,
    } else {
    }
    return
  }
  func.func @transform_0(%arg0: i32, %arg1: i32) -> (i32, i32, i32) {
    %c0_i32 = arith.constant 0 : i32
    %c0_i32_0 = arith.constant 0 : i32
    %c0_i32_1 = arith.constant 0 : i32
    return %arg0, %c0_i32, %c0_i32_0 : i32, i32, i32
  }
  func.func @transform_1(%arg0: i32, %arg1: i32) -> (i32, i32, i32) {
    %c0_i32 = arith.constant 0 : i32
    %c0_i32_0 = arith.constant 0 : i32
    return %arg0, %arg1, %c0_i32 : i32, i32, i32
  }
  func.func @transform_2(%arg0: i32, %arg1: i32) -> (i32, i32, i32) {
    %c0_i32 = arith.constant 0 : i32
    %c0_i32_0 = arith.constant 0 : i32
    return %arg0, %arg1, %c0_i32 : i32, i32, i32
  }
  func.func @transform_3(%arg0: i32, %arg1: i32) -> (i32, i32, i32) {
    %c0_i32 = arith.constant 0 : i32
    %c0_i32_0 = arith.constant 0 : i32
    %c0_i32_1 = arith.constant 0 : i32
    return %arg0, %c0_i32, %c0_i32_0 : i32, i32, i32
  }
}

module attributes {stable_mosaic.version = 11 : i64} {
  func.func @_linear_kernel(%arg0: i32, %arg1: i32, %arg2: i32, %arg3: memref<32x64xbf16, #tpu.memory_space<vmem>>, %arg4: memref<64x64xbf16, #tpu.memory_space<vmem>>, %arg5: memref<1x64xf32, #tpu.memory_space<vmem>>, %arg6: memref<32x64xbf16, #tpu.memory_space<vmem>>, %arg7: memref<32x64xf32, #tpu.memory_space<vmem>>) attributes {dimension_semantics = [#tpu.dimension_semantics<parallel>, #tpu.dimension_semantics<parallel>, #tpu.dimension_semantics<arbitrary>], iteration_bounds = array<i64: 1, 1, 1>, scalar_prefetch = 0 : i64, scratch_operands = 1 : i64, tpu.core_type = #tpu.core_type<tc>, window_params = [{transform_indices = @transform_0, window_bounds = array<i64: 32, 64>}, {transform_indices = @transform_1, window_bounds = array<i64: 64, 64>}, {transform_indices = @transform_2, window_bounds = array<i64: 1, 64>}, {transform_indices = @transform_3, window_bounds = array<i64: 32, 64>}]} {
    %c0_i32 = arith.constant 0 : i32
    %0 = arith.cmpi eq, %arg2, %c0_i32 : i32
    %1 = arith.extui %0 : i1 to i32
    %c0_i32_0 = arith.constant 0 : i32
    %2 = arith.cmpi ne, %1, %c0_i32_0 : i32
    scf.if %2 {
      %c0_10 = arith.constant 0 : index
      %c0_11 = arith.constant 0 : index
      %12 = vector.load %arg5[%c0_10, %c0_11] : memref<1x64xf32, #tpu.memory_space<vmem>>, vector<1x64xf32>
      %13 = vector.shape_cast %12 : vector<1x64xf32> to vector<1x64xf32>
      %14 = vector.broadcast %13 : vector<1x64xf32> to vector<32x64xf32>
      %c0_12 = arith.constant 0 : index
      %c0_13 = arith.constant 0 : index
      %15 = vector.load %arg7[%c0_12, %c0_13] : memref<32x64xf32, #tpu.memory_space<vmem>>, vector<32x64xf32>
      tpu.vector_store %arg7[%c0_12, %c0_13], %14 {strides = array<i32>} : memref<32x64xf32, #tpu.memory_space<vmem>>, vector<32x64xf32>,
    } else {
    }
    %c0 = arith.constant 0 : index
    %c0_1 = arith.constant 0 : index
    %3 = vector.load %arg7[%c0, %c0_1] : memref<32x64xf32, #tpu.memory_space<vmem>>, vector<32x64xf32>
    %c0_2 = arith.constant 0 : index
    %c0_3 = arith.constant 0 : index
    %4 = vector.load %arg3[%c0_2, %c0_3] : memref<32x64xbf16, #tpu.memory_space<vmem>>, vector<32x64xbf16>
    %c0_4 = arith.constant 0 : index
    %c0_5 = arith.constant 0 : index
    %5 = vector.load %arg4[%c0_4, %c0_5] : memref<64x64xbf16, #tpu.memory_space<vmem>>, vector<64x64xbf16>
    %cst = arith.constant dense<0.000000e+00> : vector<32x64xf32>
    %6 = tpu.matmul %4, %5, %cst {dimension_numbers = #tpu.dot_dimension_numbers<[1], [0], [0], [1], [0, 0, 1, 1], [], []>} : vector<32x64xbf16>, vector<64x64xbf16>, vector<32x64xf32> -> vector<32x64xf32>
    %7 = arith.addf %3, %6 : vector<32x64xf32>
    %c0_6 = arith.constant 0 : index
    %c0_7 = arith.constant 0 : index
    %8 = vector.load %arg7[%c0_6, %c0_7] : memref<32x64xf32, #tpu.memory_space<vmem>>, vector<32x64xf32>
    tpu.vector_store %arg7[%c0_6, %c0_7], %7 {strides = array<i32>} : memref<32x64xf32, #tpu.memory_space<vmem>>, vector<32x64xf32>,
    %c0_i32_8 = arith.constant 0 : i32
    %9 = arith.cmpi eq, %arg2, %c0_i32_8 : i32
    %10 = arith.extui %9 : i1 to i32
    %c0_i32_9 = arith.constant 0 : i32
    %11 = arith.cmpi ne, %10, %c0_i32_9 : i32
    scf.if %11 {
      %c0_10 = arith.constant 0 : index
      %c0_11 = arith.constant 0 : index
      %12 = vector.load %arg7[%c0_10, %c0_11] : memref<32x64xf32, #tpu.memory_space<vmem>>, vector<32x64xf32>
      %13 = arith.truncf %12 : vector<32x64xf32> to vector<32x64xbf16>
      %c0_12 = arith.constant 0 : index
      %c0_13 = arith.constant 0 : index
      %14 = vector.load %arg6[%c0_12, %c0_13] : memref<32x64xbf16, #tpu.memory_space<vmem>>, vector<32x64xbf16>
      tpu.vector_store %arg6[%c0_12, %c0_13], %13 {strides = array<i32>} : memref<32x64xbf16, #tpu.memory_space<vmem>>, vector<32x64xbf16>,
    } else {
    }
    return
  }
  func.func @transform_0(%arg0: i32, %arg1: i32, %arg2: i32) -> (i32, i32) {
    %c0_i32 = arith.constant 0 : i32
    return %arg0, %arg2 : i32, i32
  }
  func.func @transform_1(%arg0: i32, %arg1: i32, %arg2: i32) -> (i32, i32) {
    %c0_i32 = arith.constant 0 : i32
    return %arg2, %arg1 : i32, i32
  }
  func.func @transform_2(%arg0: i32, %arg1: i32, %arg2: i32) -> (i32, i32) {
    %c0_i32 = arith.constant 0 : i32
    %c0_i32_0 = arith.constant 0 : i32
    return %c0_i32, %arg1 : i32, i32
  }
  func.func @transform_3(%arg0: i32, %arg1: i32, %arg2: i32) -> (i32, i32) {
    %c0_i32 = arith.constant 0 : i32
    return %arg0, %arg1 : i32, i32
  }
}

module attributes {stable_mosaic.version = 11 : i64} {
  func.func @_ffn_kernel(%arg0: i32, %arg1: i32, %arg2: memref<32x64xbf16, #tpu.memory_space<vmem>>, %arg3: memref<64x256xbf16, #tpu.memory_space<vmem>>, %arg4: memref<1x256xf32, #tpu.memory_space<vmem>>, %arg5: memref<256x64xbf16, #tpu.memory_space<vmem>>, %arg6: memref<1x64xf32, #tpu.memory_space<vmem>>, %arg7: memref<32x64xbf16, #tpu.memory_space<vmem>>, %arg8: memref<32x64xf32, #tpu.memory_space<vmem>>) attributes {dimension_semantics = [#tpu.dimension_semantics<parallel>, #tpu.dimension_semantics<arbitrary>], iteration_bounds = array<i64: 1, 1>, scalar_prefetch = 0 : i64, scratch_operands = 1 : i64, tpu.core_type = #tpu.core_type<tc>, window_params = [{transform_indices = @transform_0, window_bounds = array<i64: 32, 64>}, {transform_indices = @transform_1, window_bounds = array<i64: 64, 256>}, {transform_indices = @transform_2, window_bounds = array<i64: 1, 256>}, {transform_indices = @transform_3, window_bounds = array<i64: 256, 64>}, {pipeline_mode = #tpu.pipeline_mode<synchronous>, transform_indices = @transform_4, window_bounds = array<i64: 1, 64>}, {transform_indices = @transform_5, window_bounds = array<i64: 32, 64>}]} {
    %c0_i32 = arith.constant 0 : i32
    %0 = arith.cmpi eq, %arg1, %c0_i32 : i32
    %1 = arith.extui %0 : i1 to i32
    %c0_i32_0 = arith.constant 0 : i32
    %2 = arith.cmpi ne, %1, %c0_i32_0 : i32
    scf.if %2 {
      %c0_16 = arith.constant 0 : index
      %c0_17 = arith.constant 0 : index
      %20 = vector.load %arg6[%c0_16, %c0_17] : memref<1x64xf32, #tpu.memory_space<vmem>>, vector<1x64xf32>
      %21 = vector.shape_cast %20 : vector<1x64xf32> to vector<1x64xf32>
      %22 = vector.broadcast %21 : vector<1x64xf32> to vector<32x64xf32>
      %c0_18 = arith.constant 0 : index
      %c0_19 = arith.constant 0 : index
      %23 = vector.load %arg8[%c0_18, %c0_19] : memref<32x64xf32, #tpu.memory_space<vmem>>, vector<32x64xf32>
      tpu.vector_store %arg8[%c0_18, %c0_19], %22 {strides = array<i32>} : memref<32x64xf32, #tpu.memory_space<vmem>>, vector<32x64xf32>,
    } else {
    }
    %c0 = arith.constant 0 : index
    %c0_1 = arith.constant 0 : index
    %3 = vector.load %arg2[%c0, %c0_1] : memref<32x64xbf16, #tpu.memory_space<vmem>>, vector<32x64xbf16>
    %c0_2 = arith.constant 0 : index
    %c0_3 = arith.constant 0 : index
    %4 = vector.load %arg3[%c0_2, %c0_3] : memref<64x256xbf16, #tpu.memory_space<vmem>>, vector<64x256xbf16>
    %cst = arith.constant dense<0.000000e+00> : vector<32x256xf32>
    %5 = tpu.matmul %3, %4, %cst {dimension_numbers = #tpu.dot_dimension_numbers<[1], [0], [0], [1], [0, 0, 1, 1], [], []>} : vector<32x64xbf16>, vector<64x256xbf16>, vector<32x256xf32> -> vector<32x256xf32>
    %c0_4 = arith.constant 0 : index
    %c0_5 = arith.constant 0 : index
    %6 = vector.load %arg4[%c0_4, %c0_5] : memref<1x256xf32, #tpu.memory_space<vmem>>, vector<1x256xf32>
    %7 = vector.broadcast %6 : vector<1x256xf32> to vector<32x256xf32>
    %8 = arith.addf %5, %7 : vector<32x256xf32>
    %cst_6 = arith.constant 0.000000e+00 : f32
    %9 = vector.broadcast %cst_6 : f32 to vector<32x256xf32>
    %10 = arith.maximumf %8, %9 : vector<32x256xf32>
    %11 = arith.truncf %10 : vector<32x256xf32> to vector<32x256xbf16>
    %c0_7 = arith.constant 0 : index
    %c0_8 = arith.constant 0 : index
    %12 = vector.load %arg8[%c0_7, %c0_8] : memref<32x64xf32, #tpu.memory_space<vmem>>, vector<32x64xf32>
    %c0_9 = arith.constant 0 : index
    %c0_10 = arith.constant 0 : index
    %13 = vector.load %arg5[%c0_9, %c0_10] : memref<256x64xbf16, #tpu.memory_space<vmem>>, vector<256x64xbf16>
    %cst_11 = arith.constant dense<0.000000e+00> : vector<32x64xf32>
    %14 = tpu.matmul %11, %13, %cst_11 {dimension_numbers = #tpu.dot_dimension_numbers<[1], [0], [0], [1], [0, 0, 1, 1], [], []>} : vector<32x256xbf16>, vector<256x64xbf16>, vector<32x64xf32> -> vector<32x64xf32>
    %15 = arith.addf %12, %14 : vector<32x64xf32>
    %c0_12 = arith.constant 0 : index
    %c0_13 = arith.constant 0 : index
    %16 = vector.load %arg8[%c0_12, %c0_13] : memref<32x64xf32, #tpu.memory_space<vmem>>, vector<32x64xf32>
    tpu.vector_store %arg8[%c0_12, %c0_13], %15 {strides = array<i32>} : memref<32x64xf32, #tpu.memory_space<vmem>>, vector<32x64xf32>,
    %c0_i32_14 = arith.constant 0 : i32
    %17 = arith.cmpi eq, %arg1, %c0_i32_14 : i32
    %18 = arith.extui %17 : i1 to i32
    %c0_i32_15 = arith.constant 0 : i32
    %19 = arith.cmpi ne, %18, %c0_i32_15 : i32
    scf.if %19 {
      %c0_16 = arith.constant 0 : index
      %c0_17 = arith.constant 0 : index
      %20 = vector.load %arg8[%c0_16, %c0_17] : memref<32x64xf32, #tpu.memory_space<vmem>>, vector<32x64xf32>
      %21 = arith.truncf %20 : vector<32x64xf32> to vector<32x64xbf16>
      %c0_18 = arith.constant 0 : index
      %c0_19 = arith.constant 0 : index
      %22 = vector.load %arg7[%c0_18, %c0_19] : memref<32x64xbf16, #tpu.memory_space<vmem>>, vector<32x64xbf16>
      tpu.vector_store %arg7[%c0_18, %c0_19], %21 {strides = array<i32>} : memref<32x64xbf16, #tpu.memory_space<vmem>>, vector<32x64xbf16>,
    } else {
    }
    return
  }
  func.func @transform_0(%arg0: i32, %arg1: i32) -> (i32, i32) {
    %c0_i32 = arith.constant 0 : i32
    %c0_i32_0 = arith.constant 0 : i32
    return %arg0, %c0_i32 : i32, i32
  }
  func.func @transform_1(%arg0: i32, %arg1: i32) -> (i32, i32) {
    %c0_i32 = arith.constant 0 : i32
    %c0_i32_0 = arith.constant 0 : i32
    return %c0_i32, %arg1 : i32, i32
  }
  func.func @transform_2(%arg0: i32, %arg1: i32) -> (i32, i32) {
    %c0_i32 = arith.constant 0 : i32
    %c0_i32_0 = arith.constant 0 : i32
    return %c0_i32, %arg1 : i32, i32
  }
  func.func @transform_3(%arg0: i32, %arg1: i32) -> (i32, i32) {
    %c0_i32 = arith.constant 0 : i32
    %c0_i32_0 = arith.constant 0 : i32
    return %arg1, %c0_i32 : i32, i32
  }
  func.func @transform_4(%arg0: i32, %arg1: i32) -> (i32, i32) {
    %c0_i32 = arith.constant 0 : i32
    %c0_i32_0 = arith.constant 0 : i32
    %c0_i32_1 = arith.constant 0 : i32
    return %c0_i32, %c0_i32_0 : i32, i32
  }
  func.func @transform_5(%arg0: i32, %arg1: i32) -> (i32, i32) {
    %c0_i32 = arith.constant 0 : i32
    %c0_i32_0 = arith.constant 0 : i32
    return %arg0, %c0_i32 : i32, i32
  }
}

module attributes {stable_mosaic.version = 11 : i64} {
  func.func @_linear_kernel(%arg0: i32, %arg1: i32, %arg2: i32, %arg3: memref<32x64xbf16, #tpu.memory_space<vmem>>, %arg4: memref<64x128xbf16, #tpu.memory_space<vmem>>, %arg5: memref<1x128xf32, #tpu.memory_space<vmem>>, %arg6: memref<32x128xbf16, #tpu.memory_space<vmem>>, %arg7: memref<32x128xf32, #tpu.memory_space<vmem>>) attributes {dimension_semantics = [#tpu.dimension_semantics<parallel>, #tpu.dimension_semantics<parallel>, #tpu.dimension_semantics<arbitrary>], iteration_bounds = array<i64: 1, 1, 1>, scalar_prefetch = 0 : i64, scratch_operands = 1 : i64, tpu.core_type = #tpu.core_type<tc>, window_params = [{transform_indices = @transform_0, window_bounds = array<i64: 32, 64>}, {transform_indices = @transform_1, window_bounds = array<i64: 64, 128>}, {transform_indices = @transform_2, window_bounds = array<i64: 1, 128>}, {transform_indices = @transform_3, window_bounds = array<i64: 32, 128>}]} {
    %c0_i32 = arith.constant 0 : i32
    %0 = arith.cmpi eq, %arg2, %c0_i32 : i32
    %1 = arith.extui %0 : i1 to i32
    %c0_i32_0 = arith.constant 0 : i32
    %2 = arith.cmpi ne, %1, %c0_i32_0 : i32
    scf.if %2 {
      %c0_10 = arith.constant 0 : index
      %c0_11 = arith.constant 0 : index
      %12 = vector.load %arg5[%c0_10, %c0_11] : memref<1x128xf32, #tpu.memory_space<vmem>>, vector<1x128xf32>
      %13 = vector.shape_cast %12 : vector<1x128xf32> to vector<1x128xf32>
      %14 = vector.broadcast %13 : vector<1x128xf32> to vector<32x128xf32>
      %c0_12 = arith.constant 0 : index
      %c0_13 = arith.constant 0 : index
      %15 = vector.load %arg7[%c0_12, %c0_13] : memref<32x128xf32, #tpu.memory_space<vmem>>, vector<32x128xf32>
      tpu.vector_store %arg7[%c0_12, %c0_13], %14 {strides = array<i32>} : memref<32x128xf32, #tpu.memory_space<vmem>>, vector<32x128xf32>,
    } else {
    }
    %c0 = arith.constant 0 : index
    %c0_1 = arith.constant 0 : index
    %3 = vector.load %arg7[%c0, %c0_1] : memref<32x128xf32, #tpu.memory_space<vmem>>, vector<32x128xf32>
    %c0_2 = arith.constant 0 : index
    %c0_3 = arith.constant 0 : index
    %4 = vector.load %arg3[%c0_2, %c0_3] : memref<32x64xbf16, #tpu.memory_space<vmem>>, vector<32x64xbf16>
    %c0_4 = arith.constant 0 : index
    %c0_5 = arith.constant 0 : index
    %5 = vector.load %arg4[%c0_4, %c0_5] : memref<64x128xbf16, #tpu.memory_space<vmem>>, vector<64x128xbf16>
    %cst = arith.constant dense<0.000000e+00> : vector<32x128xf32>
    %6 = tpu.matmul %4, %5, %cst {dimension_numbers = #tpu.dot_dimension_numbers<[1], [0], [0], [1], [0, 0, 1, 1], [], []>} : vector<32x64xbf16>, vector<64x128xbf16>, vector<32x128xf32> -> vector<32x128xf32>
    %7 = arith.addf %3, %6 : vector<32x128xf32>
    %c0_6 = arith.constant 0 : index
    %c0_7 = arith.constant 0 : index
    %8 = vector.load %arg7[%c0_6, %c0_7] : memref<32x128xf32, #tpu.memory_space<vmem>>, vector<32x128xf32>
    tpu.vector_store %arg7[%c0_6, %c0_7], %7 {strides = array<i32>} : memref<32x128xf32, #tpu.memory_space<vmem>>, vector<32x128xf32>,
    %c0_i32_8 = arith.constant 0 : i32
    %9 = arith.cmpi eq, %arg2, %c0_i32_8 : i32
    %10 = arith.extui %9 : i1 to i32
    %c0_i32_9 = arith.constant 0 : i32
    %11 = arith.cmpi ne, %10, %c0_i32_9 : i32
    scf.if %11 {
      %c0_10 = arith.constant 0 : index
      %c0_11 = arith.constant 0 : index
      %12 = vector.load %arg7[%c0_10, %c0_11] : memref<32x128xf32, #tpu.memory_space<vmem>>, vector<32x128xf32>
      %13 = arith.truncf %12 : vector<32x128xf32> to vector<32x128xbf16>
      %c0_12 = arith.constant 0 : index
      %c0_13 = arith.constant 0 : index
      %14 = vector.load %arg6[%c0_12, %c0_13] : memref<32x128xbf16, #tpu.memory_space<vmem>>, vector<32x128xbf16>
      tpu.vector_store %arg6[%c0_12, %c0_13], %13 {strides = array<i32>} : memref<32x128xbf16, #tpu.memory_space<vmem>>, vector<32x128xbf16>,
    } else {
    }
    return
  }
  func.func @transform_0(%arg0: i32, %arg1: i32, %arg2: i32) -> (i32, i32) {
    %c0_i32 = arith.constant 0 : i32
    return %arg0, %arg2 : i32, i32
  }
  func.func @transform_1(%arg0: i32, %arg1: i32, %arg2: i32) -> (i32, i32) {
    %c0_i32 = arith.constant 0 : i32
    return %arg2, %arg1 : i32, i32
  }
  func.func @transform_2(%arg0: i32, %arg1: i32, %arg2: i32) -> (i32, i32) {
    %c0_i32 = arith.constant 0 : i32
    %c0_i32_0 = arith.constant 0 : i32
    return %c0_i32, %arg1 : i32, i32
  }
  func.func @transform_3(%arg0: i32, %arg1: i32, %arg2: i32) -> (i32, i32) {
    %c0_i32 = arith.constant 0 : i32
    return %arg0, %arg1 : i32, i32
  }
}

module attributes {stable_mosaic.version = 11 : i64} {
  func.func @_linear_softmax_kernel(%arg0: i32, %arg1: memref<48x64xbf16, #tpu.memory_space<vmem>>, %arg2: memref<64x512xbf16, #tpu.memory_space<vmem>>, %arg3: memref<1x512xf32, #tpu.memory_space<vmem>>, %arg4: memref<48x512xf32, #tpu.memory_space<vmem>>) attributes {dimension_semantics = [#tpu.dimension_semantics<parallel>], iteration_bounds = array<i64: 1>, scalar_prefetch = 0 : i64, scratch_operands = 0 : i64, tpu.core_type = #tpu.core_type<tc>, window_params = [{transform_indices = @transform_0, window_bounds = array<i64: 48, 64>}, {pipeline_mode = #tpu.pipeline_mode<synchronous>, transform_indices = @transform_1, window_bounds = array<i64: 64, 512>}, {pipeline_mode = #tpu.pipeline_mode<synchronous>, transform_indices = @transform_2, window_bounds = array<i64: 1, 512>}, {transform_indices = @transform_3, window_bounds = array<i64: 48, 512>}]} {
    %c0 = arith.constant 0 : index
    %c0_0 = arith.constant 0 : index
    %0 = vector.load %arg1[%c0, %c0_0] : memref<48x64xbf16, #tpu.memory_space<vmem>>, vector<48x64xbf16>
    %c0_1 = arith.constant 0 : index
    %c0_2 = arith.constant 0 : index
    %1 = vector.load %arg2[%c0_1, %c0_2] : memref<64x512xbf16, #tpu.memory_space<vmem>>, vector<64x512xbf16>
    %cst = arith.constant dense<0.000000e+00> : vector<48x512xf32>
    %2 = tpu.matmul %0, %1, %cst {dimension_numbers = #tpu.dot_dimension_numbers<[1], [0], [0], [1], [0, 0, 1, 1], [], []>} : vector<48x64xbf16>, vector<64x512xbf16>, vector<48x512xf32> -> vector<48x512xf32>
    %c0_3 = arith.constant 0 : index
    %c0_4 = arith.constant 0 : index
    %3 = vector.load %arg3[%c0_3, %c0_4] : memref<1x512xf32, #tpu.memory_space<vmem>>, vector<1x512xf32>
    %4 = vector.broadcast %3 : vector<1x512xf32> to vector<48x512xf32>
    %5 = arith.addf %2, %4 : vector<48x512xf32>
    %cst_5 = arith.constant dense<0xFF800000> : vector<48xf32>
    %6 = vector.multi_reduction <maximumf>, %5, %cst_5 [1] : vector<48x512xf32> to vector<48xf32>
    %7 = vector.shape_cast %6 : vector<48xf32> to vector<48x1xf32>
    %8 = vector.broadcast %7 : vector<48x1xf32> to vector<48x512xf32>
    %9 = arith.subf %5, %8 : vector<48x512xf32>
    %10 = math.exp %9 : vector<48x512xf32>
    %cst_6 = arith.constant dense<0.000000e+00> : vector<48xf32>
    %11 = vector.multi_reduction <add>, %10, %cst_6 [1] : vector<48x512xf32> to vector<48xf32>
    %12 = vector.shape_cast %11 : vector<48xf32> to vector<48x1xf32>
    %13 = vector.broadcast %12 : vector<48x1xf32> to vector<48x512xf32>
    %14 = arith.divf %10, %13 : vector<48x512xf32>
    %c0_7 = arith.constant 0 : index
    %c0_8 = arith.constant 0 : index
    %15 = vector.load %arg4[%c0_7, %c0_8] : memref<48x512xf32, #tpu.memory_space<vmem>>, vector<48x512xf32>
    tpu.vector_store %arg4[%c0_7, %c0_8], %14 {strides = array<i32>} : memref<48x512xf32, #tpu.memory_space<vmem>>, vector<48x512xf32>,
    return
  }
  func.func @transform_0(%arg0: i32) -> (i32, i32) {
    %c0_i32 = arith.constant 0 : i32
    %c0_i32_0 = arith.constant 0 : i32
    return %arg0, %c0_i32 : i32, i32
  }
  func.func @transform_1(%arg0: i32) -> (i32, i32) {
    %c0_i32 = arith.constant 0 : i32
    %c0_i32_0 = arith.constant 0 : i32
    %c0_i32_1 = arith.constant 0 : i32
    return %c0_i32, %c0_i32_0 : i32, i32
  }
  func.func @transform_2(%arg0: i32) -> (i32, i32) {
    %c0_i32 = arith.constant 0 : i32
    %c0_i32_0 = arith.constant 0 : i32
    %c0_i32_1 = arith.constant 0 : i32
    return %c0_i32, %c0_i32_0 : i32, i32
  }
  func.func @transform_3(%arg0: i32) -> (i32, i32) {
    %c0_i32 = arith.constant 0 : i32
    %c0_i32_0 = arith.constant 0 : i32
    return %arg0, %c0_i32 : i32, i32
  }
}

module attributes {stable_mosaic.version = 11 : i64} {
  func.func @_ffn_kernel(%arg0: i32, %arg1: i32, %arg2: memref<48x64xbf16, #tpu.memory_space<vmem>>, %arg3: memref<64x256xbf16, #tpu.memory_space<vmem>>, %arg4: memref<1x256xf32, #tpu.memory_space<vmem>>, %arg5: memref<256x64xbf16, #tpu.memory_space<vmem>>, %arg6: memref<1x64xf32, #tpu.memory_space<vmem>>, %arg7: memref<48x64xbf16, #tpu.memory_space<vmem>>, %arg8: memref<48x64xf32, #tpu.memory_space<vmem>>) attributes {dimension_semantics = [#tpu.dimension_semantics<parallel>, #tpu.dimension_semantics<arbitrary>], iteration_bounds = array<i64: 1, 1>, scalar_prefetch = 0 : i64, scratch_operands = 1 : i64, tpu.core_type = #tpu.core_type<tc>, window_params = [{transform_indices = @transform_0, window_bounds = array<i64: 48, 64>}, {transform_indices = @transform_1, window_bounds = array<i64: 64, 256>}, {transform_indices = @transform_2, window_bounds = array<i64: 1, 256>}, {transform_indices = @transform_3, window_bounds = array<i64: 256, 64>}, {pipeline_mode = #tpu.pipeline_mode<synchronous>, transform_indices = @transform_4, window_bounds = array<i64: 1, 64>}, {transform_indices = @transform_5, window_bounds = array<i64: 48, 64>}]} {
    %c0_i32 = arith.constant 0 : i32
    %0 = arith.cmpi eq, %arg1, %c0_i32 : i32
    %1 = arith.extui %0 : i1 to i32
    %c0_i32_0 = arith.constant 0 : i32
    %2 = arith.cmpi ne, %1, %c0_i32_0 : i32
    scf.if %2 {
      %c0_16 = arith.constant 0 : index
      %c0_17 = arith.constant 0 : index
      %20 = vector.load %arg6[%c0_16, %c0_17] : memref<1x64xf32, #tpu.memory_space<vmem>>, vector<1x64xf32>
      %21 = vector.shape_cast %20 : vector<1x64xf32> to vector<1x64xf32>
      %22 = vector.broadcast %21 : vector<1x64xf32> to vector<48x64xf32>
      %c0_18 = arith.constant 0 : index
      %c0_19 = arith.constant 0 : index
      %23 = vector.load %arg8[%c0_18, %c0_19] : memref<48x64xf32, #tpu.memory_space<vmem>>, vector<48x64xf32>
      tpu.vector_store %arg8[%c0_18, %c0_19], %22 {strides = array<i32>} : memref<48x64xf32, #tpu.memory_space<vmem>>, vector<48x64xf32>,
    } else {
    }
    %c0 = arith.constant 0 : index
    %c0_1 = arith.constant 0 : index
    %3 = vector.load %arg2[%c0, %c0_1] : memref<48x64xbf16, #tpu.memory_space<vmem>>, vector<48x64xbf16>
    %c0_2 = arith.constant 0 : index
    %c0_3 = arith.constant 0 : index
    %4 = vector.load %arg3[%c0_2, %c0_3] : memref<64x256xbf16, #tpu.memory_space<vmem>>, vector<64x256xbf16>
    %cst = arith.constant dense<0.000000e+00> : vector<48x256xf32>
    %5 = tpu.matmul %3, %4, %cst {dimension_numbers = #tpu.dot_dimension_numbers<[1], [0], [0], [1], [0, 0, 1, 1], [], []>} : vector<48x64xbf16>, vector<64x256xbf16>, vector<48x256xf32> -> vector<48x256xf32>
    %c0_4 = arith.constant 0 : index
    %c0_5 = arith.constant 0 : index
    %6 = vector.load %arg4[%c0_4, %c0_5] : memref<1x256xf32, #tpu.memory_space<vmem>>, vector<1x256xf32>
    %7 = vector.broadcast %6 : vector<1x256xf32> to vector<48x256xf32>
    %8 = arith.addf %5, %7 : vector<48x256xf32>
    %cst_6 = arith.constant 0.000000e+00 : f32
    %9 = vector.broadcast %cst_6 : f32 to vector<48x256xf32>
    %10 = arith.maximumf %8, %9 : vector<48x256xf32>
    %11 = arith.truncf %10 : vector<48x256xf32> to vector<48x256xbf16>
    %c0_7 = arith.constant 0 : index
    %c0_8 = arith.constant 0 : index
    %12 = vector.load %arg8[%c0_7, %c0_8] : memref<48x64xf32, #tpu.memory_space<vmem>>, vector<48x64xf32>
    %c0_9 = arith.constant 0 : index
    %c0_10 = arith.constant 0 : index
    %13 = vector.load %arg5[%c0_9, %c0_10] : memref<256x64xbf16, #tpu.memory_space<vmem>>, vector<256x64xbf16>
    %cst_11 = arith.constant dense<0.000000e+00> : vector<48x64xf32>
    %14 = tpu.matmul %11, %13, %cst_11 {dimension_numbers = #tpu.dot_dimension_numbers<[1], [0], [0], [1], [0, 0, 1, 1], [], []>} : vector<48x256xbf16>, vector<256x64xbf16>, vector<48x64xf32> -> vector<48x64xf32>
    %15 = arith.addf %12, %14 : vector<48x64xf32>
    %c0_12 = arith.constant 0 : index
    %c0_13 = arith.constant 0 : index
    %16 = vector.load %arg8[%c0_12, %c0_13] : memref<48x64xf32, #tpu.memory_space<vmem>>, vector<48x64xf32>
    tpu.vector_store %arg8[%c0_12, %c0_13], %15 {strides = array<i32>} : memref<48x64xf32, #tpu.memory_space<vmem>>, vector<48x64xf32>,
    %c0_i32_14 = arith.constant 0 : i32
    %17 = arith.cmpi eq, %arg1, %c0_i32_14 : i32
    %18 = arith.extui %17 : i1 to i32
    %c0_i32_15 = arith.constant 0 : i32
    %19 = arith.cmpi ne, %18, %c0_i32_15 : i32
    scf.if %19 {
      %c0_16 = arith.constant 0 : index
      %c0_17 = arith.constant 0 : index
      %20 = vector.load %arg8[%c0_16, %c0_17] : memref<48x64xf32, #tpu.memory_space<vmem>>, vector<48x64xf32>
      %21 = arith.truncf %20 : vector<48x64xf32> to vector<48x64xbf16>
      %c0_18 = arith.constant 0 : index
      %c0_19 = arith.constant 0 : index
      %22 = vector.load %arg7[%c0_18, %c0_19] : memref<48x64xbf16, #tpu.memory_space<vmem>>, vector<48x64xbf16>
      tpu.vector_store %arg7[%c0_18, %c0_19], %21 {strides = array<i32>} : memref<48x64xbf16, #tpu.memory_space<vmem>>, vector<48x64xbf16>,
    } else {
    }
    return
  }
  func.func @transform_0(%arg0: i32, %arg1: i32) -> (i32, i32) {
    %c0_i32 = arith.constant 0 : i32
    %c0_i32_0 = arith.constant 0 : i32
    return %arg0, %c0_i32 : i32, i32
  }
  func.func @transform_1(%arg0: i32, %arg1: i32) -> (i32, i32) {
    %c0_i32 = arith.constant 0 : i32
    %c0_i32_0 = arith.constant 0 : i32
    return %c0_i32, %arg1 : i32, i32
  }
  func.func @transform_2(%arg0: i32, %arg1: i32) -> (i32, i32) {
    %c0_i32 = arith.constant 0 : i32
    %c0_i32_0 = arith.constant 0 : i32
    return %c0_i32, %arg1 : i32, i32
  }
  func.func @transform_3(%arg0: i32, %arg1: i32) -> (i32, i32) {
    %c0_i32 = arith.constant 0 : i32
    %c0_i32_0 = arith.constant 0 : i32
    return %arg1, %c0_i32 : i32, i32
  }
  func.func @transform_4(%arg0: i32, %arg1: i32) -> (i32, i32) {
    %c0_i32 = arith.constant 0 : i32
    %c0_i32_0 = arith.constant 0 : i32
    %c0_i32_1 = arith.constant 0 : i32
    return %c0_i32, %c0_i32_0 : i32, i32
  }
  func.func @transform_5(%arg0: i32, %arg1: i32) -> (i32, i32) {
    %c0_i32 = arith.constant 0 : i32
    %c0_i32_0 = arith.constant 0 : i32
    return %arg0, %c0_i32 : i32, i32
  }
}

module attributes {stable_mosaic.version = 11 : i64} {
  func.func @_flash_attn_kernel(%arg0: i32, %arg1: i32, %arg2: memref<8x24x16xbf16, #tpu.memory_space<vmem>>, %arg3: memref<8x16x16xbf16, #tpu.memory_space<vmem>>, %arg4: memref<8x16x16xbf16, #tpu.memory_space<vmem>>, %arg5: memref<8x24x16xbf16, #tpu.memory_space<vmem>>, %arg6: memref<8x24x1xf32, #tpu.memory_space<vmem>>, %arg7: memref<8x24x1xf32, #tpu.memory_space<vmem>>, %arg8: memref<8x24x16xf32, #tpu.memory_space<vmem>>) attributes {dimension_semantics = [#tpu.dimension_semantics<parallel>, #tpu.dimension_semantics<arbitrary>], iteration_bounds = array<i64: 1, 1>, scalar_prefetch = 0 : i64, scratch_operands = 3 : i64, tpu.core_type = #tpu.core_type<tc>, window_params = [{transform_indices = @transform_0, window_bounds = array<i64: 8, 24, 16>}, {transform_indices = @transform_1, window_bounds = array<i64: 8, 16, 16>}, {transform_indices = @transform_2, window_bounds = array<i64: 8, 16, 16>}, {transform_indices = @transform_3, window_bounds = array<i64: 8, 24, 16>}]} {
    %c0_i32 = arith.constant 0 : i32
    %0 = arith.cmpi eq, %arg1, %c0_i32 : i32
    %1 = arith.extui %0 : i1 to i32
    %c0_i32_0 = arith.constant 0 : i32
    %2 = arith.cmpi ne, %1, %c0_i32_0 : i32
    scf.if %2 {
      %cst_36 = arith.constant -1.000000e+30 : f32
      %36 = vector.broadcast %cst_36 : f32 to vector<8x24x1xf32>
      %c0_37 = arith.constant 0 : index
      %c0_38 = arith.constant 0 : index
      %c0_39 = arith.constant 0 : index
      %37 = vector.load %arg6[%c0_37, %c0_38, %c0_39] : memref<8x24x1xf32, #tpu.memory_space<vmem>>, vector<8x24x1xf32>
      tpu.vector_store %arg6[%c0_37, %c0_38, %c0_39], %36 {strides = array<i32>} : memref<8x24x1xf32, #tpu.memory_space<vmem>>, vector<8x24x1xf32>,
      %cst_40 = arith.constant 0.000000e+00 : f32
      %38 = vector.broadcast %cst_40 : f32 to vector<8x24x1xf32>
      %c0_41 = arith.constant 0 : index
      %c0_42 = arith.constant 0 : index
      %c0_43 = arith.constant 0 : index
      %39 = vector.load %arg7[%c0_41, %c0_42, %c0_43] : memref<8x24x1xf32, #tpu.memory_space<vmem>>, vector<8x24x1xf32>
      tpu.vector_store %arg7[%c0_41, %c0_42, %c0_43], %38 {strides = array<i32>} : memref<8x24x1xf32, #tpu.memory_space<vmem>>, vector<8x24x1xf32>,
      %cst_44 = arith.constant 0.000000e+00 : f32
      %40 = vector.broadcast %cst_44 : f32 to vector<8x24x16xf32>
      %c0_45 = arith.constant 0 : index
      %c0_46 = arith.constant 0 : index
      %c0_47 = arith.constant 0 : index
      %41 = vector.load %arg8[%c0_45, %c0_46, %c0_47] : memref<8x24x16xf32, #tpu.memory_space<vmem>>, vector<8x24x16xf32>
      tpu.vector_store %arg8[%c0_45, %c0_46, %c0_47], %40 {strides = array<i32>} : memref<8x24x16xf32, #tpu.memory_space<vmem>>, vector<8x24x16xf32>,
    } else {
    }
    %c0 = arith.constant 0 : index
    %c0_1 = arith.constant 0 : index
    %c0_2 = arith.constant 0 : index
    %3 = vector.load %arg2[%c0, %c0_1, %c0_2] : memref<8x24x16xbf16, #tpu.memory_space<vmem>>, vector<8x24x16xbf16>
    %c0_3 = arith.constant 0 : index
    %c0_4 = arith.constant 0 : index
    %c0_5 = arith.constant 0 : index
    %4 = vector.load %arg3[%c0_3, %c0_4, %c0_5] : memref<8x16x16xbf16, #tpu.memory_space<vmem>>, vector<8x16x16xbf16>
    "tpu.trace_start"() <{level = 10 : i32, message = "gqd,gkd->gqk"}> : () -> ()
    %cst = arith.constant dense<0.000000e+00> : vector<8x24x16xf32>
    %5 = tpu.matmul %3, %4, %cst {dimension_numbers = #tpu.dot_dimension_numbers<[2], [2], [1], [1], [0, 0, 0, 1, 1, 1], [0], [0]>} : vector<8x24x16xbf16>, vector<8x16x16xbf16>, vector<8x24x16xf32> -> vector<8x24x16xf32>
    "tpu.trace_stop"() : () -> ()
    %cst_6 = arith.constant 2.500000e-01 : f32
    %6 = vector.broadcast %cst_6 : f32 to vector<8x24x16xf32>
    %7 = arith.mulf %5, %6 : vector<8x24x16xf32>
    %c0_7 = arith.constant 0 : index
    %c0_8 = arith.constant 0 : index
    %c0_9 = arith.constant 0 : index
    %8 = vector.load %arg6[%c0_7, %c0_8, %c0_9] : memref<8x24x1xf32, #tpu.memory_space<vmem>>, vector<8x24x1xf32>
    %cst_10 = arith.constant dense<0xFF800000> : vector<8x24xf32>
    %9 = vector.multi_reduction <maximumf>, %7, %cst_10 [2] : vector<8x24x16xf32> to vector<8x24xf32>
    %10 = vector.shape_cast %9 : vector<8x24xf32> to vector<8x24x1xf32>
    %11 = arith.maximumf %8, %10 : vector<8x24x1xf32>
    %c0_11 = arith.constant 0 : index
    %c0_12 = arith.constant 0 : index
    %c0_13 = arith.constant 0 : index
    %12 = vector.load %arg6[%c0_11, %c0_12, %c0_13] : memref<8x24x1xf32, #tpu.memory_space<vmem>>, vector<8x24x1xf32>
    %13 = arith.subf %12, %11 : vector<8x24x1xf32>
    %14 = math.exp %13 : vector<8x24x1xf32>
    %15 = vector.broadcast %11 : vector<8x24x1xf32> to vector<8x24x16xf32>
    %16 = arith.subf %7, %15 : vector<8x24x16xf32>
    %17 = math.exp %16 : vector<8x24x16xf32>
    %c0_14 = arith.constant 0 : index
    %c0_15 = arith.constant 0 : index
    %c0_16 = arith.constant 0 : index
    %18 = vector.load %arg7[%c0_14, %c0_15, %c0_16] : memref<8x24x1xf32, #tpu.memory_space<vmem>>, vector<8x24x1xf32>
    %19 = arith.mulf %14, %18 : vector<8x24x1xf32>
    %cst_17 = arith.constant dense<0.000000e+00> : vector<8x24xf32>
    %20 = vector.multi_reduction <add>, %17, %cst_17 [2] : vector<8x24x16xf32> to vector<8x24xf32>
    %21 = vector.shape_cast %20 : vector<8x24xf32> to vector<8x24x1xf32>
    %22 = arith.addf %19, %21 : vector<8x24x1xf32>
    %c0_18 = arith.constant 0 : index
    %c0_19 = arith.constant 0 : index
    %c0_20 = arith.constant 0 : index
    %23 = vector.load %arg7[%c0_18, %c0_19, %c0_20] : memref<8x24x1xf32, #tpu.memory_space<vmem>>, vector<8x24x1xf32>
    tpu.vector_store %arg7[%c0_18, %c0_19, %c0_20], %22 {strides = array<i32>} : memref<8x24x1xf32, #tpu.memory_space<vmem>>, vector<8x24x1xf32>,
    %c0_21 = arith.constant 0 : index
    %c0_22 = arith.constant 0 : index
    %c0_23 = arith.constant 0 : index
    %24 = vector.load %arg8[%c0_21, %c0_22, %c0_23] : memref<8x24x16xf32, #tpu.memory_space<vmem>>, vector<8x24x16xf32>
    %25 = vector.broadcast %14 : vector<8x24x1xf32> to vector<8x24x16xf32>
    %26 = arith.mulf %25, %24 : vector<8x24x16xf32>
    %27 = arith.truncf %17 : vector<8x24x16xf32> to vector<8x24x16xbf16>
    %c0_24 = arith.constant 0 : index
    %c0_25 = arith.constant 0 : index
    %c0_26 = arith.constant 0 : index
    %28 = vector.load %arg4[%c0_24, %c0_25, %c0_26] : memref<8x16x16xbf16, #tpu.memory_space<vmem>>, vector<8x16x16xbf16>
    "tpu.trace_start"() <{level = 10 : i32, message = "gqk,gkd->gqd"}> : () -> ()
    %cst_27 = arith.constant dense<0.000000e+00> : vector<8x24x16xf32>
    %29 = tpu.matmul %27, %28, %cst_27 {dimension_numbers = #tpu.dot_dimension_numbers<[2], [1], [1], [2], [0, 0, 0, 1, 1, 2], [0], [0]>} : vector<8x24x16xbf16>, vector<8x16x16xbf16>, vector<8x24x16xf32> -> vector<8x24x16xf32>
    "tpu.trace_stop"() : () -> ()
    %30 = arith.addf %26, %29 : vector<8x24x16xf32>
    %c0_28 = arith.constant 0 : index
    %c0_29 = arith.constant 0 : index
    %c0_30 = arith.constant 0 : index
    %31 = vector.load %arg8[%c0_28, %c0_29, %c0_30] : memref<8x24x16xf32, #tpu.memory_space<vmem>>, vector<8x24x16xf32>
    tpu.vector_store %arg8[%c0_28, %c0_29, %c0_30], %30 {strides = array<i32>} : memref<8x24x16xf32, #tpu.memory_space<vmem>>, vector<8x24x16xf32>,
    %c0_31 = arith.constant 0 : index
    %c0_32 = arith.constant 0 : index
    %c0_33 = arith.constant 0 : index
    %32 = vector.load %arg6[%c0_31, %c0_32, %c0_33] : memref<8x24x1xf32, #tpu.memory_space<vmem>>, vector<8x24x1xf32>
    tpu.vector_store %arg6[%c0_31, %c0_32, %c0_33], %11 {strides = array<i32>} : memref<8x24x1xf32, #tpu.memory_space<vmem>>, vector<8x24x1xf32>,
    %c0_i32_34 = arith.constant 0 : i32
    %33 = arith.cmpi eq, %arg1, %c0_i32_34 : i32
    %34 = arith.extui %33 : i1 to i32
    %c0_i32_35 = arith.constant 0 : i32
    %35 = arith.cmpi ne, %34, %c0_i32_35 : i32
    scf.if %35 {
      %c0_36 = arith.constant 0 : index
      %c0_37 = arith.constant 0 : index
      %c0_38 = arith.constant 0 : index
      %36 = vector.load %arg7[%c0_36, %c0_37, %c0_38] : memref<8x24x1xf32, #tpu.memory_space<vmem>>, vector<8x24x1xf32>
      %37 = tpu.reciprocal %36 {approx = true} : vector<8x24x1xf32> -> vector<8x24x1xf32>
      %c0_39 = arith.constant 0 : index
      %c0_40 = arith.constant 0 : index
      %c0_41 = arith.constant 0 : index
      %38 = vector.load %arg8[%c0_39, %c0_40, %c0_41] : memref<8x24x16xf32, #tpu.memory_space<vmem>>, vector<8x24x16xf32>
      %39 = vector.broadcast %37 : vector<8x24x1xf32> to vector<8x24x16xf32>
      %40 = arith.mulf %38, %39 : vector<8x24x16xf32>
      %41 = arith.truncf %40 : vector<8x24x16xf32> to vector<8x24x16xbf16>
      %c0_42 = arith.constant 0 : index
      %c0_43 = arith.constant 0 : index
      %c0_44 = arith.constant 0 : index
      %42 = vector.load %arg5[%c0_42, %c0_43, %c0_44] : memref<8x24x16xbf16, #tpu.memory_space<vmem>>, vector<8x24x16xbf16>
      tpu.vector_store %arg5[%c0_42, %c0_43, %c0_44], %41 {strides = array<i32>} : memref<8x24x16xbf16, #tpu.memory_space<vmem>>, vector<8x24x16xbf16>,
    } else {
    }
    return
  }
  func.func @transform_0(%arg0: i32, %arg1: i32) -> (i32, i32, i32) {
    %c0_i32 = arith.constant 0 : i32
    %c0_i32_0 = arith.constant 0 : i32
    %c0_i32_1 = arith.constant 0 : i32
    return %arg0, %c0_i32, %c0_i32_0 : i32, i32, i32
  }
  func.func @transform_1(%arg0: i32, %arg1: i32) -> (i32, i32, i32) {
    %c0_i32 = arith.constant 0 : i32
    %c0_i32_0 = arith.constant 0 : i32
    return %arg0, %arg1, %c0_i32 : i32, i32, i32
  }
  func.func @transform_2(%arg0: i32, %arg1: i32) -> (i32, i32, i32) {
    %c0_i32 = arith.constant 0 : i32
    %c0_i32_0 = arith.constant 0 : i32
    return %arg0, %arg1, %c0_i32 : i32, i32, i32
  }
  func.func @transform_3(%arg0: i32, %arg1: i32) -> (i32, i32, i32) {
    %c0_i32 = arith.constant 0 : i32
    %c0_i32_0 = arith.constant 0 : i32
    %c0_i32_1 = arith.constant 0 : i32
    return %arg0, %c0_i32, %c0_i32_0 : i32, i32, i32
  }
}

</mosaic_0001>

<llo_original>
// kernel: transformer_forward.47
$region0: #{transformer_forward.47}
  #allocation0 [shape = 'u32[]', space=smem, size = 0x4, offset = 0x4, fixed_abs, tag = 'smem constant byte address 0x4 - core index']
  #allocation1 [shape = 'u32[72,128]{1,0:T(1,128)}', space=vmem, size = 0x9000, scoped, tag = 'internal scratch']
  #allocation2 [shape = 'f32[48,192]{1,0:T(8,128)}', space=vmem, size = 0xc000, scoped, tag = 'scratch operand']
  %s0 = inlined_call_operand.vmem [shape: bf16[48,64], index: 0, kind: input, shape index: {}]
  %s1 = inlined_call_operand.vmem [shape: bf16[64,192], index: 1, kind: input, shape index: {}]
  %s2 = inlined_call_operand.vmem [shape: f32[1,192], index: 2, kind: input, shape index: {}]
  %s3 = inlined_call_operand.vmem [shape: bf16[48,192], index: 3, kind: output, shape index: {}]
  %s4 = sld [smem:[#allocation0]]
  $region30: #{transformer_forward.47} parent=0
    _
  %s6 = ssub.s32 1, %s4
  %s7 = scalar_select 0, %s6, %s4
  // Predicated region
  $region2: #{transformer_forward.47} parent=0 // pred_check
    _
  $region3: #{transformer_forward.47} parent=0 // pred_check_branch
    %9 = sbr.rel (0) target = $region5
  $region4: #{transformer_forward.47} parent=0 // pred_region
    _
  $region5: #{transformer_forward.47} parent=0 // pred_fallthru
    _
  // Predicated region
  $region6: #{transformer_forward.47} parent=0 // pred_check
    _
  $region7: #{transformer_forward.47} parent=0 // pred_check_branch
    %11 = sbr.rel (0) target = $region9
  $region8: #{transformer_forward.47} parent=0 // pred_region
    _
  $region9: #{transformer_forward.47} parent=0 // pred_fallthru
    _
  // Predicated region
  $region10: #{transformer_forward.47} parent=0 // pred_check
    _
  $region11: #{transformer_forward.47} parent=0 // pred_check_branch
    %13 = sbr.rel (0) target = $region13
  $region12: #{transformer_forward.47} parent=0 // pred_region
    _
  $region13: #{transformer_forward.47} parent=0 // pred_fallthru
    _
  %p15 = scmp.eq.s32.totalorder 0, 0
  // Predicated region
  $region14: #{transformer_forward.47} parent=0 // pred_check
    %p16 = pneg %p15
  $region15: #{transformer_forward.47} parent=0 // pred_check_branch
    %18 = sbr.rel (%p16) target = $region17
  $region16: #{transformer_forward.47} parent=0 // pred_region
    %v19 = vld [vmem:[%s2] sm:$0x3]
    %v21 = vperm.slane %v19, 0
    %v22 = vperm.slane %v19, 1
    %25 = vst [vmem:[#allocation2] sm:$0xff] %v21
    %vm26 = vcmask 523264
    %27 = vst.msk [vmem:[#allocation2 + $0x8] sm:$0xff] %vm26, %v22
    %28 = vst [vmem:[#allocation2 + $0x10] sm:$0xff] %v21
    %29 = vst.msk [vmem:[#allocation2 + $0x18] sm:$0xff] %vm26, %v22
    %30 = vst [vmem:[#allocation2 + $0x20] sm:$0xff] %v21
    %31 = vst.msk [vmem:[#allocation2 + $0x28] sm:$0xff] %vm26, %v22
    %32 = vst [vmem:[#allocation2 + $0x30] sm:$0xff] %v21
    %33 = vst.msk [vmem:[#allocation2 + $0x38] sm:$0xff] %vm26, %v22
    %34 = vst [vmem:[#allocation2 + $0x40] sm:$0xff] %v21
    %35 = vst.msk [vmem:[#allocation2 + $0x48] sm:$0xff] %vm26, %v22
    %36 = vst [vmem:[#allocation2 + $0x50] sm:$0xff] %v21
    %37 = vst.msk [vmem:[#allocation2 + $0x58] sm:$0xff] %vm26, %v22
  $region17: #{transformer_forward.47} parent=0 // pred_fallthru
    _
  %v38 = vld [vmem:[#allocation2] sm:$0xff]
  %v39 = vld [vmem:[#allocation2 + $0x8] sm:$0xff]
  %v40 = vld [vmem:[#allocation2 + $0x10] sm:$0xff]
  %v41 = vld [vmem:[#allocation2 + $0x18] sm:$0xff]
  %v42 = vld [vmem:[#allocation2 + $0x20] sm:$0xff]
  %v43 = vld [vmem:[#allocation2 + $0x28] sm:$0xff]
  %v44 = vld [vmem:[#allocation2 + $0x30] sm:$0xff]
  %v45 = vld [vmem:[#allocation2 + $0x38] sm:$0xff]
  %v46 = vld [vmem:[#allocation2 + $0x40] sm:$0xff]
  %v47 = vld [vmem:[#allocation2 + $0x48] sm:$0xff]
  %v48 = vld [vmem:[#allocation2 + $0x50] sm:$0xff]
  %v49 = vld [vmem:[#allocation2 + $0x58] sm:$0xff]
  %v50 = vld [vmem:[%s0] sm:$0xf]
  %v51 = vld [vmem:[%s0 + $0x4] sm:$0xf]
  %v52 = vld [vmem:[%s0 + $0x8] sm:$0xf]
  %v53 = vld [vmem:[%s0 + $0xc] sm:$0xf]
  %v54 = vld [vmem:[%s0 + $0x10] sm:$0xf]
  %v55 = vld [vmem:[%s0 + $0x14] sm:$0xf]
  %v56 = vld [vmem:[%s1] sm:$0xff]
  %v57 = vld [vmem:[%s1 + $0x8] sm:$0xff]
  %v58 = vld [vmem:[%s1 + $0x10] sm:$0xff]
  %v59 = vld [vmem:[%s1 + $0x18] sm:$0xff]
  %v60 = vld [vmem:[%s1 + $0x20] sm:$0xff]
  %v61 = vld [vmem:[%s1 + $0x28] sm:$0xff]
  %v62 = vld [vmem:[%s1 + $0x30] sm:$0xff]
  %v63 = vld [vmem:[%s1 + $0x38] sm:$0xff]
  %v70 = vunpack.c.l.b16 %v50
  %v71 = vunpack.c.l.b16 %v51
  %v72 = vunpack.c.l.b16 %v52
  %v73 = vunpack.c.l.b16 %v53
  %v74 = vunpack.c.l.b16 %v54
  %v75 = vunpack.c.l.b16 %v55
  %v76 = vpack.c.b16 %v71, %v70
  %v77 = vpack.c.b16 %v73, %v72
  %v78 = vpack.c.b16 %v75, %v74
  %v87 = vunpack.c.l.b16 %v56
  %v88 = vunpack.c.h.b16 %v56
  %v89 = vunpack.c.l.b16 %v57
  %v90 = vunpack.c.h.b16 %v57
  %v91 = vunpack.c.l.b16 %v58
  %v92 = vunpack.c.h.b16 %v58
  %v93 = vunpack.c.l.b16 %v59
  %v94 = vunpack.c.h.b16 %v59
  %v95 = vunpack.c.l.b16 %v60
  %v96 = vunpack.c.h.b16 %v60
  %v97 = vunpack.c.l.b16 %v61
  %v98 = vunpack.c.h.b16 %v61
  %v99 = vunpack.c.l.b16 %v62
  %v100 = vunpack.c.h.b16 %v62
  %v101 = vunpack.c.l.b16 %v63
  %v102 = vunpack.c.h.b16 %v63
  %v103 = vpack.c.b16 %v89, %v87
  %v104 = vpack.c.b16 %v90, %v88
  %v105 = vpack.c.b16 %v93, %v91
  %v106 = vpack.c.b16 %v94, %v92
  %v107 = vpack.c.b16 %v97, %v95
  %v108 = vpack.c.b16 %v98, %v96
  %v109 = vpack.c.b16 %v101, %v99
  %v110 = vpack.c.b16 %v102, %v100
  %vm119 = vcmask 523264
  %v121 = vsel %vm119, %v76, 0
  %v124 = vsel %vm119, %v77, 0
  %v127 = vsel %vm119, %v78, 0
  %129 = vmatpush.bf16.msra.mxu0 0
  %130 = vmatpush.bf16.msra.mxu0 0
  %131 = vmatpush.bf16.msra.mxu0 0
  %132 = vmatpush.bf16.msra.mxu0 0
  %133 = vmatpush.bf16.msra.mxu0 %v109
  %134 = vmatpush.bf16.msra.mxu0 %v107
  %135 = vmatpush.bf16.msra.mxu0 %v105
  %136 = vmatpush.bf16.msra.mxu0 %v103
  %137 = vmatmul.bf16.gmra.mxu0 %v121
  %v138 = vpop.f32.mrf.mxu0
  %v139 = vadd.f32 0.0, %v138
  %v140 = vpop.f32.mrf.mxu0
  %v141 = vadd.f32 0.0, %v140
  %142 = vmatmul.bf16.gmra.mxu0 %v124
  %v143 = vpop.f32.mrf.mxu0
  %v144 = vadd.f32 0.0, %v143
  %v145 = vpop.f32.mrf.mxu0
  %v146 = vadd.f32 0.0, %v145
  %147 = vmatmul.bf16.gmra.mxu0 %v127
  %v148 = vpop.f32.mrf.mxu0
  %v149 = vadd.f32 0.0, %v148
  %v150 = vpop.f32.mrf.mxu0
  %v151 = vadd.f32 0.0, %v150
  %152 = vdwg.mxu0
  %153 = vmatpush.bf16.msra.mxu0 0
  %154 = vmatpush.bf16.msra.mxu0 0
  %155 = vmatpush.bf16.msra.mxu0 0
  %156 = vmatpush.bf16.msra.mxu0 0
  %157 = vmatpush.bf16.msra.mxu0 %v110
  %158 = vmatpush.bf16.msra.mxu0 %v108
  %159 = vmatpush.bf16.msra.mxu0 %v106
  %160 = vmatpush.bf16.msra.mxu0 %v104
  %161 = vmatmul.bf16.gmra.mxu0 %v121
  %v162 = vpop.f32.mrf.mxu0
  %v163 = vadd.f32 0.0, %v162
  %v164 = vpop.f32.mrf.mxu0
  %v165 = vadd.f32 0.0, %v164
  %166 = vmatmul.bf16.gmra.mxu0 %v124
  %v167 = vpop.f32.mrf.mxu0
  %v168 = vadd.f32 0.0, %v167
  %v169 = vpop.f32.mrf.mxu0
  %v170 = vadd.f32 0.0, %v169
  %171 = vmatmul.bf16.gmra.mxu0 %v127
  %v172 = vpop.f32.mrf.mxu0
  %v173 = vadd.f32 0.0, %v172
  %v174 = vpop.f32.mrf.mxu0
  %v175 = vadd.f32 0.0, %v174
  %176 = vdwg.mxu0
  %v177 = vadd.f32 %v38, %v139
  %v178 = vadd.f32 %v39, %v163
  %v179 = vadd.f32 %v40, %v141
  %v180 = vadd.f32 %v41, %v165
  %v181 = vadd.f32 %v42, %v144
  %v182 = vadd.f32 %v43, %v168
  %v183 = vadd.f32 %v44, %v146
  %v184 = vadd.f32 %v45, %v170
  %v185 = vadd.f32 %v46, %v149
  %v186 = vadd.f32 %v47, %v173
  %v187 = vadd.f32 %v48, %v151
  %v188 = vadd.f32 %v49, %v175
  %189 = vst [vmem:[#allocation2] sm:$0xff] %v177
  %190 = vst.msk [vmem:[#allocation2 + $0x8] sm:$0xff] %vm119, %v178
  %191 = vst [vmem:[#allocation2 + $0x10] sm:$0xff] %v179
  %192 = vst.msk [vmem:[#allocation2 + $0x18] sm:$0xff] %vm119, %v180
  %193 = vst [vmem:[#allocation2 + $0x20] sm:$0xff] %v181
  %194 = vst.msk [vmem:[#allocation2 + $0x28] sm:$0xff] %vm119, %v182
  %195 = vst [vmem:[#allocation2 + $0x30] sm:$0xff] %v183
  %196 = vst.msk [vmem:[#allocation2 + $0x38] sm:$0xff] %vm119, %v184
  %197 = vst [vmem:[#allocation2 + $0x40] sm:$0xff] %v185
  %198 = vst.msk [vmem:[#allocation2 + $0x48] sm:$0xff] %vm119, %v186
  %199 = vst [vmem:[#allocation2 + $0x50] sm:$0xff] %v187
  %200 = vst.msk [vmem:[#allocation2 + $0x58] sm:$0xff] %vm119, %v188
  // Predicated region
  $region18: #{transformer_forward.47} parent=0 // pred_check
    %p201 = pneg %p15
  $region19: #{transformer_forward.47} parent=0 // pred_check_branch
    %203 = sbr.rel (%p201) target = $region21
  $region20: #{transformer_forward.47} parent=0 // pred_region
    %v204 = vld [vmem:[#allocation2] sm:$0xff]
    %v205 = vld [vmem:[#allocation2 + $0x8] sm:$0xff]
    %v206 = vld [vmem:[#allocation2 + $0x10] sm:$0xff]
    %v207 = vld [vmem:[#allocation2 + $0x18] sm:$0xff]
    %v208 = vld [vmem:[#allocation2 + $0x20] sm:$0xff]
    %v209 = vld [vmem:[#allocation2 + $0x28] sm:$0xff]
    %v210 = vld [vmem:[#allocation2 + $0x30] sm:$0xff]
    %v211 = vld [vmem:[#allocation2 + $0x38] sm:$0xff]
    %v212 = vld [vmem:[#allocation2 + $0x40] sm:$0xff]
    %v213 = vld [vmem:[#allocation2 + $0x48] sm:$0xff]
    %v214 = vld [vmem:[#allocation2 + $0x50] sm:$0xff]
    %v215 = vld [vmem:[#allocation2 + $0x58] sm:$0xff]
    %v216 = vpack.c.bf16 %v205, %v204
    %v217 = vpack.c.bf16 %v207, %v206
    %v218 = vpack.c.bf16 %v209, %v208
    %v219 = vpack.c.bf16 %v211, %v210
    %v220 = vpack.c.bf16 %v213, %v212
    %v221 = vpack.c.bf16 %v215, %v214
    %vm222 = vcmask 1043456
    %vm223 = vcmask 523268
    %vm224 = vmor %vm223, %vm222
    %225 = vst.msk [vmem:[%s3] sm:$0xff] %vm224, %v216
    %226 = vst.msk [vmem:[%s3 + $0x8] sm:$0xff] %vm224, %v217
    %227 = vst.msk [vmem:[%s3 + $0x10] sm:$0xff] %vm224, %v218
    %228 = vst.msk [vmem:[%s3 + $0x18] sm:$0xff] %vm224, %v219
    %229 = vst.msk [vmem:[%s3 + $0x20] sm:$0xff] %vm224, %v220
    %230 = vst.msk [vmem:[%s3 + $0x28] sm:$0xff] %vm224, %v221
  $region21: #{transformer_forward.47} parent=0 // pred_fallthru
    _
  // Predicated region
  $region22: #{transformer_forward.47} parent=0 // pred_check
    _
  $region23: #{transformer_forward.47} parent=0 // pred_check_branch
    %232 = sbr.rel (0) target = $region25
  $region24: #{transformer_forward.47} parent=0 // pred_region
    _
  $region25: #{transformer_forward.47} parent=0 // pred_fallthru
    _
  // Predicated region
  $region26: #{transformer_forward.47} parent=0 // pred_check
    _
  $region27: #{transformer_forward.47} parent=0 // pred_check_branch
    %234 = sbr.rel (0) target = $region29
  $region28: #{transformer_forward.47} parent=0 // pred_region
    _
  $region29: #{transformer_forward.47} parent=0 // pred_fallthru
    _

// kernel: transformer_forward.50
$region0: #{transformer_forward.50}
  #allocation0 [shape = 'u32[]', space=smem, size = 0x4, offset = 0x4, fixed_abs, tag = 'smem constant byte address 0x4 - core index']
  #allocation1 [shape = 'u32[72,128]{1,0:T(1,128)}', space=vmem, size = 0x9000, scoped, tag = 'internal scratch']
  %s0 = inlined_call_operand.vmem [shape: bf16[48,64], index: 0, kind: input, shape index: {}]
  %s1 = inlined_call_operand.vmem [shape: bf16[48,64], index: 1, kind: input, shape index: {}]
  %s2 = inlined_call_operand.vmem [shape: f32[1,64], index: 2, kind: input, shape index: {}]
  %s3 = inlined_call_operand.vmem [shape: f32[1,64], index: 3, kind: input, shape index: {}]
  %s4 = inlined_call_operand.vmem [shape: bf16[48,64], index: 4, kind: output, shape index: {}]
  %s5 = sld [smem:[#allocation0]]
  $region26: #{transformer_forward.50} parent=0
    _
  %s7 = ssub.s32 1, %s5
  %s8 = scalar_select 0, %s7, %s5
  // Predicated region
  $region2: #{transformer_forward.50} parent=0 // pred_check
    _
  $region3: #{transformer_forward.50} parent=0 // pred_check_branch
    %10 = sbr.rel (0) target = $region5
  $region4: #{transformer_forward.50} parent=0 // pred_region
    _
  $region5: #{transformer_forward.50} parent=0 // pred_fallthru
    _
  // Predicated region
  $region6: #{transformer_forward.50} parent=0 // pred_check
    _
  $region7: #{transformer_forward.50} parent=0 // pred_check_branch
    %12 = sbr.rel (0) target = $region9
  $region8: #{transformer_forward.50} parent=0 // pred_region
    _
  $region9: #{transformer_forward.50} parent=0 // pred_fallthru
    _
  // Predicated region
  $region10: #{transformer_forward.50} parent=0 // pred_check
    _
  $region11: #{transformer_forward.50} parent=0 // pred_check_branch
    %14 = sbr.rel (0) target = $region13
  $region12: #{transformer_forward.50} parent=0 // pred_region
    _
  $region13: #{transformer_forward.50} parent=0 // pred_fallthru
    _
  // Predicated region
  $region14: #{transformer_forward.50} parent=0 // pred_check
    _
  $region15: #{transformer_forward.50} parent=0 // pred_check_branch
    %16 = sbr.rel (0) target = $region17
  $region16: #{transformer_forward.50} parent=0 // pred_region
    _
  $region17: #{transformer_forward.50} parent=0 // pred_fallthru
    _
  %v17 = vld [vmem:[%s0] sm:$0xf]
  %v18 = vld [vmem:[%s0 + $0x4] sm:$0xf]
  %v19 = vld [vmem:[%s0 + $0x8] sm:$0xf]
  %v20 = vld [vmem:[%s0 + $0xc] sm:$0xf]
  %v21 = vld [vmem:[%s0 + $0x10] sm:$0xf]
  %v22 = vld [vmem:[%s0 + $0x14] sm:$0xf]
  %v23 = vunpack.c.l.bf16 %v17
  %v24 = vunpack.c.l.bf16 %v18
  %v25 = vunpack.c.l.bf16 %v19
  %v26 = vunpack.c.l.bf16 %v20
  %v27 = vunpack.c.l.bf16 %v21
  %v28 = vunpack.c.l.bf16 %v22
  %v29 = vld [vmem:[%s1] sm:$0xf]
  %v30 = vld [vmem:[%s1 + $0x4] sm:$0xf]
  %v31 = vld [vmem:[%s1 + $0x8] sm:$0xf]
  %v32 = vld [vmem:[%s1 + $0xc] sm:$0xf]
  %v33 = vld [vmem:[%s1 + $0x10] sm:$0xf]
  %v34 = vld [vmem:[%s1 + $0x14] sm:$0xf]
  %v35 = vunpack.c.l.bf16 %v29
  %v36 = vunpack.c.l.bf16 %v30
  %v37 = vunpack.c.l.bf16 %v31
  %v38 = vunpack.c.l.bf16 %v32
  %v39 = vunpack.c.l.bf16 %v33
  %v40 = vunpack.c.l.bf16 %v34
  %v41 = vadd.f32 %v23, %v35
  %v42 = vadd.f32 %v24, %v36
  %v43 = vadd.f32 %v25, %v37
  %v44 = vadd.f32 %v26, %v38
  %v45 = vadd.f32 %v27, %v39
  %v46 = vadd.f32 %v28, %v40
  %vm47 = vcmask 523264
  %v48 = vsel %vm47, %v41, 0.0
  %49 = vadd.xlane.f32.xlu0 %v48
  %v50 = vpop.xlane.xlu0 %49
  %v51 = vsel %vm47, %v42, 0.0
  %52 = vadd.xlane.f32.xlu0 %v51
  %v53 = vpop.xlane.xlu0 %52
  %v54 = vsel %vm47, %v43, 0.0
  %55 = vadd.xlane.f32.xlu0 %v54
  %v56 = vpop.xlane.xlu0 %55
  %v57 = vsel %vm47, %v44, 0.0
  %58 = vadd.xlane.f32.xlu0 %v57
  %v59 = vpop.xlane.xlu0 %58
  %v60 = vsel %vm47, %v45, 0.0
  %61 = vadd.xlane.f32.xlu0 %v60
  %v62 = vpop.xlane.xlu0 %61
  %v63 = vsel %vm47, %v46, 0.0
  %64 = vadd.xlane.f32.xlu0 %v63
  %v65 = vpop.xlane.xlu0 %64
  %v66 = vrcp.pop 64.0
  %v67 = vmul.f32 64.0, %v66
  %v68 = vsub.f32 1.0, %v67
  %v69 = vmul.f32 %v66, %v68
  %v70 = vadd.f32 %v66, %v69
  %vm71 = vweird.f32 %v66
  %v72 = vsel %vm71, %v66, %v70
  %v73 = vmul.f32 %v50, %v72
  %v74 = vmul.f32 %v53, %v72
  %v75 = vmul.f32 %v56, %v72
  %v76 = vmul.f32 %v59, %v72
  %v77 = vmul.f32 %v62, %v72
  %v78 = vmul.f32 %v65, %v72
  %v79 = vsub.f32 %v41, %v73
  %v80 = vsub.f32 %v42, %v74
  %v81 = vsub.f32 %v43, %v75
  %v82 = vsub.f32 %v44, %v76
  %v83 = vsub.f32 %v45, %v77
  %v84 = vsub.f32 %v46, %v78
  %v85 = vmul.f32 %v79, %v79
  %v86 = vmul.f32 %v80, %v80
  %v87 = vmul.f32 %v81, %v81
  %v88 = vmul.f32 %v82, %v82
  %v89 = vmul.f32 %v83, %v83
  %v90 = vmul.f32 %v84, %v84
  %v91 = vsel %vm47, %v85, 0.0
  %92 = vadd.xlane.f32.xlu0 %v91
  %v93 = vpop.xlane.xlu0 %92
  %v94 = vsel %vm47, %v86, 0.0
  %95 = vadd.xlane.f32.xlu0 %v94
  %v96 = vpop.xlane.xlu0 %95
  %v97 = vsel %vm47, %v87, 0.0
  %98 = vadd.xlane.f32.xlu0 %v97
  %v99 = vpop.xlane.xlu0 %98
  %v100 = vsel %vm47, %v88, 0.0
  %101 = vadd.xlane.f32.xlu0 %v100
  %v102 = vpop.xlane.xlu0 %101
  %v103 = vsel %vm47, %v89, 0.0
  %104 = vadd.xlane.f32.xlu0 %v103
  %v105 = vpop.xlane.xlu0 %104
  %v106 = vsel %vm47, %v90, 0.0
  %107 = vadd.xlane.f32.xlu0 %v106
  %v108 = vpop.xlane.xlu0 %107
  %v109 = vmul.f32 %v93, %v72
  %v110 = vmul.f32 %v96, %v72
  %v111 = vmul.f32 %v99, %v72
  %v112 = vmul.f32 %v102, %v72
  %v113 = vmul.f32 %v105, %v72
  %v114 = vmul.f32 %v108, %v72
  %v115 = vadd.f32 %v109, 1e-05
  %v116 = vadd.f32 %v110, 1e-05
  %v117 = vadd.f32 %v111, 1e-05
  %v118 = vadd.f32 %v112, 1e-05
  %v119 = vadd.f32 %v113, 1e-05
  %v120 = vadd.f32 %v114, 1e-05
  %v121 = vrsqrt.pop %v115
  %v122 = vmul.f32 %v121, %v115
  %v123 = vmul.f32 %v122, %v121
  %v124 = vmul.f32 0.5, %v123
  %v125 = vsub.f32 1.5, %v124
  %v126 = vmul.f32 %v121, %v125
  %vm127 = vweird.f32 %v115
  %vm128 = vweird.f32 %v121
  %vm129 = vmor %vm127, %vm128
  %v130 = vsel %vm129, %v121, %v126
  %v131 = vrsqrt.pop %v116
  %v132 = vmul.f32 %v131, %v116
  %v133 = vmul.f32 %v132, %v131
  %v134 = vmul.f32 0.5, %v133
  %v135 = vsub.f32 1.5, %v134
  %v136 = vmul.f32 %v131, %v135
  %vm137 = vweird.f32 %v116
  %vm138 = vweird.f32 %v131
  %vm139 = vmor %vm137, %vm138
  %v140 = vsel %vm139, %v131, %v136
  %v141 = vrsqrt.pop %v117
  %v142 = vmul.f32 %v141, %v117
  %v143 = vmul.f32 %v142, %v141
  %v144 = vmul.f32 0.5, %v143
  %v145 = vsub.f32 1.5, %v144
  %v146 = vmul.f32 %v141, %v145
  %vm147 = vweird.f32 %v117
  %vm148 = vweird.f32 %v141
  %vm149 = vmor %vm147, %vm148
  %v150 = vsel %vm149, %v141, %v146
  %v151 = vrsqrt.pop %v118
  %v152 = vmul.f32 %v151, %v118
  %v153 = vmul.f32 %v152, %v151
  %v154 = vmul.f32 0.5, %v153
  %v155 = vsub.f32 1.5, %v154
  %v156 = vmul.f32 %v151, %v155
  %vm157 = vweird.f32 %v118
  %vm158 = vweird.f32 %v151
  %vm159 = vmor %vm157, %vm158
  %v160 = vsel %vm159, %v151, %v156
  %v161 = vrsqrt.pop %v119
  %v162 = vmul.f32 %v161, %v119
  %v163 = vmul.f32 %v162, %v161
  %v164 = vmul.f32 0.5, %v163
  %v165 = vsub.f32 1.5, %v164
  %v166 = vmul.f32 %v161, %v165
  %vm167 = vweird.f32 %v119
  %vm168 = vweird.f32 %v161
  %vm169 = vmor %vm167, %vm168
  %v170 = vsel %vm169, %v161, %v166
  %v171 = vrsqrt.pop %v120
  %v172 = vmul.f32 %v171, %v120
  %v173 = vmul.f32 %v172, %v171
  %v174 = vmul.f32 0.5, %v173
  %v175 = vsub.f32 1.5, %v174
  %v176 = vmul.f32 %v171, %v175
  %vm177 = vweird.f32 %v120
  %vm178 = vweird.f32 %v171
  %vm179 = vmor %vm177, %vm178
  %v180 = vsel %vm179, %v171, %v176
  %v181 = vmul.f32 %v79, %v130
  %v182 = vmul.f32 %v80, %v140
  %v183 = vmul.f32 %v81, %v150
  %v184 = vmul.f32 %v82, %v160
  %v185 = vmul.f32 %v83, %v170
  %v186 = vmul.f32 %v84, %v180
  %v187 = vld [vmem:[%s2] sm:$0x1]
  %v189 = vperm.slane %v187, 0
  %v191 = vmul.f32 %v181, %v189
  %v192 = vmul.f32 %v182, %v189
  %v193 = vmul.f32 %v183, %v189
  %v194 = vmul.f32 %v184, %v189
  %v195 = vmul.f32 %v185, %v189
  %v196 = vmul.f32 %v186, %v189
  %v197 = vld [vmem:[%s3] sm:$0x1]
  %v199 = vperm.slane %v197, 0
  %v201 = vadd.f32 %v191, %v199
  %v202 = vadd.f32 %v192, %v199
  %v203 = vadd.f32 %v193, %v199
  %v204 = vadd.f32 %v194, %v199
  %v205 = vadd.f32 %v195, %v199
  %v206 = vadd.f32 %v196, %v199
  %v207 = vpack.c.bf16 %v201, %v201
  %v208 = vpack.c.bf16 %v202, %v202
  %v209 = vpack.c.bf16 %v203, %v203
  %v210 = vpack.c.bf16 %v204, %v204
  %v211 = vpack.c.bf16 %v205, %v205
  %v212 = vpack.c.bf16 %v206, %v206
  %vm213 = vcmask 519168
  %214 = vst.msk [vmem:[%s4] sm:$0xf] %vm213, %v207
  %215 = vst.msk [vmem:[%s4 + $0x4] sm:$0xf] %vm213, %v208
  %216 = vst.msk [vmem:[%s4 + $0x8] sm:$0xf] %vm213, %v209
  %217 = vst.msk [vmem:[%s4 + $0xc] sm:$0xf] %vm213, %v210
  %218 = vst.msk [vmem:[%s4 + $0x10] sm:$0xf] %vm213, %v211
  %219 = vst.msk [vmem:[%s4 + $0x14] sm:$0xf] %vm213, %v212
  // Predicated region
  $region18: #{transformer_forward.50} parent=0 // pred_check
    _
  $region19: #{transformer_forward.50} parent=0 // pred_check_branch
    %221 = sbr.rel (0) target = $region21
  $region20: #{transformer_forward.50} parent=0 // pred_region
    _
  $region21: #{transformer_forward.50} parent=0 // pred_fallthru
    _
  // Predicated region
  $region22: #{transformer_forward.50} parent=0 // pred_check
    _
  $region23: #{transformer_forward.50} parent=0 // pred_check_branch
    %223 = sbr.rel (0) target = $region25
  $region24: #{transformer_forward.50} parent=0 // pred_region
    _
  $region25: #{transformer_forward.50} parent=0 // pred_fallthru
    _

// kernel: transformer_forward.49
$region0: #{transformer_forward.49}
  #allocation0 [shape = 'u32[]', space=smem, size = 0x4, offset = 0x4, fixed_abs, tag = 'smem constant byte address 0x4 - core index']
  #allocation1 [shape = 'u32[72,128]{1,0:T(1,128)}', space=vmem, size = 0x9000, scoped, tag = 'internal scratch']
  #allocation2 [shape = 'f32[48,64]{1,0:T(8,128)}', space=vmem, size = 0x6000, scoped, tag = 'scratch operand']
  %s0 = inlined_call_operand.vmem [shape: bf16[48,64], index: 0, kind: input, shape index: {}]
  %s1 = inlined_call_operand.vmem [shape: bf16[64,64], index: 1, kind: input, shape index: {}]
  %s2 = inlined_call_operand.vmem [shape: f32[1,64], index: 2, kind: input, shape index: {}]
  %s3 = inlined_call_operand.vmem [shape: bf16[48,64], index: 3, kind: output, shape index: {}]
  %s4 = sld [smem:[#allocation0]]
  $region30: #{transformer_forward.49} parent=0
    _
  %s6 = ssub.s32 1, %s4
  %s7 = scalar_select 0, %s6, %s4
  // Predicated region
  $region2: #{transformer_forward.49} parent=0 // pred_check
    _
  $region3: #{transformer_forward.49} parent=0 // pred_check_branch
    %9 = sbr.rel (0) target = $region5
  $region4: #{transformer_forward.49} parent=0 // pred_region
    _
  $region5: #{transformer_forward.49} parent=0 // pred_fallthru
    _
  // Predicated region
  $region6: #{transformer_forward.49} parent=0 // pred_check
    _
  $region7: #{transformer_forward.49} parent=0 // pred_check_branch
    %11 = sbr.rel (0) target = $region9
  $region8: #{transformer_forward.49} parent=0 // pred_region
    _
  $region9: #{transformer_forward.49} parent=0 // pred_fallthru
    _
  // Predicated region
  $region10: #{transformer_forward.49} parent=0 // pred_check
    _
  $region11: #{transformer_forward.49} parent=0 // pred_check_branch
    %13 = sbr.rel (0) target = $region13
  $region12: #{transformer_forward.49} parent=0 // pred_region
    _
  $region13: #{transformer_forward.49} parent=0 // pred_fallthru
    _
  %p15 = scmp.eq.s32.totalorder 0, 0
  // Predicated region
  $region14: #{transformer_forward.49} parent=0 // pred_check
    %p16 = pneg %p15
  $region15: #{transformer_forward.49} parent=0 // pred_check_branch
    %18 = sbr.rel (%p16) target = $region17
  $region16: #{transformer_forward.49} parent=0 // pred_region
    %v19 = vld [vmem:[%s2] sm:$0x1]
    %v21 = vperm.slane %v19, 0
    %vm23 = vcmask 523264
    %24 = vst.msk [vmem:[#allocation2] sm:$0xff] %vm23, %v21
    %25 = vst.msk [vmem:[#allocation2 + $0x8] sm:$0xff] %vm23, %v21
    %26 = vst.msk [vmem:[#allocation2 + $0x10] sm:$0xff] %vm23, %v21
    %27 = vst.msk [vmem:[#allocation2 + $0x18] sm:$0xff] %vm23, %v21
    %28 = vst.msk [vmem:[#allocation2 + $0x20] sm:$0xff] %vm23, %v21
    %29 = vst.msk [vmem:[#allocation2 + $0x28] sm:$0xff] %vm23, %v21
  $region17: #{transformer_forward.49} parent=0 // pred_fallthru
    _
  %v30 = vld [vmem:[#allocation2] sm:$0xff]
  %v31 = vld [vmem:[#allocation2 + $0x8] sm:$0xff]
  %v32 = vld [vmem:[#allocation2 + $0x10] sm:$0xff]
  %v33 = vld [vmem:[#allocation2 + $0x18] sm:$0xff]
  %v34 = vld [vmem:[#allocation2 + $0x20] sm:$0xff]
  %v35 = vld [vmem:[#allocation2 + $0x28] sm:$0xff]
  %v36 = vld [vmem:[%s0] sm:$0xf]
  %v37 = vld [vmem:[%s0 + $0x4] sm:$0xf]
  %v38 = vld [vmem:[%s0 + $0x8] sm:$0xf]
  %v39 = vld [vmem:[%s0 + $0xc] sm:$0xf]
  %v40 = vld [vmem:[%s0 + $0x10] sm:$0xf]
  %v41 = vld [vmem:[%s0 + $0x14] sm:$0xf]
  %v42 = vld [vmem:[%s1] sm:$0xf]
  %v43 = vld [vmem:[%s1 + $0x4] sm:$0xf]
  %v44 = vld [vmem:[%s1 + $0x8] sm:$0xf]
  %v45 = vld [vmem:[%s1 + $0xc] sm:$0xf]
  %v46 = vld [vmem:[%s1 + $0x10] sm:$0xf]
  %v47 = vld [vmem:[%s1 + $0x14] sm:$0xf]
  %v48 = vld [vmem:[%s1 + $0x18] sm:$0xf]
  %v49 = vld [vmem:[%s1 + $0x1c] sm:$0xf]
  %v56 = vunpack.c.l.b16 %v36
  %v57 = vunpack.c.l.b16 %v37
  %v58 = vunpack.c.l.b16 %v38
  %v59 = vunpack.c.l.b16 %v39
  %v60 = vunpack.c.l.b16 %v40
  %v61 = vunpack.c.l.b16 %v41
  %v62 = vpack.c.b16 %v57, %v56
  %v63 = vpack.c.b16 %v59, %v58
  %v64 = vpack.c.b16 %v61, %v60
  %v73 = vunpack.c.l.b16 %v42
  %v74 = vunpack.c.l.b16 %v43
  %v75 = vunpack.c.l.b16 %v44
  %v76 = vunpack.c.l.b16 %v45
  %v77 = vunpack.c.l.b16 %v46
  %v78 = vunpack.c.l.b16 %v47
  %v79 = vunpack.c.l.b16 %v48
  %v80 = vunpack.c.l.b16 %v49
  %v81 = vpack.c.b16 %v74, %v73
  %v82 = vpack.c.b16 %v76, %v75
  %v83 = vpack.c.b16 %v78, %v77
  %v84 = vpack.c.b16 %v80, %v79
  %vm89 = vcmask 523264
  %v91 = vsel %vm89, %v62, 0
  %v94 = vsel %vm89, %v63, 0
  %v97 = vsel %vm89, %v64, 0
  %99 = vmatpush.bf16.msra.mxu0 0
  %100 = vmatpush.bf16.msra.mxu0 0
  %101 = vmatpush.bf16.msra.mxu0 0
  %102 = vmatpush.bf16.msra.mxu0 0
  %103 = vmatpush.bf16.msra.mxu0 %v84
  %104 = vmatpush.bf16.msra.mxu0 %v83
  %105 = vmatpush.bf16.msra.mxu0 %v82
  %106 = vmatpush.bf16.msra.mxu0 %v81
  %107 = vmatmul.bf16.gmra.mxu0 %v91
  %v108 = vpop.f32.mrf.mxu0
  %v109 = vadd.f32 0.0, %v108
  %v110 = vpop.f32.mrf.mxu0
  %v111 = vadd.f32 0.0, %v110
  %112 = vmatmul.bf16.gmra.mxu0 %v94
  %v113 = vpop.f32.mrf.mxu0
  %v114 = vadd.f32 0.0, %v113
  %v115 = vpop.f32.mrf.mxu0
  %v116 = vadd.f32 0.0, %v115
  %117 = vmatmul.bf16.gmra.mxu0 %v97
  %v118 = vpop.f32.mrf.mxu0
  %v119 = vadd.f32 0.0, %v118
  %v120 = vpop.f32.mrf.mxu0
  %v121 = vadd.f32 0.0, %v120
  %122 = vdwg.mxu0
  %v123 = vadd.f32 %v30, %v109
  %v124 = vadd.f32 %v31, %v111
  %v125 = vadd.f32 %v32, %v114
  %v126 = vadd.f32 %v33, %v116
  %v127 = vadd.f32 %v34, %v119
  %v128 = vadd.f32 %v35, %v121
  %129 = vst.msk [vmem:[#allocation2] sm:$0xff] %vm89, %v123
  %130 = vst.msk [vmem:[#allocation2 + $0x8] sm:$0xff] %vm89, %v124
  %131 = vst.msk [vmem:[#allocation2 + $0x10] sm:$0xff] %vm89, %v125
  %132 = vst.msk [vmem:[#allocation2 + $0x18] sm:$0xff] %vm89, %v126
  %133 = vst.msk [vmem:[#allocation2 + $0x20] sm:$0xff] %vm89, %v127
  %134 = vst.msk [vmem:[#allocation2 + $0x28] sm:$0xff] %vm89, %v128
  // Predicated region
  $region18: #{transformer_forward.49} parent=0 // pred_check
    %p135 = pneg %p15
  $region19: #{transformer_forward.49} parent=0 // pred_check_branch
    %137 = sbr.rel (%p135) target = $region21
  $region20: #{transformer_forward.49} parent=0 // pred_region
    %v138 = vld [vmem:[#allocation2] sm:$0xff]
    %v139 = vld [vmem:[#allocation2 + $0x8] sm:$0xff]
    %v140 = vld [vmem:[#allocation2 + $0x10] sm:$0xff]
    %v141 = vld [vmem:[#allocation2 + $0x18] sm:$0xff]
    %v142 = vld [vmem:[#allocation2 + $0x20] sm:$0xff]
    %v143 = vld [vmem:[#allocation2 + $0x28] sm:$0xff]
    %v144 = vpack.c.bf16 %v138, %v138
    %v145 = vpack.c.bf16 %v139, %v139
    %v146 = vpack.c.bf16 %v140, %v140
    %v147 = vpack.c.bf16 %v141, %v141
    %v148 = vpack.c.bf16 %v142, %v142
    %v149 = vpack.c.bf16 %v143, %v143
    %vm150 = vcmask 519168
    %151 = vst.msk [vmem:[%s3] sm:$0xf] %vm150, %v144
    %152 = vst.msk [vmem:[%s3 + $0x4] sm:$0xf] %vm150, %v145
    %153 = vst.msk [vmem:[%s3 + $0x8] sm:$0xf] %vm150, %v146
    %154 = vst.msk [vmem:[%s3 + $0xc] sm:$0xf] %vm150, %v147
    %155 = vst.msk [vmem:[%s3 + $0x10] sm:$0xf] %vm150, %v148
    %156 = vst.msk [vmem:[%s3 + $0x14] sm:$0xf] %vm150, %v149
  $region21: #{transformer_forward.49} parent=0 // pred_fallthru
    _
  // Predicated region
  $region22: #{transformer_forward.49} parent=0 // pred_check
    _
  $region23: #{transformer_forward.49} parent=0 // pred_check_branch
    %158 = sbr.rel (0) target = $region25
  $region24: #{transformer_forward.49} parent=0 // pred_region
    _
  $region25: #{transformer_forward.49} parent=0 // pred_fallthru
    _
  // Predicated region
  $region26: #{transformer_forward.49} parent=0 // pred_check
    _
  $region27: #{transformer_forward.49} parent=0 // pred_check_branch
    %160 = sbr.rel (0) target = $region29
  $region28: #{transformer_forward.49} parent=0 // pred_region
    _
  $region29: #{transformer_forward.49} parent=0 // pred_fallthru
    _

// kernel: transformer_forward.48
$region0: #{transformer_forward.48}
  #allocation0 [shape = 'u32[]', space=smem, size = 0x4, offset = 0x4, fixed_abs, tag = 'smem constant byte address 0x4 - core index']
  #allocation1 [shape = 'u32[72,128]{1,0:T(1,128)}', space=vmem, size = 0x9000, scoped, tag = 'internal scratch']
  #allocation2 [shape = 'f32[8,24,1]{2,1,0:T(8,128)}', space=vmem, size = 0x18000, scoped, tag = 'scratch operand']
  #allocation3 [shape = 'f32[8,24,1]{2,1,0:T(8,128)}', space=vmem, size = 0x18000, scoped, tag = 'scratch operand']
  #allocation4 [shape = 'f32[8,24,16]{2,1,0:T(8,128)}', space=vmem, size = 0x18000, scoped, tag = 'scratch operand']
  %s0 = inlined_call_operand.vmem [shape: bf16[8,24,16], index: 0, kind: input, shape index: {}]
  %s1 = inlined_call_operand.vmem [shape: bf16[8,24,16], index: 1, kind: input, shape index: {}]
  %s2 = inlined_call_operand.vmem [shape: bf16[8,24,16], index: 2, kind: input, shape index: {}]
  %s3 = inlined_call_operand.vmem [shape: bf16[8,24,16], index: 3, kind: output, shape index: {}]
  %s4 = sld [smem:[#allocation0]]
  $region30: #{transformer_forward.48} parent=0
    _
  %s6 = ssub.s32 1, %s4
  %s7 = scalar_select 0, %s6, %s4
  // Predicated region
  $region2: #{transformer_forward.48} parent=0 // pred_check
    _
  $region3: #{transformer_forward.48} parent=0 // pred_check_branch
    %9 = sbr.rel (0) target = $region5
  $region4: #{transformer_forward.48} parent=0 // pred_region
    _
  $region5: #{transformer_forward.48} parent=0 // pred_fallthru
    _
  // Predicated region
  $region6: #{transformer_forward.48} parent=0 // pred_check
    _
  $region7: #{transformer_forward.48} parent=0 // pred_check_branch
    %11 = sbr.rel (0) target = $region9
  $region8: #{transformer_forward.48} parent=0 // pred_region
    _
  $region9: #{transformer_forward.48} parent=0 // pred_fallthru
    _
  // Predicated region
  $region10: #{transformer_forward.48} parent=0 // pred_check
    _
  $region11: #{transformer_forward.48} parent=0 // pred_check_branch
    %13 = sbr.rel (0) target = $region13
  $region12: #{transformer_forward.48} parent=0 // pred_region
    _
  $region13: #{transformer_forward.48} parent=0 // pred_fallthru
    _
  %p15 = scmp.eq.s32.totalorder 0, 0
  // Predicated region
  $region14: #{transformer_forward.48} parent=0 // pred_check
    %p16 = pneg %p15
  $region15: #{transformer_forward.48} parent=0 // pred_check_branch
    %18 = sbr.rel (%p16) target = $region17
  $region16: #{transformer_forward.48} parent=0 // pred_region
    %vm19 = vcmask 7168
    %20 = vst.msk [vmem:[#allocation2] sm:$0xff] %vm19, -1e+30
    %21 = vst.msk [vmem:[#allocation2 + $0x8] sm:$0xff] %vm19, -1e+30
    %22 = vst.msk [vmem:[#allocation2 + $0x10] sm:$0xff] %vm19, -1e+30
    %23 = vst.msk [vmem:[#allocation2 + $0x18] sm:$0xff] %vm19, -1e+30
    %24 = vst.msk [vmem:[#allocation2 + $0x20] sm:$0xff] %vm19, -1e+30
    %25 = vst.msk [vmem:[#allocation2 + $0x28] sm:$0xff] %vm19, -1e+30
    %26 = vst.msk [vmem:[#allocation2 + $0x30] sm:$0xff] %vm19, -1e+30
    %27 = vst.msk [vmem:[#allocation2 + $0x38] sm:$0xff] %vm19, -1e+30
    %28 = vst.msk [vmem:[#allocation2 + $0x40] sm:$0xff] %vm19, -1e+30
    %29 = vst.msk [vmem:[#allocation2 + $0x48] sm:$0xff] %vm19, -1e+30
    %30 = vst.msk [vmem:[#allocation2 + $0x50] sm:$0xff] %vm19, -1e+30
    %31 = vst.msk [vmem:[#allocation2 + $0x58] sm:$0xff] %vm19, -1e+30
    %32 = vst.msk [vmem:[#allocation2 + $0x60] sm:$0xff] %vm19, -1e+30
    %33 = vst.msk [vmem:[#allocation2 + $0x68] sm:$0xff] %vm19, -1e+30
    %34 = vst.msk [vmem:[#allocation2 + $0x70] sm:$0xff] %vm19, -1e+30
    %35 = vst.msk [vmem:[#allocation2 + $0x78] sm:$0xff] %vm19, -1e+30
    %36 = vst.msk [vmem:[#allocation2 + $0x80] sm:$0xff] %vm19, -1e+30
    %37 = vst.msk [vmem:[#allocation2 + $0x88] sm:$0xff] %vm19, -1e+30
    %38 = vst.msk [vmem:[#allocation2 + $0x90] sm:$0xff] %vm19, -1e+30
    %39 = vst.msk [vmem:[#allocation2 + $0x98] sm:$0xff] %vm19, -1e+30
    %40 = vst.msk [vmem:[#allocation2 + $0xa0] sm:$0xff] %vm19, -1e+30
    %41 = vst.msk [vmem:[#allocation2 + $0xa8] sm:$0xff] %vm19, -1e+30
    %42 = vst.msk [vmem:[#allocation2 + $0xb0] sm:$0xff] %vm19, -1e+30
    %43 = vst.msk [vmem:[#allocation2 + $0xb8] sm:$0xff] %vm19, -1e+30
    %44 = vst.msk [vmem:[#allocation3] sm:$0xff] %vm19, 0.0
    %45 = vst.msk [vmem:[#allocation3 + $0x8] sm:$0xff] %vm19, 0.0
    %46 = vst.msk [vmem:[#allocation3 + $0x10] sm:$0xff] %vm19, 0.0
    %47 = vst.msk [vmem:[#allocation3 + $0x18] sm:$0xff] %vm19, 0.0
    %48 = vst.msk [vmem:[#allocation3 + $0x20] sm:$0xff] %vm19, 0.0
    %49 = vst.msk [vmem:[#allocation3 + $0x28] sm:$0xff] %vm19, 0.0
    %50 = vst.msk [vmem:[#allocation3 + $0x30] sm:$0xff] %vm19, 0.0
    %51 = vst.msk [vmem:[#allocation3 + $0x38] sm:$0xff] %vm19, 0.0
    %52 = vst.msk [vmem:[#allocation3 + $0x40] sm:$0xff] %vm19, 0.0
    %53 = vst.msk [vmem:[#allocation3 + $0x48] sm:$0xff] %vm19, 0.0
    %54 = vst.msk [vmem:[#allocation3 + $0x50] sm:$0xff] %vm19, 0.0
    %55 = vst.msk [vmem:[#allocation3 + $0x58] sm:$0xff] %vm19, 0.0
    %56 = vst.msk [vmem:[#allocation3 + $0x60] sm:$0xff] %vm19, 0.0
    %57 = vst.msk [vmem:[#allocation3 + $0x68] sm:$0xff] %vm19, 0.0
    %58 = vst.msk [vmem:[#allocation3 + $0x70] sm:$0xff] %vm19, 0.0
    %59 = vst.msk [vmem:[#allocation3 + $0x78] sm:$0xff] %vm19, 0.0
    %60 = vst.msk [vmem:[#allocation3 + $0x80] sm:$0xff] %vm19, 0.0
    %61 = vst.msk [vmem:[#allocation3 + $0x88] sm:$0xff] %vm19, 0.0
    %62 = vst.msk [vmem:[#allocation3 + $0x90] sm:$0xff] %vm19, 0.0
    %63 = vst.msk [vmem:[#allocation3 + $0x98] sm:$0xff] %vm19, 0.0
    %64 = vst.msk [vmem:[#allocation3 + $0xa0] sm:$0xff] %vm19, 0.0
    %65 = vst.msk [vmem:[#allocation3 + $0xa8] sm:$0xff] %vm19, 0.0
    %66 = vst.msk [vmem:[#allocation3 + $0xb0] sm:$0xff] %vm19, 0.0
    %67 = vst.msk [vmem:[#allocation3 + $0xb8] sm:$0xff] %vm19, 0.0
    %vm68 = vcmask 130048
    %69 = vst.msk [vmem:[#allocation4] sm:$0xff] %vm68, 0.0
    %70 = vst.msk [vmem:[#allocation4 + $0x8] sm:$0xff] %vm68, 0.0
    %71 = vst.msk [vmem:[#allocation4 + $0x10] sm:$0xff] %vm68, 0.0
    %72 = vst.msk [vmem:[#allocation4 + $0x18] sm:$0xff] %vm68, 0.0
    %73 = vst.msk [vmem:[#allocation4 + $0x20] sm:$0xff] %vm68, 0.0
    %74 = vst.msk [vmem:[#allocation4 + $0x28] sm:$0xff] %vm68, 0.0
    %75 = vst.msk [vmem:[#allocation4 + $0x30] sm:$0xff] %vm68, 0.0
    %76 = vst.msk [vmem:[#allocation4 + $0x38] sm:$0xff] %vm68, 0.0
    %77 = vst.msk [vmem:[#allocation4 + $0x40] sm:$0xff] %vm68, 0.0
    %78 = vst.msk [vmem:[#allocation4 + $0x48] sm:$0xff] %vm68, 0.0
    %79 = vst.msk [vmem:[#allocation4 + $0x50] sm:$0xff] %vm68, 0.0
    %80 = vst.msk [vmem:[#allocation4 + $0x58] sm:$0xff] %vm68, 0.0
    %81 = vst.msk [vmem:[#allocation4 + $0x60] sm:$0xff] %vm68, 0.0
    %82 = vst.msk [vmem:[#allocation4 + $0x68] sm:$0xff] %vm68, 0.0
    %83 = vst.msk [vmem:[#allocation4 + $0x70] sm:$0xff] %vm68, 0.0
    %84 = vst.msk [vmem:[#allocation4 + $0x78] sm:$0xff] %vm68, 0.0
    %85 = vst.msk [vmem:[#allocation4 + $0x80] sm:$0xff] %vm68, 0.0
    %86 = vst.msk [vmem:[#allocation4 + $0x88] sm:$0xff] %vm68, 0.0
    %87 = vst.msk [vmem:[#allocation4 + $0x90] sm:$0xff] %vm68, 0.0
    %88 = vst.msk [vmem:[#allocation4 + $0x98] sm:$0xff] %vm68, 0.0
    %89 = vst.msk [vmem:[#allocation4 + $0xa0] sm:$0xff] %vm68, 0.0
    %90 = vst.msk [vmem:[#allocation4 + $0xa8] sm:$0xff] %vm68, 0.0
    %91 = vst.msk [vmem:[#allocation4 + $0xb0] sm:$0xff] %vm68, 0.0
    %92 = vst.msk [vmem:[#allocation4 + $0xb8] sm:$0xff] %vm68, 0.0
  $region17: #{transformer_forward.48} parent=0 // pred_fallthru
    _
  %v93 = vld [vmem:[%s0] sm:$0xf]
  %v94 = vld [vmem:[%s0 + $0x4] sm:$0xf]
  %v95 = vld [vmem:[%s0 + $0x8] sm:$0xf]
  %v96 = vld [vmem:[%s0 + $0xc] sm:$0xf]
  %v97 = vld [vmem:[%s0 + $0x10] sm:$0xf]
  %v98 = vld [vmem:[%s0 + $0x14] sm:$0xf]
  %v99 = vld [vmem:[%s0 + $0x18] sm:$0xf]
  %v100 = vld [vmem:[%s0 + $0x1c] sm:$0xf]
  %v101 = vld [vmem:[%s0 + $0x20] sm:$0xf]
  %v102 = vld [vmem:[%s0 + $0x24] sm:$0xf]
  %v103 = vld [vmem:[%s0 + $0x28] sm:$0xf]
  %v104 = vld [vmem:[%s0 + $0x2c] sm:$0xf]
  %v105 = vld [vmem:[%s0 + $0x30] sm:$0xf]
  %v106 = vld [vmem:[%s0 + $0x34] sm:$0xf]
  %v107 = vld [vmem:[%s0 + $0x38] sm:$0xf]
  %v108 = vld [vmem:[%s0 + $0x3c] sm:$0xf]
  %v109 = vld [vmem:[%s0 + $0x40] sm:$0xf]
  %v110 = vld [vmem:[%s0 + $0x44] sm:$0xf]
  %v111 = vld [vmem:[%s0 + $0x48] sm:$0xf]
  %v112 = vld [vmem:[%s0 + $0x4c] sm:$0xf]
  %v113 = vld [vmem:[%s0 + $0x50] sm:$0xf]
  %v114 = vld [vmem:[%s0 + $0x54] sm:$0xf]
  %v115 = vld [vmem:[%s0 + $0x58] sm:$0xf]
  %v116 = vld [vmem:[%s0 + $0x5c] sm:$0xf]
  %v117 = vld [vmem:[%s1] sm:$0xf]
  %v118 = vld [vmem:[%s1 + $0x4] sm:$0xf]
  %v119 = vld [vmem:[%s1 + $0x8] sm:$0xf]
  %v120 = vld [vmem:[%s1 + $0xc] sm:$0xf]
  %v121 = vld [vmem:[%s1 + $0x10] sm:$0xf]
  %v122 = vld [vmem:[%s1 + $0x14] sm:$0xf]
  %v123 = vld [vmem:[%s1 + $0x18] sm:$0xf]
  %v124 = vld [vmem:[%s1 + $0x1c] sm:$0xf]
  %v125 = vld [vmem:[%s1 + $0x20] sm:$0xf]
  %v126 = vld [vmem:[%s1 + $0x24] sm:$0xf]
  %v127 = vld [vmem:[%s1 + $0x28] sm:$0xf]
  %v128 = vld [vmem:[%s1 + $0x2c] sm:$0xf]
  %v129 = vld [vmem:[%s1 + $0x30] sm:$0xf]
  %v130 = vld [vmem:[%s1 + $0x34] sm:$0xf]
  %v131 = vld [vmem:[%s1 + $0x38] sm:$0xf]
  %v132 = vld [vmem:[%s1 + $0x3c] sm:$0xf]
  %v133 = vld [vmem:[%s1 + $0x40] sm:$0xf]
  %v134 = vld [vmem:[%s1 + $0x44] sm:$0xf]
  %v135 = vld [vmem:[%s1 + $0x48] sm:$0xf]
  %v136 = vld [vmem:[%s1 + $0x4c] sm:$0xf]
  %v137 = vld [vmem:[%s1 + $0x50] sm:$0xf]
  %v138 = vld [vmem:[%s1 + $0x54] sm:$0xf]
  %v139 = vld [vmem:[%s1 + $0x58] sm:$0xf]
  %v140 = vld [vmem:[%s1 + $0x5c] sm:$0xf]
  %v144 = vunpack.c.l.b16 %v93
  %v145 = vunpack.c.l.b16 %v94
  %v146 = vunpack.c.l.b16 %v95
  %v147 = vpack.c.b16 %v145, %v144
  %v148 = vpack.c.b16 %v146, %v146
  %v152 = vunpack.c.l.b16 %v117
  %v153 = vunpack.c.l.b16 %v118
  %v154 = vunpack.c.l.b16 %v119
  %v155 = vpack.c.b16 %v153, %v152
  %v156 = vpack.c.b16 %v154, %v154
  %vm157 = vcmask 130048
  %v159 = vsel %vm157, %v147, 0
  %v162 = vsel %vm157, %v148, 0
  %v165 = vsel %vm157, %v155, 0
  %v168 = vsel %vm157, %v156, 0
  %170 = vmatpush.bf16.xpose.msra.mxu0 0
  %171 = vmatpush.bf16.xpose.msra.mxu0 0
  %172 = vmatpush.bf16.xpose.msra.mxu0 0
  %173 = vmatpush.bf16.xpose.msra.mxu0 0
  %174 = vmatpush.bf16.xpose.msra.mxu0 0
  %175 = vmatpush.bf16.xpose.msra.mxu0 0
  %176 = vmatpush.bf16.xpose.msra.mxu0 %v168
  %177 = vmatpush.bf16.xpose.msra.mxu0 %v165
  %178 = vmatmul.bf16.gmra.mxu0 %v159
  %v179 = vpop.f32.mrf.mxu0
  %v180 = vadd.f32 0.0, %v179
  %v181 = vpop.f32.mrf.mxu0
  %v182 = vadd.f32 0.0, %v181
  %183 = vmatmul.bf16.gmra.mxu0 %v162
  %v184 = vpop.f32.mrf.mxu0
  %v185 = vadd.f32 0.0, %v184
  %v186 = vpop.f32.mrf.mxu0
  %187 = vdwg.mxu0
  %v191 = vunpack.c.l.b16 %v96
  %v192 = vunpack.c.l.b16 %v97
  %v193 = vunpack.c.l.b16 %v98
  %v194 = vpack.c.b16 %v192, %v191
  %v195 = vpack.c.b16 %v193, %v193
  %v199 = vunpack.c.l.b16 %v120
  %v200 = vunpack.c.l.b16 %v121
  %v201 = vunpack.c.l.b16 %v122
  %v202 = vpack.c.b16 %v200, %v199
  %v203 = vpack.c.b16 %v201, %v201
  %v205 = vsel %vm157, %v194, 0
  %v208 = vsel %vm157, %v195, 0
  %v211 = vsel %vm157, %v202, 0
  %v214 = vsel %vm157, %v203, 0
  %216 = vmatpush.bf16.xpose.msra.mxu0 0
  %217 = vmatpush.bf16.xpose.msra.mxu0 0
  %218 = vmatpush.bf16.xpose.msra.mxu0 0
  %219 = vmatpush.bf16.xpose.msra.mxu0 0
  %220 = vmatpush.bf16.xpose.msra.mxu0 0
  %221 = vmatpush.bf16.xpose.msra.mxu0 0
  %222 = vmatpush.bf16.xpose.msra.mxu0 %v214
  %223 = vmatpush.bf16.xpose.msra.mxu0 %v211
  %224 = vmatmul.bf16.gmra.mxu0 %v205
  %v225 = vpop.f32.mrf.mxu0
  %v226 = vadd.f32 0.0, %v225
  %v227 = vpop.f32.mrf.mxu0
  %v228 = vadd.f32 0.0, %v227
  %229 = vmatmul.bf16.gmra.mxu0 %v208
  %v230 = vpop.f32.mrf.mxu0
  %v231 = vadd.f32 0.0, %v230
  %v232 = vpop.f32.mrf.mxu0
  %233 = vdwg.mxu0
  %v237 = vunpack.c.l.b16 %v99
  %v238 = vunpack.c.l.b16 %v100
  %v239 = vunpack.c.l.b16 %v101
  %v240 = vpack.c.b16 %v238, %v237
  %v241 = vpack.c.b16 %v239, %v239
  %v245 = vunpack.c.l.b16 %v123
  %v246 = vunpack.c.l.b16 %v124
  %v247 = vunpack.c.l.b16 %v125
  %v248 = vpack.c.b16 %v246, %v245
  %v249 = vpack.c.b16 %v247, %v247
  %v251 = vsel %vm157, %v240, 0
  %v254 = vsel %vm157, %v241, 0
  %v257 = vsel %vm157, %v248, 0
  %v260 = vsel %vm157, %v249, 0
  %262 = vmatpush.bf16.xpose.msra.mxu0 0
  %263 = vmatpush.bf16.xpose.msra.mxu0 0
  %264 = vmatpush.bf16.xpose.msra.mxu0 0
  %265 = vmatpush.bf16.xpose.msra.mxu0 0
  %266 = vmatpush.bf16.xpose.msra.mxu0 0
  %267 = vmatpush.bf16.xpose.msra.mxu0 0
  %268 = vmatpush.bf16.xpose.msra.mxu0 %v260
  %269 = vmatpush.bf16.xpose.msra.mxu0 %v257
  %270 = vmatmul.bf16.gmra.mxu0 %v251
  %v271 = vpop.f32.mrf.mxu0
  %v272 = vadd.f32 0.0, %v271
  %v273 = vpop.f32.mrf.mxu0
  %v274 = vadd.f32 0.0, %v273
  %275 = vmatmul.bf16.gmra.mxu0 %v254
  %v276 = vpop.f32.mrf.mxu0
  %v277 = vadd.f32 0.0, %v276
  %v278 = vpop.f32.mrf.mxu0
  %279 = vdwg.mxu0
  %v283 = vunpack.c.l.b16 %v102
  %v284 = vunpack.c.l.b16 %v103
  %v285 = vunpack.c.l.b16 %v104
  %v286 = vpack.c.b16 %v284, %v283
  %v287 = vpack.c.b16 %v285, %v285
  %v291 = vunpack.c.l.b16 %v126
  %v292 = vunpack.c.l.b16 %v127
  %v293 = vunpack.c.l.b16 %v128
  %v294 = vpack.c.b16 %v292, %v291
  %v295 = vpack.c.b16 %v293, %v293
  %v297 = vsel %vm157, %v286, 0
  %v300 = vsel %vm157, %v287, 0
  %v303 = vsel %vm157, %v294, 0
  %v306 = vsel %vm157, %v295, 0
  %308 = vmatpush.bf16.xpose.msra.mxu0 0
  %309 = vmatpush.bf16.xpose.msra.mxu0 0
  %310 = vmatpush.bf16.xpose.msra.mxu0 0
  %311 = vmatpush.bf16.xpose.msra.mxu0 0
  %312 = vmatpush.bf16.xpose.msra.mxu0 0
  %313 = vmatpush.bf16.xpose.msra.mxu0 0
  %314 = vmatpush.bf16.xpose.msra.mxu0 %v306
  %315 = vmatpush.bf16.xpose.msra.mxu0 %v303
  %316 = vmatmul.bf16.gmra.mxu0 %v297
  %v317 = vpop.f32.mrf.mxu0
  %v318 = vadd.f32 0.0, %v317
  %v319 = vpop.f32.mrf.mxu0
  %v320 = vadd.f32 0.0, %v319
  %321 = vmatmul.bf16.gmra.mxu0 %v300
  %v322 = vpop.f32.mrf.mxu0
  %v323 = vadd.f32 0.0, %v322
  %v324 = vpop.f32.mrf.mxu0
  %325 = vdwg.mxu0
  %v329 = vunpack.c.l.b16 %v105
  %v330 = vunpack.c.l.b16 %v106
  %v331 = vunpack.c.l.b16 %v107
  %v332 = vpack.c.b16 %v330, %v329
  %v333 = vpack.c.b16 %v331, %v331
  %v337 = vunpack.c.l.b16 %v129
  %v338 = vunpack.c.l.b16 %v130
  %v339 = vunpack.c.l.b16 %v131
  %v340 = vpack.c.b16 %v338, %v337
  %v341 = vpack.c.b16 %v339, %v339
  %v343 = vsel %vm157, %v332, 0
  %v346 = vsel %vm157, %v333, 0
  %v349 = vsel %vm157, %v340, 0
  %v352 = vsel %vm157, %v341, 0
  %354 = vmatpush.bf16.xpose.msra.mxu0 0
  %355 = vmatpush.bf16.xpose.msra.mxu0 0
  %356 = vmatpush.bf16.xpose.msra.mxu0 0
  %357 = vmatpush.bf16.xpose.msra.mxu0 0
  %358 = vmatpush.bf16.xpose.msra.mxu0 0
  %359 = vmatpush.bf16.xpose.msra.mxu0 0
  %360 = vmatpush.bf16.xpose.msra.mxu0 %v352
  %361 = vmatpush.bf16.xpose.msra.mxu0 %v349
  %362 = vmatmul.bf16.gmra.mxu0 %v343
  %v363 = vpop.f32.mrf.mxu0
  %v364 = vadd.f32 0.0, %v363
  %v365 = vpop.f32.mrf.mxu0
  %v366 = vadd.f32 0.0, %v365
  %367 = vmatmul.bf16.gmra.mxu0 %v346
  %v368 = vpop.f32.mrf.mxu0
  %v369 = vadd.f32 0.0, %v368
  %v370 = vpop.f32.mrf.mxu0
  %371 = vdwg.mxu0
  %v375 = vunpack.c.l.b16 %v108
  %v376 = vunpack.c.l.b16 %v109
  %v377 = vunpack.c.l.b16 %v110
  %v378 = vpack.c.b16 %v376, %v375
  %v379 = vpack.c.b16 %v377, %v377
  %v383 = vunpack.c.l.b16 %v132
  %v384 = vunpack.c.l.b16 %v133
  %v385 = vunpack.c.l.b16 %v134
  %v386 = vpack.c.b16 %v384, %v383
  %v387 = vpack.c.b16 %v385, %v385
  %v389 = vsel %vm157, %v378, 0
  %v392 = vsel %vm157, %v379, 0
  %v395 = vsel %vm157, %v386, 0
  %v398 = vsel %vm157, %v387, 0
  %400 = vmatpush.bf16.xpose.msra.mxu0 0
  %401 = vmatpush.bf16.xpose.msra.mxu0 0
  %402 = vmatpush.bf16.xpose.msra.mxu0 0
  %403 = vmatpush.bf16.xpose.msra.mxu0 0
  %404 = vmatpush.bf16.xpose.msra.mxu0 0
  %405 = vmatpush.bf16.xpose.msra.mxu0 0
  %406 = vmatpush.bf16.xpose.msra.mxu0 %v398
  %407 = vmatpush.bf16.xpose.msra.mxu0 %v395
  %408 = vmatmul.bf16.gmra.mxu0 %v389
  %v409 = vpop.f32.mrf.mxu0
  %v410 = vadd.f32 0.0, %v409
  %v411 = vpop.f32.mrf.mxu0
  %v412 = vadd.f32 0.0, %v411
  %413 = vmatmul.bf16.gmra.mxu0 %v392
  %v414 = vpop.f32.mrf.mxu0
  %v415 = vadd.f32 0.0, %v414
  %v416 = vpop.f32.mrf.mxu0
  %417 = vdwg.mxu0
  %v421 = vunpack.c.l.b16 %v111
  %v422 = vunpack.c.l.b16 %v112
  %v423 = vunpack.c.l.b16 %v113
  %v424 = vpack.c.b16 %v422, %v421
  %v425 = vpack.c.b16 %v423, %v423
  %v429 = vunpack.c.l.b16 %v135
  %v430 = vunpack.c.l.b16 %v136
  %v431 = vunpack.c.l.b16 %v137
  %v432 = vpack.c.b16 %v430, %v429
  %v433 = vpack.c.b16 %v431, %v431
  %v435 = vsel %vm157, %v424, 0
  %v438 = vsel %vm157, %v425, 0
  %v441 = vsel %vm157, %v432, 0
  %v444 = vsel %vm157, %v433, 0
  %446 = vmatpush.bf16.xpose.msra.mxu0 0
  %447 = vmatpush.bf16.xpose.msra.mxu0 0
  %448 = vmatpush.bf16.xpose.msra.mxu0 0
  %449 = vmatpush.bf16.xpose.msra.mxu0 0
  %450 = vmatpush.bf16.xpose.msra.mxu0 0
  %451 = vmatpush.bf16.xpose.msra.mxu0 0
  %452 = vmatpush.bf16.xpose.msra.mxu0 %v444
  %453 = vmatpush.bf16.xpose.msra.mxu0 %v441
  %454 = vmatmul.bf16.gmra.mxu0 %v435
  %v455 = vpop.f32.mrf.mxu0
  %v456 = vadd.f32 0.0, %v455
  %v457 = vpop.f32.mrf.mxu0
  %v458 = vadd.f32 0.0, %v457
  %459 = vmatmul.bf16.gmra.mxu0 %v438
  %v460 = vpop.f32.mrf.mxu0
  %v461 = vadd.f32 0.0, %v460
  %v462 = vpop.f32.mrf.mxu0
  %463 = vdwg.mxu0
  %v467 = vunpack.c.l.b16 %v114
  %v468 = vunpack.c.l.b16 %v115
  %v469 = vunpack.c.l.b16 %v116
  %v470 = vpack.c.b16 %v468, %v467
  %v471 = vpack.c.b16 %v469, %v469
  %v475 = vunpack.c.l.b16 %v138
  %v476 = vunpack.c.l.b16 %v139
  %v477 = vunpack.c.l.b16 %v140
  %v478 = vpack.c.b16 %v476, %v475
  %v479 = vpack.c.b16 %v477, %v477
  %v481 = vsel %vm157, %v470, 0
  %v484 = vsel %vm157, %v471, 0
  %v487 = vsel %vm157, %v478, 0
  %v490 = vsel %vm157, %v479, 0
  %492 = vmatpush.bf16.xpose.msra.mxu0 0
  %493 = vmatpush.bf16.xpose.msra.mxu0 0
  %494 = vmatpush.bf16.xpose.msra.mxu0 0
  %495 = vmatpush.bf16.xpose.msra.mxu0 0
  %496 = vmatpush.bf16.xpose.msra.mxu0 0
  %497 = vmatpush.bf16.xpose.msra.mxu0 0
  %498 = vmatpush.bf16.xpose.msra.mxu0 %v490
  %499 = vmatpush.bf16.xpose.msra.mxu0 %v487
  %500 = vmatmul.bf16.gmra.mxu0 %v481
  %v501 = vpop.f32.mrf.mxu0
  %v502 = vadd.f32 0.0, %v501
  %v503 = vpop.f32.mrf.mxu0
  %v504 = vadd.f32 0.0, %v503
  %505 = vmatmul.bf16.gmra.mxu0 %v484
  %v506 = vpop.f32.mrf.mxu0
  %v507 = vadd.f32 0.0, %v506
  %v508 = vpop.f32.mrf.mxu0
  %509 = vdwg.mxu0
  %v510 = vmul.f32 %v180, 0.25
  %v511 = vmul.f32 %v182, 0.25
  %v512 = vmul.f32 %v185, 0.25
  %v513 = vmul.f32 %v226, 0.25
  %v514 = vmul.f32 %v228, 0.25
  %v515 = vmul.f32 %v231, 0.25
  %v516 = vmul.f32 %v272, 0.25
  %v517 = vmul.f32 %v274, 0.25
  %v518 = vmul.f32 %v277, 0.25
  %v519 = vmul.f32 %v318, 0.25
  %v520 = vmul.f32 %v320, 0.25
  %v521 = vmul.f32 %v323, 0.25
  %v522 = vmul.f32 %v364, 0.25
  %v523 = vmul.f32 %v366, 0.25
  %v524 = vmul.f32 %v369, 0.25
  %v525 = vmul.f32 %v410, 0.25
  %v526 = vmul.f32 %v412, 0.25
  %v527 = vmul.f32 %v415, 0.25
  %v528 = vmul.f32 %v456, 0.25
  %v529 = vmul.f32 %v458, 0.25
  %v530 = vmul.f32 %v461, 0.25
  %v531 = vmul.f32 %v502, 0.25
  %v532 = vmul.f32 %v504, 0.25
  %v533 = vmul.f32 %v507, 0.25
  %v534 = vlaneseq
  %v535 = vshrl.u32 %v534, 7
  %v536 = vadd.s32 %v535, 8
  %v537 = vadd.s32 %v535, 16
  %v538 = vlaneseq
  %v539 = vand.u32 %v538, 127
  %s540 = smul.u32 0, 24
  %v541 = vstv %s540
  %v542 = vadd.s32 %v539, %v541
  %vm543 = vcmp.le.s32.totalorder %v542, %v535
  %vm544 = vcmp.le.s32.totalorder %v542, %v536
  %vm545 = vcmp.le.s32.totalorder %v542, %v537
  %v546 = vsel %vm543, %v510, -1e+30
  %v547 = vsel %vm544, %v511, -1e+30
  %v548 = vsel %vm545, %v512, -1e+30
  %v549 = vsel %vm543, %v513, -1e+30
  %v550 = vsel %vm544, %v514, -1e+30
  %v551 = vsel %vm545, %v515, -1e+30
  %v552 = vsel %vm543, %v516, -1e+30
  %v553 = vsel %vm544, %v517, -1e+30
  %v554 = vsel %vm545, %v518, -1e+30
  %v555 = vsel %vm543, %v519, -1e+30
  %v556 = vsel %vm544, %v520, -1e+30
  %v557 = vsel %vm545, %v521, -1e+30
  %v558 = vsel %vm543, %v522, -1e+30
  %v559 = vsel %vm544, %v523, -1e+30
  %v560 = vsel %vm545, %v524, -1e+30
  %v561 = vsel %vm543, %v525, -1e+30
  %v562 = vsel %vm544, %v526, -1e+30
  %v563 = vsel %vm545, %v527, -1e+30
  %v564 = vsel %vm543, %v528, -1e+30
  %v565 = vsel %vm544, %v529, -1e+30
  %v566 = vsel %vm545, %v530, -1e+30
  %v567 = vsel %vm543, %v531, -1e+30
  %v568 = vsel %vm544, %v532, -1e+30
  %v569 = vsel %vm545, %v533, -1e+30
  %v570 = vld [vmem:[#allocation2] sm:$0xff]
  %v571 = vld [vmem:[#allocation2 + $0x8] sm:$0xff]
  %v572 = vld [vmem:[#allocation2 + $0x10] sm:$0xff]
  %v573 = vld [vmem:[#allocation2 + $0x18] sm:$0xff]
  %v574 = vld [vmem:[#allocation2 + $0x20] sm:$0xff]
  %v575 = vld [vmem:[#allocation2 + $0x28] sm:$0xff]
  %v576 = vld [vmem:[#allocation2 + $0x30] sm:$0xff]
  %v577 = vld [vmem:[#allocation2 + $0x38] sm:$0xff]
  %v578 = vld [vmem:[#allocation2 + $0x40] sm:$0xff]
  %v579 = vld [vmem:[#allocation2 + $0x48] sm:$0xff]
  %v580 = vld [vmem:[#allocation2 + $0x50] sm:$0xff]
  %v581 = vld [vmem:[#allocation2 + $0x58] sm:$0xff]
  %v582 = vld [vmem:[#allocation2 + $0x60] sm:$0xff]
  %v583 = vld [vmem:[#allocation2 + $0x68] sm:$0xff]
  %v584 = vld [vmem:[#allocation2 + $0x70] sm:$0xff]
  %v585 = vld [vmem:[#allocation2 + $0x78] sm:$0xff]
  %v586 = vld [vmem:[#allocation2 + $0x80] sm:$0xff]
  %v587 = vld [vmem:[#allocation2 + $0x88] sm:$0xff]
  %v588 = vld [vmem:[#allocation2 + $0x90] sm:$0xff]
  %v589 = vld [vmem:[#allocation2 + $0x98] sm:$0xff]
  %v590 = vld [vmem:[#allocation2 + $0xa0] sm:$0xff]
  %v591 = vld [vmem:[#allocation2 + $0xa8] sm:$0xff]
  %v592 = vld [vmem:[#allocation2 + $0xb0] sm:$0xff]
  %v593 = vld [vmem:[#allocation2 + $0xb8] sm:$0xff]
  %vm594 = vcmask 195584
  %v595 = vsel %vm594, %v546, -inf
  %596 = vmax.xlane.f32.xlu0 %v595
  %v597 = vpop.xlane.xlu0 %596
  %v598 = vsel %vm594, %v547, -inf
  %599 = vmax.xlane.f32.xlu0 %v598
  %v600 = vpop.xlane.xlu0 %599
  %v601 = vsel %vm594, %v548, -inf
  %602 = vmax.xlane.f32.xlu0 %v601
  %v603 = vpop.xlane.xlu0 %602
  %v604 = vsel %vm594, %v549, -inf
  %605 = vmax.xlane.f32.xlu0 %v604
  %v606 = vpop.xlane.xlu0 %605
  %v607 = vsel %vm594, %v550, -inf
  %608 = vmax.xlane.f32.xlu0 %v607
  %v609 = vpop.xlane.xlu0 %608
  %v610 = vsel %vm594, %v551, -inf
  %611 = vmax.xlane.f32.xlu0 %v610
  %v612 = vpop.xlane.xlu0 %611
  %v613 = vsel %vm594, %v552, -inf
  %614 = vmax.xlane.f32.xlu0 %v613
  %v615 = vpop.xlane.xlu0 %614
  %v616 = vsel %vm594, %v553, -inf
  %617 = vmax.xlane.f32.xlu0 %v616
  %v618 = vpop.xlane.xlu0 %617
  %v619 = vsel %vm594, %v554, -inf
  %620 = vmax.xlane.f32.xlu0 %v619
  %v621 = vpop.xlane.xlu0 %620
  %v622 = vsel %vm594, %v555, -inf
  %623 = vmax.xlane.f32.xlu0 %v622
  %v624 = vpop.xlane.xlu0 %623
  %v625 = vsel %vm594, %v556, -inf
  %626 = vmax.xlane.f32.xlu0 %v625
  %v627 = vpop.xlane.xlu0 %626
  %v628 = vsel %vm594, %v557, -inf
  %629 = vmax.xlane.f32.xlu0 %v628
  %v630 = vpop.xlane.xlu0 %629
  %v631 = vsel %vm594, %v558, -inf
  %632 = vmax.xlane.f32.xlu0 %v631
  %v633 = vpop.xlane.xlu0 %632
  %v634 = vsel %vm594, %v559, -inf
  %635 = vmax.xlane.f32.xlu0 %v634
  %v636 = vpop.xlane.xlu0 %635
  %v637 = vsel %vm594, %v560, -inf
  %638 = vmax.xlane.f32.xlu0 %v637
  %v639 = vpop.xlane.xlu0 %638
  %v640 = vsel %vm594, %v561, -inf
  %641 = vmax.xlane.f32.xlu0 %v640
  %v642 = vpop.xlane.xlu0 %641
  %v643 = vsel %vm594, %v562, -inf
  %644 = vmax.xlane.f32.xlu0 %v643
  %v645 = vpop.xlane.xlu0 %644
  %v646 = vsel %vm594, %v563, -inf
  %647 = vmax.xlane.f32.xlu0 %v646
  %v648 = vpop.xlane.xlu0 %647
  %v649 = vsel %vm594, %v564, -inf
  %650 = vmax.xlane.f32.xlu0 %v649
  %v651 = vpop.xlane.xlu0 %650
  %v652 = vsel %vm594, %v565, -inf
  %653 = vmax.xlane.f32.xlu0 %v652
  %v654 = vpop.xlane.xlu0 %653
  %v655 = vsel %vm594, %v566, -inf
  %656 = vmax.xlane.f32.xlu0 %v655
  %v657 = vpop.xlane.xlu0 %656
  %v658 = vsel %vm594, %v567, -inf
  %659 = vmax.xlane.f32.xlu0 %v658
  %v660 = vpop.xlane.xlu0 %659
  %v661 = vsel %vm594, %v568, -inf
  %662 = vmax.xlane.f32.xlu0 %v661
  %v663 = vpop.xlane.xlu0 %662
  %v664 = vsel %vm594, %v569, -inf
  %665 = vmax.xlane.f32.xlu0 %v664
  %v666 = vpop.xlane.xlu0 %665
  %v667 = vmax.f32 %v570, %v597
  %v668 = vmax.f32 %v571, %v600
  %v669 = vmax.f32 %v572, %v603
  %v670 = vmax.f32 %v573, %v606
  %v671 = vmax.f32 %v574, %v609
  %v672 = vmax.f32 %v575, %v612
  %v673 = vmax.f32 %v576, %v615
  %v674 = vmax.f32 %v577, %v618
  %v675 = vmax.f32 %v578, %v621
  %v676 = vmax.f32 %v579, %v624
  %v677 = vmax.f32 %v580, %v627
  %v678 = vmax.f32 %v581, %v630
  %v679 = vmax.f32 %v582, %v633
  %v680 = vmax.f32 %v583, %v636
  %v681 = vmax.f32 %v584, %v639
  %v682 = vmax.f32 %v585, %v642
  %v683 = vmax.f32 %v586, %v645
  %v684 = vmax.f32 %v587, %v648
  %v685 = vmax.f32 %v588, %v651
  %v686 = vmax.f32 %v589, %v654
  %v687 = vmax.f32 %v590, %v657
  %v688 = vmax.f32 %v591, %v660
  %v689 = vmax.f32 %v592, %v663
  %v690 = vmax.f32 %v593, %v666
  %v691 = vsub.f32 %v570, %v667
  %v692 = vsub.f32 %v571, %v668
  %v693 = vsub.f32 %v572, %v669
  %v694 = vsub.f32 %v573, %v670
  %v695 = vsub.f32 %v574, %v671
  %v696 = vsub.f32 %v575, %v672
  %v697 = vsub.f32 %v576, %v673
  %v698 = vsub.f32 %v577, %v674
  %v699 = vsub.f32 %v578, %v675
  %v700 = vsub.f32 %v579, %v676
  %v701 = vsub.f32 %v580, %v677
  %v702 = vsub.f32 %v581, %v678
  %v703 = vsub.f32 %v582, %v679
  %v704 = vsub.f32 %v583, %v680
  %v705 = vsub.f32 %v584, %v681
  %v706 = vsub.f32 %v585, %v682
  %v707 = vsub.f32 %v586, %v683
  %v708 = vsub.f32 %v587, %v684
  %v709 = vsub.f32 %v588, %v685
  %v710 = vsub.f32 %v589, %v686
  %v711 = vsub.f32 %v590, %v687
  %v712 = vsub.f32 %v591, %v688
  %v713 = vsub.f32 %v592, %v689
  %v714 = vsub.f32 %v593, %v690
  %v715 = vmul.f32 %v691, 1.442695
  %v716 = vpow.pop %v715
  %v717 = vmul.f32 %v692, 1.442695
  %v718 = vpow.pop %v717
  %v719 = vmul.f32 %v693, 1.442695
  %v720 = vpow.pop %v719
  %v721 = vmul.f32 %v694, 1.442695
  %v722 = vpow.pop %v721
  %v723 = vmul.f32 %v695, 1.442695
  %v724 = vpow.pop %v723
  %v725 = vmul.f32 %v696, 1.442695
  %v726 = vpow.pop %v725
  %v727 = vmul.f32 %v697, 1.442695
  %v728 = vpow.pop %v727
  %v729 = vmul.f32 %v698, 1.442695
  %v730 = vpow.pop %v729
  %v731 = vmul.f32 %v699, 1.442695
  %v732 = vpow.pop %v731
  %v733 = vmul.f32 %v700, 1.442695
  %v734 = vpow.pop %v733
  %v735 = vmul.f32 %v701, 1.442695
  %v736 = vpow.pop %v735
  %v737 = vmul.f32 %v702, 1.442695
  %v738 = vpow.pop %v737
  %v739 = vmul.f32 %v703, 1.442695
  %v740 = vpow.pop %v739
  %v741 = vmul.f32 %v704, 1.442695
  %v742 = vpow.pop %v741
  %v743 = vmul.f32 %v705, 1.442695
  %v744 = vpow.pop %v743
  %v745 = vmul.f32 %v706, 1.442695
  %v746 = vpow.pop %v745
  %v747 = vmul.f32 %v707, 1.442695
  %v748 = vpow.pop %v747
  %v749 = vmul.f32 %v708, 1.442695
  %v750 = vpow.pop %v749
  %v751 = vmul.f32 %v709, 1.442695
  %v752 = vpow.pop %v751
  %v753 = vmul.f32 %v710, 1.442695
  %v754 = vpow.pop %v753
  %v755 = vmul.f32 %v711, 1.442695
  %v756 = vpow.pop %v755
  %v757 = vmul.f32 %v712, 1.442695
  %v758 = vpow.pop %v757
  %v759 = vmul.f32 %v713, 1.442695
  %v760 = vpow.pop %v759
  %v761 = vmul.f32 %v714, 1.442695
  %v762 = vpow.pop %v761
  %764 = vset.pattern.permute.xlu0 0
  %765 = vperm.xlu0 %764, %v667
  %v766 = vpop.permute.xlu0 %765
  %769 = vset.pattern.permute.xlu0 0
  %770 = vperm.xlu0 %769, %v668
  %v771 = vpop.permute.xlu0 %770
  %774 = vset.pattern.permute.xlu0 0
  %775 = vperm.xlu0 %774, %v669
  %v776 = vpop.permute.xlu0 %775
  %779 = vset.pattern.permute.xlu0 0
  %780 = vperm.xlu0 %779, %v670
  %v781 = vpop.permute.xlu0 %780
  %784 = vset.pattern.permute.xlu0 0
  %785 = vperm.xlu0 %784, %v671
  %v786 = vpop.permute.xlu0 %785
  %789 = vset.pattern.permute.xlu0 0
  %790 = vperm.xlu0 %789, %v672
  %v791 = vpop.permute.xlu0 %790
  %794 = vset.pattern.permute.xlu0 0
  %795 = vperm.xlu0 %794, %v673
  %v796 = vpop.permute.xlu0 %795
  %799 = vset.pattern.permute.xlu0 0
  %800 = vperm.xlu0 %799, %v674
  %v801 = vpop.permute.xlu0 %800
  %804 = vset.pattern.permute.xlu0 0
  %805 = vperm.xlu0 %804, %v675
  %v806 = vpop.permute.xlu0 %805
  %809 = vset.pattern.permute.xlu0 0
  %810 = vperm.xlu0 %809, %v676
  %v811 = vpop.permute.xlu0 %810
  %814 = vset.pattern.permute.xlu0 0
  %815 = vperm.xlu0 %814, %v677
  %v816 = vpop.permute.xlu0 %815
  %819 = vset.pattern.permute.xlu0 0
  %820 = vperm.xlu0 %819, %v678
  %v821 = vpop.permute.xlu0 %820
  %824 = vset.pattern.permute.xlu0 0
  %825 = vperm.xlu0 %824, %v679
  %v826 = vpop.permute.xlu0 %825
  %829 = vset.pattern.permute.xlu0 0
  %830 = vperm.xlu0 %829, %v680
  %v831 = vpop.permute.xlu0 %830
  %834 = vset.pattern.permute.xlu0 0
  %835 = vperm.xlu0 %834, %v681
  %v836 = vpop.permute.xlu0 %835
  %839 = vset.pattern.permute.xlu0 0
  %840 = vperm.xlu0 %839, %v682
  %v841 = vpop.permute.xlu0 %840
  %844 = vset.pattern.permute.xlu0 0
  %845 = vperm.xlu0 %844, %v683
  %v846 = vpop.permute.xlu0 %845
  %849 = vset.pattern.permute.xlu0 0
  %850 = vperm.xlu0 %849, %v684
  %v851 = vpop.permute.xlu0 %850
  %854 = vset.pattern.permute.xlu0 0
  %855 = vperm.xlu0 %854, %v685
  %v856 = vpop.permute.xlu0 %855
  %859 = vset.pattern.permute.xlu0 0
  %860 = vperm.xlu0 %859, %v686
  %v861 = vpop.permute.xlu0 %860
  %864 = vset.pattern.permute.xlu0 0
  %865 = vperm.xlu0 %864, %v687
  %v866 = vpop.permute.xlu0 %865
  %869 = vset.pattern.permute.xlu0 0
  %870 = vperm.xlu0 %869, %v688
  %v871 = vpop.permute.xlu0 %870
  %874 = vset.pattern.permute.xlu0 0
  %875 = vperm.xlu0 %874, %v689
  %v876 = vpop.permute.xlu0 %875
  %879 = vset.pattern.permute.xlu0 0
  %880 = vperm.xlu0 %879, %v690
  %v881 = vpop.permute.xlu0 %880
  %v883 = vsub.f32 %v546, %v766
  %v884 = vsub.f32 %v547, %v771
  %v885 = vsub.f32 %v548, %v776
  %v886 = vsub.f32 %v549, %v781
  %v887 = vsub.f32 %v550, %v786
  %v888 = vsub.f32 %v551, %v791
  %v889 = vsub.f32 %v552, %v796
  %v890 = vsub.f32 %v553, %v801
  %v891 = vsub.f32 %v554, %v806
  %v892 = vsub.f32 %v555, %v811
  %v893 = vsub.f32 %v556, %v816
  %v894 = vsub.f32 %v557, %v821
  %v895 = vsub.f32 %v558, %v826
  %v896 = vsub.f32 %v559, %v831
  %v897 = vsub.f32 %v560, %v836
  %v898 = vsub.f32 %v561, %v841
  %v899 = vsub.f32 %v562, %v846
  %v900 = vsub.f32 %v563, %v851
  %v901 = vsub.f32 %v564, %v856
  %v902 = vsub.f32 %v565, %v861
  %v903 = vsub.f32 %v566, %v866
  %v904 = vsub.f32 %v567, %v871
  %v905 = vsub.f32 %v568, %v876
  %v906 = vsub.f32 %v569, %v881
  %v907 = vmul.f32 %v883, 1.442695
  %v908 = vpow.pop %v907
  %v909 = vmul.f32 %v884, 1.442695
  %v910 = vpow.pop %v909
  %v911 = vmul.f32 %v885, 1.442695
  %v912 = vpow.pop %v911
  %v913 = vmul.f32 %v886, 1.442695
  %v914 = vpow.pop %v913
  %v915 = vmul.f32 %v887, 1.442695
  %v916 = vpow.pop %v915
  %v917 = vmul.f32 %v888, 1.442695
  %v918 = vpow.pop %v917
  %v919 = vmul.f32 %v889, 1.442695
  %v920 = vpow.pop %v919
  %v921 = vmul.f32 %v890, 1.442695
  %v922 = vpow.pop %v921
  %v923 = vmul.f32 %v891, 1.442695
  %v924 = vpow.pop %v923
  %v925 = vmul.f32 %v892, 1.442695
  %v926 = vpow.pop %v925
  %v927 = vmul.f32 %v893, 1.442695
  %v928 = vpow.pop %v927
  %v929 = vmul.f32 %v894, 1.442695
  %v930 = vpow.pop %v929
  %v931 = vmul.f32 %v895, 1.442695
  %v932 = vpow.pop %v931
  %v933 = vmul.f32 %v896, 1.442695
  %v934 = vpow.pop %v933
  %v935 = vmul.f32 %v897, 1.442695
  %v936 = vpow.pop %v935
  %v937 = vmul.f32 %v898, 1.442695
  %v938 = vpow.pop %v937
  %v939 = vmul.f32 %v899, 1.442695
  %v940 = vpow.pop %v939
  %v941 = vmul.f32 %v900, 1.442695
  %v942 = vpow.pop %v941
  %v943 = vmul.f32 %v901, 1.442695
  %v944 = vpow.pop %v943
  %v945 = vmul.f32 %v902, 1.442695
  %v946 = vpow.pop %v945
  %v947 = vmul.f32 %v903, 1.442695
  %v948 = vpow.pop %v947
  %v949 = vmul.f32 %v904, 1.442695
  %v950 = vpow.pop %v949
  %v951 = vmul.f32 %v905, 1.442695
  %v952 = vpow.pop %v951
  %v953 = vmul.f32 %v906, 1.442695
  %v954 = vpow.pop %v953
  %v955 = vld [vmem:[#allocation3] sm:$0xff]
  %v956 = vld [vmem:[#allocation3 + $0x8] sm:$0xff]
  %v957 = vld [vmem:[#allocation3 + $0x10] sm:$0xff]
  %v958 = vld [vmem:[#allocation3 + $0x18] sm:$0xff]
  %v959 = vld [vmem:[#allocation3 + $0x20] sm:$0xff]
  %v960 = vld [vmem:[#allocation3 + $0x28] sm:$0xff]
  %v961 = vld [vmem:[#allocation3 + $0x30] sm:$0xff]
  %v962 = vld [vmem:[#allocation3 + $0x38] sm:$0xff]
  %v963 = vld [vmem:[#allocation3 + $0x40] sm:$0xff]
  %v964 = vld [vmem:[#allocation3 + $0x48] sm:$0xff]
  %v965 = vld [vmem:[#allocation3 + $0x50] sm:$0xff]
  %v966 = vld [vmem:[#allocation3 + $0x58] sm:$0xff]
  %v967 = vld [vmem:[#allocation3 + $0x60] sm:$0xff]
  %v968 = vld [vmem:[#allocation3 + $0x68] sm:$0xff]
  %v969 = vld [vmem:[#allocation3 + $0x70] sm:$0xff]
  %v970 = vld [vmem:[#allocation3 + $0x78] sm:$0xff]
  %v971 = vld [vmem:[#allocation3 + $0x80] sm:$0xff]
  %v972 = vld [vmem:[#allocation3 + $0x88] sm:$0xff]
  %v973 = vld [vmem:[#allocation3 + $0x90] sm:$0xff]
  %v974 = vld [vmem:[#allocation3 + $0x98] sm:$0xff]
  %v975 = vld [vmem:[#allocation3 + $0xa0] sm:$0xff]
  %v976 = vld [vmem:[#allocation3 + $0xa8] sm:$0xff]
  %v977 = vld [vmem:[#allocation3 + $0xb0] sm:$0xff]
  %v978 = vld [vmem:[#allocation3 + $0xb8] sm:$0xff]
  %v979 = vmul.f32 %v716, %v955
  %v980 = vmul.f32 %v718, %v956
  %v981 = vmul.f32 %v720, %v957
  %v982 = vmul.f32 %v722, %v958
  %v983 = vmul.f32 %v724, %v959
  %v984 = vmul.f32 %v726, %v960
  %v985 = vmul.f32 %v728, %v961
  %v986 = vmul.f32 %v730, %v962
  %v987 = vmul.f32 %v732, %v963
  %v988 = vmul.f32 %v734, %v964
  %v989 = vmul.f32 %v736, %v965
  %v990 = vmul.f32 %v738, %v966
  %v991 = vmul.f32 %v740, %v967
  %v992 = vmul.f32 %v742, %v968
  %v993 = vmul.f32 %v744, %v969
  %v994 = vmul.f32 %v746, %v970
  %v995 = vmul.f32 %v748, %v971
  %v996 = vmul.f32 %v750, %v972
  %v997 = vmul.f32 %v752, %v973
  %v998 = vmul.f32 %v754, %v974
  %v999 = vmul.f32 %v756, %v975
  %v1000 = vmul.f32 %v758, %v976
  %v1001 = vmul.f32 %v760, %v977
  %v1002 = vmul.f32 %v762, %v978
  %v1003 = vsel %vm594, %v908, 0.0
  %1004 = vadd.xlane.f32.xlu0 %v1003
  %v1005 = vpop.xlane.xlu0 %1004
  %v1006 = vsel %vm594, %v910, 0.0
  %1007 = vadd.xlane.f32.xlu0 %v1006
  %v1008 = vpop.xlane.xlu0 %1007
  %v1009 = vsel %vm594, %v912, 0.0
  %1010 = vadd.xlane.f32.xlu0 %v1009
  %v1011 = vpop.xlane.xlu0 %1010
  %v1012 = vsel %vm594, %v914, 0.0
  %1013 = vadd.xlane.f32.xlu0 %v1012
  %v1014 = vpop.xlane.xlu0 %1013
  %v1015 = vsel %vm594, %v916, 0.0
  %1016 = vadd.xlane.f32.xlu0 %v1015
  %v1017 = vpop.xlane.xlu0 %1016
  %v1018 = vsel %vm594, %v918, 0.0
  %1019 = vadd.xlane.f32.xlu0 %v1018
  %v1020 = vpop.xlane.xlu0 %1019
  %v1021 = vsel %vm594, %v920, 0.0
  %1022 = vadd.xlane.f32.xlu0 %v1021
  %v1023 = vpop.xlane.xlu0 %1022
  %v1024 = vsel %vm594, %v922, 0.0
  %1025 = vadd.xlane.f32.xlu0 %v1024
  %v1026 = vpop.xlane.xlu0 %1025
  %v1027 = vsel %vm594, %v924, 0.0
  %1028 = vadd.xlane.f32.xlu0 %v1027
  %v1029 = vpop.xlane.xlu0 %1028
  %v1030 = vsel %vm594, %v926, 0.0
  %1031 = vadd.xlane.f32.xlu0 %v1030
  %v1032 = vpop.xlane.xlu0 %1031
  %v1033 = vsel %vm594, %v928, 0.0
  %1034 = vadd.xlane.f32.xlu0 %v1033
  %v1035 = vpop.xlane.xlu0 %1034
  %v1036 = vsel %vm594, %v930, 0.0
  %1037 = vadd.xlane.f32.xlu0 %v1036
  %v1038 = vpop.xlane.xlu0 %1037
  %v1039 = vsel %vm594, %v932, 0.0
  %1040 = vadd.xlane.f32.xlu0 %v1039
  %v1041 = vpop.xlane.xlu0 %1040
  %v1042 = vsel %vm594, %v934, 0.0
  %1043 = vadd.xlane.f32.xlu0 %v1042
  %v1044 = vpop.xlane.xlu0 %1043
  %v1045 = vsel %vm594, %v936, 0.0
  %1046 = vadd.xlane.f32.xlu0 %v1045
  %v1047 = vpop.xlane.xlu0 %1046
  %v1048 = vsel %vm594, %v938, 0.0
  %1049 = vadd.xlane.f32.xlu0 %v1048
  %v1050 = vpop.xlane.xlu0 %1049
  %v1051 = vsel %vm594, %v940, 0.0
  %1052 = vadd.xlane.f32.xlu0 %v1051
  %v1053 = vpop.xlane.xlu0 %1052
  %v1054 = vsel %vm594, %v942, 0.0
  %1055 = vadd.xlane.f32.xlu0 %v1054
  %v1056 = vpop.xlane.xlu0 %1055
  %v1057 = vsel %vm594, %v944, 0.0
  %1058 = vadd.xlane.f32.xlu0 %v1057
  %v1059 = vpop.xlane.xlu0 %1058
  %v1060 = vsel %vm594, %v946, 0.0
  %1061 = vadd.xlane.f32.xlu0 %v1060
  %v1062 = vpop.xlane.xlu0 %1061
  %v1063 = vsel %vm594, %v948, 0.0
  %1064 = vadd.xlane.f32.xlu0 %v1063
  %v1065 = vpop.xlane.xlu0 %1064
  %v1066 = vsel %vm594, %v950, 0.0
  %1067 = vadd.xlane.f32.xlu0 %v1066
  %v1068 = vpop.xlane.xlu0 %1067
  %v1069 = vsel %vm594, %v952, 0.0
  %1070 = vadd.xlane.f32.xlu0 %v1069
  %v1071 = vpop.xlane.xlu0 %1070
  %v1072 = vsel %vm594, %v954, 0.0
  %1073 = vadd.xlane.f32.xlu0 %v1072
  %v1074 = vpop.xlane.xlu0 %1073
  %v1075 = vadd.f32 %v979, %v1005
  %v1076 = vadd.f32 %v980, %v1008
  %v1077 = vadd.f32 %v981, %v1011
  %v1078 = vadd.f32 %v982, %v1014
  %v1079 = vadd.f32 %v983, %v1017
  %v1080 = vadd.f32 %v984, %v1020
  %v1081 = vadd.f32 %v985, %v1023
  %v1082 = vadd.f32 %v986, %v1026
  %v1083 = vadd.f32 %v987, %v1029
  %v1084 = vadd.f32 %v988, %v1032
  %v1085 = vadd.f32 %v989, %v1035
  %v1086 = vadd.f32 %v990, %v1038
  %v1087 = vadd.f32 %v991, %v1041
  %v1088 = vadd.f32 %v992, %v1044
  %v1089 = vadd.f32 %v993, %v1047
  %v1090 = vadd.f32 %v994, %v1050
  %v1091 = vadd.f32 %v995, %v1053
  %v1092 = vadd.f32 %v996, %v1056
  %v1093 = vadd.f32 %v997, %v1059
  %v1094 = vadd.f32 %v998, %v1062
  %v1095 = vadd.f32 %v999, %v1065
  %v1096 = vadd.f32 %v1000, %v1068
  %v1097 = vadd.f32 %v1001, %v1071
  %v1098 = vadd.f32 %v1002, %v1074
  %vm1099 = vcmask 7168
  %1100 = vst.msk [vmem:[#allocation3] sm:$0xff] %vm1099, %v1075
  %1101 = vst.msk [vmem:[#allocation3 + $0x8] sm:$0xff] %vm1099, %v1076
  %1102 = vst.msk [vmem:[#allocation3 + $0x10] sm:$0xff] %vm1099, %v1077
  %1103 = vst.msk [vmem:[#allocation3 + $0x18] sm:$0xff] %vm1099, %v1078
  %1104 = vst.msk [vmem:[#allocation3 + $0x20] sm:$0xff] %vm1099, %v1079
  %1105 = vst.msk [vmem:[#allocation3 + $0x28] sm:$0xff] %vm1099, %v1080
  %1106 = vst.msk [vmem:[#allocation3 + $0x30] sm:$0xff] %vm1099, %v1081
  %1107 = vst.msk [vmem:[#allocation3 + $0x38] sm:$0xff] %vm1099, %v1082
  %1108 = vst.msk [vmem:[#allocation3 + $0x40] sm:$0xff] %vm1099, %v1083
  %1109 = vst.msk [vmem:[#allocation3 + $0x48] sm:$0xff] %vm1099, %v1084
  %1110 = vst.msk [vmem:[#allocation3 + $0x50] sm:$0xff] %vm1099, %v1085
  %1111 = vst.msk [vmem:[#allocation3 + $0x58] sm:$0xff] %vm1099, %v1086
  %1112 = vst.msk [vmem:[#allocation3 + $0x60] sm:$0xff] %vm1099, %v1087
  %1113 = vst.msk [vmem:[#allocation3 + $0x68] sm:$0xff] %vm1099, %v1088
  %1114 = vst.msk [vmem:[#allocation3 + $0x70] sm:$0xff] %vm1099, %v1089
  %1115 = vst.msk [vmem:[#allocation3 + $0x78] sm:$0xff] %vm1099, %v1090
  %1116 = vst.msk [vmem:[#allocation3 + $0x80] sm:$0xff] %vm1099, %v1091
  %1117 = vst.msk [vmem:[#allocation3 + $0x88] sm:$0xff] %vm1099, %v1092
  %1118 = vst.msk [vmem:[#allocation3 + $0x90] sm:$0xff] %vm1099, %v1093
  %1119 = vst.msk [vmem:[#allocation3 + $0x98] sm:$0xff] %vm1099, %v1094
  %1120 = vst.msk [vmem:[#allocation3 + $0xa0] sm:$0xff] %vm1099, %v1095
  %1121 = vst.msk [vmem:[#allocation3 + $0xa8] sm:$0xff] %vm1099, %v1096
  %1122 = vst.msk [vmem:[#allocation3 + $0xb0] sm:$0xff] %vm1099, %v1097
  %1123 = vst.msk [vmem:[#allocation3 + $0xb8] sm:$0xff] %vm1099, %v1098
  %v1124 = vld [vmem:[#allocation4] sm:$0xff]
  %v1125 = vld [vmem:[#allocation4 + $0x8] sm:$0xff]
  %v1126 = vld [vmem:[#allocation4 + $0x10] sm:$0xff]
  %v1127 = vld [vmem:[#allocation4 + $0x18] sm:$0xff]
  %v1128 = vld [vmem:[#allocation4 + $0x20] sm:$0xff]
  %v1129 = vld [vmem:[#allocation4 + $0x28] sm:$0xff]
  %v1130 = vld [vmem:[#allocation4 + $0x30] sm:$0xff]
  %v1131 = vld [vmem:[#allocation4 + $0x38] sm:$0xff]
  %v1132 = vld [vmem:[#allocation4 + $0x40] sm:$0xff]
  %v1133 = vld [vmem:[#allocation4 + $0x48] sm:$0xff]
  %v1134 = vld [vmem:[#allocation4 + $0x50] sm:$0xff]
  %v1135 = vld [vmem:[#allocation4 + $0x58] sm:$0xff]
  %v1136 = vld [vmem:[#allocation4 + $0x60] sm:$0xff]
  %v1137 = vld [vmem:[#allocation4 + $0x68] sm:$0xff]
  %v1138 = vld [vmem:[#allocation4 + $0x70] sm:$0xff]
  %v1139 = vld [vmem:[#allocation4 + $0x78] sm:$0xff]
  %v1140 = vld [vmem:[#allocation4 + $0x80] sm:$0xff]
  %v1141 = vld [vmem:[#allocation4 + $0x88] sm:$0xff]
  %v1142 = vld [vmem:[#allocation4 + $0x90] sm:$0xff]
  %v1143 = vld [vmem:[#allocation4 + $0x98] sm:$0xff]
  %v1144 = vld [vmem:[#allocation4 + $0xa0] sm:$0xff]
  %v1145 = vld [vmem:[#allocation4 + $0xa8] sm:$0xff]
  %v1146 = vld [vmem:[#allocation4 + $0xb0] sm:$0xff]
  %v1147 = vld [vmem:[#allocation4 + $0xb8] sm:$0xff]
  %1149 = vset.pattern.permute.xlu0 0
  %1150 = vperm.xlu0 %1149, %v716
  %v1151 = vpop.permute.xlu0 %1150
  %1154 = vset.pattern.permute.xlu0 0
  %1155 = vperm.xlu0 %1154, %v718
  %v1156 = vpop.permute.xlu0 %1155
  %1159 = vset.pattern.permute.xlu0 0
  %1160 = vperm.xlu0 %1159, %v720
  %v1161 = vpop.permute.xlu0 %1160
  %1164 = vset.pattern.permute.xlu0 0
  %1165 = vperm.xlu0 %1164, %v722
  %v1166 = vpop.permute.xlu0 %1165
  %1169 = vset.pattern.permute.xlu0 0
  %1170 = vperm.xlu0 %1169, %v724
  %v1171 = vpop.permute.xlu0 %1170
  %1174 = vset.pattern.permute.xlu0 0
  %1175 = vperm.xlu0 %1174, %v726
  %v1176 = vpop.permute.xlu0 %1175
  %1179 = vset.pattern.permute.xlu0 0
  %1180 = vperm.xlu0 %1179, %v728
  %v1181 = vpop.permute.xlu0 %1180
  %1184 = vset.pattern.permute.xlu0 0
  %1185 = vperm.xlu0 %1184, %v730
  %v1186 = vpop.permute.xlu0 %1185
  %1189 = vset.pattern.permute.xlu0 0
  %1190 = vperm.xlu0 %1189, %v732
  %v1191 = vpop.permute.xlu0 %1190
  %1194 = vset.pattern.permute.xlu0 0
  %1195 = vperm.xlu0 %1194, %v734
  %v1196 = vpop.permute.xlu0 %1195
  %1199 = vset.pattern.permute.xlu0 0
  %1200 = vperm.xlu0 %1199, %v736
  %v1201 = vpop.permute.xlu0 %1200
  %1204 = vset.pattern.permute.xlu0 0
  %1205 = vperm.xlu0 %1204, %v738
  %v1206 = vpop.permute.xlu0 %1205
  %1209 = vset.pattern.permute.xlu0 0
  %1210 = vperm.xlu0 %1209, %v740
  %v1211 = vpop.permute.xlu0 %1210
  %1214 = vset.pattern.permute.xlu0 0
  %1215 = vperm.xlu0 %1214, %v742
  %v1216 = vpop.permute.xlu0 %1215
  %1219 = vset.pattern.permute.xlu0 0
  %1220 = vperm.xlu0 %1219, %v744
  %v1221 = vpop.permute.xlu0 %1220
  %1224 = vset.pattern.permute.xlu0 0
  %1225 = vperm.xlu0 %1224, %v746
  %v1226 = vpop.permute.xlu0 %1225
  %1229 = vset.pattern.permute.xlu0 0
  %1230 = vperm.xlu0 %1229, %v748
  %v1231 = vpop.permute.xlu0 %1230
  %1234 = vset.pattern.permute.xlu0 0
  %1235 = vperm.xlu0 %1234, %v750
  %v1236 = vpop.permute.xlu0 %1235
  %1239 = vset.pattern.permute.xlu0 0
  %1240 = vperm.xlu0 %1239, %v752
  %v1241 = vpop.permute.xlu0 %1240
  %1244 = vset.pattern.permute.xlu0 0
  %1245 = vperm.xlu0 %1244, %v754
  %v1246 = vpop.permute.xlu0 %1245
  %1249 = vset.pattern.permute.xlu0 0
  %1250 = vperm.xlu0 %1249, %v756
  %v1251 = vpop.permute.xlu0 %1250
  %1254 = vset.pattern.permute.xlu0 0
  %1255 = vperm.xlu0 %1254, %v758
  %v1256 = vpop.permute.xlu0 %1255
  %1259 = vset.pattern.permute.xlu0 0
  %1260 = vperm.xlu0 %1259, %v760
  %v1261 = vpop.permute.xlu0 %1260
  %1264 = vset.pattern.permute.xlu0 0
  %1265 = vperm.xlu0 %1264, %v762
  %v1266 = vpop.permute.xlu0 %1265
  %v1268 = vmul.f32 %v1151, %v1124
  %v1269 = vmul.f32 %v1156, %v1125
  %v1270 = vmul.f32 %v1161, %v1126
  %v1271 = vmul.f32 %v1166, %v1127
  %v1272 = vmul.f32 %v1171, %v1128
  %v1273 = vmul.f32 %v1176, %v1129
  %v1274 = vmul.f32 %v1181, %v1130
  %v1275 = vmul.f32 %v1186, %v1131
  %v1276 = vmul.f32 %v1191, %v1132
  %v1277 = vmul.f32 %v1196, %v1133
  %v1278 = vmul.f32 %v1201, %v1134
  %v1279 = vmul.f32 %v1206, %v1135
  %v1280 = vmul.f32 %v1211, %v1136
  %v1281 = vmul.f32 %v1216, %v1137
  %v1282 = vmul.f32 %v1221, %v1138
  %v1283 = vmul.f32 %v1226, %v1139
  %v1284 = vmul.f32 %v1231, %v1140
  %v1285 = vmul.f32 %v1236, %v1141
  %v1286 = vmul.f32 %v1241, %v1142
  %v1287 = vmul.f32 %v1246, %v1143
  %v1288 = vmul.f32 %v1251, %v1144
  %v1289 = vmul.f32 %v1256, %v1145
  %v1290 = vmul.f32 %v1261, %v1146
  %v1291 = vmul.f32 %v1266, %v1147
  %v1292 = vpack.c.bf16 %v908, %v908
  %v1293 = vpack.c.bf16 %v910, %v910
  %v1294 = vpack.c.bf16 %v912, %v912
  %v1295 = vpack.c.bf16 %v914, %v914
  %v1296 = vpack.c.bf16 %v916, %v916
  %v1297 = vpack.c.bf16 %v918, %v918
  %v1298 = vpack.c.bf16 %v920, %v920
  %v1299 = vpack.c.bf16 %v922, %v922
  %v1300 = vpack.c.bf16 %v924, %v924
  %v1301 = vpack.c.bf16 %v926, %v926
  %v1302 = vpack.c.bf16 %v928, %v928
  %v1303 = vpack.c.bf16 %v930, %v930
  %v1304 = vpack.c.bf16 %v932, %v932
  %v1305 = vpack.c.bf16 %v934, %v934
  %v1306 = vpack.c.bf16 %v936, %v936
  %v1307 = vpack.c.bf16 %v938, %v938
  %v1308 = vpack.c.bf16 %v940, %v940
  %v1309 = vpack.c.bf16 %v942, %v942
  %v1310 = vpack.c.bf16 %v944, %v944
  %v1311 = vpack.c.bf16 %v946, %v946
  %v1312 = vpack.c.bf16 %v948, %v948
  %v1313 = vpack.c.bf16 %v950, %v950
  %v1314 = vpack.c.bf16 %v952, %v952
  %v1315 = vpack.c.bf16 %v954, %v954
  %v1316 = vld [vmem:[%s2] sm:$0xf]
  %v1317 = vld [vmem:[%s2 + $0x4] sm:$0xf]
  %v1318 = vld [vmem:[%s2 + $0x8] sm:$0xf]
  %v1319 = vld [vmem:[%s2 + $0xc] sm:$0xf]
  %v1320 = vld [vmem:[%s2 + $0x10] sm:$0xf]
  %v1321 = vld [vmem:[%s2 + $0x14] sm:$0xf]
  %v1322 = vld [vmem:[%s2 + $0x18] sm:$0xf]
  %v1323 = vld [vmem:[%s2 + $0x1c] sm:$0xf]
  %v1324 = vld [vmem:[%s2 + $0x20] sm:$0xf]
  %v1325 = vld [vmem:[%s2 + $0x24] sm:$0xf]
  %v1326 = vld [vmem:[%s2 + $0x28] sm:$0xf]
  %v1327 = vld [vmem:[%s2 + $0x2c] sm:$0xf]
  %v1328 = vld [vmem:[%s2 + $0x30] sm:$0xf]
  %v1329 = vld [vmem:[%s2 + $0x34] sm:$0xf]
  %v1330 = vld [vmem:[%s2 + $0x38] sm:$0xf]
  %v1331 = vld [vmem:[%s2 + $0x3c] sm:$0xf]
  %v1332 = vld [vmem:[%s2 + $0x40] sm:$0xf]
  %v1333 = vld [vmem:[%s2 + $0x44] sm:$0xf]
  %v1334 = vld [vmem:[%s2 + $0x48] sm:$0xf]
  %v1335 = vld [vmem:[%s2 + $0x4c] sm:$0xf]
  %v1336 = vld [vmem:[%s2 + $0x50] sm:$0xf]
  %v1337 = vld [vmem:[%s2 + $0x54] sm:$0xf]
  %v1338 = vld [vmem:[%s2 + $0x58] sm:$0xf]
  %v1339 = vld [vmem:[%s2 + $0x5c] sm:$0xf]
  %v1343 = vunpack.c.l.b16 %v1292
  %v1344 = vunpack.c.l.b16 %v1293
  %v1345 = vunpack.c.l.b16 %v1294
  %v1346 = vpack.c.b16 %v1344, %v1343
  %v1347 = vpack.c.b16 %v1345, %v1345
  %v1351 = vunpack.c.l.b16 %v1316
  %v1352 = vunpack.c.l.b16 %v1317
  %v1353 = vunpack.c.l.b16 %v1318
  %v1354 = vpack.c.b16 %v1352, %v1351
  %v1355 = vpack.c.b16 %v1353, %v1353
  %v1358 = vsel %vm594, %v1346, 0
  %v1361 = vsel %vm594, %v1347, 0
  %vm1363 = vcmask 1043456
  %v1365 = vsel %vm1363, %v1355, 0
  %1367 = vmatpush.bf16.msra.mxu0 0
  %1368 = vmatpush.bf16.msra.mxu0 0
  %1369 = vmatpush.bf16.msra.mxu0 0
  %1370 = vmatpush.bf16.msra.mxu0 0
  %1371 = vmatpush.bf16.msra.mxu0 0
  %1372 = vmatpush.bf16.msra.mxu0 0
  %1373 = vmatpush.bf16.msra.mxu0 %v1365
  %1374 = vmatpush.bf16.msra.mxu0 %v1354
  %1375 = vmatmul.bf16.gmra.mxu0 %v1358
  %v1376 = vpop.f32.mrf.mxu0
  %v1377 = vadd.f32 0.0, %v1376
  %v1378 = vpop.f32.mrf.mxu0
  %v1379 = vadd.f32 0.0, %v1378
  %1380 = vmatmul.bf16.gmra.mxu0 %v1361
  %v1381 = vpop.f32.mrf.mxu0
  %v1382 = vadd.f32 0.0, %v1381
  %v1383 = vpop.f32.mrf.mxu0
  %1384 = vdwg.mxu0
  %v1388 = vunpack.c.l.b16 %v1295
  %v1389 = vunpack.c.l.b16 %v1296
  %v1390 = vunpack.c.l.b16 %v1297
  %v1391 = vpack.c.b16 %v1389, %v1388
  %v1392 = vpack.c.b16 %v1390, %v1390
  %v1396 = vunpack.c.l.b16 %v1319
  %v1397 = vunpack.c.l.b16 %v1320
  %v1398 = vunpack.c.l.b16 %v1321
  %v1399 = vpack.c.b16 %v1397, %v1396
  %v1400 = vpack.c.b16 %v1398, %v1398
  %v1403 = vsel %vm594, %v1391, 0
  %v1406 = vsel %vm594, %v1392, 0
  %v1409 = vsel %vm1363, %v1400, 0
  %1411 = vmatpush.bf16.msra.mxu0 0
  %1412 = vmatpush.bf16.msra.mxu0 0
  %1413 = vmatpush.bf16.msra.mxu0 0
  %1414 = vmatpush.bf16.msra.mxu0 0
  %1415 = vmatpush.bf16.msra.mxu0 0
  %1416 = vmatpush.bf16.msra.mxu0 0
  %1417 = vmatpush.bf16.msra.mxu0 %v1409
  %1418 = vmatpush.bf16.msra.mxu0 %v1399
  %1419 = vmatmul.bf16.gmra.mxu0 %v1403
  %v1420 = vpop.f32.mrf.mxu0
  %v1421 = vadd.f32 0.0, %v1420
  %v1422 = vpop.f32.mrf.mxu0
  %v1423 = vadd.f32 0.0, %v1422
  %1424 = vmatmul.bf16.gmra.mxu0 %v1406
  %v1425 = vpop.f32.mrf.mxu0
  %v1426 = vadd.f32 0.0, %v1425
  %v1427 = vpop.f32.mrf.mxu0
  %1428 = vdwg.mxu0
  %v1432 = vunpack.c.l.b16 %v1298
  %v1433 = vunpack.c.l.b16 %v1299
  %v1434 = vunpack.c.l.b16 %v1300
  %v1435 = vpack.c.b16 %v1433, %v1432
  %v1436 = vpack.c.b16 %v1434, %v1434
  %v1440 = vunpack.c.l.b16 %v1322
  %v1441 = vunpack.c.l.b16 %v1323
  %v1442 = vunpack.c.l.b16 %v1324
  %v1443 = vpack.c.b16 %v1441, %v1440
  %v1444 = vpack.c.b16 %v1442, %v1442
  %v1447 = vsel %vm594, %v1435, 0
  %v1450 = vsel %vm594, %v1436, 0
  %v1453 = vsel %vm1363, %v1444, 0
  %1455 = vmatpush.bf16.msra.mxu0 0
  %1456 = vmatpush.bf16.msra.mxu0 0
  %1457 = vmatpush.bf16.msra.mxu0 0
  %1458 = vmatpush.bf16.msra.mxu0 0
  %1459 = vmatpush.bf16.msra.mxu0 0
  %1460 = vmatpush.bf16.msra.mxu0 0
  %1461 = vmatpush.bf16.msra.mxu0 %v1453
  %1462 = vmatpush.bf16.msra.mxu0 %v1443
  %1463 = vmatmul.bf16.gmra.mxu0 %v1447
  %v1464 = vpop.f32.mrf.mxu0
  %v1465 = vadd.f32 0.0, %v1464
  %v1466 = vpop.f32.mrf.mxu0
  %v1467 = vadd.f32 0.0, %v1466
  %1468 = vmatmul.bf16.gmra.mxu0 %v1450
  %v1469 = vpop.f32.mrf.mxu0
  %v1470 = vadd.f32 0.0, %v1469
  %v1471 = vpop.f32.mrf.mxu0
  %1472 = vdwg.mxu0
  %v1476 = vunpack.c.l.b16 %v1301
  %v1477 = vunpack.c.l.b16 %v1302
  %v1478 = vunpack.c.l.b16 %v1303
  %v1479 = vpack.c.b16 %v1477, %v1476
  %v1480 = vpack.c.b16 %v1478, %v1478
  %v1484 = vunpack.c.l.b16 %v1325
  %v1485 = vunpack.c.l.b16 %v1326
  %v1486 = vunpack.c.l.b16 %v1327
  %v1487 = vpack.c.b16 %v1485, %v1484
  %v1488 = vpack.c.b16 %v1486, %v1486
  %v1491 = vsel %vm594, %v1479, 0
  %v1494 = vsel %vm594, %v1480, 0
  %v1497 = vsel %vm1363, %v1488, 0
  %1499 = vmatpush.bf16.msra.mxu0 0
  %1500 = vmatpush.bf16.msra.mxu0 0
  %1501 = vmatpush.bf16.msra.mxu0 0
  %1502 = vmatpush.bf16.msra.mxu0 0
  %1503 = vmatpush.bf16.msra.mxu0 0
  %1504 = vmatpush.bf16.msra.mxu0 0
  %1505 = vmatpush.bf16.msra.mxu0 %v1497
  %1506 = vmatpush.bf16.msra.mxu0 %v1487
  %1507 = vmatmul.bf16.gmra.mxu0 %v1491
  %v1508 = vpop.f32.mrf.mxu0
  %v1509 = vadd.f32 0.0, %v1508
  %v1510 = vpop.f32.mrf.mxu0
  %v1511 = vadd.f32 0.0, %v1510
  %1512 = vmatmul.bf16.gmra.mxu0 %v1494
  %v1513 = vpop.f32.mrf.mxu0
  %v1514 = vadd.f32 0.0, %v1513
  %v1515 = vpop.f32.mrf.mxu0
  %1516 = vdwg.mxu0
  %v1520 = vunpack.c.l.b16 %v1304
  %v1521 = vunpack.c.l.b16 %v1305
  %v1522 = vunpack.c.l.b16 %v1306
  %v1523 = vpack.c.b16 %v1521, %v1520
  %v1524 = vpack.c.b16 %v1522, %v1522
  %v1528 = vunpack.c.l.b16 %v1328
  %v1529 = vunpack.c.l.b16 %v1329
  %v1530 = vunpack.c.l.b16 %v1330
  %v1531 = vpack.c.b16 %v1529, %v1528
  %v1532 = vpack.c.b16 %v1530, %v1530
  %v1535 = vsel %vm594, %v1523, 0
  %v1538 = vsel %vm594, %v1524, 0
  %v1541 = vsel %vm1363, %v1532, 0
  %1543 = vmatpush.bf16.msra.mxu0 0
  %1544 = vmatpush.bf16.msra.mxu0 0
  %1545 = vmatpush.bf16.msra.mxu0 0
  %1546 = vmatpush.bf16.msra.mxu0 0
  %1547 = vmatpush.bf16.msra.mxu0 0
  %1548 = vmatpush.bf16.msra.mxu0 0
  %1549 = vmatpush.bf16.msra.mxu0 %v1541
  %1550 = vmatpush.bf16.msra.mxu0 %v1531
  %1551 = vmatmul.bf16.gmra.mxu0 %v1535
  %v1552 = vpop.f32.mrf.mxu0
  %v1553 = vadd.f32 0.0, %v1552
  %v1554 = vpop.f32.mrf.mxu0
  %v1555 = vadd.f32 0.0, %v1554
  %1556 = vmatmul.bf16.gmra.mxu0 %v1538
  %v1557 = vpop.f32.mrf.mxu0
  %v1558 = vadd.f32 0.0, %v1557
  %v1559 = vpop.f32.mrf.mxu0
  %1560 = vdwg.mxu0
  %v1564 = vunpack.c.l.b16 %v1307
  %v1565 = vunpack.c.l.b16 %v1308
  %v1566 = vunpack.c.l.b16 %v1309
  %v1567 = vpack.c.b16 %v1565, %v1564
  %v1568 = vpack.c.b16 %v1566, %v1566
  %v1572 = vunpack.c.l.b16 %v1331
  %v1573 = vunpack.c.l.b16 %v1332
  %v1574 = vunpack.c.l.b16 %v1333
  %v1575 = vpack.c.b16 %v1573, %v1572
  %v1576 = vpack.c.b16 %v1574, %v1574
  %v1579 = vsel %vm594, %v1567, 0
  %v1582 = vsel %vm594, %v1568, 0
  %v1585 = vsel %vm1363, %v1576, 0
  %1587 = vmatpush.bf16.msra.mxu0 0
  %1588 = vmatpush.bf16.msra.mxu0 0
  %1589 = vmatpush.bf16.msra.mxu0 0
  %1590 = vmatpush.bf16.msra.mxu0 0
  %1591 = vmatpush.bf16.msra.mxu0 0
  %1592 = vmatpush.bf16.msra.mxu0 0
  %1593 = vmatpush.bf16.msra.mxu0 %v1585
  %1594 = vmatpush.bf16.msra.mxu0 %v1575
  %1595 = vmatmul.bf16.gmra.mxu0 %v1579
  %v1596 = vpop.f32.mrf.mxu0
  %v1597 = vadd.f32 0.0, %v1596
  %v1598 = vpop.f32.mrf.mxu0
  %v1599 = vadd.f32 0.0, %v1598
  %1600 = vmatmul.bf16.gmra.mxu0 %v1582
  %v1601 = vpop.f32.mrf.mxu0
  %v1602 = vadd.f32 0.0, %v1601
  %v1603 = vpop.f32.mrf.mxu0
  %1604 = vdwg.mxu0
  %v1608 = vunpack.c.l.b16 %v1310
  %v1609 = vunpack.c.l.b16 %v1311
  %v1610 = vunpack.c.l.b16 %v1312
  %v1611 = vpack.c.b16 %v1609, %v1608
  %v1612 = vpack.c.b16 %v1610, %v1610
  %v1616 = vunpack.c.l.b16 %v1334
  %v1617 = vunpack.c.l.b16 %v1335
  %v1618 = vunpack.c.l.b16 %v1336
  %v1619 = vpack.c.b16 %v1617, %v1616
  %v1620 = vpack.c.b16 %v1618, %v1618
  %v1623 = vsel %vm594, %v1611, 0
  %v1626 = vsel %vm594, %v1612, 0
  %v1629 = vsel %vm1363, %v1620, 0
  %1631 = vmatpush.bf16.msra.mxu0 0
  %1632 = vmatpush.bf16.msra.mxu0 0
  %1633 = vmatpush.bf16.msra.mxu0 0
  %1634 = vmatpush.bf16.msra.mxu0 0
  %1635 = vmatpush.bf16.msra.mxu0 0
  %1636 = vmatpush.bf16.msra.mxu0 0
  %1637 = vmatpush.bf16.msra.mxu0 %v1629
  %1638 = vmatpush.bf16.msra.mxu0 %v1619
  %1639 = vmatmul.bf16.gmra.mxu0 %v1623
  %v1640 = vpop.f32.mrf.mxu0
  %v1641 = vadd.f32 0.0, %v1640
  %v1642 = vpop.f32.mrf.mxu0
  %v1643 = vadd.f32 0.0, %v1642
  %1644 = vmatmul.bf16.gmra.mxu0 %v1626
  %v1645 = vpop.f32.mrf.mxu0
  %v1646 = vadd.f32 0.0, %v1645
  %v1647 = vpop.f32.mrf.mxu0
  %1648 = vdwg.mxu0
  %v1652 = vunpack.c.l.b16 %v1313
  %v1653 = vunpack.c.l.b16 %v1314
  %v1654 = vunpack.c.l.b16 %v1315
  %v1655 = vpack.c.b16 %v1653, %v1652
  %v1656 = vpack.c.b16 %v1654, %v1654
  %v1660 = vunpack.c.l.b16 %v1337
  %v1661 = vunpack.c.l.b16 %v1338
  %v1662 = vunpack.c.l.b16 %v1339
  %v1663 = vpack.c.b16 %v1661, %v1660
  %v1664 = vpack.c.b16 %v1662, %v1662
  %v1667 = vsel %vm594, %v1655, 0
  %v1670 = vsel %vm594, %v1656, 0
  %v1673 = vsel %vm1363, %v1664, 0
  %1675 = vmatpush.bf16.msra.mxu0 0
  %1676 = vmatpush.bf16.msra.mxu0 0
  %1677 = vmatpush.bf16.msra.mxu0 0
  %1678 = vmatpush.bf16.msra.mxu0 0
  %1679 = vmatpush.bf16.msra.mxu0 0
  %1680 = vmatpush.bf16.msra.mxu0 0
  %1681 = vmatpush.bf16.msra.mxu0 %v1673
  %1682 = vmatpush.bf16.msra.mxu0 %v1663
  %1683 = vmatmul.bf16.gmra.mxu0 %v1667
  %v1684 = vpop.f32.mrf.mxu0
  %v1685 = vadd.f32 0.0, %v1684
  %v1686 = vpop.f32.mrf.mxu0
  %v1687 = vadd.f32 0.0, %v1686
  %1688 = vmatmul.bf16.gmra.mxu0 %v1670
  %v1689 = vpop.f32.mrf.mxu0
  %v1690 = vadd.f32 0.0, %v1689
  %v1691 = vpop.f32.mrf.mxu0
  %1692 = vdwg.mxu0
  %v1693 = vadd.f32 %v1268, %v1377
  %v1694 = vadd.f32 %v1269, %v1379
  %v1695 = vadd.f32 %v1270, %v1382
  %v1696 = vadd.f32 %v1271, %v1421
  %v1697 = vadd.f32 %v1272, %v1423
  %v1698 = vadd.f32 %v1273, %v1426
  %v1699 = vadd.f32 %v1274, %v1465
  %v1700 = vadd.f32 %v1275, %v1467
  %v1701 = vadd.f32 %v1276, %v1470
  %v1702 = vadd.f32 %v1277, %v1509
  %v1703 = vadd.f32 %v1278, %v1511
  %v1704 = vadd.f32 %v1279, %v1514
  %v1705 = vadd.f32 %v1280, %v1553
  %v1706 = vadd.f32 %v1281, %v1555
  %v1707 = vadd.f32 %v1282, %v1558
  %v1708 = vadd.f32 %v1283, %v1597
  %v1709 = vadd.f32 %v1284, %v1599
  %v1710 = vadd.f32 %v1285, %v1602
  %v1711 = vadd.f32 %v1286, %v1641
  %v1712 = vadd.f32 %v1287, %v1643
  %v1713 = vadd.f32 %v1288, %v1646
  %v1714 = vadd.f32 %v1289, %v1685
  %v1715 = vadd.f32 %v1290, %v1687
  %v1716 = vadd.f32 %v1291, %v1690
  %1717 = vst.msk [vmem:[#allocation4] sm:$0xff] %vm157, %v1693
  %1718 = vst.msk [vmem:[#allocation4 + $0x8] sm:$0xff] %vm157, %v1694
  %1719 = vst.msk [vmem:[#allocation4 + $0x10] sm:$0xff] %vm157, %v1695
  %1720 = vst.msk [vmem:[#allocation4 + $0x18] sm:$0xff] %vm157, %v1696
  %1721 = vst.msk [vmem:[#allocation4 + $0x20] sm:$0xff] %vm157, %v1697
  %1722 = vst.msk [vmem:[#allocation4 + $0x28] sm:$0xff] %vm157, %v1698
  %1723 = vst.msk [vmem:[#allocation4 + $0x30] sm:$0xff] %vm157, %v1699
  %1724 = vst.msk [vmem:[#allocation4 + $0x38] sm:$0xff] %vm157, %v1700
  %1725 = vst.msk [vmem:[#allocation4 + $0x40] sm:$0xff] %vm157, %v1701
  %1726 = vst.msk [vmem:[#allocation4 + $0x48] sm:$0xff] %vm157, %v1702
  %1727 = vst.msk [vmem:[#allocation4 + $0x50] sm:$0xff] %vm157, %v1703
  %1728 = vst.msk [vmem:[#allocation4 + $0x58] sm:$0xff] %vm157, %v1704
  %1729 = vst.msk [vmem:[#allocation4 + $0x60] sm:$0xff] %vm157, %v1705
  %1730 = vst.msk [vmem:[#allocation4 + $0x68] sm:$0xff] %vm157, %v1706
  %1731 = vst.msk [vmem:[#allocation4 + $0x70] sm:$0xff] %vm157, %v1707
  %1732 = vst.msk [vmem:[#allocation4 + $0x78] sm:$0xff] %vm157, %v1708
  %1733 = vst.msk [vmem:[#allocation4 + $0x80] sm:$0xff] %vm157, %v1709
  %1734 = vst.msk [vmem:[#allocation4 + $0x88] sm:$0xff] %vm157, %v1710
  %1735 = vst.msk [vmem:[#allocation4 + $0x90] sm:$0xff] %vm157, %v1711
  %1736 = vst.msk [vmem:[#allocation4 + $0x98] sm:$0xff] %vm157, %v1712
  %1737 = vst.msk [vmem:[#allocation4 + $0xa0] sm:$0xff] %vm157, %v1713
  %1738 = vst.msk [vmem:[#allocation4 + $0xa8] sm:$0xff] %vm157, %v1714
  %1739 = vst.msk [vmem:[#allocation4 + $0xb0] sm:$0xff] %vm157, %v1715
  %1740 = vst.msk [vmem:[#allocation4 + $0xb8] sm:$0xff] %vm157, %v1716
  %1741 = vst.msk [vmem:[#allocation2] sm:$0xff] %vm1099, %v667
  %1742 = vst.msk [vmem:[#allocation2 + $0x8] sm:$0xff] %vm1099, %v668
  %1743 = vst.msk [vmem:[#allocation2 + $0x10] sm:$0xff] %vm1099, %v669
  %1744 = vst.msk [vmem:[#allocation2 + $0x18] sm:$0xff] %vm1099, %v670
  %1745 = vst.msk [vmem:[#allocation2 + $0x20] sm:$0xff] %vm1099, %v671
  %1746 = vst.msk [vmem:[#allocation2 + $0x28] sm:$0xff] %vm1099, %v672
  %1747 = vst.msk [vmem:[#allocation2 + $0x30] sm:$0xff] %vm1099, %v673
  %1748 = vst.msk [vmem:[#allocation2 + $0x38] sm:$0xff] %vm1099, %v674
  %1749 = vst.msk [vmem:[#allocation2 + $0x40] sm:$0xff] %vm1099, %v675
  %1750 = vst.msk [vmem:[#allocation2 + $0x48] sm:$0xff] %vm1099, %v676
  %1751 = vst.msk [vmem:[#allocation2 + $0x50] sm:$0xff] %vm1099, %v677
  %1752 = vst.msk [vmem:[#allocation2 + $0x58] sm:$0xff] %vm1099, %v678
  %1753 = vst.msk [vmem:[#allocation2 + $0x60] sm:$0xff] %vm1099, %v679
  %1754 = vst.msk [vmem:[#allocation2 + $0x68] sm:$0xff] %vm1099, %v680
  %1755 = vst.msk [vmem:[#allocation2 + $0x70] sm:$0xff] %vm1099, %v681
  %1756 = vst.msk [vmem:[#allocation2 + $0x78] sm:$0xff] %vm1099, %v682
  %1757 = vst.msk [vmem:[#allocation2 + $0x80] sm:$0xff] %vm1099, %v683
  %1758 = vst.msk [vmem:[#allocation2 + $0x88] sm:$0xff] %vm1099, %v684
  %1759 = vst.msk [vmem:[#allocation2 + $0x90] sm:$0xff] %vm1099, %v685
  %1760 = vst.msk [vmem:[#allocation2 + $0x98] sm:$0xff] %vm1099, %v686
  %1761 = vst.msk [vmem:[#allocation2 + $0xa0] sm:$0xff] %vm1099, %v687
  %1762 = vst.msk [vmem:[#allocation2 + $0xa8] sm:$0xff] %vm1099, %v688
  %1763 = vst.msk [vmem:[#allocation2 + $0xb0] sm:$0xff] %vm1099, %v689
  %1764 = vst.msk [vmem:[#allocation2 + $0xb8] sm:$0xff] %vm1099, %v690
  // Predicated region
  $region18: #{transformer_forward.48} parent=0 // pred_check
    %p1765 = pneg %p15
  $region19: #{transformer_forward.48} parent=0 // pred_check_branch
    %1767 = sbr.rel (%p1765) target = $region21
  $region20: #{transformer_forward.48} parent=0 // pred_region
    %v1768 = vld [vmem:[#allocation3] sm:$0xff]
    %v1769 = vld [vmem:[#allocation3 + $0x8] sm:$0xff]
    %v1770 = vld [vmem:[#allocation3 + $0x10] sm:$0xff]
    %v1771 = vld [vmem:[#allocation3 + $0x18] sm:$0xff]
    %v1772 = vld [vmem:[#allocation3 + $0x20] sm:$0xff]
    %v1773 = vld [vmem:[#allocation3 + $0x28] sm:$0xff]
    %v1774 = vld [vmem:[#allocation3 + $0x30] sm:$0xff]
    %v1775 = vld [vmem:[#allocation3 + $0x38] sm:$0xff]
    %v1776 = vld [vmem:[#allocation3 + $0x40] sm:$0xff]
    %v1777 = vld [vmem:[#allocation3 + $0x48] sm:$0xff]
    %v1778 = vld [vmem:[#allocation3 + $0x50] sm:$0xff]
    %v1779 = vld [vmem:[#allocation3 + $0x58] sm:$0xff]
    %v1780 = vld [vmem:[#allocation3 + $0x60] sm:$0xff]
    %v1781 = vld [vmem:[#allocation3 + $0x68] sm:$0xff]
    %v1782 = vld [vmem:[#allocation3 + $0x70] sm:$0xff]
    %v1783 = vld [vmem:[#allocation3 + $0x78] sm:$0xff]
    %v1784 = vld [vmem:[#allocation3 + $0x80] sm:$0xff]
    %v1785 = vld [vmem:[#allocation3 + $0x88] sm:$0xff]
    %v1786 = vld [vmem:[#allocation3 + $0x90] sm:$0xff]
    %v1787 = vld [vmem:[#allocation3 + $0x98] sm:$0xff]
    %v1788 = vld [vmem:[#allocation3 + $0xa0] sm:$0xff]
    %v1789 = vld [vmem:[#allocation3 + $0xa8] sm:$0xff]
    %v1790 = vld [vmem:[#allocation3 + $0xb0] sm:$0xff]
    %v1791 = vld [vmem:[#allocation3 + $0xb8] sm:$0xff]
    %v1792 = vrcp.pop %v1768
    %v1793 = vrcp.pop %v1769
    %v1794 = vrcp.pop %v1770
    %v1795 = vrcp.pop %v1771
    %v1796 = vrcp.pop %v1772
    %v1797 = vrcp.pop %v1773
    %v1798 = vrcp.pop %v1774
    %v1799 = vrcp.pop %v1775
    %v1800 = vrcp.pop %v1776
    %v1801 = vrcp.pop %v1777
    %v1802 = vrcp.pop %v1778
    %v1803 = vrcp.pop %v1779
    %v1804 = vrcp.pop %v1780
    %v1805 = vrcp.pop %v1781
    %v1806 = vrcp.pop %v1782
    %v1807 = vrcp.pop %v1783
    %v1808 = vrcp.pop %v1784
    %v1809 = vrcp.pop %v1785
    %v1810 = vrcp.pop %v1786
    %v1811 = vrcp.pop %v1787
    %v1812 = vrcp.pop %v1788
    %v1813 = vrcp.pop %v1789
    %v1814 = vrcp.pop %v1790
    %v1815 = vrcp.pop %v1791
    %v1816 = vld [vmem:[#allocation4] sm:$0xff]
    %v1817 = vld [vmem:[#allocation4 + $0x8] sm:$0xff]
    %v1818 = vld [vmem:[#allocation4 + $0x10] sm:$0xff]
    %v1819 = vld [vmem:[#allocation4 + $0x18] sm:$0xff]
    %v1820 = vld [vmem:[#allocation4 + $0x20] sm:$0xff]
    %v1821 = vld [vmem:[#allocation4 + $0x28] sm:$0xff]
    %v1822 = vld [vmem:[#allocation4 + $0x30] sm:$0xff]
    %v1823 = vld [vmem:[#allocation4 + $0x38] sm:$0xff]
    %v1824 = vld [vmem:[#allocation4 + $0x40] sm:$0xff]
    %v1825 = vld [vmem:[#allocation4 + $0x48] sm:$0xff]
    %v1826 = vld [vmem:[#allocation4 + $0x50] sm:$0xff]
    %v1827 = vld [vmem:[#allocation4 + $0x58] sm:$0xff]
    %v1828 = vld [vmem:[#allocation4 + $0x60] sm:$0xff]
    %v1829 = vld [vmem:[#allocation4 + $0x68] sm:$0xff]
    %v1830 = vld [vmem:[#allocation4 + $0x70] sm:$0xff]
    %v1831 = vld [vmem:[#allocation4 + $0x78] sm:$0xff]
    %v1832 = vld [vmem:[#allocation4 + $0x80] sm:$0xff]
    %v1833 = vld [vmem:[#allocation4 + $0x88] sm:$0xff]
    %v1834 = vld [vmem:[#allocation4 + $0x90] sm:$0xff]
    %v1835 = vld [vmem:[#allocation4 + $0x98] sm:$0xff]
    %v1836 = vld [vmem:[#allocation4 + $0xa0] sm:$0xff]
    %v1837 = vld [vmem:[#allocation4 + $0xa8] sm:$0xff]
    %v1838 = vld [vmem:[#allocation4 + $0xb0] sm:$0xff]
    %v1839 = vld [vmem:[#allocation4 + $0xb8] sm:$0xff]
    %1841 = vset.pattern.permute.xlu0 0
    %1842 = vperm.xlu0 %1841, %v1792
    %v1843 = vpop.permute.xlu0 %1842
    %1846 = vset.pattern.permute.xlu0 0
    %1847 = vperm.xlu0 %1846, %v1793
    %v1848 = vpop.permute.xlu0 %1847
    %1851 = vset.pattern.permute.xlu0 0
    %1852 = vperm.xlu0 %1851, %v1794
    %v1853 = vpop.permute.xlu0 %1852
    %1856 = vset.pattern.permute.xlu0 0
    %1857 = vperm.xlu0 %1856, %v1795
    %v1858 = vpop.permute.xlu0 %1857
    %1861 = vset.pattern.permute.xlu0 0
    %1862 = vperm.xlu0 %1861, %v1796
    %v1863 = vpop.permute.xlu0 %1862
    %1866 = vset.pattern.permute.xlu0 0
    %1867 = vperm.xlu0 %1866, %v1797
    %v1868 = vpop.permute.xlu0 %1867
    %1871 = vset.pattern.permute.xlu0 0
    %1872 = vperm.xlu0 %1871, %v1798
    %v1873 = vpop.permute.xlu0 %1872
    %1876 = vset.pattern.permute.xlu0 0
    %1877 = vperm.xlu0 %1876, %v1799
    %v1878 = vpop.permute.xlu0 %1877
    %1881 = vset.pattern.permute.xlu0 0
    %1882 = vperm.xlu0 %1881, %v1800
    %v1883 = vpop.permute.xlu0 %1882
    %1886 = vset.pattern.permute.xlu0 0
    %1887 = vperm.xlu0 %1886, %v1801
    %v1888 = vpop.permute.xlu0 %1887
    %1891 = vset.pattern.permute.xlu0 0
    %1892 = vperm.xlu0 %1891, %v1802
    %v1893 = vpop.permute.xlu0 %1892
    %1896 = vset.pattern.permute.xlu0 0
    %1897 = vperm.xlu0 %1896, %v1803
    %v1898 = vpop.permute.xlu0 %1897
    %1901 = vset.pattern.permute.xlu0 0
    %1902 = vperm.xlu0 %1901, %v1804
    %v1903 = vpop.permute.xlu0 %1902
    %1906 = vset.pattern.permute.xlu0 0
    %1907 = vperm.xlu0 %1906, %v1805
    %v1908 = vpop.permute.xlu0 %1907
    %1911 = vset.pattern.permute.xlu0 0
    %1912 = vperm.xlu0 %1911, %v1806
    %v1913 = vpop.permute.xlu0 %1912
    %1916 = vset.pattern.permute.xlu0 0
    %1917 = vperm.xlu0 %1916, %v1807
    %v1918 = vpop.permute.xlu0 %1917
    %1921 = vset.pattern.permute.xlu0 0
    %1922 = vperm.xlu0 %1921, %v1808
    %v1923 = vpop.permute.xlu0 %1922
    %1926 = vset.pattern.permute.xlu0 0
    %1927 = vperm.xlu0 %1926, %v1809
    %v1928 = vpop.permute.xlu0 %1927
    %1931 = vset.pattern.permute.xlu0 0
    %1932 = vperm.xlu0 %1931, %v1810
    %v1933 = vpop.permute.xlu0 %1932
    %1936 = vset.pattern.permute.xlu0 0
    %1937 = vperm.xlu0 %1936, %v1811
    %v1938 = vpop.permute.xlu0 %1937
    %1941 = vset.pattern.permute.xlu0 0
    %1942 = vperm.xlu0 %1941, %v1812
    %v1943 = vpop.permute.xlu0 %1942
    %1946 = vset.pattern.permute.xlu0 0
    %1947 = vperm.xlu0 %1946, %v1813
    %v1948 = vpop.permute.xlu0 %1947
    %1951 = vset.pattern.permute.xlu0 0
    %1952 = vperm.xlu0 %1951, %v1814
    %v1953 = vpop.permute.xlu0 %1952
    %1956 = vset.pattern.permute.xlu0 0
    %1957 = vperm.xlu0 %1956, %v1815
    %v1958 = vpop.permute.xlu0 %1957
    %v1960 = vmul.f32 %v1816, %v1843
    %v1961 = vmul.f32 %v1817, %v1848
    %v1962 = vmul.f32 %v1818, %v1853
    %v1963 = vmul.f32 %v1819, %v1858
    %v1964 = vmul.f32 %v1820, %v1863
    %v1965 = vmul.f32 %v1821, %v1868
    %v1966 = vmul.f32 %v1822, %v1873
    %v1967 = vmul.f32 %v1823, %v1878
    %v1968 = vmul.f32 %v1824, %v1883
    %v1969 = vmul.f32 %v1825, %v1888
    %v1970 = vmul.f32 %v1826, %v1893
    %v1971 = vmul.f32 %v1827, %v1898
    %v1972 = vmul.f32 %v1828, %v1903
    %v1973 = vmul.f32 %v1829, %v1908
    %v1974 = vmul.f32 %v1830, %v1913
    %v1975 = vmul.f32 %v1831, %v1918
    %v1976 = vmul.f32 %v1832, %v1923
    %v1977 = vmul.f32 %v1833, %v1928
    %v1978 = vmul.f32 %v1834, %v1933
    %v1979 = vmul.f32 %v1835, %v1938
    %v1980 = vmul.f32 %v1836, %v1943
    %v1981 = vmul.f32 %v1837, %v1948
    %v1982 = vmul.f32 %v1838, %v1953
    %v1983 = vmul.f32 %v1839, %v1958
    %v1984 = vpack.c.bf16 %v1960, %v1960
    %v1985 = vpack.c.bf16 %v1961, %v1961
    %v1986 = vpack.c.bf16 %v1962, %v1962
    %v1987 = vpack.c.bf16 %v1963, %v1963
    %v1988 = vpack.c.bf16 %v1964, %v1964
    %v1989 = vpack.c.bf16 %v1965, %v1965
    %v1990 = vpack.c.bf16 %v1966, %v1966
    %v1991 = vpack.c.bf16 %v1967, %v1967
    %v1992 = vpack.c.bf16 %v1968, %v1968
    %v1993 = vpack.c.bf16 %v1969, %v1969
    %v1994 = vpack.c.bf16 %v1970, %v1970
    %v1995 = vpack.c.bf16 %v1971, %v1971
    %v1996 = vpack.c.bf16 %v1972, %v1972
    %v1997 = vpack.c.bf16 %v1973, %v1973
    %v1998 = vpack.c.bf16 %v1974, %v1974
    %v1999 = vpack.c.bf16 %v1975, %v1975
    %v2000 = vpack.c.bf16 %v1976, %v1976
    %v2001 = vpack.c.bf16 %v1977, %v1977
    %v2002 = vpack.c.bf16 %v1978, %v1978
    %v2003 = vpack.c.bf16 %v1979, %v1979
    %v2004 = vpack.c.bf16 %v1980, %v1980
    %v2005 = vpack.c.bf16 %v1981, %v1981
    %v2006 = vpack.c.bf16 %v1982, %v1982
    %v2007 = vpack.c.bf16 %v1983, %v1983
    %vm2008 = vcmask 125952
    %2009 = vst.msk [vmem:[%s3] sm:$0xf] %vm2008, %v1984
    %2010 = vst.msk [vmem:[%s3 + $0x4] sm:$0xf] %vm2008, %v1985
    %2011 = vst.msk [vmem:[%s3 + $0x8] sm:$0xf] %vm2008, %v1986
    %2012 = vst.msk [vmem:[%s3 + $0xc] sm:$0xf] %vm2008, %v1987
    %2013 = vst.msk [vmem:[%s3 + $0x10] sm:$0xf] %vm2008, %v1988
    %2014 = vst.msk [vmem:[%s3 + $0x14] sm:$0xf] %vm2008, %v1989
    %2015 = vst.msk [vmem:[%s3 + $0x18] sm:$0xf] %vm2008, %v1990
    %2016 = vst.msk [vmem:[%s3 + $0x1c] sm:$0xf] %vm2008, %v1991
    %2017 = vst.msk [vmem:[%s3 + $0x20] sm:$0xf] %vm2008, %v1992
    %2018 = vst.msk [vmem:[%s3 + $0x24] sm:$0xf] %vm2008, %v1993
    %2019 = vst.msk [vmem:[%s3 + $0x28] sm:$0xf] %vm2008, %v1994
    %2020 = vst.msk [vmem:[%s3 + $0x2c] sm:$0xf] %vm2008, %v1995
    %2021 = vst.msk [vmem:[%s3 + $0x30] sm:$0xf] %vm2008, %v1996
    %2022 = vst.msk [vmem:[%s3 + $0x34] sm:$0xf] %vm2008, %v1997
    %2023 = vst.msk [vmem:[%s3 + $0x38] sm:$0xf] %vm2008, %v1998
    %2024 = vst.msk [vmem:[%s3 + $0x3c] sm:$0xf] %vm2008, %v1999
    %2025 = vst.msk [vmem:[%s3 + $0x40] sm:$0xf] %vm2008, %v2000
    %2026 = vst.msk [vmem:[%s3 + $0x44] sm:$0xf] %vm2008, %v2001
    %2027 = vst.msk [vmem:[%s3 + $0x48] sm:$0xf] %vm2008, %v2002
    %2028 = vst.msk [vmem:[%s3 + $0x4c] sm:$0xf] %vm2008, %v2003
    %2029 = vst.msk [vmem:[%s3 + $0x50] sm:$0xf] %vm2008, %v2004
    %2030 = vst.msk [vmem:[%s3 + $0x54] sm:$0xf] %vm2008, %v2005
    %2031 = vst.msk [vmem:[%s3 + $0x58] sm:$0xf] %vm2008, %v2006
    %2032 = vst.msk [vmem:[%s3 + $0x5c] sm:$0xf] %vm2008, %v2007
  $region21: #{transformer_forward.48} parent=0 // pred_fallthru
    _
  // Predicated region
  $region22: #{transformer_forward.48} parent=0 // pred_check
    _
  $region23: #{transformer_forward.48} parent=0 // pred_check_branch
    %2034 = sbr.rel (0) target = $region25
  $region24: #{transformer_forward.48} parent=0 // pred_region
    _
  $region25: #{transformer_forward.48} parent=0 // pred_fallthru
    _
  // Predicated region
  $region26: #{transformer_forward.48} parent=0 // pred_check
    _
  $region27: #{transformer_forward.48} parent=0 // pred_check_branch
    %2036 = sbr.rel (0) target = $region29
  $region28: #{transformer_forward.48} parent=0 // pred_region
    _
  $region29: #{transformer_forward.48} parent=0 // pred_fallthru
    _

// kernel: transformer_forward.35
$region0: #{transformer_forward.35}
  #allocation0 [shape = 'u32[]', space=smem, size = 0x4, offset = 0x4, fixed_abs, tag = 'smem constant byte address 0x4 - core index']
  #allocation1 [shape = 'u32[72,128]{1,0:T(1,128)}', space=vmem, size = 0x9000, scoped, tag = 'internal scratch']
  #allocation2 [shape = 'f32[32,192]{1,0:T(8,128)}', space=vmem, size = 0x8000, scoped, tag = 'scratch operand']
  %s0 = inlined_call_operand.vmem [shape: bf16[32,64], index: 0, kind: input, shape index: {}]
  %s1 = inlined_call_operand.vmem [shape: bf16[64,192], index: 1, kind: input, shape index: {}]
  %s2 = inlined_call_operand.vmem [shape: f32[1,192], index: 2, kind: input, shape index: {}]
  %s3 = inlined_call_operand.vmem [shape: bf16[32,192], index: 3, kind: output, shape index: {}]
  %s4 = sld [smem:[#allocation0]]
  $region30: #{transformer_forward.35} parent=0
    _
  %s6 = ssub.s32 1, %s4
  %s7 = scalar_select 0, %s6, %s4
  // Predicated region
  $region2: #{transformer_forward.35} parent=0 // pred_check
    _
  $region3: #{transformer_forward.35} parent=0 // pred_check_branch
    %9 = sbr.rel (0) target = $region5
  $region4: #{transformer_forward.35} parent=0 // pred_region
    _
  $region5: #{transformer_forward.35} parent=0 // pred_fallthru
    _
  // Predicated region
  $region6: #{transformer_forward.35} parent=0 // pred_check
    _
  $region7: #{transformer_forward.35} parent=0 // pred_check_branch
    %11 = sbr.rel (0) target = $region9
  $region8: #{transformer_forward.35} parent=0 // pred_region
    _
  $region9: #{transformer_forward.35} parent=0 // pred_fallthru
    _
  // Predicated region
  $region10: #{transformer_forward.35} parent=0 // pred_check
    _
  $region11: #{transformer_forward.35} parent=0 // pred_check_branch
    %13 = sbr.rel (0) target = $region13
  $region12: #{transformer_forward.35} parent=0 // pred_region
    _
  $region13: #{transformer_forward.35} parent=0 // pred_fallthru
    _
  %p15 = scmp.eq.s32.totalorder 0, 0
  // Predicated region
  $region14: #{transformer_forward.35} parent=0 // pred_check
    %p16 = pneg %p15
  $region15: #{transformer_forward.35} parent=0 // pred_check_branch
    %18 = sbr.rel (%p16) target = $region17
  $region16: #{transformer_forward.35} parent=0 // pred_region
    %v19 = vld [vmem:[%s2] sm:$0x3]
    %v21 = vperm.slane %v19, 0
    %v22 = vperm.slane %v19, 1
    %25 = vst [vmem:[#allocation2] sm:$0xff] %v21
    %vm26 = vcmask 523264
    %27 = vst.msk [vmem:[#allocation2 + $0x8] sm:$0xff] %vm26, %v22
    %28 = vst [vmem:[#allocation2 + $0x10] sm:$0xff] %v21
    %29 = vst.msk [vmem:[#allocation2 + $0x18] sm:$0xff] %vm26, %v22
    %30 = vst [vmem:[#allocation2 + $0x20] sm:$0xff] %v21
    %31 = vst.msk [vmem:[#allocation2 + $0x28] sm:$0xff] %vm26, %v22
    %32 = vst [vmem:[#allocation2 + $0x30] sm:$0xff] %v21
    %33 = vst.msk [vmem:[#allocation2 + $0x38] sm:$0xff] %vm26, %v22
  $region17: #{transformer_forward.35} parent=0 // pred_fallthru
    _
  %v34 = vld [vmem:[#allocation2] sm:$0xff]
  %v35 = vld [vmem:[#allocation2 + $0x8] sm:$0xff]
  %v36 = vld [vmem:[#allocation2 + $0x10] sm:$0xff]
  %v37 = vld [vmem:[#allocation2 + $0x18] sm:$0xff]
  %v38 = vld [vmem:[#allocation2 + $0x20] sm:$0xff]
  %v39 = vld [vmem:[#allocation2 + $0x28] sm:$0xff]
  %v40 = vld [vmem:[#allocation2 + $0x30] sm:$0xff]
  %v41 = vld [vmem:[#allocation2 + $0x38] sm:$0xff]
  %v42 = vld [vmem:[%s0] sm:$0xf]
  %v43 = vld [vmem:[%s0 + $0x4] sm:$0xf]
  %v44 = vld [vmem:[%s0 + $0x8] sm:$0xf]
  %v45 = vld [vmem:[%s0 + $0xc] sm:$0xf]
  %v46 = vld [vmem:[%s1] sm:$0xff]
  %v47 = vld [vmem:[%s1 + $0x8] sm:$0xff]
  %v48 = vld [vmem:[%s1 + $0x10] sm:$0xff]
  %v49 = vld [vmem:[%s1 + $0x18] sm:$0xff]
  %v50 = vld [vmem:[%s1 + $0x20] sm:$0xff]
  %v51 = vld [vmem:[%s1 + $0x28] sm:$0xff]
  %v52 = vld [vmem:[%s1 + $0x30] sm:$0xff]
  %v53 = vld [vmem:[%s1 + $0x38] sm:$0xff]
  %v58 = vunpack.c.l.b16 %v42
  %v59 = vunpack.c.l.b16 %v43
  %v60 = vunpack.c.l.b16 %v44
  %v61 = vunpack.c.l.b16 %v45
  %v62 = vpack.c.b16 %v59, %v58
  %v63 = vpack.c.b16 %v61, %v60
  %v72 = vunpack.c.l.b16 %v46
  %v73 = vunpack.c.h.b16 %v46
  %v74 = vunpack.c.l.b16 %v47
  %v75 = vunpack.c.h.b16 %v47
  %v76 = vunpack.c.l.b16 %v48
  %v77 = vunpack.c.h.b16 %v48
  %v78 = vunpack.c.l.b16 %v49
  %v79 = vunpack.c.h.b16 %v49
  %v80 = vunpack.c.l.b16 %v50
  %v81 = vunpack.c.h.b16 %v50
  %v82 = vunpack.c.l.b16 %v51
  %v83 = vunpack.c.h.b16 %v51
  %v84 = vunpack.c.l.b16 %v52
  %v85 = vunpack.c.h.b16 %v52
  %v86 = vunpack.c.l.b16 %v53
  %v87 = vunpack.c.h.b16 %v53
  %v88 = vpack.c.b16 %v74, %v72
  %v89 = vpack.c.b16 %v75, %v73
  %v90 = vpack.c.b16 %v78, %v76
  %v91 = vpack.c.b16 %v79, %v77
  %v92 = vpack.c.b16 %v82, %v80
  %v93 = vpack.c.b16 %v83, %v81
  %v94 = vpack.c.b16 %v86, %v84
  %v95 = vpack.c.b16 %v87, %v85
  %vm104 = vcmask 523264
  %v106 = vsel %vm104, %v62, 0
  %v109 = vsel %vm104, %v63, 0
  %111 = vmatpush.bf16.msra.mxu0 0
  %112 = vmatpush.bf16.msra.mxu0 0
  %113 = vmatpush.bf16.msra.mxu0 0
  %114 = vmatpush.bf16.msra.mxu0 0
  %115 = vmatpush.bf16.msra.mxu0 %v94
  %116 = vmatpush.bf16.msra.mxu0 %v92
  %117 = vmatpush.bf16.msra.mxu0 %v90
  %118 = vmatpush.bf16.msra.mxu0 %v88
  %119 = vmatmul.bf16.gmra.mxu0 %v106
  %v120 = vpop.f32.mrf.mxu0
  %v121 = vadd.f32 0.0, %v120
  %v122 = vpop.f32.mrf.mxu0
  %v123 = vadd.f32 0.0, %v122
  %124 = vmatmul.bf16.gmra.mxu0 %v109
  %v125 = vpop.f32.mrf.mxu0
  %v126 = vadd.f32 0.0, %v125
  %v127 = vpop.f32.mrf.mxu0
  %v128 = vadd.f32 0.0, %v127
  %129 = vdwg.mxu0
  %130 = vmatpush.bf16.msra.mxu0 0
  %131 = vmatpush.bf16.msra.mxu0 0
  %132 = vmatpush.bf16.msra.mxu0 0
  %133 = vmatpush.bf16.msra.mxu0 0
  %134 = vmatpush.bf16.msra.mxu0 %v95
  %135 = vmatpush.bf16.msra.mxu0 %v93
  %136 = vmatpush.bf16.msra.mxu0 %v91
  %137 = vmatpush.bf16.msra.mxu0 %v89
  %138 = vmatmul.bf16.gmra.mxu0 %v106
  %v139 = vpop.f32.mrf.mxu0
  %v140 = vadd.f32 0.0, %v139
  %v141 = vpop.f32.mrf.mxu0
  %v142 = vadd.f32 0.0, %v141
  %143 = vmatmul.bf16.gmra.mxu0 %v109
  %v144 = vpop.f32.mrf.mxu0
  %v145 = vadd.f32 0.0, %v144
  %v146 = vpop.f32.mrf.mxu0
  %v147 = vadd.f32 0.0, %v146
  %148 = vdwg.mxu0
  %v149 = vadd.f32 %v34, %v121
  %v150 = vadd.f32 %v35, %v140
  %v151 = vadd.f32 %v36, %v123
  %v152 = vadd.f32 %v37, %v142
  %v153 = vadd.f32 %v38, %v126
  %v154 = vadd.f32 %v39, %v145
  %v155 = vadd.f32 %v40, %v128
  %v156 = vadd.f32 %v41, %v147
  %157 = vst [vmem:[#allocation2] sm:$0xff] %v149
  %158 = vst.msk [vmem:[#allocation2 + $0x8] sm:$0xff] %vm104, %v150
  %159 = vst [vmem:[#allocation2 + $0x10] sm:$0xff] %v151
  %160 = vst.msk [vmem:[#allocation2 + $0x18] sm:$0xff] %vm104, %v152
  %161 = vst [vmem:[#allocation2 + $0x20] sm:$0xff] %v153
  %162 = vst.msk [vmem:[#allocation2 + $0x28] sm:$0xff] %vm104, %v154
  %163 = vst [vmem:[#allocation2 + $0x30] sm:$0xff] %v155
  %164 = vst.msk [vmem:[#allocation2 + $0x38] sm:$0xff] %vm104, %v156
  // Predicated region
  $region18: #{transformer_forward.35} parent=0 // pred_check
    %p165 = pneg %p15
  $region19: #{transformer_forward.35} parent=0 // pred_check_branch
    %167 = sbr.rel (%p165) target = $region21
  $region20: #{transformer_forward.35} parent=0 // pred_region
    %v168 = vld [vmem:[#allocation2] sm:$0xff]
    %v169 = vld [vmem:[#allocation2 + $0x8] sm:$0xff]
    %v170 = vld [vmem:[#allocation2 + $0x10] sm:$0xff]
    %v171 = vld [vmem:[#allocation2 + $0x18] sm:$0xff]
    %v172 = vld [vmem:[#allocation2 + $0x20] sm:$0xff]
    %v173 = vld [vmem:[#allocation2 + $0x28] sm:$0xff]
    %v174 = vld [vmem:[#allocation2 + $0x30] sm:$0xff]
    %v175 = vld [vmem:[#allocation2 + $0x38] sm:$0xff]
    %v176 = vpack.c.bf16 %v169, %v168
    %v177 = vpack.c.bf16 %v171, %v170
    %v178 = vpack.c.bf16 %v173, %v172
    %v179 = vpack.c.bf16 %v175, %v174
    %vm180 = vcmask 1043456
    %vm181 = vcmask 523268
    %vm182 = vmor %vm181, %vm180
    %183 = vst.msk [vmem:[%s3] sm:$0xff] %vm182, %v176
    %184 = vst.msk [vmem:[%s3 + $0x8] sm:$0xff] %vm182, %v177
    %185 = vst.msk [vmem:[%s3 + $0x10] sm:$0xff] %vm182, %v178
    %186 = vst.msk [vmem:[%s3 + $0x18] sm:$0xff] %vm182, %v179
  $region21: #{transformer_forward.35} parent=0 // pred_fallthru
    _
  // Predicated region
  $region22: #{transformer_forward.35} parent=0 // pred_check
    _
  $region23: #{transformer_forward.35} parent=0 // pred_check_branch
    %188 = sbr.rel (0) target = $region25
  $region24: #{transformer_forward.35} parent=0 // pred_region
    _
  $region25: #{transformer_forward.35} parent=0 // pred_fallthru
    _
  // Predicated region
  $region26: #{transformer_forward.35} parent=0 // pred_check
    _
  $region27: #{transformer_forward.35} parent=0 // pred_check_branch
    %190 = sbr.rel (0) target = $region29
  $region28: #{transformer_forward.35} parent=0 // pred_region
    _
  $region29: #{transformer_forward.35} parent=0 // pred_fallthru
    _

// kernel: transformer_forward.38
$region0: #{transformer_forward.38}
  #allocation0 [shape = 'u32[]', space=smem, size = 0x4, offset = 0x4, fixed_abs, tag = 'smem constant byte address 0x4 - core index']
  #allocation1 [shape = 'u32[72,128]{1,0:T(1,128)}', space=vmem, size = 0x9000, scoped, tag = 'internal scratch']
  %s0 = inlined_call_operand.vmem [shape: bf16[32,64], index: 0, kind: input, shape index: {}]
  %s1 = inlined_call_operand.vmem [shape: bf16[32,64], index: 1, kind: input, shape index: {}]
  %s2 = inlined_call_operand.vmem [shape: f32[1,64], index: 2, kind: input, shape index: {}]
  %s3 = inlined_call_operand.vmem [shape: f32[1,64], index: 3, kind: input, shape index: {}]
  %s4 = inlined_call_operand.vmem [shape: bf16[32,64], index: 4, kind: output, shape index: {}]
  %s5 = sld [smem:[#allocation0]]
  $region26: #{transformer_forward.38} parent=0
    _
  %s7 = ssub.s32 1, %s5
  %s8 = scalar_select 0, %s7, %s5
  // Predicated region
  $region2: #{transformer_forward.38} parent=0 // pred_check
    _
  $region3: #{transformer_forward.38} parent=0 // pred_check_branch
    %10 = sbr.rel (0) target = $region5
  $region4: #{transformer_forward.38} parent=0 // pred_region
    _
  $region5: #{transformer_forward.38} parent=0 // pred_fallthru
    _
  // Predicated region
  $region6: #{transformer_forward.38} parent=0 // pred_check
    _
  $region7: #{transformer_forward.38} parent=0 // pred_check_branch
    %12 = sbr.rel (0) target = $region9
  $region8: #{transformer_forward.38} parent=0 // pred_region
    _
  $region9: #{transformer_forward.38} parent=0 // pred_fallthru
    _
  // Predicated region
  $region10: #{transformer_forward.38} parent=0 // pred_check
    _
  $region11: #{transformer_forward.38} parent=0 // pred_check_branch
    %14 = sbr.rel (0) target = $region13
  $region12: #{transformer_forward.38} parent=0 // pred_region
    _
  $region13: #{transformer_forward.38} parent=0 // pred_fallthru
    _
  // Predicated region
  $region14: #{transformer_forward.38} parent=0 // pred_check
    _
  $region15: #{transformer_forward.38} parent=0 // pred_check_branch
    %16 = sbr.rel (0) target = $region17
  $region16: #{transformer_forward.38} parent=0 // pred_region
    _
  $region17: #{transformer_forward.38} parent=0 // pred_fallthru
    _
  %v17 = vld [vmem:[%s0] sm:$0xf]
  %v18 = vld [vmem:[%s0 + $0x4] sm:$0xf]
  %v19 = vld [vmem:[%s0 + $0x8] sm:$0xf]
  %v20 = vld [vmem:[%s0 + $0xc] sm:$0xf]
  %v21 = vunpack.c.l.bf16 %v17
  %v22 = vunpack.c.l.bf16 %v18
  %v23 = vunpack.c.l.bf16 %v19
  %v24 = vunpack.c.l.bf16 %v20
  %v25 = vld [vmem:[%s1] sm:$0xf]
  %v26 = vld [vmem:[%s1 + $0x4] sm:$0xf]
  %v27 = vld [vmem:[%s1 + $0x8] sm:$0xf]
  %v28 = vld [vmem:[%s1 + $0xc] sm:$0xf]
  %v29 = vunpack.c.l.bf16 %v25
  %v30 = vunpack.c.l.bf16 %v26
  %v31 = vunpack.c.l.bf16 %v27
  %v32 = vunpack.c.l.bf16 %v28
  %v33 = vadd.f32 %v21, %v29
  %v34 = vadd.f32 %v22, %v30
  %v35 = vadd.f32 %v23, %v31
  %v36 = vadd.f32 %v24, %v32
  %vm37 = vcmask 523264
  %v38 = vsel %vm37, %v33, 0.0
  %39 = vadd.xlane.f32.xlu0 %v38
  %v40 = vpop.xlane.xlu0 %39
  %v41 = vsel %vm37, %v34, 0.0
  %42 = vadd.xlane.f32.xlu0 %v41
  %v43 = vpop.xlane.xlu0 %42
  %v44 = vsel %vm37, %v35, 0.0
  %45 = vadd.xlane.f32.xlu0 %v44
  %v46 = vpop.xlane.xlu0 %45
  %v47 = vsel %vm37, %v36, 0.0
  %48 = vadd.xlane.f32.xlu0 %v47
  %v49 = vpop.xlane.xlu0 %48
  %v50 = vrcp.pop 64.0
  %v51 = vmul.f32 64.0, %v50
  %v52 = vsub.f32 1.0, %v51
  %v53 = vmul.f32 %v50, %v52
  %v54 = vadd.f32 %v50, %v53
  %vm55 = vweird.f32 %v50
  %v56 = vsel %vm55, %v50, %v54
  %v57 = vmul.f32 %v40, %v56
  %v58 = vmul.f32 %v43, %v56
  %v59 = vmul.f32 %v46, %v56
  %v60 = vmul.f32 %v49, %v56
  %v61 = vsub.f32 %v33, %v57
  %v62 = vsub.f32 %v34, %v58
  %v63 = vsub.f32 %v35, %v59
  %v64 = vsub.f32 %v36, %v60
  %v65 = vmul.f32 %v61, %v61
  %v66 = vmul.f32 %v62, %v62
  %v67 = vmul.f32 %v63, %v63
  %v68 = vmul.f32 %v64, %v64
  %v69 = vsel %vm37, %v65, 0.0
  %70 = vadd.xlane.f32.xlu0 %v69
  %v71 = vpop.xlane.xlu0 %70
  %v72 = vsel %vm37, %v66, 0.0
  %73 = vadd.xlane.f32.xlu0 %v72
  %v74 = vpop.xlane.xlu0 %73
  %v75 = vsel %vm37, %v67, 0.0
  %76 = vadd.xlane.f32.xlu0 %v75
  %v77 = vpop.xlane.xlu0 %76
  %v78 = vsel %vm37, %v68, 0.0
  %79 = vadd.xlane.f32.xlu0 %v78
  %v80 = vpop.xlane.xlu0 %79
  %v81 = vmul.f32 %v71, %v56
  %v82 = vmul.f32 %v74, %v56
  %v83 = vmul.f32 %v77, %v56
  %v84 = vmul.f32 %v80, %v56
  %v85 = vadd.f32 %v81, 1e-05
  %v86 = vadd.f32 %v82, 1e-05
  %v87 = vadd.f32 %v83, 1e-05
  %v88 = vadd.f32 %v84, 1e-05
  %v89 = vrsqrt.pop %v85
  %v90 = vmul.f32 %v89, %v85
  %v91 = vmul.f32 %v90, %v89
  %v92 = vmul.f32 0.5, %v91
  %v93 = vsub.f32 1.5, %v92
  %v94 = vmul.f32 %v89, %v93
  %vm95 = vweird.f32 %v85
  %vm96 = vweird.f32 %v89
  %vm97 = vmor %vm95, %vm96
  %v98 = vsel %vm97, %v89, %v94
  %v99 = vrsqrt.pop %v86
  %v100 = vmul.f32 %v99, %v86
  %v101 = vmul.f32 %v100, %v99
  %v102 = vmul.f32 0.5, %v101
  %v103 = vsub.f32 1.5, %v102
  %v104 = vmul.f32 %v99, %v103
  %vm105 = vweird.f32 %v86
  %vm106 = vweird.f32 %v99
  %vm107 = vmor %vm105, %vm106
  %v108 = vsel %vm107, %v99, %v104
  %v109 = vrsqrt.pop %v87
  %v110 = vmul.f32 %v109, %v87
  %v111 = vmul.f32 %v110, %v109
  %v112 = vmul.f32 0.5, %v111
  %v113 = vsub.f32 1.5, %v112
  %v114 = vmul.f32 %v109, %v113
  %vm115 = vweird.f32 %v87
  %vm116 = vweird.f32 %v109
  %vm117 = vmor %vm115, %vm116
  %v118 = vsel %vm117, %v109, %v114
  %v119 = vrsqrt.pop %v88
  %v120 = vmul.f32 %v119, %v88
  %v121 = vmul.f32 %v120, %v119
  %v122 = vmul.f32 0.5, %v121
  %v123 = vsub.f32 1.5, %v122
  %v124 = vmul.f32 %v119, %v123
  %vm125 = vweird.f32 %v88
  %vm126 = vweird.f32 %v119
  %vm127 = vmor %vm125, %vm126
  %v128 = vsel %vm127, %v119, %v124
  %v129 = vmul.f32 %v61, %v98
  %v130 = vmul.f32 %v62, %v108
  %v131 = vmul.f32 %v63, %v118
  %v132 = vmul.f32 %v64, %v128
  %v133 = vld [vmem:[%s2] sm:$0x1]
  %v135 = vperm.slane %v133, 0
  %v137 = vmul.f32 %v129, %v135
  %v138 = vmul.f32 %v130, %v135
  %v139 = vmul.f32 %v131, %v135
  %v140 = vmul.f32 %v132, %v135
  %v141 = vld [vmem:[%s3] sm:$0x1]
  %v143 = vperm.slane %v141, 0
  %v145 = vadd.f32 %v137, %v143
  %v146 = vadd.f32 %v138, %v143
  %v147 = vadd.f32 %v139, %v143
  %v148 = vadd.f32 %v140, %v143
  %v149 = vpack.c.bf16 %v145, %v145
  %v150 = vpack.c.bf16 %v146, %v146
  %v151 = vpack.c.bf16 %v147, %v147
  %v152 = vpack.c.bf16 %v148, %v148
  %vm153 = vcmask 519168
  %154 = vst.msk [vmem:[%s4] sm:$0xf] %vm153, %v149
  %155 = vst.msk [vmem:[%s4 + $0x4] sm:$0xf] %vm153, %v150
  %156 = vst.msk [vmem:[%s4 + $0x8] sm:$0xf] %vm153, %v151
  %157 = vst.msk [vmem:[%s4 + $0xc] sm:$0xf] %vm153, %v152
  // Predicated region
  $region18: #{transformer_forward.38} parent=0 // pred_check
    _
  $region19: #{transformer_forward.38} parent=0 // pred_check_branch
    %159 = sbr.rel (0) target = $region21
  $region20: #{transformer_forward.38} parent=0 // pred_region
    _
  $region21: #{transformer_forward.38} parent=0 // pred_fallthru
    _
  // Predicated region
  $region22: #{transformer_forward.38} parent=0 // pred_check
    _
  $region23: #{transformer_forward.38} parent=0 // pred_check_branch
    %161 = sbr.rel (0) target = $region25
  $region24: #{transformer_forward.38} parent=0 // pred_region
    _
  $region25: #{transformer_forward.38} parent=0 // pred_fallthru
    _

// kernel: transformer_forward.37
$region0: #{transformer_forward.37}
  #allocation0 [shape = 'u32[]', space=smem, size = 0x4, offset = 0x4, fixed_abs, tag = 'smem constant byte address 0x4 - core index']
  #allocation1 [shape = 'u32[72,128]{1,0:T(1,128)}', space=vmem, size = 0x9000, scoped, tag = 'internal scratch']
  #allocation2 [shape = 'f32[32,64]{1,0:T(8,128)}', space=vmem, size = 0x4000, scoped, tag = 'scratch operand']
  %s0 = inlined_call_operand.vmem [shape: bf16[32,64], index: 0, kind: input, shape index: {}]
  %s1 = inlined_call_operand.vmem [shape: bf16[64,64], index: 1, kind: input, shape index: {}]
  %s2 = inlined_call_operand.vmem [shape: f32[1,64], index: 2, kind: input, shape index: {}]
  %s3 = inlined_call_operand.vmem [shape: bf16[32,64], index: 3, kind: output, shape index: {}]
  %s4 = sld [smem:[#allocation0]]
  $region30: #{transformer_forward.37} parent=0
    _
  %s6 = ssub.s32 1, %s4
  %s7 = scalar_select 0, %s6, %s4
  // Predicated region
  $region2: #{transformer_forward.37} parent=0 // pred_check
    _
  $region3: #{transformer_forward.37} parent=0 // pred_check_branch
    %9 = sbr.rel (0) target = $region5
  $region4: #{transformer_forward.37} parent=0 // pred_region
    _
  $region5: #{transformer_forward.37} parent=0 // pred_fallthru
    _
  // Predicated region
  $region6: #{transformer_forward.37} parent=0 // pred_check
    _
  $region7: #{transformer_forward.37} parent=0 // pred_check_branch
    %11 = sbr.rel (0) target = $region9
  $region8: #{transformer_forward.37} parent=0 // pred_region
    _
  $region9: #{transformer_forward.37} parent=0 // pred_fallthru
    _
  // Predicated region
  $region10: #{transformer_forward.37} parent=0 // pred_check
    _
  $region11: #{transformer_forward.37} parent=0 // pred_check_branch
    %13 = sbr.rel (0) target = $region13
  $region12: #{transformer_forward.37} parent=0 // pred_region
    _
  $region13: #{transformer_forward.37} parent=0 // pred_fallthru
    _
  %p15 = scmp.eq.s32.totalorder 0, 0
  // Predicated region
  $region14: #{transformer_forward.37} parent=0 // pred_check
    %p16 = pneg %p15
  $region15: #{transformer_forward.37} parent=0 // pred_check_branch
    %18 = sbr.rel (%p16) target = $region17
  $region16: #{transformer_forward.37} parent=0 // pred_region
    %v19 = vld [vmem:[%s2] sm:$0x1]
    %v21 = vperm.slane %v19, 0
    %vm23 = vcmask 523264
    %24 = vst.msk [vmem:[#allocation2] sm:$0xff] %vm23, %v21
    %25 = vst.msk [vmem:[#allocation2 + $0x8] sm:$0xff] %vm23, %v21
    %26 = vst.msk [vmem:[#allocation2 + $0x10] sm:$0xff] %vm23, %v21
    %27 = vst.msk [vmem:[#allocation2 + $0x18] sm:$0xff] %vm23, %v21
  $region17: #{transformer_forward.37} parent=0 // pred_fallthru
    _
  %v28 = vld [vmem:[#allocation2] sm:$0xff]
  %v29 = vld [vmem:[#allocation2 + $0x8] sm:$0xff]
  %v30 = vld [vmem:[#allocation2 + $0x10] sm:$0xff]
  %v31 = vld [vmem:[#allocation2 + $0x18] sm:$0xff]
  %v32 = vld [vmem:[%s0] sm:$0xf]
  %v33 = vld [vmem:[%s0 + $0x4] sm:$0xf]
  %v34 = vld [vmem:[%s0 + $0x8] sm:$0xf]
  %v35 = vld [vmem:[%s0 + $0xc] sm:$0xf]
  %v36 = vld [vmem:[%s1] sm:$0xf]
  %v37 = vld [vmem:[%s1 + $0x4] sm:$0xf]
  %v38 = vld [vmem:[%s1 + $0x8] sm:$0xf]
  %v39 = vld [vmem:[%s1 + $0xc] sm:$0xf]
  %v40 = vld [vmem:[%s1 + $0x10] sm:$0xf]
  %v41 = vld [vmem:[%s1 + $0x14] sm:$0xf]
  %v42 = vld [vmem:[%s1 + $0x18] sm:$0xf]
  %v43 = vld [vmem:[%s1 + $0x1c] sm:$0xf]
  %v48 = vunpack.c.l.b16 %v32
  %v49 = vunpack.c.l.b16 %v33
  %v50 = vunpack.c.l.b16 %v34
  %v51 = vunpack.c.l.b16 %v35
  %v52 = vpack.c.b16 %v49, %v48
  %v53 = vpack.c.b16 %v51, %v50
  %v62 = vunpack.c.l.b16 %v36
  %v63 = vunpack.c.l.b16 %v37
  %v64 = vunpack.c.l.b16 %v38
  %v65 = vunpack.c.l.b16 %v39
  %v66 = vunpack.c.l.b16 %v40
  %v67 = vunpack.c.l.b16 %v41
  %v68 = vunpack.c.l.b16 %v42
  %v69 = vunpack.c.l.b16 %v43
  %v70 = vpack.c.b16 %v63, %v62
  %v71 = vpack.c.b16 %v65, %v64
  %v72 = vpack.c.b16 %v67, %v66
  %v73 = vpack.c.b16 %v69, %v68
  %vm78 = vcmask 523264
  %v80 = vsel %vm78, %v52, 0
  %v83 = vsel %vm78, %v53, 0
  %85 = vmatpush.bf16.msra.mxu0 0
  %86 = vmatpush.bf16.msra.mxu0 0
  %87 = vmatpush.bf16.msra.mxu0 0
  %88 = vmatpush.bf16.msra.mxu0 0
  %89 = vmatpush.bf16.msra.mxu0 %v73
  %90 = vmatpush.bf16.msra.mxu0 %v72
  %91 = vmatpush.bf16.msra.mxu0 %v71
  %92 = vmatpush.bf16.msra.mxu0 %v70
  %93 = vmatmul.bf16.gmra.mxu0 %v80
  %v94 = vpop.f32.mrf.mxu0
  %v95 = vadd.f32 0.0, %v94
  %v96 = vpop.f32.mrf.mxu0
  %v97 = vadd.f32 0.0, %v96
  %98 = vmatmul.bf16.gmra.mxu0 %v83
  %v99 = vpop.f32.mrf.mxu0
  %v100 = vadd.f32 0.0, %v99
  %v101 = vpop.f32.mrf.mxu0
  %v102 = vadd.f32 0.0, %v101
  %103 = vdwg.mxu0
  %v104 = vadd.f32 %v28, %v95
  %v105 = vadd.f32 %v29, %v97
  %v106 = vadd.f32 %v30, %v100
  %v107 = vadd.f32 %v31, %v102
  %108 = vst.msk [vmem:[#allocation2] sm:$0xff] %vm78, %v104
  %109 = vst.msk [vmem:[#allocation2 + $0x8] sm:$0xff] %vm78, %v105
  %110 = vst.msk [vmem:[#allocation2 + $0x10] sm:$0xff] %vm78, %v106
  %111 = vst.msk [vmem:[#allocation2 + $0x18] sm:$0xff] %vm78, %v107
  // Predicated region
  $region18: #{transformer_forward.37} parent=0 // pred_check
    %p112 = pneg %p15
  $region19: #{transformer_forward.37} parent=0 // pred_check_branch
    %114 = sbr.rel (%p112) target = $region21
  $region20: #{transformer_forward.37} parent=0 // pred_region
    %v115 = vld [vmem:[#allocation2] sm:$0xff]
    %v116 = vld [vmem:[#allocation2 + $0x8] sm:$0xff]
    %v117 = vld [vmem:[#allocation2 + $0x10] sm:$0xff]
    %v118 = vld [vmem:[#allocation2 + $0x18] sm:$0xff]
    %v119 = vpack.c.bf16 %v115, %v115
    %v120 = vpack.c.bf16 %v116, %v116
    %v121 = vpack.c.bf16 %v117, %v117
    %v122 = vpack.c.bf16 %v118, %v118
    %vm123 = vcmask 519168
    %124 = vst.msk [vmem:[%s3] sm:$0xf] %vm123, %v119
    %125 = vst.msk [vmem:[%s3 + $0x4] sm:$0xf] %vm123, %v120
    %126 = vst.msk [vmem:[%s3 + $0x8] sm:$0xf] %vm123, %v121
    %127 = vst.msk [vmem:[%s3 + $0xc] sm:$0xf] %vm123, %v122
  $region21: #{transformer_forward.37} parent=0 // pred_fallthru
    _
  // Predicated region
  $region22: #{transformer_forward.37} parent=0 // pred_check
    _
  $region23: #{transformer_forward.37} parent=0 // pred_check_branch
    %129 = sbr.rel (0) target = $region25
  $region24: #{transformer_forward.37} parent=0 // pred_region
    _
  $region25: #{transformer_forward.37} parent=0 // pred_fallthru
    _
  // Predicated region
  $region26: #{transformer_forward.37} parent=0 // pred_check
    _
  $region27: #{transformer_forward.37} parent=0 // pred_check_branch
    %131 = sbr.rel (0) target = $region29
  $region28: #{transformer_forward.37} parent=0 // pred_region
    _
  $region29: #{transformer_forward.37} parent=0 // pred_fallthru
    _

// kernel: transformer_forward.52
$region0: #{transformer_forward.52}
  #allocation0 [shape = 'u32[]', space=smem, size = 0x4, offset = 0x4, fixed_abs, tag = 'smem constant byte address 0x4 - core index']
  #allocation1 [shape = 'u32[72,128]{1,0:T(1,128)}', space=vmem, size = 0x9000, scoped, tag = 'internal scratch']
  #allocation2 [shape = 'f32[32,128]{1,0:T(8,128)}', space=vmem, size = 0x4000, scoped, tag = 'scratch operand']
  %s0 = inlined_call_operand.vmem [shape: bf16[32,64], index: 0, kind: input, shape index: {}]
  %s1 = inlined_call_operand.vmem [shape: bf16[64,128], index: 1, kind: input, shape index: {}]
  %s2 = inlined_call_operand.vmem [shape: f32[1,128], index: 2, kind: input, shape index: {}]
  %s3 = inlined_call_operand.vmem [shape: bf16[32,128], index: 3, kind: output, shape index: {}]
  %s4 = sld [smem:[#allocation0]]
  $region30: #{transformer_forward.52} parent=0
    _
  %s6 = ssub.s32 1, %s4
  %s7 = scalar_select 0, %s6, %s4
  // Predicated region
  $region2: #{transformer_forward.52} parent=0 // pred_check
    _
  $region3: #{transformer_forward.52} parent=0 // pred_check_branch
    %9 = sbr.rel (0) target = $region5
  $region4: #{transformer_forward.52} parent=0 // pred_region
    _
  $region5: #{transformer_forward.52} parent=0 // pred_fallthru
    _
  // Predicated region
  $region6: #{transformer_forward.52} parent=0 // pred_check
    _
  $region7: #{transformer_forward.52} parent=0 // pred_check_branch
    %11 = sbr.rel (0) target = $region9
  $region8: #{transformer_forward.52} parent=0 // pred_region
    _
  $region9: #{transformer_forward.52} parent=0 // pred_fallthru
    _
  // Predicated region
  $region10: #{transformer_forward.52} parent=0 // pred_check
    _
  $region11: #{transformer_forward.52} parent=0 // pred_check_branch
    %13 = sbr.rel (0) target = $region13
  $region12: #{transformer_forward.52} parent=0 // pred_region
    _
  $region13: #{transformer_forward.52} parent=0 // pred_fallthru
    _
  %p15 = scmp.eq.s32.totalorder 0, 0
  // Predicated region
  $region14: #{transformer_forward.52} parent=0 // pred_check
    %p16 = pneg %p15
  $region15: #{transformer_forward.52} parent=0 // pred_check_branch
    %18 = sbr.rel (%p16) target = $region17
  $region16: #{transformer_forward.52} parent=0 // pred_region
    %v19 = vld [vmem:[%s2] sm:$0x1]
    %v21 = vperm.slane %v19, 0
    %23 = vst [vmem:[#allocation2] sm:$0xff] %v21
    %24 = vst [vmem:[#allocation2 + $0x8] sm:$0xff] %v21
    %25 = vst [vmem:[#allocation2 + $0x10] sm:$0xff] %v21
    %26 = vst [vmem:[#allocation2 + $0x18] sm:$0xff] %v21
  $region17: #{transformer_forward.52} parent=0 // pred_fallthru
    _
  %v27 = vld [vmem:[#allocation2] sm:$0xff]
  %v28 = vld [vmem:[#allocation2 + $0x8] sm:$0xff]
  %v29 = vld [vmem:[#allocation2 + $0x10] sm:$0xff]
  %v30 = vld [vmem:[#allocation2 + $0x18] sm:$0xff]
  %v31 = vld [vmem:[%s0] sm:$0xf]
  %v32 = vld [vmem:[%s0 + $0x4] sm:$0xf]
  %v33 = vld [vmem:[%s0 + $0x8] sm:$0xf]
  %v34 = vld [vmem:[%s0 + $0xc] sm:$0xf]
  %v35 = vld [vmem:[%s1] sm:$0xf]
  %v36 = vld [vmem:[%s1 + $0x4] sm:$0xf]
  %v37 = vld [vmem:[%s1 + $0x8] sm:$0xf]
  %v38 = vld [vmem:[%s1 + $0xc] sm:$0xf]
  %v39 = vld [vmem:[%s1 + $0x10] sm:$0xf]
  %v40 = vld [vmem:[%s1 + $0x14] sm:$0xf]
  %v41 = vld [vmem:[%s1 + $0x18] sm:$0xf]
  %v42 = vld [vmem:[%s1 + $0x1c] sm:$0xf]
  %v47 = vunpack.c.l.b16 %v31
  %v48 = vunpack.c.l.b16 %v32
  %v49 = vunpack.c.l.b16 %v33
  %v50 = vunpack.c.l.b16 %v34
  %v51 = vpack.c.b16 %v48, %v47
  %v52 = vpack.c.b16 %v50, %v49
  %v61 = vunpack.c.l.b16 %v35
  %v62 = vunpack.c.l.b16 %v36
  %v63 = vunpack.c.l.b16 %v37
  %v64 = vunpack.c.l.b16 %v38
  %v65 = vunpack.c.l.b16 %v39
  %v66 = vunpack.c.l.b16 %v40
  %v67 = vunpack.c.l.b16 %v41
  %v68 = vunpack.c.l.b16 %v42
  %v69 = vpack.c.b16 %v62, %v61
  %v70 = vpack.c.b16 %v64, %v63
  %v71 = vpack.c.b16 %v66, %v65
  %v72 = vpack.c.b16 %v68, %v67
  %vm77 = vcmask 523264
  %v79 = vsel %vm77, %v51, 0
  %v82 = vsel %vm77, %v52, 0
  %84 = vmatpush.bf16.msra.mxu0 0
  %85 = vmatpush.bf16.msra.mxu0 0
  %86 = vmatpush.bf16.msra.mxu0 0
  %87 = vmatpush.bf16.msra.mxu0 0
  %88 = vmatpush.bf16.msra.mxu0 %v72
  %89 = vmatpush.bf16.msra.mxu0 %v71
  %90 = vmatpush.bf16.msra.mxu0 %v70
  %91 = vmatpush.bf16.msra.mxu0 %v69
  %92 = vmatmul.bf16.gmra.mxu0 %v79
  %v93 = vpop.f32.mrf.mxu0
  %v94 = vadd.f32 0.0, %v93
  %v95 = vpop.f32.mrf.mxu0
  %v96 = vadd.f32 0.0, %v95
  %97 = vmatmul.bf16.gmra.mxu0 %v82
  %v98 = vpop.f32.mrf.mxu0
  %v99 = vadd.f32 0.0, %v98
  %v100 = vpop.f32.mrf.mxu0
  %v101 = vadd.f32 0.0, %v100
  %102 = vdwg.mxu0
  %v103 = vadd.f32 %v27, %v94
  %v104 = vadd.f32 %v28, %v96
  %v105 = vadd.f32 %v29, %v99
  %v106 = vadd.f32 %v30, %v101
  %107 = vst [vmem:[#allocation2] sm:$0xff] %v103
  %108 = vst [vmem:[#allocation2 + $0x8] sm:$0xff] %v104
  %109 = vst [vmem:[#allocation2 + $0x10] sm:$0xff] %v105
  %110 = vst [vmem:[#allocation2 + $0x18] sm:$0xff] %v106
  // Predicated region
  $region18: #{transformer_forward.52} parent=0 // pred_check
    %p111 = pneg %p15
  $region19: #{transformer_forward.52} parent=0 // pred_check_branch
    %113 = sbr.rel (%p111) target = $region21
  $region20: #{transformer_forward.52} parent=0 // pred_region
    %v114 = vld [vmem:[#allocation2] sm:$0xff]
    %v115 = vld [vmem:[#allocation2 + $0x8] sm:$0xff]
    %v116 = vld [vmem:[#allocation2 + $0x10] sm:$0xff]
    %v117 = vld [vmem:[#allocation2 + $0x18] sm:$0xff]
    %v118 = vpack.c.bf16 %v114, %v114
    %v119 = vpack.c.bf16 %v115, %v115
    %v120 = vpack.c.bf16 %v116, %v116
    %v121 = vpack.c.bf16 %v117, %v117
    %122 = vst [vmem:[%s3] sm:$0xf] %v118
    %123 = vst [vmem:[%s3 + $0x4] sm:$0xf] %v119
    %124 = vst [vmem:[%s3 + $0x8] sm:$0xf] %v120
    %125 = vst [vmem:[%s3 + $0xc] sm:$0xf] %v121
  $region21: #{transformer_forward.52} parent=0 // pred_fallthru
    _
  // Predicated region
  $region22: #{transformer_forward.52} parent=0 // pred_check
    _
  $region23: #{transformer_forward.52} parent=0 // pred_check_branch
    %127 = sbr.rel (0) target = $region25
  $region24: #{transformer_forward.52} parent=0 // pred_region
    _
  $region25: #{transformer_forward.52} parent=0 // pred_fallthru
    _
  // Predicated region
  $region26: #{transformer_forward.52} parent=0 // pred_check
    _
  $region27: #{transformer_forward.52} parent=0 // pred_check_branch
    %129 = sbr.rel (0) target = $region29
  $region28: #{transformer_forward.52} parent=0 // pred_region
    _
  $region29: #{transformer_forward.52} parent=0 // pred_fallthru
    _

// kernel: transformer_forward.39
$region0: #{transformer_forward.39}
  #allocation0 [shape = 'u32[]', space=smem, size = 0x4, offset = 0x4, fixed_abs, tag = 'smem constant byte address 0x4 - core index']
  #allocation1 [shape = 'u32[72,128]{1,0:T(1,128)}', space=vmem, size = 0x9000, scoped, tag = 'internal scratch']
  #allocation2 [shape = 'f32[32,64]{1,0:T(8,128)}', space=vmem, size = 0x4000, scoped, tag = 'scratch operand']
  %s0 = inlined_call_operand.vmem [shape: bf16[32,64], index: 0, kind: input, shape index: {}]
  %s1 = inlined_call_operand.vmem [shape: bf16[64,256], index: 1, kind: input, shape index: {}]
  %s2 = inlined_call_operand.vmem [shape: f32[1,256], index: 2, kind: input, shape index: {}]
  %s3 = inlined_call_operand.vmem [shape: bf16[256,64], index: 3, kind: input, shape index: {}]
  %s4 = inlined_call_operand.vmem [shape: f32[1,64], index: 4, kind: input, shape index: {}]
  %s5 = inlined_call_operand.vmem [shape: bf16[32,64], index: 5, kind: output, shape index: {}]
  %s6 = sld [smem:[#allocation0]]
  $region38: #{transformer_forward.39} parent=0
    _
  %s8 = ssub.s32 1, %s6
  %s9 = scalar_select 0, %s8, %s6
  // Predicated region
  $region2: #{transformer_forward.39} parent=0 // pred_check
    _
  $region3: #{transformer_forward.39} parent=0 // pred_check_branch
    %11 = sbr.rel (0) target = $region5
  $region4: #{transformer_forward.39} parent=0 // pred_region
    _
  $region5: #{transformer_forward.39} parent=0 // pred_fallthru
    _
  // Predicated region
  $region6: #{transformer_forward.39} parent=0 // pred_check
    _
  $region7: #{transformer_forward.39} parent=0 // pred_check_branch
    %13 = sbr.rel (0) target = $region9
  $region8: #{transformer_forward.39} parent=0 // pred_region
    _
  $region9: #{transformer_forward.39} parent=0 // pred_fallthru
    _
  // Predicated region
  $region10: #{transformer_forward.39} parent=0 // pred_check
    _
  $region11: #{transformer_forward.39} parent=0 // pred_check_branch
    %15 = sbr.rel (0) target = $region13
  $region12: #{transformer_forward.39} parent=0 // pred_region
    _
  $region13: #{transformer_forward.39} parent=0 // pred_fallthru
    _
  // Predicated region
  $region14: #{transformer_forward.39} parent=0 // pred_check
    _
  $region15: #{transformer_forward.39} parent=0 // pred_check_branch
    %17 = sbr.rel (0) target = $region17
  $region16: #{transformer_forward.39} parent=0 // pred_region
    _
  $region17: #{transformer_forward.39} parent=0 // pred_fallthru
    _
  // Predicated region
  $region18: #{transformer_forward.39} parent=0 // pred_check
    _
  $region19: #{transformer_forward.39} parent=0 // pred_check_branch
    %19 = sbr.rel (0) target = $region21
  $region20: #{transformer_forward.39} parent=0 // pred_region
    _
  $region21: #{transformer_forward.39} parent=0 // pred_fallthru
    _
  %p21 = scmp.eq.s32.totalorder 0, 0
  // Predicated region
  $region22: #{transformer_forward.39} parent=0 // pred_check
    %p22 = pneg %p21
  $region23: #{transformer_forward.39} parent=0 // pred_check_branch
    %24 = sbr.rel (%p22) target = $region25
  $region24: #{transformer_forward.39} parent=0 // pred_region
    %v25 = vld [vmem:[%s4] sm:$0x1]
    %v27 = vperm.slane %v25, 0
    %vm29 = vcmask 523264
    %30 = vst.msk [vmem:[#allocation2] sm:$0xff] %vm29, %v27
    %31 = vst.msk [vmem:[#allocation2 + $0x8] sm:$0xff] %vm29, %v27
    %32 = vst.msk [vmem:[#allocation2 + $0x10] sm:$0xff] %vm29, %v27
    %33 = vst.msk [vmem:[#allocation2 + $0x18] sm:$0xff] %vm29, %v27
  $region25: #{transformer_forward.39} parent=0 // pred_fallthru
    _
  %v34 = vld [vmem:[%s0] sm:$0xf]
  %v35 = vld [vmem:[%s0 + $0x4] sm:$0xf]
  %v36 = vld [vmem:[%s0 + $0x8] sm:$0xf]
  %v37 = vld [vmem:[%s0 + $0xc] sm:$0xf]
  %v38 = vld [vmem:[%s1] sm:$0xff]
  %v39 = vld [vmem:[%s1 + $0x8] sm:$0xff]
  %v40 = vld [vmem:[%s1 + $0x10] sm:$0xff]
  %v41 = vld [vmem:[%s1 + $0x18] sm:$0xff]
  %v42 = vld [vmem:[%s1 + $0x20] sm:$0xff]
  %v43 = vld [vmem:[%s1 + $0x28] sm:$0xff]
  %v44 = vld [vmem:[%s1 + $0x30] sm:$0xff]
  %v45 = vld [vmem:[%s1 + $0x38] sm:$0xff]
  %v46 = vld [vmem:[%s2] sm:$0x3]
  %v48 = vperm.slane %v46, 0
  %v49 = vperm.slane %v46, 1
  %v56 = vunpack.c.l.b16 %v34
  %v57 = vunpack.c.l.b16 %v35
  %v58 = vunpack.c.l.b16 %v36
  %v59 = vunpack.c.l.b16 %v37
  %v60 = vpack.c.b16 %v57, %v56
  %v61 = vpack.c.b16 %v59, %v58
  %v70 = vunpack.c.l.b16 %v38
  %v71 = vunpack.c.h.b16 %v38
  %v72 = vunpack.c.l.b16 %v39
  %v73 = vunpack.c.h.b16 %v39
  %v74 = vunpack.c.l.b16 %v40
  %v75 = vunpack.c.h.b16 %v40
  %v76 = vunpack.c.l.b16 %v41
  %v77 = vunpack.c.h.b16 %v41
  %v78 = vunpack.c.l.b16 %v42
  %v79 = vunpack.c.h.b16 %v42
  %v80 = vunpack.c.l.b16 %v43
  %v81 = vunpack.c.h.b16 %v43
  %v82 = vunpack.c.l.b16 %v44
  %v83 = vunpack.c.h.b16 %v44
  %v84 = vunpack.c.l.b16 %v45
  %v85 = vunpack.c.h.b16 %v45
  %v86 = vpack.c.b16 %v72, %v70
  %v87 = vpack.c.b16 %v73, %v71
  %v88 = vpack.c.b16 %v76, %v74
  %v89 = vpack.c.b16 %v77, %v75
  %v90 = vpack.c.b16 %v80, %v78
  %v91 = vpack.c.b16 %v81, %v79
  %v92 = vpack.c.b16 %v84, %v82
  %v93 = vpack.c.b16 %v85, %v83
  %vm102 = vcmask 523264
  %v104 = vsel %vm102, %v60, 0
  %v107 = vsel %vm102, %v61, 0
  %109 = vmatpush.bf16.msra.mxu0 0
  %110 = vmatpush.bf16.msra.mxu0 0
  %111 = vmatpush.bf16.msra.mxu0 0
  %112 = vmatpush.bf16.msra.mxu0 0
  %113 = vmatpush.bf16.msra.mxu0 %v92
  %114 = vmatpush.bf16.msra.mxu0 %v90
  %115 = vmatpush.bf16.msra.mxu0 %v88
  %116 = vmatpush.bf16.msra.mxu0 %v86
  %117 = vmatmul.bf16.gmra.mxu0 %v104
  %v118 = vpop.f32.mrf.mxu0
  %v119 = vadd.f32 %v48, %v118
  %v120 = vpop.f32.mrf.mxu0
  %v121 = vadd.f32 %v48, %v120
  %122 = vmatmul.bf16.gmra.mxu0 %v107
  %v123 = vpop.f32.mrf.mxu0
  %v124 = vadd.f32 %v48, %v123
  %v125 = vpop.f32.mrf.mxu0
  %v126 = vadd.f32 %v48, %v125
  %127 = vdwg.mxu0
  %128 = vmatpush.bf16.msra.mxu0 0
  %129 = vmatpush.bf16.msra.mxu0 0
  %130 = vmatpush.bf16.msra.mxu0 0
  %131 = vmatpush.bf16.msra.mxu0 0
  %132 = vmatpush.bf16.msra.mxu0 %v93
  %133 = vmatpush.bf16.msra.mxu0 %v91
  %134 = vmatpush.bf16.msra.mxu0 %v89
  %135 = vmatpush.bf16.msra.mxu0 %v87
  %136 = vmatmul.bf16.gmra.mxu0 %v104
  %v137 = vpop.f32.mrf.mxu0
  %v138 = vadd.f32 %v49, %v137
  %v139 = vpop.f32.mrf.mxu0
  %v140 = vadd.f32 %v49, %v139
  %141 = vmatmul.bf16.gmra.mxu0 %v107
  %v142 = vpop.f32.mrf.mxu0
  %v143 = vadd.f32 %v49, %v142
  %v144 = vpop.f32.mrf.mxu0
  %v145 = vadd.f32 %v49, %v144
  %146 = vdwg.mxu0
  %v147 = vmax.f32 %v119, 0.0
  %v148 = vmax.f32 %v138, 0.0
  %v149 = vmax.f32 %v121, 0.0
  %v150 = vmax.f32 %v140, 0.0
  %v151 = vmax.f32 %v124, 0.0
  %v152 = vmax.f32 %v143, 0.0
  %v153 = vmax.f32 %v126, 0.0
  %v154 = vmax.f32 %v145, 0.0
  %v155 = vpack.c.bf16 %v149, %v147
  %v156 = vpack.c.bf16 %v150, %v148
  %v157 = vpack.c.bf16 %v153, %v151
  %v158 = vpack.c.bf16 %v154, %v152
  %v159 = vld [vmem:[#allocation2] sm:$0xff]
  %v160 = vld [vmem:[#allocation2 + $0x8] sm:$0xff]
  %v161 = vld [vmem:[#allocation2 + $0x10] sm:$0xff]
  %v162 = vld [vmem:[#allocation2 + $0x18] sm:$0xff]
  %v163 = vld [vmem:[%s3] sm:$0xf]
  %v164 = vld [vmem:[%s3 + $0x4] sm:$0xf]
  %v165 = vld [vmem:[%s3 + $0x8] sm:$0xf]
  %v166 = vld [vmem:[%s3 + $0xc] sm:$0xf]
  %v167 = vld [vmem:[%s3 + $0x10] sm:$0xf]
  %v168 = vld [vmem:[%s3 + $0x14] sm:$0xf]
  %v169 = vld [vmem:[%s3 + $0x18] sm:$0xf]
  %v170 = vld [vmem:[%s3 + $0x1c] sm:$0xf]
  %v171 = vld [vmem:[%s3 + $0x20] sm:$0xf]
  %v172 = vld [vmem:[%s3 + $0x24] sm:$0xf]
  %v173 = vld [vmem:[%s3 + $0x28] sm:$0xf]
  %v174 = vld [vmem:[%s3 + $0x2c] sm:$0xf]
  %v175 = vld [vmem:[%s3 + $0x30] sm:$0xf]
  %v176 = vld [vmem:[%s3 + $0x34] sm:$0xf]
  %v177 = vld [vmem:[%s3 + $0x38] sm:$0xf]
  %v178 = vld [vmem:[%s3 + $0x3c] sm:$0xf]
  %v179 = vld [vmem:[%s3 + $0x40] sm:$0xf]
  %v180 = vld [vmem:[%s3 + $0x44] sm:$0xf]
  %v181 = vld [vmem:[%s3 + $0x48] sm:$0xf]
  %v182 = vld [vmem:[%s3 + $0x4c] sm:$0xf]
  %v183 = vld [vmem:[%s3 + $0x50] sm:$0xf]
  %v184 = vld [vmem:[%s3 + $0x54] sm:$0xf]
  %v185 = vld [vmem:[%s3 + $0x58] sm:$0xf]
  %v186 = vld [vmem:[%s3 + $0x5c] sm:$0xf]
  %v187 = vld [vmem:[%s3 + $0x60] sm:$0xf]
  %v188 = vld [vmem:[%s3 + $0x64] sm:$0xf]
  %v189 = vld [vmem:[%s3 + $0x68] sm:$0xf]
  %v190 = vld [vmem:[%s3 + $0x6c] sm:$0xf]
  %v191 = vld [vmem:[%s3 + $0x70] sm:$0xf]
  %v192 = vld [vmem:[%s3 + $0x74] sm:$0xf]
  %v193 = vld [vmem:[%s3 + $0x78] sm:$0xf]
  %v194 = vld [vmem:[%s3 + $0x7c] sm:$0xf]
  %v227 = vunpack.c.l.b16 %v163
  %v228 = vunpack.c.l.b16 %v164
  %v229 = vunpack.c.l.b16 %v165
  %v230 = vunpack.c.l.b16 %v166
  %v231 = vunpack.c.l.b16 %v167
  %v232 = vunpack.c.l.b16 %v168
  %v233 = vunpack.c.l.b16 %v169
  %v234 = vunpack.c.l.b16 %v170
  %v235 = vunpack.c.l.b16 %v171
  %v236 = vunpack.c.l.b16 %v172
  %v237 = vunpack.c.l.b16 %v173
  %v238 = vunpack.c.l.b16 %v174
  %v239 = vunpack.c.l.b16 %v175
  %v240 = vunpack.c.l.b16 %v176
  %v241 = vunpack.c.l.b16 %v177
  %v242 = vunpack.c.l.b16 %v178
  %v243 = vunpack.c.l.b16 %v179
  %v244 = vunpack.c.l.b16 %v180
  %v245 = vunpack.c.l.b16 %v181
  %v246 = vunpack.c.l.b16 %v182
  %v247 = vunpack.c.l.b16 %v183
  %v248 = vunpack.c.l.b16 %v184
  %v249 = vunpack.c.l.b16 %v185
  %v250 = vunpack.c.l.b16 %v186
  %v251 = vunpack.c.l.b16 %v187
  %v252 = vunpack.c.l.b16 %v188
  %v253 = vunpack.c.l.b16 %v189
  %v254 = vunpack.c.l.b16 %v190
  %v255 = vunpack.c.l.b16 %v191
  %v256 = vunpack.c.l.b16 %v192
  %v257 = vunpack.c.l.b16 %v193
  %v258 = vunpack.c.l.b16 %v194
  %v259 = vpack.c.b16 %v228, %v227
  %v260 = vpack.c.b16 %v230, %v229
  %v261 = vpack.c.b16 %v232, %v231
  %v262 = vpack.c.b16 %v234, %v233
  %v263 = vpack.c.b16 %v236, %v235
  %v264 = vpack.c.b16 %v238, %v237
  %v265 = vpack.c.b16 %v240, %v239
  %v266 = vpack.c.b16 %v242, %v241
  %v267 = vpack.c.b16 %v244, %v243
  %v268 = vpack.c.b16 %v246, %v245
  %v269 = vpack.c.b16 %v248, %v247
  %v270 = vpack.c.b16 %v250, %v249
  %v271 = vpack.c.b16 %v252, %v251
  %v272 = vpack.c.b16 %v254, %v253
  %v273 = vpack.c.b16 %v256, %v255
  %v274 = vpack.c.b16 %v258, %v257
  %291 = vmatpush.bf16.msra.mxu0 %v266
  %292 = vmatpush.bf16.msra.mxu0 %v265
  %293 = vmatpush.bf16.msra.mxu0 %v264
  %294 = vmatpush.bf16.msra.mxu0 %v263
  %295 = vmatpush.bf16.msra.mxu0 %v262
  %296 = vmatpush.bf16.msra.mxu0 %v261
  %297 = vmatpush.bf16.msra.mxu0 %v260
  %298 = vmatpush.bf16.msra.mxu0 %v259
  %299 = vmatmul.bf16.gmra.mxu0 %v155
  %v300 = vpop.f32.mrf.mxu0
  %v301 = vadd.f32 0.0, %v300
  %v302 = vpop.f32.mrf.mxu0
  %v303 = vadd.f32 0.0, %v302
  %304 = vmatmul.bf16.gmra.mxu0 %v157
  %v305 = vpop.f32.mrf.mxu0
  %v306 = vadd.f32 0.0, %v305
  %v307 = vpop.f32.mrf.mxu0
  %v308 = vadd.f32 0.0, %v307
  %309 = vdwg.mxu0
  %310 = vmatpush.bf16.msra.mxu0 %v274
  %311 = vmatpush.bf16.msra.mxu0 %v273
  %312 = vmatpush.bf16.msra.mxu0 %v272
  %313 = vmatpush.bf16.msra.mxu0 %v271
  %314 = vmatpush.bf16.msra.mxu0 %v270
  %315 = vmatpush.bf16.msra.mxu0 %v269
  %316 = vmatpush.bf16.msra.mxu0 %v268
  %317 = vmatpush.bf16.msra.mxu0 %v267
  %318 = vmatmul.bf16.gmra.mxu0 %v156
  %v319 = vpop.f32.mrf.mxu0
  %v320 = vadd.f32 %v301, %v319
  %v321 = vpop.f32.mrf.mxu0
  %v322 = vadd.f32 %v303, %v321
  %323 = vmatmul.bf16.gmra.mxu0 %v158
  %v324 = vpop.f32.mrf.mxu0
  %v325 = vadd.f32 %v306, %v324
  %v326 = vpop.f32.mrf.mxu0
  %v327 = vadd.f32 %v308, %v326
  %328 = vdwg.mxu0
  %v329 = vadd.f32 %v159, %v320
  %v330 = vadd.f32 %v160, %v322
  %v331 = vadd.f32 %v161, %v325
  %v332 = vadd.f32 %v162, %v327
  %333 = vst.msk [vmem:[#allocation2] sm:$0xff] %vm102, %v329
  %334 = vst.msk [vmem:[#allocation2 + $0x8] sm:$0xff] %vm102, %v330
  %335 = vst.msk [vmem:[#allocation2 + $0x10] sm:$0xff] %vm102, %v331
  %336 = vst.msk [vmem:[#allocation2 + $0x18] sm:$0xff] %vm102, %v332
  // Predicated region
  $region26: #{transformer_forward.39} parent=0 // pred_check
    %p337 = pneg %p21
  $region27: #{transformer_forward.39} parent=0 // pred_check_branch
    %339 = sbr.rel (%p337) target = $region29
  $region28: #{transformer_forward.39} parent=0 // pred_region
    %v340 = vld [vmem:[#allocation2] sm:$0xff]
    %v341 = vld [vmem:[#allocation2 + $0x8] sm:$0xff]
    %v342 = vld [vmem:[#allocation2 + $0x10] sm:$0xff]
    %v343 = vld [vmem:[#allocation2 + $0x18] sm:$0xff]
    %v344 = vpack.c.bf16 %v340, %v340
    %v345 = vpack.c.bf16 %v341, %v341
    %v346 = vpack.c.bf16 %v342, %v342
    %v347 = vpack.c.bf16 %v343, %v343
    %vm348 = vcmask 519168
    %349 = vst.msk [vmem:[%s5] sm:$0xf] %vm348, %v344
    %350 = vst.msk [vmem:[%s5 + $0x4] sm:$0xf] %vm348, %v345
    %351 = vst.msk [vmem:[%s5 + $0x8] sm:$0xf] %vm348, %v346
    %352 = vst.msk [vmem:[%s5 + $0xc] sm:$0xf] %vm348, %v347
  $region29: #{transformer_forward.39} parent=0 // pred_fallthru
    _
  // Predicated region
  $region30: #{transformer_forward.39} parent=0 // pred_check
    _
  $region31: #{transformer_forward.39} parent=0 // pred_check_branch
    %354 = sbr.rel (0) target = $region33
  $region32: #{transformer_forward.39} parent=0 // pred_region
    _
  $region33: #{transformer_forward.39} parent=0 // pred_fallthru
    _
  // Predicated region
  $region34: #{transformer_forward.39} parent=0 // pred_check
    _
  $region35: #{transformer_forward.39} parent=0 // pred_check_branch
    %356 = sbr.rel (0) target = $region37
  $region36: #{transformer_forward.39} parent=0 // pred_region
    _
  $region37: #{transformer_forward.39} parent=0 // pred_fallthru
    _

// kernel: transformer_forward.36
$region0: #{transformer_forward.36}
  #allocation0 [shape = 'u32[]', space=smem, size = 0x4, offset = 0x4, fixed_abs, tag = 'smem constant byte address 0x4 - core index']
  #allocation1 [shape = 'u32[72,128]{1,0:T(1,128)}', space=vmem, size = 0x9000, scoped, tag = 'internal scratch']
  #allocation2 [shape = 'f32[8,16,1]{2,1,0:T(8,128)}', space=vmem, size = 0x10000, scoped, tag = 'scratch operand']
  #allocation3 [shape = 'f32[8,16,1]{2,1,0:T(8,128)}', space=vmem, size = 0x10000, scoped, tag = 'scratch operand']
  #allocation4 [shape = 'f32[8,16,16]{2,1,0:T(8,128)}', space=vmem, size = 0x10000, scoped, tag = 'scratch operand']
  %s0 = inlined_call_operand.vmem [shape: bf16[8,16,16], index: 0, kind: input, shape index: {}]
  %s1 = inlined_call_operand.vmem [shape: bf16[8,16,16], index: 1, kind: input, shape index: {}]
  %s2 = inlined_call_operand.vmem [shape: bf16[8,16,16], index: 2, kind: input, shape index: {}]
  %s3 = inlined_call_operand.vmem [shape: bf16[8,16,16], index: 3, kind: output, shape index: {}]
  %s4 = sld [smem:[#allocation0]]
  $region30: #{transformer_forward.36} parent=0
    _
  %s6 = ssub.s32 1, %s4
  %s7 = scalar_select 0, %s6, %s4
  // Predicated region
  $region2: #{transformer_forward.36} parent=0 // pred_check
    _
  $region3: #{transformer_forward.36} parent=0 // pred_check_branch
    %9 = sbr.rel (0) target = $region5
  $region4: #{transformer_forward.36} parent=0 // pred_region
    _
  $region5: #{transformer_forward.36} parent=0 // pred_fallthru
    _
  // Predicated region
  $region6: #{transformer_forward.36} parent=0 // pred_check
    _
  $region7: #{transformer_forward.36} parent=0 // pred_check_branch
    %11 = sbr.rel (0) target = $region9
  $region8: #{transformer_forward.36} parent=0 // pred_region
    _
  $region9: #{transformer_forward.36} parent=0 // pred_fallthru
    _
  // Predicated region
  $region10: #{transformer_forward.36} parent=0 // pred_check
    _
  $region11: #{transformer_forward.36} parent=0 // pred_check_branch
    %13 = sbr.rel (0) target = $region13
  $region12: #{transformer_forward.36} parent=0 // pred_region
    _
  $region13: #{transformer_forward.36} parent=0 // pred_fallthru
    _
  %p15 = scmp.eq.s32.totalorder 0, 0
  // Predicated region
  $region14: #{transformer_forward.36} parent=0 // pred_check
    %p16 = pneg %p15
  $region15: #{transformer_forward.36} parent=0 // pred_check_branch
    %18 = sbr.rel (%p16) target = $region17
  $region16: #{transformer_forward.36} parent=0 // pred_region
    %vm19 = vcmask 7168
    %20 = vst.msk [vmem:[#allocation2] sm:$0xff] %vm19, -1e+30
    %21 = vst.msk [vmem:[#allocation2 + $0x8] sm:$0xff] %vm19, -1e+30
    %22 = vst.msk [vmem:[#allocation2 + $0x10] sm:$0xff] %vm19, -1e+30
    %23 = vst.msk [vmem:[#allocation2 + $0x18] sm:$0xff] %vm19, -1e+30
    %24 = vst.msk [vmem:[#allocation2 + $0x20] sm:$0xff] %vm19, -1e+30
    %25 = vst.msk [vmem:[#allocation2 + $0x28] sm:$0xff] %vm19, -1e+30
    %26 = vst.msk [vmem:[#allocation2 + $0x30] sm:$0xff] %vm19, -1e+30
    %27 = vst.msk [vmem:[#allocation2 + $0x38] sm:$0xff] %vm19, -1e+30
    %28 = vst.msk [vmem:[#allocation2 + $0x40] sm:$0xff] %vm19, -1e+30
    %29 = vst.msk [vmem:[#allocation2 + $0x48] sm:$0xff] %vm19, -1e+30
    %30 = vst.msk [vmem:[#allocation2 + $0x50] sm:$0xff] %vm19, -1e+30
    %31 = vst.msk [vmem:[#allocation2 + $0x58] sm:$0xff] %vm19, -1e+30
    %32 = vst.msk [vmem:[#allocation2 + $0x60] sm:$0xff] %vm19, -1e+30
    %33 = vst.msk [vmem:[#allocation2 + $0x68] sm:$0xff] %vm19, -1e+30
    %34 = vst.msk [vmem:[#allocation2 + $0x70] sm:$0xff] %vm19, -1e+30
    %35 = vst.msk [vmem:[#allocation2 + $0x78] sm:$0xff] %vm19, -1e+30
    %36 = vst.msk [vmem:[#allocation3] sm:$0xff] %vm19, 0.0
    %37 = vst.msk [vmem:[#allocation3 + $0x8] sm:$0xff] %vm19, 0.0
    %38 = vst.msk [vmem:[#allocation3 + $0x10] sm:$0xff] %vm19, 0.0
    %39 = vst.msk [vmem:[#allocation3 + $0x18] sm:$0xff] %vm19, 0.0
    %40 = vst.msk [vmem:[#allocation3 + $0x20] sm:$0xff] %vm19, 0.0
    %41 = vst.msk [vmem:[#allocation3 + $0x28] sm:$0xff] %vm19, 0.0
    %42 = vst.msk [vmem:[#allocation3 + $0x30] sm:$0xff] %vm19, 0.0
    %43 = vst.msk [vmem:[#allocation3 + $0x38] sm:$0xff] %vm19, 0.0
    %44 = vst.msk [vmem:[#allocation3 + $0x40] sm:$0xff] %vm19, 0.0
    %45 = vst.msk [vmem:[#allocation3 + $0x48] sm:$0xff] %vm19, 0.0
    %46 = vst.msk [vmem:[#allocation3 + $0x50] sm:$0xff] %vm19, 0.0
    %47 = vst.msk [vmem:[#allocation3 + $0x58] sm:$0xff] %vm19, 0.0
    %48 = vst.msk [vmem:[#allocation3 + $0x60] sm:$0xff] %vm19, 0.0
    %49 = vst.msk [vmem:[#allocation3 + $0x68] sm:$0xff] %vm19, 0.0
    %50 = vst.msk [vmem:[#allocation3 + $0x70] sm:$0xff] %vm19, 0.0
    %51 = vst.msk [vmem:[#allocation3 + $0x78] sm:$0xff] %vm19, 0.0
    %vm52 = vcmask 130048
    %53 = vst.msk [vmem:[#allocation4] sm:$0xff] %vm52, 0.0
    %54 = vst.msk [vmem:[#allocation4 + $0x8] sm:$0xff] %vm52, 0.0
    %55 = vst.msk [vmem:[#allocation4 + $0x10] sm:$0xff] %vm52, 0.0
    %56 = vst.msk [vmem:[#allocation4 + $0x18] sm:$0xff] %vm52, 0.0
    %57 = vst.msk [vmem:[#allocation4 + $0x20] sm:$0xff] %vm52, 0.0
    %58 = vst.msk [vmem:[#allocation4 + $0x28] sm:$0xff] %vm52, 0.0
    %59 = vst.msk [vmem:[#allocation4 + $0x30] sm:$0xff] %vm52, 0.0
    %60 = vst.msk [vmem:[#allocation4 + $0x38] sm:$0xff] %vm52, 0.0
    %61 = vst.msk [vmem:[#allocation4 + $0x40] sm:$0xff] %vm52, 0.0
    %62 = vst.msk [vmem:[#allocation4 + $0x48] sm:$0xff] %vm52, 0.0
    %63 = vst.msk [vmem:[#allocation4 + $0x50] sm:$0xff] %vm52, 0.0
    %64 = vst.msk [vmem:[#allocation4 + $0x58] sm:$0xff] %vm52, 0.0
    %65 = vst.msk [vmem:[#allocation4 + $0x60] sm:$0xff] %vm52, 0.0
    %66 = vst.msk [vmem:[#allocation4 + $0x68] sm:$0xff] %vm52, 0.0
    %67 = vst.msk [vmem:[#allocation4 + $0x70] sm:$0xff] %vm52, 0.0
    %68 = vst.msk [vmem:[#allocation4 + $0x78] sm:$0xff] %vm52, 0.0
  $region17: #{transformer_forward.36} parent=0 // pred_fallthru
    _
  %v69 = vld [vmem:[%s0] sm:$0xf]
  %v70 = vld [vmem:[%s0 + $0x4] sm:$0xf]
  %v71 = vld [vmem:[%s0 + $0x8] sm:$0xf]
  %v72 = vld [vmem:[%s0 + $0xc] sm:$0xf]
  %v73 = vld [vmem:[%s0 + $0x10] sm:$0xf]
  %v74 = vld [vmem:[%s0 + $0x14] sm:$0xf]
  %v75 = vld [vmem:[%s0 + $0x18] sm:$0xf]
  %v76 = vld [vmem:[%s0 + $0x1c] sm:$0xf]
  %v77 = vld [vmem:[%s0 + $0x20] sm:$0xf]
  %v78 = vld [vmem:[%s0 + $0x24] sm:$0xf]
  %v79 = vld [vmem:[%s0 + $0x28] sm:$0xf]
  %v80 = vld [vmem:[%s0 + $0x2c] sm:$0xf]
  %v81 = vld [vmem:[%s0 + $0x30] sm:$0xf]
  %v82 = vld [vmem:[%s0 + $0x34] sm:$0xf]
  %v83 = vld [vmem:[%s0 + $0x38] sm:$0xf]
  %v84 = vld [vmem:[%s0 + $0x3c] sm:$0xf]
  %v85 = vld [vmem:[%s1] sm:$0xf]
  %v86 = vld [vmem:[%s1 + $0x4] sm:$0xf]
  %v87 = vld [vmem:[%s1 + $0x8] sm:$0xf]
  %v88 = vld [vmem:[%s1 + $0xc] sm:$0xf]
  %v89 = vld [vmem:[%s1 + $0x10] sm:$0xf]
  %v90 = vld [vmem:[%s1 + $0x14] sm:$0xf]
  %v91 = vld [vmem:[%s1 + $0x18] sm:$0xf]
  %v92 = vld [vmem:[%s1 + $0x1c] sm:$0xf]
  %v93 = vld [vmem:[%s1 + $0x20] sm:$0xf]
  %v94 = vld [vmem:[%s1 + $0x24] sm:$0xf]
  %v95 = vld [vmem:[%s1 + $0x28] sm:$0xf]
  %v96 = vld [vmem:[%s1 + $0x2c] sm:$0xf]
  %v97 = vld [vmem:[%s1 + $0x30] sm:$0xf]
  %v98 = vld [vmem:[%s1 + $0x34] sm:$0xf]
  %v99 = vld [vmem:[%s1 + $0x38] sm:$0xf]
  %v100 = vld [vmem:[%s1 + $0x3c] sm:$0xf]
  %v103 = vunpack.c.l.b16 %v69
  %v104 = vunpack.c.l.b16 %v70
  %v105 = vpack.c.b16 %v104, %v103
  %v108 = vunpack.c.l.b16 %v85
  %v109 = vunpack.c.l.b16 %v86
  %v110 = vpack.c.b16 %v109, %v108
  %vm111 = vcmask 130048
  %v113 = vsel %vm111, %v105, 0
  %v116 = vsel %vm111, %v110, 0
  %118 = vmatpush.bf16.xpose.msra.mxu0 0
  %119 = vmatpush.bf16.xpose.msra.mxu0 0
  %120 = vmatpush.bf16.xpose.msra.mxu0 0
  %121 = vmatpush.bf16.xpose.msra.mxu0 0
  %122 = vmatpush.bf16.xpose.msra.mxu0 0
  %123 = vmatpush.bf16.xpose.msra.mxu0 0
  %124 = vmatpush.bf16.xpose.msra.mxu0 0
  %125 = vmatpush.bf16.xpose.msra.mxu0 %v116
  %126 = vmatmul.bf16.gmra.mxu0 %v113
  %v127 = vpop.f32.mrf.mxu0
  %v128 = vadd.f32 0.0, %v127
  %v129 = vpop.f32.mrf.mxu0
  %v130 = vadd.f32 0.0, %v129
  %131 = vdwg.mxu0
  %v134 = vunpack.c.l.b16 %v71
  %v135 = vunpack.c.l.b16 %v72
  %v136 = vpack.c.b16 %v135, %v134
  %v139 = vunpack.c.l.b16 %v87
  %v140 = vunpack.c.l.b16 %v88
  %v141 = vpack.c.b16 %v140, %v139
  %v143 = vsel %vm111, %v136, 0
  %v146 = vsel %vm111, %v141, 0
  %148 = vmatpush.bf16.xpose.msra.mxu0 0
  %149 = vmatpush.bf16.xpose.msra.mxu0 0
  %150 = vmatpush.bf16.xpose.msra.mxu0 0
  %151 = vmatpush.bf16.xpose.msra.mxu0 0
  %152 = vmatpush.bf16.xpose.msra.mxu0 0
  %153 = vmatpush.bf16.xpose.msra.mxu0 0
  %154 = vmatpush.bf16.xpose.msra.mxu0 0
  %155 = vmatpush.bf16.xpose.msra.mxu0 %v146
  %156 = vmatmul.bf16.gmra.mxu0 %v143
  %v157 = vpop.f32.mrf.mxu0
  %v158 = vadd.f32 0.0, %v157
  %v159 = vpop.f32.mrf.mxu0
  %v160 = vadd.f32 0.0, %v159
  %161 = vdwg.mxu0
  %v164 = vunpack.c.l.b16 %v73
  %v165 = vunpack.c.l.b16 %v74
  %v166 = vpack.c.b16 %v165, %v164
  %v169 = vunpack.c.l.b16 %v89
  %v170 = vunpack.c.l.b16 %v90
  %v171 = vpack.c.b16 %v170, %v169
  %v173 = vsel %vm111, %v166, 0
  %v176 = vsel %vm111, %v171, 0
  %178 = vmatpush.bf16.xpose.msra.mxu0 0
  %179 = vmatpush.bf16.xpose.msra.mxu0 0
  %180 = vmatpush.bf16.xpose.msra.mxu0 0
  %181 = vmatpush.bf16.xpose.msra.mxu0 0
  %182 = vmatpush.bf16.xpose.msra.mxu0 0
  %183 = vmatpush.bf16.xpose.msra.mxu0 0
  %184 = vmatpush.bf16.xpose.msra.mxu0 0
  %185 = vmatpush.bf16.xpose.msra.mxu0 %v176
  %186 = vmatmul.bf16.gmra.mxu0 %v173
  %v187 = vpop.f32.mrf.mxu0
  %v188 = vadd.f32 0.0, %v187
  %v189 = vpop.f32.mrf.mxu0
  %v190 = vadd.f32 0.0, %v189
  %191 = vdwg.mxu0
  %v194 = vunpack.c.l.b16 %v75
  %v195 = vunpack.c.l.b16 %v76
  %v196 = vpack.c.b16 %v195, %v194
  %v199 = vunpack.c.l.b16 %v91
  %v200 = vunpack.c.l.b16 %v92
  %v201 = vpack.c.b16 %v200, %v199
  %v203 = vsel %vm111, %v196, 0
  %v206 = vsel %vm111, %v201, 0
  %208 = vmatpush.bf16.xpose.msra.mxu0 0
  %209 = vmatpush.bf16.xpose.msra.mxu0 0
  %210 = vmatpush.bf16.xpose.msra.mxu0 0
  %211 = vmatpush.bf16.xpose.msra.mxu0 0
  %212 = vmatpush.bf16.xpose.msra.mxu0 0
  %213 = vmatpush.bf16.xpose.msra.mxu0 0
  %214 = vmatpush.bf16.xpose.msra.mxu0 0
  %215 = vmatpush.bf16.xpose.msra.mxu0 %v206
  %216 = vmatmul.bf16.gmra.mxu0 %v203
  %v217 = vpop.f32.mrf.mxu0
  %v218 = vadd.f32 0.0, %v217
  %v219 = vpop.f32.mrf.mxu0
  %v220 = vadd.f32 0.0, %v219
  %221 = vdwg.mxu0
  %v224 = vunpack.c.l.b16 %v77
  %v225 = vunpack.c.l.b16 %v78
  %v226 = vpack.c.b16 %v225, %v224
  %v229 = vunpack.c.l.b16 %v93
  %v230 = vunpack.c.l.b16 %v94
  %v231 = vpack.c.b16 %v230, %v229
  %v233 = vsel %vm111, %v226, 0
  %v236 = vsel %vm111, %v231, 0
  %238 = vmatpush.bf16.xpose.msra.mxu0 0
  %239 = vmatpush.bf16.xpose.msra.mxu0 0
  %240 = vmatpush.bf16.xpose.msra.mxu0 0
  %241 = vmatpush.bf16.xpose.msra.mxu0 0
  %242 = vmatpush.bf16.xpose.msra.mxu0 0
  %243 = vmatpush.bf16.xpose.msra.mxu0 0
  %244 = vmatpush.bf16.xpose.msra.mxu0 0
  %245 = vmatpush.bf16.xpose.msra.mxu0 %v236
  %246 = vmatmul.bf16.gmra.mxu0 %v233
  %v247 = vpop.f32.mrf.mxu0
  %v248 = vadd.f32 0.0, %v247
  %v249 = vpop.f32.mrf.mxu0
  %v250 = vadd.f32 0.0, %v249
  %251 = vdwg.mxu0
  %v254 = vunpack.c.l.b16 %v79
  %v255 = vunpack.c.l.b16 %v80
  %v256 = vpack.c.b16 %v255, %v254
  %v259 = vunpack.c.l.b16 %v95
  %v260 = vunpack.c.l.b16 %v96
  %v261 = vpack.c.b16 %v260, %v259
  %v263 = vsel %vm111, %v256, 0
  %v266 = vsel %vm111, %v261, 0
  %268 = vmatpush.bf16.xpose.msra.mxu0 0
  %269 = vmatpush.bf16.xpose.msra.mxu0 0
  %270 = vmatpush.bf16.xpose.msra.mxu0 0
  %271 = vmatpush.bf16.xpose.msra.mxu0 0
  %272 = vmatpush.bf16.xpose.msra.mxu0 0
  %273 = vmatpush.bf16.xpose.msra.mxu0 0
  %274 = vmatpush.bf16.xpose.msra.mxu0 0
  %275 = vmatpush.bf16.xpose.msra.mxu0 %v266
  %276 = vmatmul.bf16.gmra.mxu0 %v263
  %v277 = vpop.f32.mrf.mxu0
  %v278 = vadd.f32 0.0, %v277
  %v279 = vpop.f32.mrf.mxu0
  %v280 = vadd.f32 0.0, %v279
  %281 = vdwg.mxu0
  %v284 = vunpack.c.l.b16 %v81
  %v285 = vunpack.c.l.b16 %v82
  %v286 = vpack.c.b16 %v285, %v284
  %v289 = vunpack.c.l.b16 %v97
  %v290 = vunpack.c.l.b16 %v98
  %v291 = vpack.c.b16 %v290, %v289
  %v293 = vsel %vm111, %v286, 0
  %v296 = vsel %vm111, %v291, 0
  %298 = vmatpush.bf16.xpose.msra.mxu0 0
  %299 = vmatpush.bf16.xpose.msra.mxu0 0
  %300 = vmatpush.bf16.xpose.msra.mxu0 0
  %301 = vmatpush.bf16.xpose.msra.mxu0 0
  %302 = vmatpush.bf16.xpose.msra.mxu0 0
  %303 = vmatpush.bf16.xpose.msra.mxu0 0
  %304 = vmatpush.bf16.xpose.msra.mxu0 0
  %305 = vmatpush.bf16.xpose.msra.mxu0 %v296
  %306 = vmatmul.bf16.gmra.mxu0 %v293
  %v307 = vpop.f32.mrf.mxu0
  %v308 = vadd.f32 0.0, %v307
  %v309 = vpop.f32.mrf.mxu0
  %v310 = vadd.f32 0.0, %v309
  %311 = vdwg.mxu0
  %v314 = vunpack.c.l.b16 %v83
  %v315 = vunpack.c.l.b16 %v84
  %v316 = vpack.c.b16 %v315, %v314
  %v319 = vunpack.c.l.b16 %v99
  %v320 = vunpack.c.l.b16 %v100
  %v321 = vpack.c.b16 %v320, %v319
  %v323 = vsel %vm111, %v316, 0
  %v326 = vsel %vm111, %v321, 0
  %328 = vmatpush.bf16.xpose.msra.mxu0 0
  %329 = vmatpush.bf16.xpose.msra.mxu0 0
  %330 = vmatpush.bf16.xpose.msra.mxu0 0
  %331 = vmatpush.bf16.xpose.msra.mxu0 0
  %332 = vmatpush.bf16.xpose.msra.mxu0 0
  %333 = vmatpush.bf16.xpose.msra.mxu0 0
  %334 = vmatpush.bf16.xpose.msra.mxu0 0
  %335 = vmatpush.bf16.xpose.msra.mxu0 %v326
  %336 = vmatmul.bf16.gmra.mxu0 %v323
  %v337 = vpop.f32.mrf.mxu0
  %v338 = vadd.f32 0.0, %v337
  %v339 = vpop.f32.mrf.mxu0
  %v340 = vadd.f32 0.0, %v339
  %341 = vdwg.mxu0
  %v342 = vmul.f32 %v128, 0.25
  %v343 = vmul.f32 %v130, 0.25
  %v344 = vmul.f32 %v158, 0.25
  %v345 = vmul.f32 %v160, 0.25
  %v346 = vmul.f32 %v188, 0.25
  %v347 = vmul.f32 %v190, 0.25
  %v348 = vmul.f32 %v218, 0.25
  %v349 = vmul.f32 %v220, 0.25
  %v350 = vmul.f32 %v248, 0.25
  %v351 = vmul.f32 %v250, 0.25
  %v352 = vmul.f32 %v278, 0.25
  %v353 = vmul.f32 %v280, 0.25
  %v354 = vmul.f32 %v308, 0.25
  %v355 = vmul.f32 %v310, 0.25
  %v356 = vmul.f32 %v338, 0.25
  %v357 = vmul.f32 %v340, 0.25
  %v358 = vld [vmem:[#allocation2] sm:$0xff]
  %v359 = vld [vmem:[#allocation2 + $0x8] sm:$0xff]
  %v360 = vld [vmem:[#allocation2 + $0x10] sm:$0xff]
  %v361 = vld [vmem:[#allocation2 + $0x18] sm:$0xff]
  %v362 = vld [vmem:[#allocation2 + $0x20] sm:$0xff]
  %v363 = vld [vmem:[#allocation2 + $0x28] sm:$0xff]
  %v364 = vld [vmem:[#allocation2 + $0x30] sm:$0xff]
  %v365 = vld [vmem:[#allocation2 + $0x38] sm:$0xff]
  %v366 = vld [vmem:[#allocation2 + $0x40] sm:$0xff]
  %v367 = vld [vmem:[#allocation2 + $0x48] sm:$0xff]
  %v368 = vld [vmem:[#allocation2 + $0x50] sm:$0xff]
  %v369 = vld [vmem:[#allocation2 + $0x58] sm:$0xff]
  %v370 = vld [vmem:[#allocation2 + $0x60] sm:$0xff]
  %v371 = vld [vmem:[#allocation2 + $0x68] sm:$0xff]
  %v372 = vld [vmem:[#allocation2 + $0x70] sm:$0xff]
  %v373 = vld [vmem:[#allocation2 + $0x78] sm:$0xff]
  %v374 = vsel %vm111, %v342, -inf
  %375 = vmax.xlane.f32.xlu0 %v374
  %v376 = vpop.xlane.xlu0 %375
  %v377 = vsel %vm111, %v343, -inf
  %378 = vmax.xlane.f32.xlu0 %v377
  %v379 = vpop.xlane.xlu0 %378
  %v380 = vsel %vm111, %v344, -inf
  %381 = vmax.xlane.f32.xlu0 %v380
  %v382 = vpop.xlane.xlu0 %381
  %v383 = vsel %vm111, %v345, -inf
  %384 = vmax.xlane.f32.xlu0 %v383
  %v385 = vpop.xlane.xlu0 %384
  %v386 = vsel %vm111, %v346, -inf
  %387 = vmax.xlane.f32.xlu0 %v386
  %v388 = vpop.xlane.xlu0 %387
  %v389 = vsel %vm111, %v347, -inf
  %390 = vmax.xlane.f32.xlu0 %v389
  %v391 = vpop.xlane.xlu0 %390
  %v392 = vsel %vm111, %v348, -inf
  %393 = vmax.xlane.f32.xlu0 %v392
  %v394 = vpop.xlane.xlu0 %393
  %v395 = vsel %vm111, %v349, -inf
  %396 = vmax.xlane.f32.xlu0 %v395
  %v397 = vpop.xlane.xlu0 %396
  %v398 = vsel %vm111, %v350, -inf
  %399 = vmax.xlane.f32.xlu0 %v398
  %v400 = vpop.xlane.xlu0 %399
  %v401 = vsel %vm111, %v351, -inf
  %402 = vmax.xlane.f32.xlu0 %v401
  %v403 = vpop.xlane.xlu0 %402
  %v404 = vsel %vm111, %v352, -inf
  %405 = vmax.xlane.f32.xlu0 %v404
  %v406 = vpop.xlane.xlu0 %405
  %v407 = vsel %vm111, %v353, -inf
  %408 = vmax.xlane.f32.xlu0 %v407
  %v409 = vpop.xlane.xlu0 %408
  %v410 = vsel %vm111, %v354, -inf
  %411 = vmax.xlane.f32.xlu0 %v410
  %v412 = vpop.xlane.xlu0 %411
  %v413 = vsel %vm111, %v355, -inf
  %414 = vmax.xlane.f32.xlu0 %v413
  %v415 = vpop.xlane.xlu0 %414
  %v416 = vsel %vm111, %v356, -inf
  %417 = vmax.xlane.f32.xlu0 %v416
  %v418 = vpop.xlane.xlu0 %417
  %v419 = vsel %vm111, %v357, -inf
  %420 = vmax.xlane.f32.xlu0 %v419
  %v421 = vpop.xlane.xlu0 %420
  %v422 = vmax.f32 %v358, %v376
  %v423 = vmax.f32 %v359, %v379
  %v424 = vmax.f32 %v360, %v382
  %v425 = vmax.f32 %v361, %v385
  %v426 = vmax.f32 %v362, %v388
  %v427 = vmax.f32 %v363, %v391
  %v428 = vmax.f32 %v364, %v394
  %v429 = vmax.f32 %v365, %v397
  %v430 = vmax.f32 %v366, %v400
  %v431 = vmax.f32 %v367, %v403
  %v432 = vmax.f32 %v368, %v406
  %v433 = vmax.f32 %v369, %v409
  %v434 = vmax.f32 %v370, %v412
  %v435 = vmax.f32 %v371, %v415
  %v436 = vmax.f32 %v372, %v418
  %v437 = vmax.f32 %v373, %v421
  %v438 = vsub.f32 %v358, %v422
  %v439 = vsub.f32 %v359, %v423
  %v440 = vsub.f32 %v360, %v424
  %v441 = vsub.f32 %v361, %v425
  %v442 = vsub.f32 %v362, %v426
  %v443 = vsub.f32 %v363, %v427
  %v444 = vsub.f32 %v364, %v428
  %v445 = vsub.f32 %v365, %v429
  %v446 = vsub.f32 %v366, %v430
  %v447 = vsub.f32 %v367, %v431
  %v448 = vsub.f32 %v368, %v432
  %v449 = vsub.f32 %v369, %v433
  %v450 = vsub.f32 %v370, %v434
  %v451 = vsub.f32 %v371, %v435
  %v452 = vsub.f32 %v372, %v436
  %v453 = vsub.f32 %v373, %v437
  %v454 = vmul.f32 %v438, 1.442695
  %v455 = vpow.pop %v454
  %v456 = vmul.f32 %v439, 1.442695
  %v457 = vpow.pop %v456
  %v458 = vmul.f32 %v440, 1.442695
  %v459 = vpow.pop %v458
  %v460 = vmul.f32 %v441, 1.442695
  %v461 = vpow.pop %v460
  %v462 = vmul.f32 %v442, 1.442695
  %v463 = vpow.pop %v462
  %v464 = vmul.f32 %v443, 1.442695
  %v465 = vpow.pop %v464
  %v466 = vmul.f32 %v444, 1.442695
  %v467 = vpow.pop %v466
  %v468 = vmul.f32 %v445, 1.442695
  %v469 = vpow.pop %v468
  %v470 = vmul.f32 %v446, 1.442695
  %v471 = vpow.pop %v470
  %v472 = vmul.f32 %v447, 1.442695
  %v473 = vpow.pop %v472
  %v474 = vmul.f32 %v448, 1.442695
  %v475 = vpow.pop %v474
  %v476 = vmul.f32 %v449, 1.442695
  %v477 = vpow.pop %v476
  %v478 = vmul.f32 %v450, 1.442695
  %v479 = vpow.pop %v478
  %v480 = vmul.f32 %v451, 1.442695
  %v481 = vpow.pop %v480
  %v482 = vmul.f32 %v452, 1.442695
  %v483 = vpow.pop %v482
  %v484 = vmul.f32 %v453, 1.442695
  %v485 = vpow.pop %v484
  %487 = vset.pattern.permute.xlu0 0
  %488 = vperm.xlu0 %487, %v422
  %v489 = vpop.permute.xlu0 %488
  %492 = vset.pattern.permute.xlu0 0
  %493 = vperm.xlu0 %492, %v423
  %v494 = vpop.permute.xlu0 %493
  %497 = vset.pattern.permute.xlu0 0
  %498 = vperm.xlu0 %497, %v424
  %v499 = vpop.permute.xlu0 %498
  %502 = vset.pattern.permute.xlu0 0
  %503 = vperm.xlu0 %502, %v425
  %v504 = vpop.permute.xlu0 %503
  %507 = vset.pattern.permute.xlu0 0
  %508 = vperm.xlu0 %507, %v426
  %v509 = vpop.permute.xlu0 %508
  %512 = vset.pattern.permute.xlu0 0
  %513 = vperm.xlu0 %512, %v427
  %v514 = vpop.permute.xlu0 %513
  %517 = vset.pattern.permute.xlu0 0
  %518 = vperm.xlu0 %517, %v428
  %v519 = vpop.permute.xlu0 %518
  %522 = vset.pattern.permute.xlu0 0
  %523 = vperm.xlu0 %522, %v429
  %v524 = vpop.permute.xlu0 %523
  %527 = vset.pattern.permute.xlu0 0
  %528 = vperm.xlu0 %527, %v430
  %v529 = vpop.permute.xlu0 %528
  %532 = vset.pattern.permute.xlu0 0
  %533 = vperm.xlu0 %532, %v431
  %v534 = vpop.permute.xlu0 %533
  %537 = vset.pattern.permute.xlu0 0
  %538 = vperm.xlu0 %537, %v432
  %v539 = vpop.permute.xlu0 %538
  %542 = vset.pattern.permute.xlu0 0
  %543 = vperm.xlu0 %542, %v433
  %v544 = vpop.permute.xlu0 %543
  %547 = vset.pattern.permute.xlu0 0
  %548 = vperm.xlu0 %547, %v434
  %v549 = vpop.permute.xlu0 %548
  %552 = vset.pattern.permute.xlu0 0
  %553 = vperm.xlu0 %552, %v435
  %v554 = vpop.permute.xlu0 %553
  %557 = vset.pattern.permute.xlu0 0
  %558 = vperm.xlu0 %557, %v436
  %v559 = vpop.permute.xlu0 %558
  %562 = vset.pattern.permute.xlu0 0
  %563 = vperm.xlu0 %562, %v437
  %v564 = vpop.permute.xlu0 %563
  %v566 = vsub.f32 %v342, %v489
  %v567 = vsub.f32 %v343, %v494
  %v568 = vsub.f32 %v344, %v499
  %v569 = vsub.f32 %v345, %v504
  %v570 = vsub.f32 %v346, %v509
  %v571 = vsub.f32 %v347, %v514
  %v572 = vsub.f32 %v348, %v519
  %v573 = vsub.f32 %v349, %v524
  %v574 = vsub.f32 %v350, %v529
  %v575 = vsub.f32 %v351, %v534
  %v576 = vsub.f32 %v352, %v539
  %v577 = vsub.f32 %v353, %v544
  %v578 = vsub.f32 %v354, %v549
  %v579 = vsub.f32 %v355, %v554
  %v580 = vsub.f32 %v356, %v559
  %v581 = vsub.f32 %v357, %v564
  %v582 = vmul.f32 %v566, 1.442695
  %v583 = vpow.pop %v582
  %v584 = vmul.f32 %v567, 1.442695
  %v585 = vpow.pop %v584
  %v586 = vmul.f32 %v568, 1.442695
  %v587 = vpow.pop %v586
  %v588 = vmul.f32 %v569, 1.442695
  %v589 = vpow.pop %v588
  %v590 = vmul.f32 %v570, 1.442695
  %v591 = vpow.pop %v590
  %v592 = vmul.f32 %v571, 1.442695
  %v593 = vpow.pop %v592
  %v594 = vmul.f32 %v572, 1.442695
  %v595 = vpow.pop %v594
  %v596 = vmul.f32 %v573, 1.442695
  %v597 = vpow.pop %v596
  %v598 = vmul.f32 %v574, 1.442695
  %v599 = vpow.pop %v598
  %v600 = vmul.f32 %v575, 1.442695
  %v601 = vpow.pop %v600
  %v602 = vmul.f32 %v576, 1.442695
  %v603 = vpow.pop %v602
  %v604 = vmul.f32 %v577, 1.442695
  %v605 = vpow.pop %v604
  %v606 = vmul.f32 %v578, 1.442695
  %v607 = vpow.pop %v606
  %v608 = vmul.f32 %v579, 1.442695
  %v609 = vpow.pop %v608
  %v610 = vmul.f32 %v580, 1.442695
  %v611 = vpow.pop %v610
  %v612 = vmul.f32 %v581, 1.442695
  %v613 = vpow.pop %v612
  %v614 = vld [vmem:[#allocation3] sm:$0xff]
  %v615 = vld [vmem:[#allocation3 + $0x8] sm:$0xff]
  %v616 = vld [vmem:[#allocation3 + $0x10] sm:$0xff]
  %v617 = vld [vmem:[#allocation3 + $0x18] sm:$0xff]
  %v618 = vld [vmem:[#allocation3 + $0x20] sm:$0xff]
  %v619 = vld [vmem:[#allocation3 + $0x28] sm:$0xff]
  %v620 = vld [vmem:[#allocation3 + $0x30] sm:$0xff]
  %v621 = vld [vmem:[#allocation3 + $0x38] sm:$0xff]
  %v622 = vld [vmem:[#allocation3 + $0x40] sm:$0xff]
  %v623 = vld [vmem:[#allocation3 + $0x48] sm:$0xff]
  %v624 = vld [vmem:[#allocation3 + $0x50] sm:$0xff]
  %v625 = vld [vmem:[#allocation3 + $0x58] sm:$0xff]
  %v626 = vld [vmem:[#allocation3 + $0x60] sm:$0xff]
  %v627 = vld [vmem:[#allocation3 + $0x68] sm:$0xff]
  %v628 = vld [vmem:[#allocation3 + $0x70] sm:$0xff]
  %v629 = vld [vmem:[#allocation3 + $0x78] sm:$0xff]
  %v630 = vmul.f32 %v455, %v614
  %v631 = vmul.f32 %v457, %v615
  %v632 = vmul.f32 %v459, %v616
  %v633 = vmul.f32 %v461, %v617
  %v634 = vmul.f32 %v463, %v618
  %v635 = vmul.f32 %v465, %v619
  %v636 = vmul.f32 %v467, %v620
  %v637 = vmul.f32 %v469, %v621
  %v638 = vmul.f32 %v471, %v622
  %v639 = vmul.f32 %v473, %v623
  %v640 = vmul.f32 %v475, %v624
  %v641 = vmul.f32 %v477, %v625
  %v642 = vmul.f32 %v479, %v626
  %v643 = vmul.f32 %v481, %v627
  %v644 = vmul.f32 %v483, %v628
  %v645 = vmul.f32 %v485, %v629
  %v646 = vsel %vm111, %v583, 0.0
  %647 = vadd.xlane.f32.xlu0 %v646
  %v648 = vpop.xlane.xlu0 %647
  %v649 = vsel %vm111, %v585, 0.0
  %650 = vadd.xlane.f32.xlu0 %v649
  %v651 = vpop.xlane.xlu0 %650
  %v652 = vsel %vm111, %v587, 0.0
  %653 = vadd.xlane.f32.xlu0 %v652
  %v654 = vpop.xlane.xlu0 %653
  %v655 = vsel %vm111, %v589, 0.0
  %656 = vadd.xlane.f32.xlu0 %v655
  %v657 = vpop.xlane.xlu0 %656
  %v658 = vsel %vm111, %v591, 0.0
  %659 = vadd.xlane.f32.xlu0 %v658
  %v660 = vpop.xlane.xlu0 %659
  %v661 = vsel %vm111, %v593, 0.0
  %662 = vadd.xlane.f32.xlu0 %v661
  %v663 = vpop.xlane.xlu0 %662
  %v664 = vsel %vm111, %v595, 0.0
  %665 = vadd.xlane.f32.xlu0 %v664
  %v666 = vpop.xlane.xlu0 %665
  %v667 = vsel %vm111, %v597, 0.0
  %668 = vadd.xlane.f32.xlu0 %v667
  %v669 = vpop.xlane.xlu0 %668
  %v670 = vsel %vm111, %v599, 0.0
  %671 = vadd.xlane.f32.xlu0 %v670
  %v672 = vpop.xlane.xlu0 %671
  %v673 = vsel %vm111, %v601, 0.0
  %674 = vadd.xlane.f32.xlu0 %v673
  %v675 = vpop.xlane.xlu0 %674
  %v676 = vsel %vm111, %v603, 0.0
  %677 = vadd.xlane.f32.xlu0 %v676
  %v678 = vpop.xlane.xlu0 %677
  %v679 = vsel %vm111, %v605, 0.0
  %680 = vadd.xlane.f32.xlu0 %v679
  %v681 = vpop.xlane.xlu0 %680
  %v682 = vsel %vm111, %v607, 0.0
  %683 = vadd.xlane.f32.xlu0 %v682
  %v684 = vpop.xlane.xlu0 %683
  %v685 = vsel %vm111, %v609, 0.0
  %686 = vadd.xlane.f32.xlu0 %v685
  %v687 = vpop.xlane.xlu0 %686
  %v688 = vsel %vm111, %v611, 0.0
  %689 = vadd.xlane.f32.xlu0 %v688
  %v690 = vpop.xlane.xlu0 %689
  %v691 = vsel %vm111, %v613, 0.0
  %692 = vadd.xlane.f32.xlu0 %v691
  %v693 = vpop.xlane.xlu0 %692
  %v694 = vadd.f32 %v630, %v648
  %v695 = vadd.f32 %v631, %v651
  %v696 = vadd.f32 %v632, %v654
  %v697 = vadd.f32 %v633, %v657
  %v698 = vadd.f32 %v634, %v660
  %v699 = vadd.f32 %v635, %v663
  %v700 = vadd.f32 %v636, %v666
  %v701 = vadd.f32 %v637, %v669
  %v702 = vadd.f32 %v638, %v672
  %v703 = vadd.f32 %v639, %v675
  %v704 = vadd.f32 %v640, %v678
  %v705 = vadd.f32 %v641, %v681
  %v706 = vadd.f32 %v642, %v684
  %v707 = vadd.f32 %v643, %v687
  %v708 = vadd.f32 %v644, %v690
  %v709 = vadd.f32 %v645, %v693
  %vm710 = vcmask 7168
  %711 = vst.msk [vmem:[#allocation3] sm:$0xff] %vm710, %v694
  %712 = vst.msk [vmem:[#allocation3 + $0x8] sm:$0xff] %vm710, %v695
  %713 = vst.msk [vmem:[#allocation3 + $0x10] sm:$0xff] %vm710, %v696
  %714 = vst.msk [vmem:[#allocation3 + $0x18] sm:$0xff] %vm710, %v697
  %715 = vst.msk [vmem:[#allocation3 + $0x20] sm:$0xff] %vm710, %v698
  %716 = vst.msk [vmem:[#allocation3 + $0x28] sm:$0xff] %vm710, %v699
  %717 = vst.msk [vmem:[#allocation3 + $0x30] sm:$0xff] %vm710, %v700
  %718 = vst.msk [vmem:[#allocation3 + $0x38] sm:$0xff] %vm710, %v701
  %719 = vst.msk [vmem:[#allocation3 + $0x40] sm:$0xff] %vm710, %v702
  %720 = vst.msk [vmem:[#allocation3 + $0x48] sm:$0xff] %vm710, %v703
  %721 = vst.msk [vmem:[#allocation3 + $0x50] sm:$0xff] %vm710, %v704
  %722 = vst.msk [vmem:[#allocation3 + $0x58] sm:$0xff] %vm710, %v705
  %723 = vst.msk [vmem:[#allocation3 + $0x60] sm:$0xff] %vm710, %v706
  %724 = vst.msk [vmem:[#allocation3 + $0x68] sm:$0xff] %vm710, %v707
  %725 = vst.msk [vmem:[#allocation3 + $0x70] sm:$0xff] %vm710, %v708
  %726 = vst.msk [vmem:[#allocation3 + $0x78] sm:$0xff] %vm710, %v709
  %v727 = vld [vmem:[#allocation4] sm:$0xff]
  %v728 = vld [vmem:[#allocation4 + $0x8] sm:$0xff]
  %v729 = vld [vmem:[#allocation4 + $0x10] sm:$0xff]
  %v730 = vld [vmem:[#allocation4 + $0x18] sm:$0xff]
  %v731 = vld [vmem:[#allocation4 + $0x20] sm:$0xff]
  %v732 = vld [vmem:[#allocation4 + $0x28] sm:$0xff]
  %v733 = vld [vmem:[#allocation4 + $0x30] sm:$0xff]
  %v734 = vld [vmem:[#allocation4 + $0x38] sm:$0xff]
  %v735 = vld [vmem:[#allocation4 + $0x40] sm:$0xff]
  %v736 = vld [vmem:[#allocation4 + $0x48] sm:$0xff]
  %v737 = vld [vmem:[#allocation4 + $0x50] sm:$0xff]
  %v738 = vld [vmem:[#allocation4 + $0x58] sm:$0xff]
  %v739 = vld [vmem:[#allocation4 + $0x60] sm:$0xff]
  %v740 = vld [vmem:[#allocation4 + $0x68] sm:$0xff]
  %v741 = vld [vmem:[#allocation4 + $0x70] sm:$0xff]
  %v742 = vld [vmem:[#allocation4 + $0x78] sm:$0xff]
  %744 = vset.pattern.permute.xlu0 0
  %745 = vperm.xlu0 %744, %v455
  %v746 = vpop.permute.xlu0 %745
  %749 = vset.pattern.permute.xlu0 0
  %750 = vperm.xlu0 %749, %v457
  %v751 = vpop.permute.xlu0 %750
  %754 = vset.pattern.permute.xlu0 0
  %755 = vperm.xlu0 %754, %v459
  %v756 = vpop.permute.xlu0 %755
  %759 = vset.pattern.permute.xlu0 0
  %760 = vperm.xlu0 %759, %v461
  %v761 = vpop.permute.xlu0 %760
  %764 = vset.pattern.permute.xlu0 0
  %765 = vperm.xlu0 %764, %v463
  %v766 = vpop.permute.xlu0 %765
  %769 = vset.pattern.permute.xlu0 0
  %770 = vperm.xlu0 %769, %v465
  %v771 = vpop.permute.xlu0 %770
  %774 = vset.pattern.permute.xlu0 0
  %775 = vperm.xlu0 %774, %v467
  %v776 = vpop.permute.xlu0 %775
  %779 = vset.pattern.permute.xlu0 0
  %780 = vperm.xlu0 %779, %v469
  %v781 = vpop.permute.xlu0 %780
  %784 = vset.pattern.permute.xlu0 0
  %785 = vperm.xlu0 %784, %v471
  %v786 = vpop.permute.xlu0 %785
  %789 = vset.pattern.permute.xlu0 0
  %790 = vperm.xlu0 %789, %v473
  %v791 = vpop.permute.xlu0 %790
  %794 = vset.pattern.permute.xlu0 0
  %795 = vperm.xlu0 %794, %v475
  %v796 = vpop.permute.xlu0 %795
  %799 = vset.pattern.permute.xlu0 0
  %800 = vperm.xlu0 %799, %v477
  %v801 = vpop.permute.xlu0 %800
  %804 = vset.pattern.permute.xlu0 0
  %805 = vperm.xlu0 %804, %v479
  %v806 = vpop.permute.xlu0 %805
  %809 = vset.pattern.permute.xlu0 0
  %810 = vperm.xlu0 %809, %v481
  %v811 = vpop.permute.xlu0 %810
  %814 = vset.pattern.permute.xlu0 0
  %815 = vperm.xlu0 %814, %v483
  %v816 = vpop.permute.xlu0 %815
  %819 = vset.pattern.permute.xlu0 0
  %820 = vperm.xlu0 %819, %v485
  %v821 = vpop.permute.xlu0 %820
  %v823 = vmul.f32 %v746, %v727
  %v824 = vmul.f32 %v751, %v728
  %v825 = vmul.f32 %v756, %v729
  %v826 = vmul.f32 %v761, %v730
  %v827 = vmul.f32 %v766, %v731
  %v828 = vmul.f32 %v771, %v732
  %v829 = vmul.f32 %v776, %v733
  %v830 = vmul.f32 %v781, %v734
  %v831 = vmul.f32 %v786, %v735
  %v832 = vmul.f32 %v791, %v736
  %v833 = vmul.f32 %v796, %v737
  %v834 = vmul.f32 %v801, %v738
  %v835 = vmul.f32 %v806, %v739
  %v836 = vmul.f32 %v811, %v740
  %v837 = vmul.f32 %v816, %v741
  %v838 = vmul.f32 %v821, %v742
  %v839 = vpack.c.bf16 %v583, %v583
  %v840 = vpack.c.bf16 %v585, %v585
  %v841 = vpack.c.bf16 %v587, %v587
  %v842 = vpack.c.bf16 %v589, %v589
  %v843 = vpack.c.bf16 %v591, %v591
  %v844 = vpack.c.bf16 %v593, %v593
  %v845 = vpack.c.bf16 %v595, %v595
  %v846 = vpack.c.bf16 %v597, %v597
  %v847 = vpack.c.bf16 %v599, %v599
  %v848 = vpack.c.bf16 %v601, %v601
  %v849 = vpack.c.bf16 %v603, %v603
  %v850 = vpack.c.bf16 %v605, %v605
  %v851 = vpack.c.bf16 %v607, %v607
  %v852 = vpack.c.bf16 %v609, %v609
  %v853 = vpack.c.bf16 %v611, %v611
  %v854 = vpack.c.bf16 %v613, %v613
  %v855 = vld [vmem:[%s2] sm:$0xf]
  %v856 = vld [vmem:[%s2 + $0x4] sm:$0xf]
  %v857 = vld [vmem:[%s2 + $0x8] sm:$0xf]
  %v858 = vld [vmem:[%s2 + $0xc] sm:$0xf]
  %v859 = vld [vmem:[%s2 + $0x10] sm:$0xf]
  %v860 = vld [vmem:[%s2 + $0x14] sm:$0xf]
  %v861 = vld [vmem:[%s2 + $0x18] sm:$0xf]
  %v862 = vld [vmem:[%s2 + $0x1c] sm:$0xf]
  %v863 = vld [vmem:[%s2 + $0x20] sm:$0xf]
  %v864 = vld [vmem:[%s2 + $0x24] sm:$0xf]
  %v865 = vld [vmem:[%s2 + $0x28] sm:$0xf]
  %v866 = vld [vmem:[%s2 + $0x2c] sm:$0xf]
  %v867 = vld [vmem:[%s2 + $0x30] sm:$0xf]
  %v868 = vld [vmem:[%s2 + $0x34] sm:$0xf]
  %v869 = vld [vmem:[%s2 + $0x38] sm:$0xf]
  %v870 = vld [vmem:[%s2 + $0x3c] sm:$0xf]
  %v873 = vunpack.c.l.b16 %v839
  %v874 = vunpack.c.l.b16 %v840
  %v875 = vpack.c.b16 %v874, %v873
  %v878 = vunpack.c.l.b16 %v855
  %v879 = vunpack.c.l.b16 %v856
  %v880 = vpack.c.b16 %v879, %v878
  %v883 = vsel %vm111, %v875, 0
  %885 = vmatpush.bf16.msra.mxu0 0
  %886 = vmatpush.bf16.msra.mxu0 0
  %887 = vmatpush.bf16.msra.mxu0 0
  %888 = vmatpush.bf16.msra.mxu0 0
  %889 = vmatpush.bf16.msra.mxu0 0
  %890 = vmatpush.bf16.msra.mxu0 0
  %891 = vmatpush.bf16.msra.mxu0 0
  %892 = vmatpush.bf16.msra.mxu0 %v880
  %893 = vmatmul.bf16.gmra.mxu0 %v883
  %v894 = vpop.f32.mrf.mxu0
  %v895 = vadd.f32 0.0, %v894
  %v896 = vpop.f32.mrf.mxu0
  %v897 = vadd.f32 0.0, %v896
  %898 = vdwg.mxu0
  %v901 = vunpack.c.l.b16 %v841
  %v902 = vunpack.c.l.b16 %v842
  %v903 = vpack.c.b16 %v902, %v901
  %v906 = vunpack.c.l.b16 %v857
  %v907 = vunpack.c.l.b16 %v858
  %v908 = vpack.c.b16 %v907, %v906
  %v911 = vsel %vm111, %v903, 0
  %913 = vmatpush.bf16.msra.mxu0 0
  %914 = vmatpush.bf16.msra.mxu0 0
  %915 = vmatpush.bf16.msra.mxu0 0
  %916 = vmatpush.bf16.msra.mxu0 0
  %917 = vmatpush.bf16.msra.mxu0 0
  %918 = vmatpush.bf16.msra.mxu0 0
  %919 = vmatpush.bf16.msra.mxu0 0
  %920 = vmatpush.bf16.msra.mxu0 %v908
  %921 = vmatmul.bf16.gmra.mxu0 %v911
  %v922 = vpop.f32.mrf.mxu0
  %v923 = vadd.f32 0.0, %v922
  %v924 = vpop.f32.mrf.mxu0
  %v925 = vadd.f32 0.0, %v924
  %926 = vdwg.mxu0
  %v929 = vunpack.c.l.b16 %v843
  %v930 = vunpack.c.l.b16 %v844
  %v931 = vpack.c.b16 %v930, %v929
  %v934 = vunpack.c.l.b16 %v859
  %v935 = vunpack.c.l.b16 %v860
  %v936 = vpack.c.b16 %v935, %v934
  %v939 = vsel %vm111, %v931, 0
  %941 = vmatpush.bf16.msra.mxu0 0
  %942 = vmatpush.bf16.msra.mxu0 0
  %943 = vmatpush.bf16.msra.mxu0 0
  %944 = vmatpush.bf16.msra.mxu0 0
  %945 = vmatpush.bf16.msra.mxu0 0
  %946 = vmatpush.bf16.msra.mxu0 0
  %947 = vmatpush.bf16.msra.mxu0 0
  %948 = vmatpush.bf16.msra.mxu0 %v936
  %949 = vmatmul.bf16.gmra.mxu0 %v939
  %v950 = vpop.f32.mrf.mxu0
  %v951 = vadd.f32 0.0, %v950
  %v952 = vpop.f32.mrf.mxu0
  %v953 = vadd.f32 0.0, %v952
  %954 = vdwg.mxu0
  %v957 = vunpack.c.l.b16 %v845
  %v958 = vunpack.c.l.b16 %v846
  %v959 = vpack.c.b16 %v958, %v957
  %v962 = vunpack.c.l.b16 %v861
  %v963 = vunpack.c.l.b16 %v862
  %v964 = vpack.c.b16 %v963, %v962
  %v967 = vsel %vm111, %v959, 0
  %969 = vmatpush.bf16.msra.mxu0 0
  %970 = vmatpush.bf16.msra.mxu0 0
  %971 = vmatpush.bf16.msra.mxu0 0
  %972 = vmatpush.bf16.msra.mxu0 0
  %973 = vmatpush.bf16.msra.mxu0 0
  %974 = vmatpush.bf16.msra.mxu0 0
  %975 = vmatpush.bf16.msra.mxu0 0
  %976 = vmatpush.bf16.msra.mxu0 %v964
  %977 = vmatmul.bf16.gmra.mxu0 %v967
  %v978 = vpop.f32.mrf.mxu0
  %v979 = vadd.f32 0.0, %v978
  %v980 = vpop.f32.mrf.mxu0
  %v981 = vadd.f32 0.0, %v980
  %982 = vdwg.mxu0
  %v985 = vunpack.c.l.b16 %v847
  %v986 = vunpack.c.l.b16 %v848
  %v987 = vpack.c.b16 %v986, %v985
  %v990 = vunpack.c.l.b16 %v863
  %v991 = vunpack.c.l.b16 %v864
  %v992 = vpack.c.b16 %v991, %v990
  %v995 = vsel %vm111, %v987, 0
  %997 = vmatpush.bf16.msra.mxu0 0
  %998 = vmatpush.bf16.msra.mxu0 0
  %999 = vmatpush.bf16.msra.mxu0 0
  %1000 = vmatpush.bf16.msra.mxu0 0
  %1001 = vmatpush.bf16.msra.mxu0 0
  %1002 = vmatpush.bf16.msra.mxu0 0
  %1003 = vmatpush.bf16.msra.mxu0 0
  %1004 = vmatpush.bf16.msra.mxu0 %v992
  %1005 = vmatmul.bf16.gmra.mxu0 %v995
  %v1006 = vpop.f32.mrf.mxu0
  %v1007 = vadd.f32 0.0, %v1006
  %v1008 = vpop.f32.mrf.mxu0
  %v1009 = vadd.f32 0.0, %v1008
  %1010 = vdwg.mxu0
  %v1013 = vunpack.c.l.b16 %v849
  %v1014 = vunpack.c.l.b16 %v850
  %v1015 = vpack.c.b16 %v1014, %v1013
  %v1018 = vunpack.c.l.b16 %v865
  %v1019 = vunpack.c.l.b16 %v866
  %v1020 = vpack.c.b16 %v1019, %v1018
  %v1023 = vsel %vm111, %v1015, 0
  %1025 = vmatpush.bf16.msra.mxu0 0
  %1026 = vmatpush.bf16.msra.mxu0 0
  %1027 = vmatpush.bf16.msra.mxu0 0
  %1028 = vmatpush.bf16.msra.mxu0 0
  %1029 = vmatpush.bf16.msra.mxu0 0
  %1030 = vmatpush.bf16.msra.mxu0 0
  %1031 = vmatpush.bf16.msra.mxu0 0
  %1032 = vmatpush.bf16.msra.mxu0 %v1020
  %1033 = vmatmul.bf16.gmra.mxu0 %v1023
  %v1034 = vpop.f32.mrf.mxu0
  %v1035 = vadd.f32 0.0, %v1034
  %v1036 = vpop.f32.mrf.mxu0
  %v1037 = vadd.f32 0.0, %v1036
  %1038 = vdwg.mxu0
  %v1041 = vunpack.c.l.b16 %v851
  %v1042 = vunpack.c.l.b16 %v852
  %v1043 = vpack.c.b16 %v1042, %v1041
  %v1046 = vunpack.c.l.b16 %v867
  %v1047 = vunpack.c.l.b16 %v868
  %v1048 = vpack.c.b16 %v1047, %v1046
  %v1051 = vsel %vm111, %v1043, 0
  %1053 = vmatpush.bf16.msra.mxu0 0
  %1054 = vmatpush.bf16.msra.mxu0 0
  %1055 = vmatpush.bf16.msra.mxu0 0
  %1056 = vmatpush.bf16.msra.mxu0 0
  %1057 = vmatpush.bf16.msra.mxu0 0
  %1058 = vmatpush.bf16.msra.mxu0 0
  %1059 = vmatpush.bf16.msra.mxu0 0
  %1060 = vmatpush.bf16.msra.mxu0 %v1048
  %1061 = vmatmul.bf16.gmra.mxu0 %v1051
  %v1062 = vpop.f32.mrf.mxu0
  %v1063 = vadd.f32 0.0, %v1062
  %v1064 = vpop.f32.mrf.mxu0
  %v1065 = vadd.f32 0.0, %v1064
  %1066 = vdwg.mxu0
  %v1069 = vunpack.c.l.b16 %v853
  %v1070 = vunpack.c.l.b16 %v854
  %v1071 = vpack.c.b16 %v1070, %v1069
  %v1074 = vunpack.c.l.b16 %v869
  %v1075 = vunpack.c.l.b16 %v870
  %v1076 = vpack.c.b16 %v1075, %v1074
  %v1079 = vsel %vm111, %v1071, 0
  %1081 = vmatpush.bf16.msra.mxu0 0
  %1082 = vmatpush.bf16.msra.mxu0 0
  %1083 = vmatpush.bf16.msra.mxu0 0
  %1084 = vmatpush.bf16.msra.mxu0 0
  %1085 = vmatpush.bf16.msra.mxu0 0
  %1086 = vmatpush.bf16.msra.mxu0 0
  %1087 = vmatpush.bf16.msra.mxu0 0
  %1088 = vmatpush.bf16.msra.mxu0 %v1076
  %1089 = vmatmul.bf16.gmra.mxu0 %v1079
  %v1090 = vpop.f32.mrf.mxu0
  %v1091 = vadd.f32 0.0, %v1090
  %v1092 = vpop.f32.mrf.mxu0
  %v1093 = vadd.f32 0.0, %v1092
  %1094 = vdwg.mxu0
  %v1095 = vadd.f32 %v823, %v895
  %v1096 = vadd.f32 %v824, %v897
  %v1097 = vadd.f32 %v825, %v923
  %v1098 = vadd.f32 %v826, %v925
  %v1099 = vadd.f32 %v827, %v951
  %v1100 = vadd.f32 %v828, %v953
  %v1101 = vadd.f32 %v829, %v979
  %v1102 = vadd.f32 %v830, %v981
  %v1103 = vadd.f32 %v831, %v1007
  %v1104 = vadd.f32 %v832, %v1009
  %v1105 = vadd.f32 %v833, %v1035
  %v1106 = vadd.f32 %v834, %v1037
  %v1107 = vadd.f32 %v835, %v1063
  %v1108 = vadd.f32 %v836, %v1065
  %v1109 = vadd.f32 %v837, %v1091
  %v1110 = vadd.f32 %v838, %v1093
  %1111 = vst.msk [vmem:[#allocation4] sm:$0xff] %vm111, %v1095
  %1112 = vst.msk [vmem:[#allocation4 + $0x8] sm:$0xff] %vm111, %v1096
  %1113 = vst.msk [vmem:[#allocation4 + $0x10] sm:$0xff] %vm111, %v1097
  %1114 = vst.msk [vmem:[#allocation4 + $0x18] sm:$0xff] %vm111, %v1098
  %1115 = vst.msk [vmem:[#allocation4 + $0x20] sm:$0xff] %vm111, %v1099
  %1116 = vst.msk [vmem:[#allocation4 + $0x28] sm:$0xff] %vm111, %v1100
  %1117 = vst.msk [vmem:[#allocation4 + $0x30] sm:$0xff] %vm111, %v1101
  %1118 = vst.msk [vmem:[#allocation4 + $0x38] sm:$0xff] %vm111, %v1102
  %1119 = vst.msk [vmem:[#allocation4 + $0x40] sm:$0xff] %vm111, %v1103
  %1120 = vst.msk [vmem:[#allocation4 + $0x48] sm:$0xff] %vm111, %v1104
  %1121 = vst.msk [vmem:[#allocation4 + $0x50] sm:$0xff] %vm111, %v1105
  %1122 = vst.msk [vmem:[#allocation4 + $0x58] sm:$0xff] %vm111, %v1106
  %1123 = vst.msk [vmem:[#allocation4 + $0x60] sm:$0xff] %vm111, %v1107
  %1124 = vst.msk [vmem:[#allocation4 + $0x68] sm:$0xff] %vm111, %v1108
  %1125 = vst.msk [vmem:[#allocation4 + $0x70] sm:$0xff] %vm111, %v1109
  %1126 = vst.msk [vmem:[#allocation4 + $0x78] sm:$0xff] %vm111, %v1110
  %1127 = vst.msk [vmem:[#allocation2] sm:$0xff] %vm710, %v422
  %1128 = vst.msk [vmem:[#allocation2 + $0x8] sm:$0xff] %vm710, %v423
  %1129 = vst.msk [vmem:[#allocation2 + $0x10] sm:$0xff] %vm710, %v424
  %1130 = vst.msk [vmem:[#allocation2 + $0x18] sm:$0xff] %vm710, %v425
  %1131 = vst.msk [vmem:[#allocation2 + $0x20] sm:$0xff] %vm710, %v426
  %1132 = vst.msk [vmem:[#allocation2 + $0x28] sm:$0xff] %vm710, %v427
  %1133 = vst.msk [vmem:[#allocation2 + $0x30] sm:$0xff] %vm710, %v428
  %1134 = vst.msk [vmem:[#allocation2 + $0x38] sm:$0xff] %vm710, %v429
  %1135 = vst.msk [vmem:[#allocation2 + $0x40] sm:$0xff] %vm710, %v430
  %1136 = vst.msk [vmem:[#allocation2 + $0x48] sm:$0xff] %vm710, %v431
  %1137 = vst.msk [vmem:[#allocation2 + $0x50] sm:$0xff] %vm710, %v432
  %1138 = vst.msk [vmem:[#allocation2 + $0x58] sm:$0xff] %vm710, %v433
  %1139 = vst.msk [vmem:[#allocation2 + $0x60] sm:$0xff] %vm710, %v434
  %1140 = vst.msk [vmem:[#allocation2 + $0x68] sm:$0xff] %vm710, %v435
  %1141 = vst.msk [vmem:[#allocation2 + $0x70] sm:$0xff] %vm710, %v436
  %1142 = vst.msk [vmem:[#allocation2 + $0x78] sm:$0xff] %vm710, %v437
  // Predicated region
  $region18: #{transformer_forward.36} parent=0 // pred_check
    %p1143 = pneg %p15
  $region19: #{transformer_forward.36} parent=0 // pred_check_branch
    %1145 = sbr.rel (%p1143) target = $region21
  $region20: #{transformer_forward.36} parent=0 // pred_region
    %v1146 = vld [vmem:[#allocation3] sm:$0xff]
    %v1147 = vld [vmem:[#allocation3 + $0x8] sm:$0xff]
    %v1148 = vld [vmem:[#allocation3 + $0x10] sm:$0xff]
    %v1149 = vld [vmem:[#allocation3 + $0x18] sm:$0xff]
    %v1150 = vld [vmem:[#allocation3 + $0x20] sm:$0xff]
    %v1151 = vld [vmem:[#allocation3 + $0x28] sm:$0xff]
    %v1152 = vld [vmem:[#allocation3 + $0x30] sm:$0xff]
    %v1153 = vld [vmem:[#allocation3 + $0x38] sm:$0xff]
    %v1154 = vld [vmem:[#allocation3 + $0x40] sm:$0xff]
    %v1155 = vld [vmem:[#allocation3 + $0x48] sm:$0xff]
    %v1156 = vld [vmem:[#allocation3 + $0x50] sm:$0xff]
    %v1157 = vld [vmem:[#allocation3 + $0x58] sm:$0xff]
    %v1158 = vld [vmem:[#allocation3 + $0x60] sm:$0xff]
    %v1159 = vld [vmem:[#allocation3 + $0x68] sm:$0xff]
    %v1160 = vld [vmem:[#allocation3 + $0x70] sm:$0xff]
    %v1161 = vld [vmem:[#allocation3 + $0x78] sm:$0xff]
    %v1162 = vrcp.pop %v1146
    %v1163 = vrcp.pop %v1147
    %v1164 = vrcp.pop %v1148
    %v1165 = vrcp.pop %v1149
    %v1166 = vrcp.pop %v1150
    %v1167 = vrcp.pop %v1151
    %v1168 = vrcp.pop %v1152
    %v1169 = vrcp.pop %v1153
    %v1170 = vrcp.pop %v1154
    %v1171 = vrcp.pop %v1155
    %v1172 = vrcp.pop %v1156
    %v1173 = vrcp.pop %v1157
    %v1174 = vrcp.pop %v1158
    %v1175 = vrcp.pop %v1159
    %v1176 = vrcp.pop %v1160
    %v1177 = vrcp.pop %v1161
    %v1178 = vld [vmem:[#allocation4] sm:$0xff]
    %v1179 = vld [vmem:[#allocation4 + $0x8] sm:$0xff]
    %v1180 = vld [vmem:[#allocation4 + $0x10] sm:$0xff]
    %v1181 = vld [vmem:[#allocation4 + $0x18] sm:$0xff]
    %v1182 = vld [vmem:[#allocation4 + $0x20] sm:$0xff]
    %v1183 = vld [vmem:[#allocation4 + $0x28] sm:$0xff]
    %v1184 = vld [vmem:[#allocation4 + $0x30] sm:$0xff]
    %v1185 = vld [vmem:[#allocation4 + $0x38] sm:$0xff]
    %v1186 = vld [vmem:[#allocation4 + $0x40] sm:$0xff]
    %v1187 = vld [vmem:[#allocation4 + $0x48] sm:$0xff]
    %v1188 = vld [vmem:[#allocation4 + $0x50] sm:$0xff]
    %v1189 = vld [vmem:[#allocation4 + $0x58] sm:$0xff]
    %v1190 = vld [vmem:[#allocation4 + $0x60] sm:$0xff]
    %v1191 = vld [vmem:[#allocation4 + $0x68] sm:$0xff]
    %v1192 = vld [vmem:[#allocation4 + $0x70] sm:$0xff]
    %v1193 = vld [vmem:[#allocation4 + $0x78] sm:$0xff]
    %1195 = vset.pattern.permute.xlu0 0
    %1196 = vperm.xlu0 %1195, %v1162
    %v1197 = vpop.permute.xlu0 %1196
    %1200 = vset.pattern.permute.xlu0 0
    %1201 = vperm.xlu0 %1200, %v1163
    %v1202 = vpop.permute.xlu0 %1201
    %1205 = vset.pattern.permute.xlu0 0
    %1206 = vperm.xlu0 %1205, %v1164
    %v1207 = vpop.permute.xlu0 %1206
    %1210 = vset.pattern.permute.xlu0 0
    %1211 = vperm.xlu0 %1210, %v1165
    %v1212 = vpop.permute.xlu0 %1211
    %1215 = vset.pattern.permute.xlu0 0
    %1216 = vperm.xlu0 %1215, %v1166
    %v1217 = vpop.permute.xlu0 %1216
    %1220 = vset.pattern.permute.xlu0 0
    %1221 = vperm.xlu0 %1220, %v1167
    %v1222 = vpop.permute.xlu0 %1221
    %1225 = vset.pattern.permute.xlu0 0
    %1226 = vperm.xlu0 %1225, %v1168
    %v1227 = vpop.permute.xlu0 %1226
    %1230 = vset.pattern.permute.xlu0 0
    %1231 = vperm.xlu0 %1230, %v1169
    %v1232 = vpop.permute.xlu0 %1231
    %1235 = vset.pattern.permute.xlu0 0
    %1236 = vperm.xlu0 %1235, %v1170
    %v1237 = vpop.permute.xlu0 %1236
    %1240 = vset.pattern.permute.xlu0 0
    %1241 = vperm.xlu0 %1240, %v1171
    %v1242 = vpop.permute.xlu0 %1241
    %1245 = vset.pattern.permute.xlu0 0
    %1246 = vperm.xlu0 %1245, %v1172
    %v1247 = vpop.permute.xlu0 %1246
    %1250 = vset.pattern.permute.xlu0 0
    %1251 = vperm.xlu0 %1250, %v1173
    %v1252 = vpop.permute.xlu0 %1251
    %1255 = vset.pattern.permute.xlu0 0
    %1256 = vperm.xlu0 %1255, %v1174
    %v1257 = vpop.permute.xlu0 %1256
    %1260 = vset.pattern.permute.xlu0 0
    %1261 = vperm.xlu0 %1260, %v1175
    %v1262 = vpop.permute.xlu0 %1261
    %1265 = vset.pattern.permute.xlu0 0
    %1266 = vperm.xlu0 %1265, %v1176
    %v1267 = vpop.permute.xlu0 %1266
    %1270 = vset.pattern.permute.xlu0 0
    %1271 = vperm.xlu0 %1270, %v1177
    %v1272 = vpop.permute.xlu0 %1271
    %v1274 = vmul.f32 %v1178, %v1197
    %v1275 = vmul.f32 %v1179, %v1202
    %v1276 = vmul.f32 %v1180, %v1207
    %v1277 = vmul.f32 %v1181, %v1212
    %v1278 = vmul.f32 %v1182, %v1217
    %v1279 = vmul.f32 %v1183, %v1222
    %v1280 = vmul.f32 %v1184, %v1227
    %v1281 = vmul.f32 %v1185, %v1232
    %v1282 = vmul.f32 %v1186, %v1237
    %v1283 = vmul.f32 %v1187, %v1242
    %v1284 = vmul.f32 %v1188, %v1247
    %v1285 = vmul.f32 %v1189, %v1252
    %v1286 = vmul.f32 %v1190, %v1257
    %v1287 = vmul.f32 %v1191, %v1262
    %v1288 = vmul.f32 %v1192, %v1267
    %v1289 = vmul.f32 %v1193, %v1272
    %v1290 = vpack.c.bf16 %v1274, %v1274
    %v1291 = vpack.c.bf16 %v1275, %v1275
    %v1292 = vpack.c.bf16 %v1276, %v1276
    %v1293 = vpack.c.bf16 %v1277, %v1277
    %v1294 = vpack.c.bf16 %v1278, %v1278
    %v1295 = vpack.c.bf16 %v1279, %v1279
    %v1296 = vpack.c.bf16 %v1280, %v1280
    %v1297 = vpack.c.bf16 %v1281, %v1281
    %v1298 = vpack.c.bf16 %v1282, %v1282
    %v1299 = vpack.c.bf16 %v1283, %v1283
    %v1300 = vpack.c.bf16 %v1284, %v1284
    %v1301 = vpack.c.bf16 %v1285, %v1285
    %v1302 = vpack.c.bf16 %v1286, %v1286
    %v1303 = vpack.c.bf16 %v1287, %v1287
    %v1304 = vpack.c.bf16 %v1288, %v1288
    %v1305 = vpack.c.bf16 %v1289, %v1289
    %vm1306 = vcmask 125952
    %1307 = vst.msk [vmem:[%s3] sm:$0xf] %vm1306, %v1290
    %1308 = vst.msk [vmem:[%s3 + $0x4] sm:$0xf] %vm1306, %v1291
    %1309 = vst.msk [vmem:[%s3 + $0x8] sm:$0xf] %vm1306, %v1292
    %1310 = vst.msk [vmem:[%s3 + $0xc] sm:$0xf] %vm1306, %v1293
    %1311 = vst.msk [vmem:[%s3 + $0x10] sm:$0xf] %vm1306, %v1294
    %1312 = vst.msk [vmem:[%s3 + $0x14] sm:$0xf] %vm1306, %v1295
    %1313 = vst.msk [vmem:[%s3 + $0x18] sm:$0xf] %vm1306, %v1296
    %1314 = vst.msk [vmem:[%s3 + $0x1c] sm:$0xf] %vm1306, %v1297
    %1315 = vst.msk [vmem:[%s3 + $0x20] sm:$0xf] %vm1306, %v1298
    %1316 = vst.msk [vmem:[%s3 + $0x24] sm:$0xf] %vm1306, %v1299
    %1317 = vst.msk [vmem:[%s3 + $0x28] sm:$0xf] %vm1306, %v1300
    %1318 = vst.msk [vmem:[%s3 + $0x2c] sm:$0xf] %vm1306, %v1301
    %1319 = vst.msk [vmem:[%s3 + $0x30] sm:$0xf] %vm1306, %v1302
    %1320 = vst.msk [vmem:[%s3 + $0x34] sm:$0xf] %vm1306, %v1303
    %1321 = vst.msk [vmem:[%s3 + $0x38] sm:$0xf] %vm1306, %v1304
    %1322 = vst.msk [vmem:[%s3 + $0x3c] sm:$0xf] %vm1306, %v1305
  $region21: #{transformer_forward.36} parent=0 // pred_fallthru
    _
  // Predicated region
  $region22: #{transformer_forward.36} parent=0 // pred_check
    _
  $region23: #{transformer_forward.36} parent=0 // pred_check_branch
    %1324 = sbr.rel (0) target = $region25
  $region24: #{transformer_forward.36} parent=0 // pred_region
    _
  $region25: #{transformer_forward.36} parent=0 // pred_fallthru
    _
  // Predicated region
  $region26: #{transformer_forward.36} parent=0 // pred_check
    _
  $region27: #{transformer_forward.36} parent=0 // pred_check_branch
    %1326 = sbr.rel (0) target = $region29
  $region28: #{transformer_forward.36} parent=0 // pred_region
    _
  $region29: #{transformer_forward.36} parent=0 // pred_fallthru
    _

// kernel: transformer_forward.69
$region0: #{transformer_forward.69}
  #allocation0 [shape = 'u32[]', space=smem, size = 0x4, offset = 0x4, fixed_abs, tag = 'smem constant byte address 0x4 - core index']
  #allocation1 [shape = 'u32[72,128]{1,0:T(1,128)}', space=vmem, size = 0x9000, scoped, tag = 'internal scratch']
  %s0 = inlined_call_operand.vmem [shape: bf16[48,64], index: 0, kind: input, shape index: {}]
  %s1 = inlined_call_operand.vmem [shape: bf16[64,512], index: 1, kind: input, shape index: {}]
  %s2 = inlined_call_operand.vmem [shape: f32[1,512], index: 2, kind: input, shape index: {}]
  %s3 = inlined_call_operand.hbm [shape: f32[48,512], index: 3, kind: output, shape index: {}]
  %s4 = sld [smem:[#allocation0]]
  $region22: #{transformer_forward.69} parent=0
    _
  %s6 = ssub.s32 1, %s4
  %s7 = scalar_select 0, %s6, %s4
  $region1: #{transformer_forward.69} parent=0
    #allocation2 [shape = 'u8[98304]{0}', space=vmem, size = 0x18000, scoped, tag = 'output window, operand 0, single buffered']
    #allocation3 [shape = 's32[1]{0}', space=sflag, size = 0x4, scoped, tag = 'scoped memory for transformer_forward.69']
    %8 = vsyncpa [#allocation3], 0
    // Predicated region
    $region2: #{transformer_forward.69} parent=1 // pred_check
      _
    $region3: #{transformer_forward.69} parent=1 // pred_check_branch
      %10 = sbr.rel (0) target = $region5
    $region4: #{transformer_forward.69} parent=1 // pred_region
      _
    $region5: #{transformer_forward.69} parent=1 // pred_fallthru
      _
    // Predicated region
    $region6: #{transformer_forward.69} parent=1 // pred_check
      _
    $region7: #{transformer_forward.69} parent=1 // pred_check_branch
      %12 = sbr.rel (0) target = $region9
    $region8: #{transformer_forward.69} parent=1 // pred_region
      _
    $region9: #{transformer_forward.69} parent=1 // pred_fallthru
      _
    // Predicated region
    $region10: #{transformer_forward.69} parent=1 // pred_check
      _
    $region11: #{transformer_forward.69} parent=1 // pred_check_branch
      %14 = sbr.rel (0) target = $region13
    $region12: #{transformer_forward.69} parent=1 // pred_region
      _
    $region13: #{transformer_forward.69} parent=1 // pred_fallthru
      _
    %v16 = vld [vmem:[%s0] sm:$0xf]
    %v17 = vld [vmem:[%s0 + $0x4] sm:$0xf]
    %v18 = vld [vmem:[%s0 + $0x8] sm:$0xf]
    %v19 = vld [vmem:[%s0 + $0xc] sm:$0xf]
    %v20 = vld [vmem:[%s0 + $0x10] sm:$0xf]
    %v21 = vld [vmem:[%s0 + $0x14] sm:$0xf]
    %v22 = vld [vmem:[%s1] sm:$0xff]
    %v23 = vld [vmem:[%s1 + $0x8] sm:$0xff]
    %v24 = vld [vmem:[%s1 + $0x10] sm:$0xff]
    %v25 = vld [vmem:[%s1 + $0x18] sm:$0xff]
    %v26 = vld [vmem:[%s1 + $0x20] sm:$0xff]
    %v27 = vld [vmem:[%s1 + $0x28] sm:$0xff]
    %v28 = vld [vmem:[%s1 + $0x30] sm:$0xff]
    %v29 = vld [vmem:[%s1 + $0x38] sm:$0xff]
    %v30 = vld [vmem:[%s1 + $0x40] sm:$0xff]
    %v31 = vld [vmem:[%s1 + $0x48] sm:$0xff]
    %v32 = vld [vmem:[%s1 + $0x50] sm:$0xff]
    %v33 = vld [vmem:[%s1 + $0x58] sm:$0xff]
    %v34 = vld [vmem:[%s1 + $0x60] sm:$0xff]
    %v35 = vld [vmem:[%s1 + $0x68] sm:$0xff]
    %v36 = vld [vmem:[%s1 + $0x70] sm:$0xff]
    %v37 = vld [vmem:[%s1 + $0x78] sm:$0xff]
    %v38 = vld [vmem:[%s2] sm:$0xf]
    %v40 = vperm.slane %v38, 0
    %v41 = vperm.slane %v38, 1
    %v42 = vperm.slane %v38, 2
    %v43 = vperm.slane %v38, 3
    %v54 = vunpack.c.l.b16 %v16
    %v55 = vunpack.c.l.b16 %v17
    %v56 = vunpack.c.l.b16 %v18
    %v57 = vunpack.c.l.b16 %v19
    %v58 = vunpack.c.l.b16 %v20
    %v59 = vunpack.c.l.b16 %v21
    %v60 = vpack.c.b16 %v55, %v54
    %v61 = vpack.c.b16 %v57, %v56
    %v62 = vpack.c.b16 %v59, %v58
    %v79 = vunpack.c.l.b16 %v22
    %v80 = vunpack.c.h.b16 %v22
    %v81 = vunpack.c.l.b16 %v23
    %v82 = vunpack.c.h.b16 %v23
    %v83 = vunpack.c.l.b16 %v24
    %v84 = vunpack.c.h.b16 %v24
    %v85 = vunpack.c.l.b16 %v25
    %v86 = vunpack.c.h.b16 %v25
    %v87 = vunpack.c.l.b16 %v26
    %v88 = vunpack.c.h.b16 %v26
    %v89 = vunpack.c.l.b16 %v27
    %v90 = vunpack.c.h.b16 %v27
    %v91 = vunpack.c.l.b16 %v28
    %v92 = vunpack.c.h.b16 %v28
    %v93 = vunpack.c.l.b16 %v29
    %v94 = vunpack.c.h.b16 %v29
    %v95 = vunpack.c.l.b16 %v30
    %v96 = vunpack.c.h.b16 %v30
    %v97 = vunpack.c.l.b16 %v31
    %v98 = vunpack.c.h.b16 %v31
    %v99 = vunpack.c.l.b16 %v32
    %v100 = vunpack.c.h.b16 %v32
    %v101 = vunpack.c.l.b16 %v33
    %v102 = vunpack.c.h.b16 %v33
    %v103 = vunpack.c.l.b16 %v34
    %v104 = vunpack.c.h.b16 %v34
    %v105 = vunpack.c.l.b16 %v35
    %v106 = vunpack.c.h.b16 %v35
    %v107 = vunpack.c.l.b16 %v36
    %v108 = vunpack.c.h.b16 %v36
    %v109 = vunpack.c.l.b16 %v37
    %v110 = vunpack.c.h.b16 %v37
    %v111 = vpack.c.b16 %v83, %v79
    %v112 = vpack.c.b16 %v84, %v80
    %v113 = vpack.c.b16 %v85, %v81
    %v114 = vpack.c.b16 %v86, %v82
    %v115 = vpack.c.b16 %v91, %v87
    %v116 = vpack.c.b16 %v92, %v88
    %v117 = vpack.c.b16 %v93, %v89
    %v118 = vpack.c.b16 %v94, %v90
    %v119 = vpack.c.b16 %v99, %v95
    %v120 = vpack.c.b16 %v100, %v96
    %v121 = vpack.c.b16 %v101, %v97
    %v122 = vpack.c.b16 %v102, %v98
    %v123 = vpack.c.b16 %v107, %v103
    %v124 = vpack.c.b16 %v108, %v104
    %v125 = vpack.c.b16 %v109, %v105
    %v126 = vpack.c.b16 %v110, %v106
    %vm143 = vcmask 523264
    %v145 = vsel %vm143, %v60, 0
    %v148 = vsel %vm143, %v61, 0
    %v151 = vsel %vm143, %v62, 0
    %153 = vmatpush.bf16.msra.mxu0 0
    %154 = vmatpush.bf16.msra.mxu0 0
    %155 = vmatpush.bf16.msra.mxu0 0
    %156 = vmatpush.bf16.msra.mxu0 0
    %157 = vmatpush.bf16.msra.mxu0 %v123
    %158 = vmatpush.bf16.msra.mxu0 %v119
    %159 = vmatpush.bf16.msra.mxu0 %v115
    %160 = vmatpush.bf16.msra.mxu0 %v111
    %161 = vmatmul.bf16.gmra.mxu0 %v145
    %v162 = vpop.f32.mrf.mxu0
    %v163 = vadd.f32 %v40, %v162
    %v164 = vpop.f32.mrf.mxu0
    %v165 = vadd.f32 %v40, %v164
    %166 = vmatmul.bf16.gmra.mxu0 %v148
    %v167 = vpop.f32.mrf.mxu0
    %v168 = vadd.f32 %v40, %v167
    %v169 = vpop.f32.mrf.mxu0
    %v170 = vadd.f32 %v40, %v169
    %171 = vmatmul.bf16.gmra.mxu0 %v151
    %v172 = vpop.f32.mrf.mxu0
    %v173 = vadd.f32 %v40, %v172
    %v174 = vpop.f32.mrf.mxu0
    %v175 = vadd.f32 %v40, %v174
    %176 = vdwg.mxu0
    %177 = vmatpush.bf16.msra.mxu0 0
    %178 = vmatpush.bf16.msra.mxu0 0
    %179 = vmatpush.bf16.msra.mxu0 0
    %180 = vmatpush.bf16.msra.mxu0 0
    %181 = vmatpush.bf16.msra.mxu0 %v124
    %182 = vmatpush.bf16.msra.mxu0 %v120
    %183 = vmatpush.bf16.msra.mxu0 %v116
    %184 = vmatpush.bf16.msra.mxu0 %v112
    %185 = vmatmul.bf16.gmra.mxu0 %v145
    %v186 = vpop.f32.mrf.mxu0
    %v187 = vadd.f32 %v41, %v186
    %v188 = vpop.f32.mrf.mxu0
    %v189 = vadd.f32 %v41, %v188
    %190 = vmatmul.bf16.gmra.mxu0 %v148
    %v191 = vpop.f32.mrf.mxu0
    %v192 = vadd.f32 %v41, %v191
    %v193 = vpop.f32.mrf.mxu0
    %v194 = vadd.f32 %v41, %v193
    %195 = vmatmul.bf16.gmra.mxu0 %v151
    %v196 = vpop.f32.mrf.mxu0
    %v197 = vadd.f32 %v41, %v196
    %v198 = vpop.f32.mrf.mxu0
    %v199 = vadd.f32 %v41, %v198
    %200 = vdwg.mxu0
    %201 = vmatpush.bf16.msra.mxu0 0
    %202 = vmatpush.bf16.msra.mxu0 0
    %203 = vmatpush.bf16.msra.mxu0 0
    %204 = vmatpush.bf16.msra.mxu0 0
    %205 = vmatpush.bf16.msra.mxu0 %v125
    %206 = vmatpush.bf16.msra.mxu0 %v121
    %207 = vmatpush.bf16.msra.mxu0 %v117
    %208 = vmatpush.bf16.msra.mxu0 %v113
    %209 = vmatmul.bf16.gmra.mxu0 %v145
    %v210 = vpop.f32.mrf.mxu0
    %v211 = vadd.f32 %v42, %v210
    %v212 = vpop.f32.mrf.mxu0
    %v213 = vadd.f32 %v42, %v212
    %214 = vmatmul.bf16.gmra.mxu0 %v148
    %v215 = vpop.f32.mrf.mxu0
    %v216 = vadd.f32 %v42, %v215
    %v217 = vpop.f32.mrf.mxu0
    %v218 = vadd.f32 %v42, %v217
    %219 = vmatmul.bf16.gmra.mxu0 %v151
    %v220 = vpop.f32.mrf.mxu0
    %v221 = vadd.f32 %v42, %v220
    %v222 = vpop.f32.mrf.mxu0
    %v223 = vadd.f32 %v42, %v222
    %224 = vdwg.mxu0
    %225 = vmatpush.bf16.msra.mxu0 0
    %226 = vmatpush.bf16.msra.mxu0 0
    %227 = vmatpush.bf16.msra.mxu0 0
    %228 = vmatpush.bf16.msra.mxu0 0
    %229 = vmatpush.bf16.msra.mxu0 %v126
    %230 = vmatpush.bf16.msra.mxu0 %v122
    %231 = vmatpush.bf16.msra.mxu0 %v118
    %232 = vmatpush.bf16.msra.mxu0 %v114
    %233 = vmatmul.bf16.gmra.mxu0 %v145
    %v234 = vpop.f32.mrf.mxu0
    %v235 = vadd.f32 %v43, %v234
    %v236 = vpop.f32.mrf.mxu0
    %v237 = vadd.f32 %v43, %v236
    %238 = vmatmul.bf16.gmra.mxu0 %v148
    %v239 = vpop.f32.mrf.mxu0
    %v240 = vadd.f32 %v43, %v239
    %v241 = vpop.f32.mrf.mxu0
    %v242 = vadd.f32 %v43, %v241
    %243 = vmatmul.bf16.gmra.mxu0 %v151
    %v244 = vpop.f32.mrf.mxu0
    %v245 = vadd.f32 %v43, %v244
    %v246 = vpop.f32.mrf.mxu0
    %v247 = vadd.f32 %v43, %v246
    %248 = vdwg.mxu0
    %v249 = vmax.f32 %v163, %v187
    %v250 = vmax.f32 %v249, %v211
    %v251 = vmax.f32 %v250, %v235
    %252 = vmax.xlane.f32.xlu0 %v251
    %v253 = vpop.xlane.xlu0 %252
    %v254 = vmax.f32 %v165, %v189
    %v255 = vmax.f32 %v254, %v213
    %v256 = vmax.f32 %v255, %v237
    %257 = vmax.xlane.f32.xlu0 %v256
    %v258 = vpop.xlane.xlu0 %257
    %v259 = vmax.f32 %v168, %v192
    %v260 = vmax.f32 %v259, %v216
    %v261 = vmax.f32 %v260, %v240
    %262 = vmax.xlane.f32.xlu0 %v261
    %v263 = vpop.xlane.xlu0 %262
    %v264 = vmax.f32 %v170, %v194
    %v265 = vmax.f32 %v264, %v218
    %v266 = vmax.f32 %v265, %v242
    %267 = vmax.xlane.f32.xlu0 %v266
    %v268 = vpop.xlane.xlu0 %267
    %v269 = vmax.f32 %v173, %v197
    %v270 = vmax.f32 %v269, %v221
    %v271 = vmax.f32 %v270, %v245
    %272 = vmax.xlane.f32.xlu0 %v271
    %v273 = vpop.xlane.xlu0 %272
    %v274 = vmax.f32 %v175, %v199
    %v275 = vmax.f32 %v274, %v223
    %v276 = vmax.f32 %v275, %v247
    %277 = vmax.xlane.f32.xlu0 %v276
    %v278 = vpop.xlane.xlu0 %277
    %v279 = vsub.f32 %v163, %v253
    %v280 = vsub.f32 %v187, %v253
    %v281 = vsub.f32 %v211, %v253
    %v282 = vsub.f32 %v235, %v253
    %v283 = vsub.f32 %v165, %v258
    %v284 = vsub.f32 %v189, %v258
    %v285 = vsub.f32 %v213, %v258
    %v286 = vsub.f32 %v237, %v258
    %v287 = vsub.f32 %v168, %v263
    %v288 = vsub.f32 %v192, %v263
    %v289 = vsub.f32 %v216, %v263
    %v290 = vsub.f32 %v240, %v263
    %v291 = vsub.f32 %v170, %v268
    %v292 = vsub.f32 %v194, %v268
    %v293 = vsub.f32 %v218, %v268
    %v294 = vsub.f32 %v242, %v268
    %v295 = vsub.f32 %v173, %v273
    %v296 = vsub.f32 %v197, %v273
    %v297 = vsub.f32 %v221, %v273
    %v298 = vsub.f32 %v245, %v273
    %v299 = vsub.f32 %v175, %v278
    %v300 = vsub.f32 %v199, %v278
    %v301 = vsub.f32 %v223, %v278
    %v302 = vsub.f32 %v247, %v278
    %v303 = vmul.f32 %v279, 1.442695
    %v304 = vpow.pop %v303
    %v305 = vmul.f32 %v280, 1.442695
    %v306 = vpow.pop %v305
    %v307 = vmul.f32 %v281, 1.442695
    %v308 = vpow.pop %v307
    %v309 = vmul.f32 %v282, 1.442695
    %v310 = vpow.pop %v309
    %v311 = vmul.f32 %v283, 1.442695
    %v312 = vpow.pop %v311
    %v313 = vmul.f32 %v284, 1.442695
    %v314 = vpow.pop %v313
    %v315 = vmul.f32 %v285, 1.442695
    %v316 = vpow.pop %v315
    %v317 = vmul.f32 %v286, 1.442695
    %v318 = vpow.pop %v317
    %v319 = vmul.f32 %v287, 1.442695
    %v320 = vpow.pop %v319
    %v321 = vmul.f32 %v288, 1.442695
    %v322 = vpow.pop %v321
    %v323 = vmul.f32 %v289, 1.442695
    %v324 = vpow.pop %v323
    %v325 = vmul.f32 %v290, 1.442695
    %v326 = vpow.pop %v325
    %v327 = vmul.f32 %v291, 1.442695
    %v328 = vpow.pop %v327
    %v329 = vmul.f32 %v292, 1.442695
    %v330 = vpow.pop %v329
    %v331 = vmul.f32 %v293, 1.442695
    %v332 = vpow.pop %v331
    %v333 = vmul.f32 %v294, 1.442695
    %v334 = vpow.pop %v333
    %v335 = vmul.f32 %v295, 1.442695
    %v336 = vpow.pop %v335
    %v337 = vmul.f32 %v296, 1.442695
    %v338 = vpow.pop %v337
    %v339 = vmul.f32 %v297, 1.442695
    %v340 = vpow.pop %v339
    %v341 = vmul.f32 %v298, 1.442695
    %v342 = vpow.pop %v341
    %v343 = vmul.f32 %v299, 1.442695
    %v344 = vpow.pop %v343
    %v345 = vmul.f32 %v300, 1.442695
    %v346 = vpow.pop %v345
    %v347 = vmul.f32 %v301, 1.442695
    %v348 = vpow.pop %v347
    %v349 = vmul.f32 %v302, 1.442695
    %v350 = vpow.pop %v349
    %v351 = vadd.f32 %v304, %v306
    %v352 = vadd.f32 %v351, %v308
    %v353 = vadd.f32 %v352, %v310
    %354 = vadd.xlane.f32.xlu0 %v353
    %v355 = vpop.xlane.xlu0 %354
    %v356 = vadd.f32 %v312, %v314
    %v357 = vadd.f32 %v356, %v316
    %v358 = vadd.f32 %v357, %v318
    %359 = vadd.xlane.f32.xlu0 %v358
    %v360 = vpop.xlane.xlu0 %359
    %v361 = vadd.f32 %v320, %v322
    %v362 = vadd.f32 %v361, %v324
    %v363 = vadd.f32 %v362, %v326
    %364 = vadd.xlane.f32.xlu0 %v363
    %v365 = vpop.xlane.xlu0 %364
    %v366 = vadd.f32 %v328, %v330
    %v367 = vadd.f32 %v366, %v332
    %v368 = vadd.f32 %v367, %v334
    %369 = vadd.xlane.f32.xlu0 %v368
    %v370 = vpop.xlane.xlu0 %369
    %v371 = vadd.f32 %v336, %v338
    %v372 = vadd.f32 %v371, %v340
    %v373 = vadd.f32 %v372, %v342
    %374 = vadd.xlane.f32.xlu0 %v373
    %v375 = vpop.xlane.xlu0 %374
    %v376 = vadd.f32 %v344, %v346
    %v377 = vadd.f32 %v376, %v348
    %v378 = vadd.f32 %v377, %v350
    %379 = vadd.xlane.f32.xlu0 %v378
    %v380 = vpop.xlane.xlu0 %379
    %v381 = vrcp.pop %v355
    %v382 = vmul.f32 %v355, %v381
    %v383 = vsub.f32 1.0, %v382
    %v384 = vmul.f32 %v381, %v383
    %v385 = vadd.f32 %v381, %v384
    %vm386 = vweird.f32 %v355
    %vm387 = vweird.f32 %v381
    %vm388 = vmor %vm386, %vm387
    %v389 = vsel %vm388, %v381, %v385
    %v390 = vand.u32 2147483647, %v355
    %vm391 = vcmp.eq.f32.partialorder %v390, 8.507059e+37
    %v392 = vand.u32 %v355, 2147483648
    %v393 = vor.u32 1.1754944e-38, %v392
    %v394 = vsel %vm391, %v393, %v389
    %v395 = vmul.f32 %v304, %v394
    %v396 = vmul.f32 %v306, %v394
    %v397 = vmul.f32 %v308, %v394
    %v398 = vmul.f32 %v310, %v394
    %v399 = vrcp.pop %v360
    %v400 = vmul.f32 %v360, %v399
    %v401 = vsub.f32 1.0, %v400
    %v402 = vmul.f32 %v399, %v401
    %v403 = vadd.f32 %v399, %v402
    %vm404 = vweird.f32 %v360
    %vm405 = vweird.f32 %v399
    %vm406 = vmor %vm404, %vm405
    %v407 = vsel %vm406, %v399, %v403
    %v408 = vand.u32 2147483647, %v360
    %vm409 = vcmp.eq.f32.partialorder %v408, 8.507059e+37
    %v410 = vand.u32 %v360, 2147483648
    %v411 = vor.u32 1.1754944e-38, %v410
    %v412 = vsel %vm409, %v411, %v407
    %v413 = vmul.f32 %v312, %v412
    %v414 = vmul.f32 %v314, %v412
    %v415 = vmul.f32 %v316, %v412
    %v416 = vmul.f32 %v318, %v412
    %v417 = vrcp.pop %v365
    %v418 = vmul.f32 %v365, %v417
    %v419 = vsub.f32 1.0, %v418
    %v420 = vmul.f32 %v417, %v419
    %v421 = vadd.f32 %v417, %v420
    %vm422 = vweird.f32 %v365
    %vm423 = vweird.f32 %v417
    %vm424 = vmor %vm422, %vm423
    %v425 = vsel %vm424, %v417, %v421
    %v426 = vand.u32 2147483647, %v365
    %vm427 = vcmp.eq.f32.partialorder %v426, 8.507059e+37
    %v428 = vand.u32 %v365, 2147483648
    %v429 = vor.u32 1.1754944e-38, %v428
    %v430 = vsel %vm427, %v429, %v425
    %v431 = vmul.f32 %v320, %v430
    %v432 = vmul.f32 %v322, %v430
    %v433 = vmul.f32 %v324, %v430
    %v434 = vmul.f32 %v326, %v430
    %v435 = vrcp.pop %v370
    %v436 = vmul.f32 %v370, %v435
    %v437 = vsub.f32 1.0, %v436
    %v438 = vmul.f32 %v435, %v437
    %v439 = vadd.f32 %v435, %v438
    %vm440 = vweird.f32 %v370
    %vm441 = vweird.f32 %v435
    %vm442 = vmor %vm440, %vm441
    %v443 = vsel %vm442, %v435, %v439
    %v444 = vand.u32 2147483647, %v370
    %vm445 = vcmp.eq.f32.partialorder %v444, 8.507059e+37
    %v446 = vand.u32 %v370, 2147483648
    %v447 = vor.u32 1.1754944e-38, %v446
    %v448 = vsel %vm445, %v447, %v443
    %v449 = vmul.f32 %v328, %v448
    %v450 = vmul.f32 %v330, %v448
    %v451 = vmul.f32 %v332, %v448
    %v452 = vmul.f32 %v334, %v448
    %v453 = vrcp.pop %v375
    %v454 = vmul.f32 %v375, %v453
    %v455 = vsub.f32 1.0, %v454
    %v456 = vmul.f32 %v453, %v455
    %v457 = vadd.f32 %v453, %v456
    %vm458 = vweird.f32 %v375
    %vm459 = vweird.f32 %v453
    %vm460 = vmor %vm458, %vm459
    %v461 = vsel %vm460, %v453, %v457
    %v462 = vand.u32 2147483647, %v375
    %vm463 = vcmp.eq.f32.partialorder %v462, 8.507059e+37
    %v464 = vand.u32 %v375, 2147483648
    %v465 = vor.u32 1.1754944e-38, %v464
    %v466 = vsel %vm463, %v465, %v461
    %v467 = vmul.f32 %v336, %v466
    %v468 = vmul.f32 %v338, %v466
    %v469 = vmul.f32 %v340, %v466
    %v470 = vmul.f32 %v342, %v466
    %v471 = vrcp.pop %v380
    %v472 = vmul.f32 %v380, %v471
    %v473 = vsub.f32 1.0, %v472
    %v474 = vmul.f32 %v471, %v473
    %v475 = vadd.f32 %v471, %v474
    %vm476 = vweird.f32 %v380
    %vm477 = vweird.f32 %v471
    %vm478 = vmor %vm476, %vm477
    %v479 = vsel %vm478, %v471, %v475
    %v480 = vand.u32 2147483647, %v380
    %vm481 = vcmp.eq.f32.partialorder %v480, 8.507059e+37
    %v482 = vand.u32 %v380, 2147483648
    %v483 = vor.u32 1.1754944e-38, %v482
    %v484 = vsel %vm481, %v483, %v479
    %v485 = vmul.f32 %v344, %v484
    %v486 = vmul.f32 %v346, %v484
    %v487 = vmul.f32 %v348, %v484
    %v488 = vmul.f32 %v350, %v484
    %489 = vst [vmem:[#allocation2] sm:$0xff] %v395
    %490 = vst [vmem:[#allocation2 + $0x8] sm:$0xff] %v396
    %491 = vst [vmem:[#allocation2 + $0x10] sm:$0xff] %v397
    %492 = vst [vmem:[#allocation2 + $0x18] sm:$0xff] %v398
    %493 = vst [vmem:[#allocation2 + $0x20] sm:$0xff] %v413
    %494 = vst [vmem:[#allocation2 + $0x28] sm:$0xff] %v414
    %495 = vst [vmem:[#allocation2 + $0x30] sm:$0xff] %v415
    %496 = vst [vmem:[#allocation2 + $0x38] sm:$0xff] %v416
    %497 = vst [vmem:[#allocation2 + $0x40] sm:$0xff] %v431
    %498 = vst [vmem:[#allocation2 + $0x48] sm:$0xff] %v432
    %499 = vst [vmem:[#allocation2 + $0x50] sm:$0xff] %v433
    %500 = vst [vmem:[#allocation2 + $0x58] sm:$0xff] %v434
    %501 = vst [vmem:[#allocation2 + $0x60] sm:$0xff] %v449
    %502 = vst [vmem:[#allocation2 + $0x68] sm:$0xff] %v450
    %503 = vst [vmem:[#allocation2 + $0x70] sm:$0xff] %v451
    %504 = vst [vmem:[#allocation2 + $0x78] sm:$0xff] %v452
    %505 = vst [vmem:[#allocation2 + $0x80] sm:$0xff] %v467
    %506 = vst [vmem:[#allocation2 + $0x88] sm:$0xff] %v468
    %507 = vst [vmem:[#allocation2 + $0x90] sm:$0xff] %v469
    %508 = vst [vmem:[#allocation2 + $0x98] sm:$0xff] %v470
    %509 = vst [vmem:[#allocation2 + $0xa0] sm:$0xff] %v485
    %510 = vst [vmem:[#allocation2 + $0xa8] sm:$0xff] %v486
    %511 = vst [vmem:[#allocation2 + $0xb0] sm:$0xff] %v487
    %512 = vst [vmem:[#allocation2 + $0xb8] sm:$0xff] %v488
    // Predicated region
    $region14: #{transformer_forward.69} parent=1 // pred_check
      _
    $region15: #{transformer_forward.69} parent=1 // pred_check_branch
      %514 = sbr.rel (0) target = $region17
    $region16: #{transformer_forward.69} parent=1 // pred_region
      %516 = vsyncadd [#allocation3], 0
      %s517 = sshll.u32 [#allocation2], 4
      %s518 = int_to_ptr.vmem [resolvable:$true] %s517
      %s519 = sshll.u32 %s3, 4
      %s520 = int_to_ptr.hbm [resolvable:$true] %s519
      %525 = dma.vmem_to_hbm [thread:$0]  %s518, 3072, %s520, [#allocation3], 512, 512, 32
    $region17: #{transformer_forward.69} parent=1 // pred_fallthru
      _
    // Predicated region
    $region18: #{transformer_forward.69} parent=1 // pred_check
      _
    $region19: #{transformer_forward.69} parent=1 // pred_check_branch
      %527 = sbr.rel (0) target = $region21
    $region20: #{transformer_forward.69} parent=1 // pred_region
      %529 = dma.done [#allocation3], 3072
    $region21: #{transformer_forward.69} parent=1 // pred_fallthru
      _
    %530 = vsyncpa [#allocation3], 1

// kernel: transformer_forward.56
$region0: #{transformer_forward.56}
  #allocation0 [shape = 'u32[]', space=smem, size = 0x4, offset = 0x4, fixed_abs, tag = 'smem constant byte address 0x4 - core index']
  #allocation1 [shape = 'u32[72,128]{1,0:T(1,128)}', space=vmem, size = 0x9000, scoped, tag = 'internal scratch']
  #allocation2 [shape = 'f32[48,64]{1,0:T(8,128)}', space=vmem, size = 0x6000, scoped, tag = 'scratch operand']
  %s0 = inlined_call_operand.vmem [shape: bf16[48,64], index: 0, kind: input, shape index: {}]
  %s1 = inlined_call_operand.vmem [shape: bf16[64,256], index: 1, kind: input, shape index: {}]
  %s2 = inlined_call_operand.vmem [shape: f32[1,256], index: 2, kind: input, shape index: {}]
  %s3 = inlined_call_operand.vmem [shape: bf16[256,64], index: 3, kind: input, shape index: {}]
  %s4 = inlined_call_operand.vmem [shape: f32[1,64], index: 4, kind: input, shape index: {}]
  %s5 = inlined_call_operand.vmem [shape: bf16[48,64], index: 5, kind: output, shape index: {}]
  %s6 = sld [smem:[#allocation0]]
  $region38: #{transformer_forward.56} parent=0
    _
  %s8 = ssub.s32 1, %s6
  %s9 = scalar_select 0, %s8, %s6
  // Predicated region
  $region2: #{transformer_forward.56} parent=0 // pred_check
    _
  $region3: #{transformer_forward.56} parent=0 // pred_check_branch
    %11 = sbr.rel (0) target = $region5
  $region4: #{transformer_forward.56} parent=0 // pred_region
    _
  $region5: #{transformer_forward.56} parent=0 // pred_fallthru
    _
  // Predicated region
  $region6: #{transformer_forward.56} parent=0 // pred_check
    _
  $region7: #{transformer_forward.56} parent=0 // pred_check_branch
    %13 = sbr.rel (0) target = $region9
  $region8: #{transformer_forward.56} parent=0 // pred_region
    _
  $region9: #{transformer_forward.56} parent=0 // pred_fallthru
    _
  // Predicated region
  $region10: #{transformer_forward.56} parent=0 // pred_check
    _
  $region11: #{transformer_forward.56} parent=0 // pred_check_branch
    %15 = sbr.rel (0) target = $region13
  $region12: #{transformer_forward.56} parent=0 // pred_region
    _
  $region13: #{transformer_forward.56} parent=0 // pred_fallthru
    _
  // Predicated region
  $region14: #{transformer_forward.56} parent=0 // pred_check
    _
  $region15: #{transformer_forward.56} parent=0 // pred_check_branch
    %17 = sbr.rel (0) target = $region17
  $region16: #{transformer_forward.56} parent=0 // pred_region
    _
  $region17: #{transformer_forward.56} parent=0 // pred_fallthru
    _
  // Predicated region
  $region18: #{transformer_forward.56} parent=0 // pred_check
    _
  $region19: #{transformer_forward.56} parent=0 // pred_check_branch
    %19 = sbr.rel (0) target = $region21
  $region20: #{transformer_forward.56} parent=0 // pred_region
    _
  $region21: #{transformer_forward.56} parent=0 // pred_fallthru
    _
  %p21 = scmp.eq.s32.totalorder 0, 0
  // Predicated region
  $region22: #{transformer_forward.56} parent=0 // pred_check
    %p22 = pneg %p21
  $region23: #{transformer_forward.56} parent=0 // pred_check_branch
    %24 = sbr.rel (%p22) target = $region25
  $region24: #{transformer_forward.56} parent=0 // pred_region
    %v25 = vld [vmem:[%s4] sm:$0x1]
    %v27 = vperm.slane %v25, 0
    %vm29 = vcmask 523264
    %30 = vst.msk [vmem:[#allocation2] sm:$0xff] %vm29, %v27
    %31 = vst.msk [vmem:[#allocation2 + $0x8] sm:$0xff] %vm29, %v27
    %32 = vst.msk [vmem:[#allocation2 + $0x10] sm:$0xff] %vm29, %v27
    %33 = vst.msk [vmem:[#allocation2 + $0x18] sm:$0xff] %vm29, %v27
    %34 = vst.msk [vmem:[#allocation2 + $0x20] sm:$0xff] %vm29, %v27
    %35 = vst.msk [vmem:[#allocation2 + $0x28] sm:$0xff] %vm29, %v27
  $region25: #{transformer_forward.56} parent=0 // pred_fallthru
    _
  %v36 = vld [vmem:[%s0] sm:$0xf]
  %v37 = vld [vmem:[%s0 + $0x4] sm:$0xf]
  %v38 = vld [vmem:[%s0 + $0x8] sm:$0xf]
  %v39 = vld [vmem:[%s0 + $0xc] sm:$0xf]
  %v40 = vld [vmem:[%s0 + $0x10] sm:$0xf]
  %v41 = vld [vmem:[%s0 + $0x14] sm:$0xf]
  %v42 = vld [vmem:[%s1] sm:$0xff]
  %v43 = vld [vmem:[%s1 + $0x8] sm:$0xff]
  %v44 = vld [vmem:[%s1 + $0x10] sm:$0xff]
  %v45 = vld [vmem:[%s1 + $0x18] sm:$0xff]
  %v46 = vld [vmem:[%s1 + $0x20] sm:$0xff]
  %v47 = vld [vmem:[%s1 + $0x28] sm:$0xff]
  %v48 = vld [vmem:[%s1 + $0x30] sm:$0xff]
  %v49 = vld [vmem:[%s1 + $0x38] sm:$0xff]
  %v50 = vld [vmem:[%s2] sm:$0x3]
  %v52 = vperm.slane %v50, 0
  %v53 = vperm.slane %v50, 1
  %v62 = vunpack.c.l.b16 %v36
  %v63 = vunpack.c.l.b16 %v37
  %v64 = vunpack.c.l.b16 %v38
  %v65 = vunpack.c.l.b16 %v39
  %v66 = vunpack.c.l.b16 %v40
  %v67 = vunpack.c.l.b16 %v41
  %v68 = vpack.c.b16 %v63, %v62
  %v69 = vpack.c.b16 %v65, %v64
  %v70 = vpack.c.b16 %v67, %v66
  %v79 = vunpack.c.l.b16 %v42
  %v80 = vunpack.c.h.b16 %v42
  %v81 = vunpack.c.l.b16 %v43
  %v82 = vunpack.c.h.b16 %v43
  %v83 = vunpack.c.l.b16 %v44
  %v84 = vunpack.c.h.b16 %v44
  %v85 = vunpack.c.l.b16 %v45
  %v86 = vunpack.c.h.b16 %v45
  %v87 = vunpack.c.l.b16 %v46
  %v88 = vunpack.c.h.b16 %v46
  %v89 = vunpack.c.l.b16 %v47
  %v90 = vunpack.c.h.b16 %v47
  %v91 = vunpack.c.l.b16 %v48
  %v92 = vunpack.c.h.b16 %v48
  %v93 = vunpack.c.l.b16 %v49
  %v94 = vunpack.c.h.b16 %v49
  %v95 = vpack.c.b16 %v81, %v79
  %v96 = vpack.c.b16 %v82, %v80
  %v97 = vpack.c.b16 %v85, %v83
  %v98 = vpack.c.b16 %v86, %v84
  %v99 = vpack.c.b16 %v89, %v87
  %v100 = vpack.c.b16 %v90, %v88
  %v101 = vpack.c.b16 %v93, %v91
  %v102 = vpack.c.b16 %v94, %v92
  %vm111 = vcmask 523264
  %v113 = vsel %vm111, %v68, 0
  %v116 = vsel %vm111, %v69, 0
  %v119 = vsel %vm111, %v70, 0
  %121 = vmatpush.bf16.msra.mxu0 0
  %122 = vmatpush.bf16.msra.mxu0 0
  %123 = vmatpush.bf16.msra.mxu0 0
  %124 = vmatpush.bf16.msra.mxu0 0
  %125 = vmatpush.bf16.msra.mxu0 %v101
  %126 = vmatpush.bf16.msra.mxu0 %v99
  %127 = vmatpush.bf16.msra.mxu0 %v97
  %128 = vmatpush.bf16.msra.mxu0 %v95
  %129 = vmatmul.bf16.gmra.mxu0 %v113
  %v130 = vpop.f32.mrf.mxu0
  %v131 = vadd.f32 %v52, %v130
  %v132 = vpop.f32.mrf.mxu0
  %v133 = vadd.f32 %v52, %v132
  %134 = vmatmul.bf16.gmra.mxu0 %v116
  %v135 = vpop.f32.mrf.mxu0
  %v136 = vadd.f32 %v52, %v135
  %v137 = vpop.f32.mrf.mxu0
  %v138 = vadd.f32 %v52, %v137
  %139 = vmatmul.bf16.gmra.mxu0 %v119
  %v140 = vpop.f32.mrf.mxu0
  %v141 = vadd.f32 %v52, %v140
  %v142 = vpop.f32.mrf.mxu0
  %v143 = vadd.f32 %v52, %v142
  %144 = vdwg.mxu0
  %145 = vmatpush.bf16.msra.mxu0 0
  %146 = vmatpush.bf16.msra.mxu0 0
  %147 = vmatpush.bf16.msra.mxu0 0
  %148 = vmatpush.bf16.msra.mxu0 0
  %149 = vmatpush.bf16.msra.mxu0 %v102
  %150 = vmatpush.bf16.msra.mxu0 %v100
  %151 = vmatpush.bf16.msra.mxu0 %v98
  %152 = vmatpush.bf16.msra.mxu0 %v96
  %153 = vmatmul.bf16.gmra.mxu0 %v113
  %v154 = vpop.f32.mrf.mxu0
  %v155 = vadd.f32 %v53, %v154
  %v156 = vpop.f32.mrf.mxu0
  %v157 = vadd.f32 %v53, %v156
  %158 = vmatmul.bf16.gmra.mxu0 %v116
  %v159 = vpop.f32.mrf.mxu0
  %v160 = vadd.f32 %v53, %v159
  %v161 = vpop.f32.mrf.mxu0
  %v162 = vadd.f32 %v53, %v161
  %163 = vmatmul.bf16.gmra.mxu0 %v119
  %v164 = vpop.f32.mrf.mxu0
  %v165 = vadd.f32 %v53, %v164
  %v166 = vpop.f32.mrf.mxu0
  %v167 = vadd.f32 %v53, %v166
  %168 = vdwg.mxu0
  %v169 = vmax.f32 %v131, 0.0
  %v170 = vmax.f32 %v155, 0.0
  %v171 = vmax.f32 %v133, 0.0
  %v172 = vmax.f32 %v157, 0.0
  %v173 = vmax.f32 %v136, 0.0
  %v174 = vmax.f32 %v160, 0.0
  %v175 = vmax.f32 %v138, 0.0
  %v176 = vmax.f32 %v162, 0.0
  %v177 = vmax.f32 %v141, 0.0
  %v178 = vmax.f32 %v165, 0.0
  %v179 = vmax.f32 %v143, 0.0
  %v180 = vmax.f32 %v167, 0.0
  %v181 = vpack.c.bf16 %v171, %v169
  %v182 = vpack.c.bf16 %v172, %v170
  %v183 = vpack.c.bf16 %v175, %v173
  %v184 = vpack.c.bf16 %v176, %v174
  %v185 = vpack.c.bf16 %v179, %v177
  %v186 = vpack.c.bf16 %v180, %v178
  %v187 = vld [vmem:[#allocation2] sm:$0xff]
  %v188 = vld [vmem:[#allocation2 + $0x8] sm:$0xff]
  %v189 = vld [vmem:[#allocation2 + $0x10] sm:$0xff]
  %v190 = vld [vmem:[#allocation2 + $0x18] sm:$0xff]
  %v191 = vld [vmem:[#allocation2 + $0x20] sm:$0xff]
  %v192 = vld [vmem:[#allocation2 + $0x28] sm:$0xff]
  %v193 = vld [vmem:[%s3] sm:$0xf]
  %v194 = vld [vmem:[%s3 + $0x4] sm:$0xf]
  %v195 = vld [vmem:[%s3 + $0x8] sm:$0xf]
  %v196 = vld [vmem:[%s3 + $0xc] sm:$0xf]
  %v197 = vld [vmem:[%s3 + $0x10] sm:$0xf]
  %v198 = vld [vmem:[%s3 + $0x14] sm:$0xf]
  %v199 = vld [vmem:[%s3 + $0x18] sm:$0xf]
  %v200 = vld [vmem:[%s3 + $0x1c] sm:$0xf]
  %v201 = vld [vmem:[%s3 + $0x20] sm:$0xf]
  %v202 = vld [vmem:[%s3 + $0x24] sm:$0xf]
  %v203 = vld [vmem:[%s3 + $0x28] sm:$0xf]
  %v204 = vld [vmem:[%s3 + $0x2c] sm:$0xf]
  %v205 = vld [vmem:[%s3 + $0x30] sm:$0xf]
  %v206 = vld [vmem:[%s3 + $0x34] sm:$0xf]
  %v207 = vld [vmem:[%s3 + $0x38] sm:$0xf]
  %v208 = vld [vmem:[%s3 + $0x3c] sm:$0xf]
  %v209 = vld [vmem:[%s3 + $0x40] sm:$0xf]
  %v210 = vld [vmem:[%s3 + $0x44] sm:$0xf]
  %v211 = vld [vmem:[%s3 + $0x48] sm:$0xf]
  %v212 = vld [vmem:[%s3 + $0x4c] sm:$0xf]
  %v213 = vld [vmem:[%s3 + $0x50] sm:$0xf]
  %v214 = vld [vmem:[%s3 + $0x54] sm:$0xf]
  %v215 = vld [vmem:[%s3 + $0x58] sm:$0xf]
  %v216 = vld [vmem:[%s3 + $0x5c] sm:$0xf]
  %v217 = vld [vmem:[%s3 + $0x60] sm:$0xf]
  %v218 = vld [vmem:[%s3 + $0x64] sm:$0xf]
  %v219 = vld [vmem:[%s3 + $0x68] sm:$0xf]
  %v220 = vld [vmem:[%s3 + $0x6c] sm:$0xf]
  %v221 = vld [vmem:[%s3 + $0x70] sm:$0xf]
  %v222 = vld [vmem:[%s3 + $0x74] sm:$0xf]
  %v223 = vld [vmem:[%s3 + $0x78] sm:$0xf]
  %v224 = vld [vmem:[%s3 + $0x7c] sm:$0xf]
  %v257 = vunpack.c.l.b16 %v193
  %v258 = vunpack.c.l.b16 %v194
  %v259 = vunpack.c.l.b16 %v195
  %v260 = vunpack.c.l.b16 %v196
  %v261 = vunpack.c.l.b16 %v197
  %v262 = vunpack.c.l.b16 %v198
  %v263 = vunpack.c.l.b16 %v199
  %v264 = vunpack.c.l.b16 %v200
  %v265 = vunpack.c.l.b16 %v201
  %v266 = vunpack.c.l.b16 %v202
  %v267 = vunpack.c.l.b16 %v203
  %v268 = vunpack.c.l.b16 %v204
  %v269 = vunpack.c.l.b16 %v205
  %v270 = vunpack.c.l.b16 %v206
  %v271 = vunpack.c.l.b16 %v207
  %v272 = vunpack.c.l.b16 %v208
  %v273 = vunpack.c.l.b16 %v209
  %v274 = vunpack.c.l.b16 %v210
  %v275 = vunpack.c.l.b16 %v211
  %v276 = vunpack.c.l.b16 %v212
  %v277 = vunpack.c.l.b16 %v213
  %v278 = vunpack.c.l.b16 %v214
  %v279 = vunpack.c.l.b16 %v215
  %v280 = vunpack.c.l.b16 %v216
  %v281 = vunpack.c.l.b16 %v217
  %v282 = vunpack.c.l.b16 %v218
  %v283 = vunpack.c.l.b16 %v219
  %v284 = vunpack.c.l.b16 %v220
  %v285 = vunpack.c.l.b16 %v221
  %v286 = vunpack.c.l.b16 %v222
  %v287 = vunpack.c.l.b16 %v223
  %v288 = vunpack.c.l.b16 %v224
  %v289 = vpack.c.b16 %v258, %v257
  %v290 = vpack.c.b16 %v260, %v259
  %v291 = vpack.c.b16 %v262, %v261
  %v292 = vpack.c.b16 %v264, %v263
  %v293 = vpack.c.b16 %v266, %v265
  %v294 = vpack.c.b16 %v268, %v267
  %v295 = vpack.c.b16 %v270, %v269
  %v296 = vpack.c.b16 %v272, %v271
  %v297 = vpack.c.b16 %v274, %v273
  %v298 = vpack.c.b16 %v276, %v275
  %v299 = vpack.c.b16 %v278, %v277
  %v300 = vpack.c.b16 %v280, %v279
  %v301 = vpack.c.b16 %v282, %v281
  %v302 = vpack.c.b16 %v284, %v283
  %v303 = vpack.c.b16 %v286, %v285
  %v304 = vpack.c.b16 %v288, %v287
  %321 = vmatpush.bf16.msra.mxu0 %v296
  %322 = vmatpush.bf16.msra.mxu0 %v295
  %323 = vmatpush.bf16.msra.mxu0 %v294
  %324 = vmatpush.bf16.msra.mxu0 %v293
  %325 = vmatpush.bf16.msra.mxu0 %v292
  %326 = vmatpush.bf16.msra.mxu0 %v291
  %327 = vmatpush.bf16.msra.mxu0 %v290
  %328 = vmatpush.bf16.msra.mxu0 %v289
  %329 = vmatmul.bf16.gmra.mxu0 %v181
  %v330 = vpop.f32.mrf.mxu0
  %v331 = vadd.f32 0.0, %v330
  %v332 = vpop.f32.mrf.mxu0
  %v333 = vadd.f32 0.0, %v332
  %334 = vmatmul.bf16.gmra.mxu0 %v183
  %v335 = vpop.f32.mrf.mxu0
  %v336 = vadd.f32 0.0, %v335
  %v337 = vpop.f32.mrf.mxu0
  %v338 = vadd.f32 0.0, %v337
  %339 = vmatmul.bf16.gmra.mxu0 %v185
  %v340 = vpop.f32.mrf.mxu0
  %v341 = vadd.f32 0.0, %v340
  %v342 = vpop.f32.mrf.mxu0
  %v343 = vadd.f32 0.0, %v342
  %344 = vdwg.mxu0
  %345 = vmatpush.bf16.msra.mxu0 %v304
  %346 = vmatpush.bf16.msra.mxu0 %v303
  %347 = vmatpush.bf16.msra.mxu0 %v302
  %348 = vmatpush.bf16.msra.mxu0 %v301
  %349 = vmatpush.bf16.msra.mxu0 %v300
  %350 = vmatpush.bf16.msra.mxu0 %v299
  %351 = vmatpush.bf16.msra.mxu0 %v298
  %352 = vmatpush.bf16.msra.mxu0 %v297
  %353 = vmatmul.bf16.gmra.mxu0 %v182
  %v354 = vpop.f32.mrf.mxu0
  %v355 = vadd.f32 %v331, %v354
  %v356 = vpop.f32.mrf.mxu0
  %v357 = vadd.f32 %v333, %v356
  %358 = vmatmul.bf16.gmra.mxu0 %v184
  %v359 = vpop.f32.mrf.mxu0
  %v360 = vadd.f32 %v336, %v359
  %v361 = vpop.f32.mrf.mxu0
  %v362 = vadd.f32 %v338, %v361
  %363 = vmatmul.bf16.gmra.mxu0 %v186
  %v364 = vpop.f32.mrf.mxu0
  %v365 = vadd.f32 %v341, %v364
  %v366 = vpop.f32.mrf.mxu0
  %v367 = vadd.f32 %v343, %v366
  %368 = vdwg.mxu0
  %v369 = vadd.f32 %v187, %v355
  %v370 = vadd.f32 %v188, %v357
  %v371 = vadd.f32 %v189, %v360
  %v372 = vadd.f32 %v190, %v362
  %v373 = vadd.f32 %v191, %v365
  %v374 = vadd.f32 %v192, %v367
  %375 = vst.msk [vmem:[#allocation2] sm:$0xff] %vm111, %v369
  %376 = vst.msk [vmem:[#allocation2 + $0x8] sm:$0xff] %vm111, %v370
  %377 = vst.msk [vmem:[#allocation2 + $0x10] sm:$0xff] %vm111, %v371
  %378 = vst.msk [vmem:[#allocation2 + $0x18] sm:$0xff] %vm111, %v372
  %379 = vst.msk [vmem:[#allocation2 + $0x20] sm:$0xff] %vm111, %v373
  %380 = vst.msk [vmem:[#allocation2 + $0x28] sm:$0xff] %vm111, %v374
  // Predicated region
  $region26: #{transformer_forward.56} parent=0 // pred_check
    %p381 = pneg %p21
  $region27: #{transformer_forward.56} parent=0 // pred_check_branch
    %383 = sbr.rel (%p381) target = $region29
  $region28: #{transformer_forward.56} parent=0 // pred_region
    %v384 = vld [vmem:[#allocation2] sm:$0xff]
    %v385 = vld [vmem:[#allocation2 + $0x8] sm:$0xff]
    %v386 = vld [vmem:[#allocation2 + $0x10] sm:$0xff]
    %v387 = vld [vmem:[#allocation2 + $0x18] sm:$0xff]
    %v388 = vld [vmem:[#allocation2 + $0x20] sm:$0xff]
    %v389 = vld [vmem:[#allocation2 + $0x28] sm:$0xff]
    %v390 = vpack.c.bf16 %v384, %v384
    %v391 = vpack.c.bf16 %v385, %v385
    %v392 = vpack.c.bf16 %v386, %v386
    %v393 = vpack.c.bf16 %v387, %v387
    %v394 = vpack.c.bf16 %v388, %v388
    %v395 = vpack.c.bf16 %v389, %v389
    %vm396 = vcmask 519168
    %397 = vst.msk [vmem:[%s5] sm:$0xf] %vm396, %v390
    %398 = vst.msk [vmem:[%s5 + $0x4] sm:$0xf] %vm396, %v391
    %399 = vst.msk [vmem:[%s5 + $0x8] sm:$0xf] %vm396, %v392
    %400 = vst.msk [vmem:[%s5 + $0xc] sm:$0xf] %vm396, %v393
    %401 = vst.msk [vmem:[%s5 + $0x10] sm:$0xf] %vm396, %v394
    %402 = vst.msk [vmem:[%s5 + $0x14] sm:$0xf] %vm396, %v395
  $region29: #{transformer_forward.56} parent=0 // pred_fallthru
    _
  // Predicated region
  $region30: #{transformer_forward.56} parent=0 // pred_check
    _
  $region31: #{transformer_forward.56} parent=0 // pred_check_branch
    %404 = sbr.rel (0) target = $region33
  $region32: #{transformer_forward.56} parent=0 // pred_region
    _
  $region33: #{transformer_forward.56} parent=0 // pred_fallthru
    _
  // Predicated region
  $region34: #{transformer_forward.56} parent=0 // pred_check
    _
  $region35: #{transformer_forward.56} parent=0 // pred_check_branch
    %406 = sbr.rel (0) target = $region37
  $region36: #{transformer_forward.56} parent=0 // pred_region
    _
  $region37: #{transformer_forward.56} parent=0 // pred_fallthru
    _

// kernel: transformer_forward.53
$region0: #{transformer_forward.53}
  #allocation0 [shape = 'u32[]', space=smem, size = 0x4, offset = 0x4, fixed_abs, tag = 'smem constant byte address 0x4 - core index']
  #allocation1 [shape = 'u32[72,128]{1,0:T(1,128)}', space=vmem, size = 0x9000, scoped, tag = 'internal scratch']
  #allocation2 [shape = 'f32[8,24,1]{2,1,0:T(8,128)}', space=vmem, size = 0x18000, scoped, tag = 'scratch operand']
  #allocation3 [shape = 'f32[8,24,1]{2,1,0:T(8,128)}', space=vmem, size = 0x18000, scoped, tag = 'scratch operand']
  #allocation4 [shape = 'f32[8,24,16]{2,1,0:T(8,128)}', space=vmem, size = 0x18000, scoped, tag = 'scratch operand']
  %s0 = inlined_call_operand.vmem [shape: bf16[8,24,16], index: 0, kind: input, shape index: {}]
  %s1 = inlined_call_operand.vmem [shape: bf16[8,16,16], index: 1, kind: input, shape index: {}]
  %s2 = inlined_call_operand.vmem [shape: bf16[8,16,16], index: 2, kind: input, shape index: {}]
  %s3 = inlined_call_operand.vmem [shape: bf16[8,24,16], index: 3, kind: output, shape index: {}]
  %s4 = sld [smem:[#allocation0]]
  $region30: #{transformer_forward.53} parent=0
    _
  %s6 = ssub.s32 1, %s4
  %s7 = scalar_select 0, %s6, %s4
  // Predicated region
  $region2: #{transformer_forward.53} parent=0 // pred_check
    _
  $region3: #{transformer_forward.53} parent=0 // pred_check_branch
    %9 = sbr.rel (0) target = $region5
  $region4: #{transformer_forward.53} parent=0 // pred_region
    _
  $region5: #{transformer_forward.53} parent=0 // pred_fallthru
    _
  // Predicated region
  $region6: #{transformer_forward.53} parent=0 // pred_check
    _
  $region7: #{transformer_forward.53} parent=0 // pred_check_branch
    %11 = sbr.rel (0) target = $region9
  $region8: #{transformer_forward.53} parent=0 // pred_region
    _
  $region9: #{transformer_forward.53} parent=0 // pred_fallthru
    _
  // Predicated region
  $region10: #{transformer_forward.53} parent=0 // pred_check
    _
  $region11: #{transformer_forward.53} parent=0 // pred_check_branch
    %13 = sbr.rel (0) target = $region13
  $region12: #{transformer_forward.53} parent=0 // pred_region
    _
  $region13: #{transformer_forward.53} parent=0 // pred_fallthru
    _
  %p15 = scmp.eq.s32.totalorder 0, 0
  // Predicated region
  $region14: #{transformer_forward.53} parent=0 // pred_check
    %p16 = pneg %p15
  $region15: #{transformer_forward.53} parent=0 // pred_check_branch
    %18 = sbr.rel (%p16) target = $region17
  $region16: #{transformer_forward.53} parent=0 // pred_region
    %vm19 = vcmask 7168
    %20 = vst.msk [vmem:[#allocation2] sm:$0xff] %vm19, -1e+30
    %21 = vst.msk [vmem:[#allocation2 + $0x8] sm:$0xff] %vm19, -1e+30
    %22 = vst.msk [vmem:[#allocation2 + $0x10] sm:$0xff] %vm19, -1e+30
    %23 = vst.msk [vmem:[#allocation2 + $0x18] sm:$0xff] %vm19, -1e+30
    %24 = vst.msk [vmem:[#allocation2 + $0x20] sm:$0xff] %vm19, -1e+30
    %25 = vst.msk [vmem:[#allocation2 + $0x28] sm:$0xff] %vm19, -1e+30
    %26 = vst.msk [vmem:[#allocation2 + $0x30] sm:$0xff] %vm19, -1e+30
    %27 = vst.msk [vmem:[#allocation2 + $0x38] sm:$0xff] %vm19, -1e+30
    %28 = vst.msk [vmem:[#allocation2 + $0x40] sm:$0xff] %vm19, -1e+30
    %29 = vst.msk [vmem:[#allocation2 + $0x48] sm:$0xff] %vm19, -1e+30
    %30 = vst.msk [vmem:[#allocation2 + $0x50] sm:$0xff] %vm19, -1e+30
    %31 = vst.msk [vmem:[#allocation2 + $0x58] sm:$0xff] %vm19, -1e+30
    %32 = vst.msk [vmem:[#allocation2 + $0x60] sm:$0xff] %vm19, -1e+30
    %33 = vst.msk [vmem:[#allocation2 + $0x68] sm:$0xff] %vm19, -1e+30
    %34 = vst.msk [vmem:[#allocation2 + $0x70] sm:$0xff] %vm19, -1e+30
    %35 = vst.msk [vmem:[#allocation2 + $0x78] sm:$0xff] %vm19, -1e+30
    %36 = vst.msk [vmem:[#allocation2 + $0x80] sm:$0xff] %vm19, -1e+30
    %37 = vst.msk [vmem:[#allocation2 + $0x88] sm:$0xff] %vm19, -1e+30
    %38 = vst.msk [vmem:[#allocation2 + $0x90] sm:$0xff] %vm19, -1e+30
    %39 = vst.msk [vmem:[#allocation2 + $0x98] sm:$0xff] %vm19, -1e+30
    %40 = vst.msk [vmem:[#allocation2 + $0xa0] sm:$0xff] %vm19, -1e+30
    %41 = vst.msk [vmem:[#allocation2 + $0xa8] sm:$0xff] %vm19, -1e+30
    %42 = vst.msk [vmem:[#allocation2 + $0xb0] sm:$0xff] %vm19, -1e+30
    %43 = vst.msk [vmem:[#allocation2 + $0xb8] sm:$0xff] %vm19, -1e+30
    %44 = vst.msk [vmem:[#allocation3] sm:$0xff] %vm19, 0.0
    %45 = vst.msk [vmem:[#allocation3 + $0x8] sm:$0xff] %vm19, 0.0
    %46 = vst.msk [vmem:[#allocation3 + $0x10] sm:$0xff] %vm19, 0.0
    %47 = vst.msk [vmem:[#allocation3 + $0x18] sm:$0xff] %vm19, 0.0
    %48 = vst.msk [vmem:[#allocation3 + $0x20] sm:$0xff] %vm19, 0.0
    %49 = vst.msk [vmem:[#allocation3 + $0x28] sm:$0xff] %vm19, 0.0
    %50 = vst.msk [vmem:[#allocation3 + $0x30] sm:$0xff] %vm19, 0.0
    %51 = vst.msk [vmem:[#allocation3 + $0x38] sm:$0xff] %vm19, 0.0
    %52 = vst.msk [vmem:[#allocation3 + $0x40] sm:$0xff] %vm19, 0.0
    %53 = vst.msk [vmem:[#allocation3 + $0x48] sm:$0xff] %vm19, 0.0
    %54 = vst.msk [vmem:[#allocation3 + $0x50] sm:$0xff] %vm19, 0.0
    %55 = vst.msk [vmem:[#allocation3 + $0x58] sm:$0xff] %vm19, 0.0
    %56 = vst.msk [vmem:[#allocation3 + $0x60] sm:$0xff] %vm19, 0.0
    %57 = vst.msk [vmem:[#allocation3 + $0x68] sm:$0xff] %vm19, 0.0
    %58 = vst.msk [vmem:[#allocation3 + $0x70] sm:$0xff] %vm19, 0.0
    %59 = vst.msk [vmem:[#allocation3 + $0x78] sm:$0xff] %vm19, 0.0
    %60 = vst.msk [vmem:[#allocation3 + $0x80] sm:$0xff] %vm19, 0.0
    %61 = vst.msk [vmem:[#allocation3 + $0x88] sm:$0xff] %vm19, 0.0
    %62 = vst.msk [vmem:[#allocation3 + $0x90] sm:$0xff] %vm19, 0.0
    %63 = vst.msk [vmem:[#allocation3 + $0x98] sm:$0xff] %vm19, 0.0
    %64 = vst.msk [vmem:[#allocation3 + $0xa0] sm:$0xff] %vm19, 0.0
    %65 = vst.msk [vmem:[#allocation3 + $0xa8] sm:$0xff] %vm19, 0.0
    %66 = vst.msk [vmem:[#allocation3 + $0xb0] sm:$0xff] %vm19, 0.0
    %67 = vst.msk [vmem:[#allocation3 + $0xb8] sm:$0xff] %vm19, 0.0
    %vm68 = vcmask 130048
    %69 = vst.msk [vmem:[#allocation4] sm:$0xff] %vm68, 0.0
    %70 = vst.msk [vmem:[#allocation4 + $0x8] sm:$0xff] %vm68, 0.0
    %71 = vst.msk [vmem:[#allocation4 + $0x10] sm:$0xff] %vm68, 0.0
    %72 = vst.msk [vmem:[#allocation4 + $0x18] sm:$0xff] %vm68, 0.0
    %73 = vst.msk [vmem:[#allocation4 + $0x20] sm:$0xff] %vm68, 0.0
    %74 = vst.msk [vmem:[#allocation4 + $0x28] sm:$0xff] %vm68, 0.0
    %75 = vst.msk [vmem:[#allocation4 + $0x30] sm:$0xff] %vm68, 0.0
    %76 = vst.msk [vmem:[#allocation4 + $0x38] sm:$0xff] %vm68, 0.0
    %77 = vst.msk [vmem:[#allocation4 + $0x40] sm:$0xff] %vm68, 0.0
    %78 = vst.msk [vmem:[#allocation4 + $0x48] sm:$0xff] %vm68, 0.0
    %79 = vst.msk [vmem:[#allocation4 + $0x50] sm:$0xff] %vm68, 0.0
    %80 = vst.msk [vmem:[#allocation4 + $0x58] sm:$0xff] %vm68, 0.0
    %81 = vst.msk [vmem:[#allocation4 + $0x60] sm:$0xff] %vm68, 0.0
    %82 = vst.msk [vmem:[#allocation4 + $0x68] sm:$0xff] %vm68, 0.0
    %83 = vst.msk [vmem:[#allocation4 + $0x70] sm:$0xff] %vm68, 0.0
    %84 = vst.msk [vmem:[#allocation4 + $0x78] sm:$0xff] %vm68, 0.0
    %85 = vst.msk [vmem:[#allocation4 + $0x80] sm:$0xff] %vm68, 0.0
    %86 = vst.msk [vmem:[#allocation4 + $0x88] sm:$0xff] %vm68, 0.0
    %87 = vst.msk [vmem:[#allocation4 + $0x90] sm:$0xff] %vm68, 0.0
    %88 = vst.msk [vmem:[#allocation4 + $0x98] sm:$0xff] %vm68, 0.0
    %89 = vst.msk [vmem:[#allocation4 + $0xa0] sm:$0xff] %vm68, 0.0
    %90 = vst.msk [vmem:[#allocation4 + $0xa8] sm:$0xff] %vm68, 0.0
    %91 = vst.msk [vmem:[#allocation4 + $0xb0] sm:$0xff] %vm68, 0.0
    %92 = vst.msk [vmem:[#allocation4 + $0xb8] sm:$0xff] %vm68, 0.0
  $region17: #{transformer_forward.53} parent=0 // pred_fallthru
    _
  %v93 = vld [vmem:[%s0] sm:$0xf]
  %v94 = vld [vmem:[%s0 + $0x4] sm:$0xf]
  %v95 = vld [vmem:[%s0 + $0x8] sm:$0xf]
  %v96 = vld [vmem:[%s0 + $0xc] sm:$0xf]
  %v97 = vld [vmem:[%s0 + $0x10] sm:$0xf]
  %v98 = vld [vmem:[%s0 + $0x14] sm:$0xf]
  %v99 = vld [vmem:[%s0 + $0x18] sm:$0xf]
  %v100 = vld [vmem:[%s0 + $0x1c] sm:$0xf]
  %v101 = vld [vmem:[%s0 + $0x20] sm:$0xf]
  %v102 = vld [vmem:[%s0 + $0x24] sm:$0xf]
  %v103 = vld [vmem:[%s0 + $0x28] sm:$0xf]
  %v104 = vld [vmem:[%s0 + $0x2c] sm:$0xf]
  %v105 = vld [vmem:[%s0 + $0x30] sm:$0xf]
  %v106 = vld [vmem:[%s0 + $0x34] sm:$0xf]
  %v107 = vld [vmem:[%s0 + $0x38] sm:$0xf]
  %v108 = vld [vmem:[%s0 + $0x3c] sm:$0xf]
  %v109 = vld [vmem:[%s0 + $0x40] sm:$0xf]
  %v110 = vld [vmem:[%s0 + $0x44] sm:$0xf]
  %v111 = vld [vmem:[%s0 + $0x48] sm:$0xf]
  %v112 = vld [vmem:[%s0 + $0x4c] sm:$0xf]
  %v113 = vld [vmem:[%s0 + $0x50] sm:$0xf]
  %v114 = vld [vmem:[%s0 + $0x54] sm:$0xf]
  %v115 = vld [vmem:[%s0 + $0x58] sm:$0xf]
  %v116 = vld [vmem:[%s0 + $0x5c] sm:$0xf]
  %v117 = vld [vmem:[%s1] sm:$0xf]
  %v118 = vld [vmem:[%s1 + $0x4] sm:$0xf]
  %v119 = vld [vmem:[%s1 + $0x8] sm:$0xf]
  %v120 = vld [vmem:[%s1 + $0xc] sm:$0xf]
  %v121 = vld [vmem:[%s1 + $0x10] sm:$0xf]
  %v122 = vld [vmem:[%s1 + $0x14] sm:$0xf]
  %v123 = vld [vmem:[%s1 + $0x18] sm:$0xf]
  %v124 = vld [vmem:[%s1 + $0x1c] sm:$0xf]
  %v125 = vld [vmem:[%s1 + $0x20] sm:$0xf]
  %v126 = vld [vmem:[%s1 + $0x24] sm:$0xf]
  %v127 = vld [vmem:[%s1 + $0x28] sm:$0xf]
  %v128 = vld [vmem:[%s1 + $0x2c] sm:$0xf]
  %v129 = vld [vmem:[%s1 + $0x30] sm:$0xf]
  %v130 = vld [vmem:[%s1 + $0x34] sm:$0xf]
  %v131 = vld [vmem:[%s1 + $0x38] sm:$0xf]
  %v132 = vld [vmem:[%s1 + $0x3c] sm:$0xf]
  %v136 = vunpack.c.l.b16 %v93
  %v137 = vunpack.c.l.b16 %v94
  %v138 = vunpack.c.l.b16 %v95
  %v139 = vpack.c.b16 %v137, %v136
  %v140 = vpack.c.b16 %v138, %v138
  %v143 = vunpack.c.l.b16 %v117
  %v144 = vunpack.c.l.b16 %v118
  %v145 = vpack.c.b16 %v144, %v143
  %vm146 = vcmask 130048
  %v148 = vsel %vm146, %v139, 0
  %v151 = vsel %vm146, %v140, 0
  %v154 = vsel %vm146, %v145, 0
  %156 = vmatpush.bf16.xpose.msra.mxu0 0
  %157 = vmatpush.bf16.xpose.msra.mxu0 0
  %158 = vmatpush.bf16.xpose.msra.mxu0 0
  %159 = vmatpush.bf16.xpose.msra.mxu0 0
  %160 = vmatpush.bf16.xpose.msra.mxu0 0
  %161 = vmatpush.bf16.xpose.msra.mxu0 0
  %162 = vmatpush.bf16.xpose.msra.mxu0 0
  %163 = vmatpush.bf16.xpose.msra.mxu0 %v154
  %164 = vmatmul.bf16.gmra.mxu0 %v148
  %v165 = vpop.f32.mrf.mxu0
  %v166 = vadd.f32 0.0, %v165
  %v167 = vpop.f32.mrf.mxu0
  %v168 = vadd.f32 0.0, %v167
  %169 = vmatmul.bf16.gmra.mxu0 %v151
  %v170 = vpop.f32.mrf.mxu0
  %v171 = vadd.f32 0.0, %v170
  %v172 = vpop.f32.mrf.mxu0
  %173 = vdwg.mxu0
  %v177 = vunpack.c.l.b16 %v96
  %v178 = vunpack.c.l.b16 %v97
  %v179 = vunpack.c.l.b16 %v98
  %v180 = vpack.c.b16 %v178, %v177
  %v181 = vpack.c.b16 %v179, %v179
  %v184 = vunpack.c.l.b16 %v119
  %v185 = vunpack.c.l.b16 %v120
  %v186 = vpack.c.b16 %v185, %v184
  %v188 = vsel %vm146, %v180, 0
  %v191 = vsel %vm146, %v181, 0
  %v194 = vsel %vm146, %v186, 0
  %196 = vmatpush.bf16.xpose.msra.mxu0 0
  %197 = vmatpush.bf16.xpose.msra.mxu0 0
  %198 = vmatpush.bf16.xpose.msra.mxu0 0
  %199 = vmatpush.bf16.xpose.msra.mxu0 0
  %200 = vmatpush.bf16.xpose.msra.mxu0 0
  %201 = vmatpush.bf16.xpose.msra.mxu0 0
  %202 = vmatpush.bf16.xpose.msra.mxu0 0
  %203 = vmatpush.bf16.xpose.msra.mxu0 %v194
  %204 = vmatmul.bf16.gmra.mxu0 %v188
  %v205 = vpop.f32.mrf.mxu0
  %v206 = vadd.f32 0.0, %v205
  %v207 = vpop.f32.mrf.mxu0
  %v208 = vadd.f32 0.0, %v207
  %209 = vmatmul.bf16.gmra.mxu0 %v191
  %v210 = vpop.f32.mrf.mxu0
  %v211 = vadd.f32 0.0, %v210
  %v212 = vpop.f32.mrf.mxu0
  %213 = vdwg.mxu0
  %v217 = vunpack.c.l.b16 %v99
  %v218 = vunpack.c.l.b16 %v100
  %v219 = vunpack.c.l.b16 %v101
  %v220 = vpack.c.b16 %v218, %v217
  %v221 = vpack.c.b16 %v219, %v219
  %v224 = vunpack.c.l.b16 %v121
  %v225 = vunpack.c.l.b16 %v122
  %v226 = vpack.c.b16 %v225, %v224
  %v228 = vsel %vm146, %v220, 0
  %v231 = vsel %vm146, %v221, 0
  %v234 = vsel %vm146, %v226, 0
  %236 = vmatpush.bf16.xpose.msra.mxu0 0
  %237 = vmatpush.bf16.xpose.msra.mxu0 0
  %238 = vmatpush.bf16.xpose.msra.mxu0 0
  %239 = vmatpush.bf16.xpose.msra.mxu0 0
  %240 = vmatpush.bf16.xpose.msra.mxu0 0
  %241 = vmatpush.bf16.xpose.msra.mxu0 0
  %242 = vmatpush.bf16.xpose.msra.mxu0 0
  %243 = vmatpush.bf16.xpose.msra.mxu0 %v234
  %244 = vmatmul.bf16.gmra.mxu0 %v228
  %v245 = vpop.f32.mrf.mxu0
  %v246 = vadd.f32 0.0, %v245
  %v247 = vpop.f32.mrf.mxu0
  %v248 = vadd.f32 0.0, %v247
  %249 = vmatmul.bf16.gmra.mxu0 %v231
  %v250 = vpop.f32.mrf.mxu0
  %v251 = vadd.f32 0.0, %v250
  %v252 = vpop.f32.mrf.mxu0
  %253 = vdwg.mxu0
  %v257 = vunpack.c.l.b16 %v102
  %v258 = vunpack.c.l.b16 %v103
  %v259 = vunpack.c.l.b16 %v104
  %v260 = vpack.c.b16 %v258, %v257
  %v261 = vpack.c.b16 %v259, %v259
  %v264 = vunpack.c.l.b16 %v123
  %v265 = vunpack.c.l.b16 %v124
  %v266 = vpack.c.b16 %v265, %v264
  %v268 = vsel %vm146, %v260, 0
  %v271 = vsel %vm146, %v261, 0
  %v274 = vsel %vm146, %v266, 0
  %276 = vmatpush.bf16.xpose.msra.mxu0 0
  %277 = vmatpush.bf16.xpose.msra.mxu0 0
  %278 = vmatpush.bf16.xpose.msra.mxu0 0
  %279 = vmatpush.bf16.xpose.msra.mxu0 0
  %280 = vmatpush.bf16.xpose.msra.mxu0 0
  %281 = vmatpush.bf16.xpose.msra.mxu0 0
  %282 = vmatpush.bf16.xpose.msra.mxu0 0
  %283 = vmatpush.bf16.xpose.msra.mxu0 %v274
  %284 = vmatmul.bf16.gmra.mxu0 %v268
  %v285 = vpop.f32.mrf.mxu0
  %v286 = vadd.f32 0.0, %v285
  %v287 = vpop.f32.mrf.mxu0
  %v288 = vadd.f32 0.0, %v287
  %289 = vmatmul.bf16.gmra.mxu0 %v271
  %v290 = vpop.f32.mrf.mxu0
  %v291 = vadd.f32 0.0, %v290
  %v292 = vpop.f32.mrf.mxu0
  %293 = vdwg.mxu0
  %v297 = vunpack.c.l.b16 %v105
  %v298 = vunpack.c.l.b16 %v106
  %v299 = vunpack.c.l.b16 %v107
  %v300 = vpack.c.b16 %v298, %v297
  %v301 = vpack.c.b16 %v299, %v299
  %v304 = vunpack.c.l.b16 %v125
  %v305 = vunpack.c.l.b16 %v126
  %v306 = vpack.c.b16 %v305, %v304
  %v308 = vsel %vm146, %v300, 0
  %v311 = vsel %vm146, %v301, 0
  %v314 = vsel %vm146, %v306, 0
  %316 = vmatpush.bf16.xpose.msra.mxu0 0
  %317 = vmatpush.bf16.xpose.msra.mxu0 0
  %318 = vmatpush.bf16.xpose.msra.mxu0 0
  %319 = vmatpush.bf16.xpose.msra.mxu0 0
  %320 = vmatpush.bf16.xpose.msra.mxu0 0
  %321 = vmatpush.bf16.xpose.msra.mxu0 0
  %322 = vmatpush.bf16.xpose.msra.mxu0 0
  %323 = vmatpush.bf16.xpose.msra.mxu0 %v314
  %324 = vmatmul.bf16.gmra.mxu0 %v308
  %v325 = vpop.f32.mrf.mxu0
  %v326 = vadd.f32 0.0, %v325
  %v327 = vpop.f32.mrf.mxu0
  %v328 = vadd.f32 0.0, %v327
  %329 = vmatmul.bf16.gmra.mxu0 %v311
  %v330 = vpop.f32.mrf.mxu0
  %v331 = vadd.f32 0.0, %v330
  %v332 = vpop.f32.mrf.mxu0
  %333 = vdwg.mxu0
  %v337 = vunpack.c.l.b16 %v108
  %v338 = vunpack.c.l.b16 %v109
  %v339 = vunpack.c.l.b16 %v110
  %v340 = vpack.c.b16 %v338, %v337
  %v341 = vpack.c.b16 %v339, %v339
  %v344 = vunpack.c.l.b16 %v127
  %v345 = vunpack.c.l.b16 %v128
  %v346 = vpack.c.b16 %v345, %v344
  %v348 = vsel %vm146, %v340, 0
  %v351 = vsel %vm146, %v341, 0
  %v354 = vsel %vm146, %v346, 0
  %356 = vmatpush.bf16.xpose.msra.mxu0 0
  %357 = vmatpush.bf16.xpose.msra.mxu0 0
  %358 = vmatpush.bf16.xpose.msra.mxu0 0
  %359 = vmatpush.bf16.xpose.msra.mxu0 0
  %360 = vmatpush.bf16.xpose.msra.mxu0 0
  %361 = vmatpush.bf16.xpose.msra.mxu0 0
  %362 = vmatpush.bf16.xpose.msra.mxu0 0
  %363 = vmatpush.bf16.xpose.msra.mxu0 %v354
  %364 = vmatmul.bf16.gmra.mxu0 %v348
  %v365 = vpop.f32.mrf.mxu0
  %v366 = vadd.f32 0.0, %v365
  %v367 = vpop.f32.mrf.mxu0
  %v368 = vadd.f32 0.0, %v367
  %369 = vmatmul.bf16.gmra.mxu0 %v351
  %v370 = vpop.f32.mrf.mxu0
  %v371 = vadd.f32 0.0, %v370
  %v372 = vpop.f32.mrf.mxu0
  %373 = vdwg.mxu0
  %v377 = vunpack.c.l.b16 %v111
  %v378 = vunpack.c.l.b16 %v112
  %v379 = vunpack.c.l.b16 %v113
  %v380 = vpack.c.b16 %v378, %v377
  %v381 = vpack.c.b16 %v379, %v379
  %v384 = vunpack.c.l.b16 %v129
  %v385 = vunpack.c.l.b16 %v130
  %v386 = vpack.c.b16 %v385, %v384
  %v388 = vsel %vm146, %v380, 0
  %v391 = vsel %vm146, %v381, 0
  %v394 = vsel %vm146, %v386, 0
  %396 = vmatpush.bf16.xpose.msra.mxu0 0
  %397 = vmatpush.bf16.xpose.msra.mxu0 0
  %398 = vmatpush.bf16.xpose.msra.mxu0 0
  %399 = vmatpush.bf16.xpose.msra.mxu0 0
  %400 = vmatpush.bf16.xpose.msra.mxu0 0
  %401 = vmatpush.bf16.xpose.msra.mxu0 0
  %402 = vmatpush.bf16.xpose.msra.mxu0 0
  %403 = vmatpush.bf16.xpose.msra.mxu0 %v394
  %404 = vmatmul.bf16.gmra.mxu0 %v388
  %v405 = vpop.f32.mrf.mxu0
  %v406 = vadd.f32 0.0, %v405
  %v407 = vpop.f32.mrf.mxu0
  %v408 = vadd.f32 0.0, %v407
  %409 = vmatmul.bf16.gmra.mxu0 %v391
  %v410 = vpop.f32.mrf.mxu0
  %v411 = vadd.f32 0.0, %v410
  %v412 = vpop.f32.mrf.mxu0
  %413 = vdwg.mxu0
  %v417 = vunpack.c.l.b16 %v114
  %v418 = vunpack.c.l.b16 %v115
  %v419 = vunpack.c.l.b16 %v116
  %v420 = vpack.c.b16 %v418, %v417
  %v421 = vpack.c.b16 %v419, %v419
  %v424 = vunpack.c.l.b16 %v131
  %v425 = vunpack.c.l.b16 %v132
  %v426 = vpack.c.b16 %v425, %v424
  %v428 = vsel %vm146, %v420, 0
  %v431 = vsel %vm146, %v421, 0
  %v434 = vsel %vm146, %v426, 0
  %436 = vmatpush.bf16.xpose.msra.mxu0 0
  %437 = vmatpush.bf16.xpose.msra.mxu0 0
  %438 = vmatpush.bf16.xpose.msra.mxu0 0
  %439 = vmatpush.bf16.xpose.msra.mxu0 0
  %440 = vmatpush.bf16.xpose.msra.mxu0 0
  %441 = vmatpush.bf16.xpose.msra.mxu0 0
  %442 = vmatpush.bf16.xpose.msra.mxu0 0
  %443 = vmatpush.bf16.xpose.msra.mxu0 %v434
  %444 = vmatmul.bf16.gmra.mxu0 %v428
  %v445 = vpop.f32.mrf.mxu0
  %v446 = vadd.f32 0.0, %v445
  %v447 = vpop.f32.mrf.mxu0
  %v448 = vadd.f32 0.0, %v447
  %449 = vmatmul.bf16.gmra.mxu0 %v431
  %v450 = vpop.f32.mrf.mxu0
  %v451 = vadd.f32 0.0, %v450
  %v452 = vpop.f32.mrf.mxu0
  %453 = vdwg.mxu0
  %v454 = vmul.f32 %v166, 0.25
  %v455 = vmul.f32 %v168, 0.25
  %v456 = vmul.f32 %v171, 0.25
  %v457 = vmul.f32 %v206, 0.25
  %v458 = vmul.f32 %v208, 0.25
  %v459 = vmul.f32 %v211, 0.25
  %v460 = vmul.f32 %v246, 0.25
  %v461 = vmul.f32 %v248, 0.25
  %v462 = vmul.f32 %v251, 0.25
  %v463 = vmul.f32 %v286, 0.25
  %v464 = vmul.f32 %v288, 0.25
  %v465 = vmul.f32 %v291, 0.25
  %v466 = vmul.f32 %v326, 0.25
  %v467 = vmul.f32 %v328, 0.25
  %v468 = vmul.f32 %v331, 0.25
  %v469 = vmul.f32 %v366, 0.25
  %v470 = vmul.f32 %v368, 0.25
  %v471 = vmul.f32 %v371, 0.25
  %v472 = vmul.f32 %v406, 0.25
  %v473 = vmul.f32 %v408, 0.25
  %v474 = vmul.f32 %v411, 0.25
  %v475 = vmul.f32 %v446, 0.25
  %v476 = vmul.f32 %v448, 0.25
  %v477 = vmul.f32 %v451, 0.25
  %v478 = vld [vmem:[#allocation2] sm:$0xff]
  %v479 = vld [vmem:[#allocation2 + $0x8] sm:$0xff]
  %v480 = vld [vmem:[#allocation2 + $0x10] sm:$0xff]
  %v481 = vld [vmem:[#allocation2 + $0x18] sm:$0xff]
  %v482 = vld [vmem:[#allocation2 + $0x20] sm:$0xff]
  %v483 = vld [vmem:[#allocation2 + $0x28] sm:$0xff]
  %v484 = vld [vmem:[#allocation2 + $0x30] sm:$0xff]
  %v485 = vld [vmem:[#allocation2 + $0x38] sm:$0xff]
  %v486 = vld [vmem:[#allocation2 + $0x40] sm:$0xff]
  %v487 = vld [vmem:[#allocation2 + $0x48] sm:$0xff]
  %v488 = vld [vmem:[#allocation2 + $0x50] sm:$0xff]
  %v489 = vld [vmem:[#allocation2 + $0x58] sm:$0xff]
  %v490 = vld [vmem:[#allocation2 + $0x60] sm:$0xff]
  %v491 = vld [vmem:[#allocation2 + $0x68] sm:$0xff]
  %v492 = vld [vmem:[#allocation2 + $0x70] sm:$0xff]
  %v493 = vld [vmem:[#allocation2 + $0x78] sm:$0xff]
  %v494 = vld [vmem:[#allocation2 + $0x80] sm:$0xff]
  %v495 = vld [vmem:[#allocation2 + $0x88] sm:$0xff]
  %v496 = vld [vmem:[#allocation2 + $0x90] sm:$0xff]
  %v497 = vld [vmem:[#allocation2 + $0x98] sm:$0xff]
  %v498 = vld [vmem:[#allocation2 + $0xa0] sm:$0xff]
  %v499 = vld [vmem:[#allocation2 + $0xa8] sm:$0xff]
  %v500 = vld [vmem:[#allocation2 + $0xb0] sm:$0xff]
  %v501 = vld [vmem:[#allocation2 + $0xb8] sm:$0xff]
  %v502 = vsel %vm146, %v454, -inf
  %503 = vmax.xlane.f32.xlu0 %v502
  %v504 = vpop.xlane.xlu0 %503
  %v505 = vsel %vm146, %v455, -inf
  %506 = vmax.xlane.f32.xlu0 %v505
  %v507 = vpop.xlane.xlu0 %506
  %v508 = vsel %vm146, %v456, -inf
  %509 = vmax.xlane.f32.xlu0 %v508
  %v510 = vpop.xlane.xlu0 %509
  %v511 = vsel %vm146, %v457, -inf
  %512 = vmax.xlane.f32.xlu0 %v511
  %v513 = vpop.xlane.xlu0 %512
  %v514 = vsel %vm146, %v458, -inf
  %515 = vmax.xlane.f32.xlu0 %v514
  %v516 = vpop.xlane.xlu0 %515
  %v517 = vsel %vm146, %v459, -inf
  %518 = vmax.xlane.f32.xlu0 %v517
  %v519 = vpop.xlane.xlu0 %518
  %v520 = vsel %vm146, %v460, -inf
  %521 = vmax.xlane.f32.xlu0 %v520
  %v522 = vpop.xlane.xlu0 %521
  %v523 = vsel %vm146, %v461, -inf
  %524 = vmax.xlane.f32.xlu0 %v523
  %v525 = vpop.xlane.xlu0 %524
  %v526 = vsel %vm146, %v462, -inf
  %527 = vmax.xlane.f32.xlu0 %v526
  %v528 = vpop.xlane.xlu0 %527
  %v529 = vsel %vm146, %v463, -inf
  %530 = vmax.xlane.f32.xlu0 %v529
  %v531 = vpop.xlane.xlu0 %530
  %v532 = vsel %vm146, %v464, -inf
  %533 = vmax.xlane.f32.xlu0 %v532
  %v534 = vpop.xlane.xlu0 %533
  %v535 = vsel %vm146, %v465, -inf
  %536 = vmax.xlane.f32.xlu0 %v535
  %v537 = vpop.xlane.xlu0 %536
  %v538 = vsel %vm146, %v466, -inf
  %539 = vmax.xlane.f32.xlu0 %v538
  %v540 = vpop.xlane.xlu0 %539
  %v541 = vsel %vm146, %v467, -inf
  %542 = vmax.xlane.f32.xlu0 %v541
  %v543 = vpop.xlane.xlu0 %542
  %v544 = vsel %vm146, %v468, -inf
  %545 = vmax.xlane.f32.xlu0 %v544
  %v546 = vpop.xlane.xlu0 %545
  %v547 = vsel %vm146, %v469, -inf
  %548 = vmax.xlane.f32.xlu0 %v547
  %v549 = vpop.xlane.xlu0 %548
  %v550 = vsel %vm146, %v470, -inf
  %551 = vmax.xlane.f32.xlu0 %v550
  %v552 = vpop.xlane.xlu0 %551
  %v553 = vsel %vm146, %v471, -inf
  %554 = vmax.xlane.f32.xlu0 %v553
  %v555 = vpop.xlane.xlu0 %554
  %v556 = vsel %vm146, %v472, -inf
  %557 = vmax.xlane.f32.xlu0 %v556
  %v558 = vpop.xlane.xlu0 %557
  %v559 = vsel %vm146, %v473, -inf
  %560 = vmax.xlane.f32.xlu0 %v559
  %v561 = vpop.xlane.xlu0 %560
  %v562 = vsel %vm146, %v474, -inf
  %563 = vmax.xlane.f32.xlu0 %v562
  %v564 = vpop.xlane.xlu0 %563
  %v565 = vsel %vm146, %v475, -inf
  %566 = vmax.xlane.f32.xlu0 %v565
  %v567 = vpop.xlane.xlu0 %566
  %v568 = vsel %vm146, %v476, -inf
  %569 = vmax.xlane.f32.xlu0 %v568
  %v570 = vpop.xlane.xlu0 %569
  %v571 = vsel %vm146, %v477, -inf
  %572 = vmax.xlane.f32.xlu0 %v571
  %v573 = vpop.xlane.xlu0 %572
  %v574 = vmax.f32 %v478, %v504
  %v575 = vmax.f32 %v479, %v507
  %v576 = vmax.f32 %v480, %v510
  %v577 = vmax.f32 %v481, %v513
  %v578 = vmax.f32 %v482, %v516
  %v579 = vmax.f32 %v483, %v519
  %v580 = vmax.f32 %v484, %v522
  %v581 = vmax.f32 %v485, %v525
  %v582 = vmax.f32 %v486, %v528
  %v583 = vmax.f32 %v487, %v531
  %v584 = vmax.f32 %v488, %v534
  %v585 = vmax.f32 %v489, %v537
  %v586 = vmax.f32 %v490, %v540
  %v587 = vmax.f32 %v491, %v543
  %v588 = vmax.f32 %v492, %v546
  %v589 = vmax.f32 %v493, %v549
  %v590 = vmax.f32 %v494, %v552
  %v591 = vmax.f32 %v495, %v555
  %v592 = vmax.f32 %v496, %v558
  %v593 = vmax.f32 %v497, %v561
  %v594 = vmax.f32 %v498, %v564
  %v595 = vmax.f32 %v499, %v567
  %v596 = vmax.f32 %v500, %v570
  %v597 = vmax.f32 %v501, %v573
  %v598 = vsub.f32 %v478, %v574
  %v599 = vsub.f32 %v479, %v575
  %v600 = vsub.f32 %v480, %v576
  %v601 = vsub.f32 %v481, %v577
  %v602 = vsub.f32 %v482, %v578
  %v603 = vsub.f32 %v483, %v579
  %v604 = vsub.f32 %v484, %v580
  %v605 = vsub.f32 %v485, %v581
  %v606 = vsub.f32 %v486, %v582
  %v607 = vsub.f32 %v487, %v583
  %v608 = vsub.f32 %v488, %v584
  %v609 = vsub.f32 %v489, %v585
  %v610 = vsub.f32 %v490, %v586
  %v611 = vsub.f32 %v491, %v587
  %v612 = vsub.f32 %v492, %v588
  %v613 = vsub.f32 %v493, %v589
  %v614 = vsub.f32 %v494, %v590
  %v615 = vsub.f32 %v495, %v591
  %v616 = vsub.f32 %v496, %v592
  %v617 = vsub.f32 %v497, %v593
  %v618 = vsub.f32 %v498, %v594
  %v619 = vsub.f32 %v499, %v595
  %v620 = vsub.f32 %v500, %v596
  %v621 = vsub.f32 %v501, %v597
  %v622 = vmul.f32 %v598, 1.442695
  %v623 = vpow.pop %v622
  %v624 = vmul.f32 %v599, 1.442695
  %v625 = vpow.pop %v624
  %v626 = vmul.f32 %v600, 1.442695
  %v627 = vpow.pop %v626
  %v628 = vmul.f32 %v601, 1.442695
  %v629 = vpow.pop %v628
  %v630 = vmul.f32 %v602, 1.442695
  %v631 = vpow.pop %v630
  %v632 = vmul.f32 %v603, 1.442695
  %v633 = vpow.pop %v632
  %v634 = vmul.f32 %v604, 1.442695
  %v635 = vpow.pop %v634
  %v636 = vmul.f32 %v605, 1.442695
  %v637 = vpow.pop %v636
  %v638 = vmul.f32 %v606, 1.442695
  %v639 = vpow.pop %v638
  %v640 = vmul.f32 %v607, 1.442695
  %v641 = vpow.pop %v640
  %v642 = vmul.f32 %v608, 1.442695
  %v643 = vpow.pop %v642
  %v644 = vmul.f32 %v609, 1.442695
  %v645 = vpow.pop %v644
  %v646 = vmul.f32 %v610, 1.442695
  %v647 = vpow.pop %v646
  %v648 = vmul.f32 %v611, 1.442695
  %v649 = vpow.pop %v648
  %v650 = vmul.f32 %v612, 1.442695
  %v651 = vpow.pop %v650
  %v652 = vmul.f32 %v613, 1.442695
  %v653 = vpow.pop %v652
  %v654 = vmul.f32 %v614, 1.442695
  %v655 = vpow.pop %v654
  %v656 = vmul.f32 %v615, 1.442695
  %v657 = vpow.pop %v656
  %v658 = vmul.f32 %v616, 1.442695
  %v659 = vpow.pop %v658
  %v660 = vmul.f32 %v617, 1.442695
  %v661 = vpow.pop %v660
  %v662 = vmul.f32 %v618, 1.442695
  %v663 = vpow.pop %v662
  %v664 = vmul.f32 %v619, 1.442695
  %v665 = vpow.pop %v664
  %v666 = vmul.f32 %v620, 1.442695
  %v667 = vpow.pop %v666
  %v668 = vmul.f32 %v621, 1.442695
  %v669 = vpow.pop %v668
  %671 = vset.pattern.permute.xlu0 0
  %672 = vperm.xlu0 %671, %v574
  %v673 = vpop.permute.xlu0 %672
  %676 = vset.pattern.permute.xlu0 0
  %677 = vperm.xlu0 %676, %v575
  %v678 = vpop.permute.xlu0 %677
  %681 = vset.pattern.permute.xlu0 0
  %682 = vperm.xlu0 %681, %v576
  %v683 = vpop.permute.xlu0 %682
  %686 = vset.pattern.permute.xlu0 0
  %687 = vperm.xlu0 %686, %v577
  %v688 = vpop.permute.xlu0 %687
  %691 = vset.pattern.permute.xlu0 0
  %692 = vperm.xlu0 %691, %v578
  %v693 = vpop.permute.xlu0 %692
  %696 = vset.pattern.permute.xlu0 0
  %697 = vperm.xlu0 %696, %v579
  %v698 = vpop.permute.xlu0 %697
  %701 = vset.pattern.permute.xlu0 0
  %702 = vperm.xlu0 %701, %v580
  %v703 = vpop.permute.xlu0 %702
  %706 = vset.pattern.permute.xlu0 0
  %707 = vperm.xlu0 %706, %v581
  %v708 = vpop.permute.xlu0 %707
  %711 = vset.pattern.permute.xlu0 0
  %712 = vperm.xlu0 %711, %v582
  %v713 = vpop.permute.xlu0 %712
  %716 = vset.pattern.permute.xlu0 0
  %717 = vperm.xlu0 %716, %v583
  %v718 = vpop.permute.xlu0 %717
  %721 = vset.pattern.permute.xlu0 0
  %722 = vperm.xlu0 %721, %v584
  %v723 = vpop.permute.xlu0 %722
  %726 = vset.pattern.permute.xlu0 0
  %727 = vperm.xlu0 %726, %v585
  %v728 = vpop.permute.xlu0 %727
  %731 = vset.pattern.permute.xlu0 0
  %732 = vperm.xlu0 %731, %v586
  %v733 = vpop.permute.xlu0 %732
  %736 = vset.pattern.permute.xlu0 0
  %737 = vperm.xlu0 %736, %v587
  %v738 = vpop.permute.xlu0 %737
  %741 = vset.pattern.permute.xlu0 0
  %742 = vperm.xlu0 %741, %v588
  %v743 = vpop.permute.xlu0 %742
  %746 = vset.pattern.permute.xlu0 0
  %747 = vperm.xlu0 %746, %v589
  %v748 = vpop.permute.xlu0 %747
  %751 = vset.pattern.permute.xlu0 0
  %752 = vperm.xlu0 %751, %v590
  %v753 = vpop.permute.xlu0 %752
  %756 = vset.pattern.permute.xlu0 0
  %757 = vperm.xlu0 %756, %v591
  %v758 = vpop.permute.xlu0 %757
  %761 = vset.pattern.permute.xlu0 0
  %762 = vperm.xlu0 %761, %v592
  %v763 = vpop.permute.xlu0 %762
  %766 = vset.pattern.permute.xlu0 0
  %767 = vperm.xlu0 %766, %v593
  %v768 = vpop.permute.xlu0 %767
  %771 = vset.pattern.permute.xlu0 0
  %772 = vperm.xlu0 %771, %v594
  %v773 = vpop.permute.xlu0 %772
  %776 = vset.pattern.permute.xlu0 0
  %777 = vperm.xlu0 %776, %v595
  %v778 = vpop.permute.xlu0 %777
  %781 = vset.pattern.permute.xlu0 0
  %782 = vperm.xlu0 %781, %v596
  %v783 = vpop.permute.xlu0 %782
  %786 = vset.pattern.permute.xlu0 0
  %787 = vperm.xlu0 %786, %v597
  %v788 = vpop.permute.xlu0 %787
  %v790 = vsub.f32 %v454, %v673
  %v791 = vsub.f32 %v455, %v678
  %v792 = vsub.f32 %v456, %v683
  %v793 = vsub.f32 %v457, %v688
  %v794 = vsub.f32 %v458, %v693
  %v795 = vsub.f32 %v459, %v698
  %v796 = vsub.f32 %v460, %v703
  %v797 = vsub.f32 %v461, %v708
  %v798 = vsub.f32 %v462, %v713
  %v799 = vsub.f32 %v463, %v718
  %v800 = vsub.f32 %v464, %v723
  %v801 = vsub.f32 %v465, %v728
  %v802 = vsub.f32 %v466, %v733
  %v803 = vsub.f32 %v467, %v738
  %v804 = vsub.f32 %v468, %v743
  %v805 = vsub.f32 %v469, %v748
  %v806 = vsub.f32 %v470, %v753
  %v807 = vsub.f32 %v471, %v758
  %v808 = vsub.f32 %v472, %v763
  %v809 = vsub.f32 %v473, %v768
  %v810 = vsub.f32 %v474, %v773
  %v811 = vsub.f32 %v475, %v778
  %v812 = vsub.f32 %v476, %v783
  %v813 = vsub.f32 %v477, %v788
  %v814 = vmul.f32 %v790, 1.442695
  %v815 = vpow.pop %v814
  %v816 = vmul.f32 %v791, 1.442695
  %v817 = vpow.pop %v816
  %v818 = vmul.f32 %v792, 1.442695
  %v819 = vpow.pop %v818
  %v820 = vmul.f32 %v793, 1.442695
  %v821 = vpow.pop %v820
  %v822 = vmul.f32 %v794, 1.442695
  %v823 = vpow.pop %v822
  %v824 = vmul.f32 %v795, 1.442695
  %v825 = vpow.pop %v824
  %v826 = vmul.f32 %v796, 1.442695
  %v827 = vpow.pop %v826
  %v828 = vmul.f32 %v797, 1.442695
  %v829 = vpow.pop %v828
  %v830 = vmul.f32 %v798, 1.442695
  %v831 = vpow.pop %v830
  %v832 = vmul.f32 %v799, 1.442695
  %v833 = vpow.pop %v832
  %v834 = vmul.f32 %v800, 1.442695
  %v835 = vpow.pop %v834
  %v836 = vmul.f32 %v801, 1.442695
  %v837 = vpow.pop %v836
  %v838 = vmul.f32 %v802, 1.442695
  %v839 = vpow.pop %v838
  %v840 = vmul.f32 %v803, 1.442695
  %v841 = vpow.pop %v840
  %v842 = vmul.f32 %v804, 1.442695
  %v843 = vpow.pop %v842
  %v844 = vmul.f32 %v805, 1.442695
  %v845 = vpow.pop %v844
  %v846 = vmul.f32 %v806, 1.442695
  %v847 = vpow.pop %v846
  %v848 = vmul.f32 %v807, 1.442695
  %v849 = vpow.pop %v848
  %v850 = vmul.f32 %v808, 1.442695
  %v851 = vpow.pop %v850
  %v852 = vmul.f32 %v809, 1.442695
  %v853 = vpow.pop %v852
  %v854 = vmul.f32 %v810, 1.442695
  %v855 = vpow.pop %v854
  %v856 = vmul.f32 %v811, 1.442695
  %v857 = vpow.pop %v856
  %v858 = vmul.f32 %v812, 1.442695
  %v859 = vpow.pop %v858
  %v860 = vmul.f32 %v813, 1.442695
  %v861 = vpow.pop %v860
  %v862 = vld [vmem:[#allocation3] sm:$0xff]
  %v863 = vld [vmem:[#allocation3 + $0x8] sm:$0xff]
  %v864 = vld [vmem:[#allocation3 + $0x10] sm:$0xff]
  %v865 = vld [vmem:[#allocation3 + $0x18] sm:$0xff]
  %v866 = vld [vmem:[#allocation3 + $0x20] sm:$0xff]
  %v867 = vld [vmem:[#allocation3 + $0x28] sm:$0xff]
  %v868 = vld [vmem:[#allocation3 + $0x30] sm:$0xff]
  %v869 = vld [vmem:[#allocation3 + $0x38] sm:$0xff]
  %v870 = vld [vmem:[#allocation3 + $0x40] sm:$0xff]
  %v871 = vld [vmem:[#allocation3 + $0x48] sm:$0xff]
  %v872 = vld [vmem:[#allocation3 + $0x50] sm:$0xff]
  %v873 = vld [vmem:[#allocation3 + $0x58] sm:$0xff]
  %v874 = vld [vmem:[#allocation3 + $0x60] sm:$0xff]
  %v875 = vld [vmem:[#allocation3 + $0x68] sm:$0xff]
  %v876 = vld [vmem:[#allocation3 + $0x70] sm:$0xff]
  %v877 = vld [vmem:[#allocation3 + $0x78] sm:$0xff]
  %v878 = vld [vmem:[#allocation3 + $0x80] sm:$0xff]
  %v879 = vld [vmem:[#allocation3 + $0x88] sm:$0xff]
  %v880 = vld [vmem:[#allocation3 + $0x90] sm:$0xff]
  %v881 = vld [vmem:[#allocation3 + $0x98] sm:$0xff]
  %v882 = vld [vmem:[#allocation3 + $0xa0] sm:$0xff]
  %v883 = vld [vmem:[#allocation3 + $0xa8] sm:$0xff]
  %v884 = vld [vmem:[#allocation3 + $0xb0] sm:$0xff]
  %v885 = vld [vmem:[#allocation3 + $0xb8] sm:$0xff]
  %v886 = vmul.f32 %v623, %v862
  %v887 = vmul.f32 %v625, %v863
  %v888 = vmul.f32 %v627, %v864
  %v889 = vmul.f32 %v629, %v865
  %v890 = vmul.f32 %v631, %v866
  %v891 = vmul.f32 %v633, %v867
  %v892 = vmul.f32 %v635, %v868
  %v893 = vmul.f32 %v637, %v869
  %v894 = vmul.f32 %v639, %v870
  %v895 = vmul.f32 %v641, %v871
  %v896 = vmul.f32 %v643, %v872
  %v897 = vmul.f32 %v645, %v873
  %v898 = vmul.f32 %v647, %v874
  %v899 = vmul.f32 %v649, %v875
  %v900 = vmul.f32 %v651, %v876
  %v901 = vmul.f32 %v653, %v877
  %v902 = vmul.f32 %v655, %v878
  %v903 = vmul.f32 %v657, %v879
  %v904 = vmul.f32 %v659, %v880
  %v905 = vmul.f32 %v661, %v881
  %v906 = vmul.f32 %v663, %v882
  %v907 = vmul.f32 %v665, %v883
  %v908 = vmul.f32 %v667, %v884
  %v909 = vmul.f32 %v669, %v885
  %v910 = vsel %vm146, %v815, 0.0
  %911 = vadd.xlane.f32.xlu0 %v910
  %v912 = vpop.xlane.xlu0 %911
  %v913 = vsel %vm146, %v817, 0.0
  %914 = vadd.xlane.f32.xlu0 %v913
  %v915 = vpop.xlane.xlu0 %914
  %v916 = vsel %vm146, %v819, 0.0
  %917 = vadd.xlane.f32.xlu0 %v916
  %v918 = vpop.xlane.xlu0 %917
  %v919 = vsel %vm146, %v821, 0.0
  %920 = vadd.xlane.f32.xlu0 %v919
  %v921 = vpop.xlane.xlu0 %920
  %v922 = vsel %vm146, %v823, 0.0
  %923 = vadd.xlane.f32.xlu0 %v922
  %v924 = vpop.xlane.xlu0 %923
  %v925 = vsel %vm146, %v825, 0.0
  %926 = vadd.xlane.f32.xlu0 %v925
  %v927 = vpop.xlane.xlu0 %926
  %v928 = vsel %vm146, %v827, 0.0
  %929 = vadd.xlane.f32.xlu0 %v928
  %v930 = vpop.xlane.xlu0 %929
  %v931 = vsel %vm146, %v829, 0.0
  %932 = vadd.xlane.f32.xlu0 %v931
  %v933 = vpop.xlane.xlu0 %932
  %v934 = vsel %vm146, %v831, 0.0
  %935 = vadd.xlane.f32.xlu0 %v934
  %v936 = vpop.xlane.xlu0 %935
  %v937 = vsel %vm146, %v833, 0.0
  %938 = vadd.xlane.f32.xlu0 %v937
  %v939 = vpop.xlane.xlu0 %938
  %v940 = vsel %vm146, %v835, 0.0
  %941 = vadd.xlane.f32.xlu0 %v940
  %v942 = vpop.xlane.xlu0 %941
  %v943 = vsel %vm146, %v837, 0.0
  %944 = vadd.xlane.f32.xlu0 %v943
  %v945 = vpop.xlane.xlu0 %944
  %v946 = vsel %vm146, %v839, 0.0
  %947 = vadd.xlane.f32.xlu0 %v946
  %v948 = vpop.xlane.xlu0 %947
  %v949 = vsel %vm146, %v841, 0.0
  %950 = vadd.xlane.f32.xlu0 %v949
  %v951 = vpop.xlane.xlu0 %950
  %v952 = vsel %vm146, %v843, 0.0
  %953 = vadd.xlane.f32.xlu0 %v952
  %v954 = vpop.xlane.xlu0 %953
  %v955 = vsel %vm146, %v845, 0.0
  %956 = vadd.xlane.f32.xlu0 %v955
  %v957 = vpop.xlane.xlu0 %956
  %v958 = vsel %vm146, %v847, 0.0
  %959 = vadd.xlane.f32.xlu0 %v958
  %v960 = vpop.xlane.xlu0 %959
  %v961 = vsel %vm146, %v849, 0.0
  %962 = vadd.xlane.f32.xlu0 %v961
  %v963 = vpop.xlane.xlu0 %962
  %v964 = vsel %vm146, %v851, 0.0
  %965 = vadd.xlane.f32.xlu0 %v964
  %v966 = vpop.xlane.xlu0 %965
  %v967 = vsel %vm146, %v853, 0.0
  %968 = vadd.xlane.f32.xlu0 %v967
  %v969 = vpop.xlane.xlu0 %968
  %v970 = vsel %vm146, %v855, 0.0
  %971 = vadd.xlane.f32.xlu0 %v970
  %v972 = vpop.xlane.xlu0 %971
  %v973 = vsel %vm146, %v857, 0.0
  %974 = vadd.xlane.f32.xlu0 %v973
  %v975 = vpop.xlane.xlu0 %974
  %v976 = vsel %vm146, %v859, 0.0
  %977 = vadd.xlane.f32.xlu0 %v976
  %v978 = vpop.xlane.xlu0 %977
  %v979 = vsel %vm146, %v861, 0.0
  %980 = vadd.xlane.f32.xlu0 %v979
  %v981 = vpop.xlane.xlu0 %980
  %v982 = vadd.f32 %v886, %v912
  %v983 = vadd.f32 %v887, %v915
  %v984 = vadd.f32 %v888, %v918
  %v985 = vadd.f32 %v889, %v921
  %v986 = vadd.f32 %v890, %v924
  %v987 = vadd.f32 %v891, %v927
  %v988 = vadd.f32 %v892, %v930
  %v989 = vadd.f32 %v893, %v933
  %v990 = vadd.f32 %v894, %v936
  %v991 = vadd.f32 %v895, %v939
  %v992 = vadd.f32 %v896, %v942
  %v993 = vadd.f32 %v897, %v945
  %v994 = vadd.f32 %v898, %v948
  %v995 = vadd.f32 %v899, %v951
  %v996 = vadd.f32 %v900, %v954
  %v997 = vadd.f32 %v901, %v957
  %v998 = vadd.f32 %v902, %v960
  %v999 = vadd.f32 %v903, %v963
  %v1000 = vadd.f32 %v904, %v966
  %v1001 = vadd.f32 %v905, %v969
  %v1002 = vadd.f32 %v906, %v972
  %v1003 = vadd.f32 %v907, %v975
  %v1004 = vadd.f32 %v908, %v978
  %v1005 = vadd.f32 %v909, %v981
  %vm1006 = vcmask 7168
  %1007 = vst.msk [vmem:[#allocation3] sm:$0xff] %vm1006, %v982
  %1008 = vst.msk [vmem:[#allocation3 + $0x8] sm:$0xff] %vm1006, %v983
  %1009 = vst.msk [vmem:[#allocation3 + $0x10] sm:$0xff] %vm1006, %v984
  %1010 = vst.msk [vmem:[#allocation3 + $0x18] sm:$0xff] %vm1006, %v985
  %1011 = vst.msk [vmem:[#allocation3 + $0x20] sm:$0xff] %vm1006, %v986
  %1012 = vst.msk [vmem:[#allocation3 + $0x28] sm:$0xff] %vm1006, %v987
  %1013 = vst.msk [vmem:[#allocation3 + $0x30] sm:$0xff] %vm1006, %v988
  %1014 = vst.msk [vmem:[#allocation3 + $0x38] sm:$0xff] %vm1006, %v989
  %1015 = vst.msk [vmem:[#allocation3 + $0x40] sm:$0xff] %vm1006, %v990
  %1016 = vst.msk [vmem:[#allocation3 + $0x48] sm:$0xff] %vm1006, %v991
  %1017 = vst.msk [vmem:[#allocation3 + $0x50] sm:$0xff] %vm1006, %v992
  %1018 = vst.msk [vmem:[#allocation3 + $0x58] sm:$0xff] %vm1006, %v993
  %1019 = vst.msk [vmem:[#allocation3 + $0x60] sm:$0xff] %vm1006, %v994
  %1020 = vst.msk [vmem:[#allocation3 + $0x68] sm:$0xff] %vm1006, %v995
  %1021 = vst.msk [vmem:[#allocation3 + $0x70] sm:$0xff] %vm1006, %v996
  %1022 = vst.msk [vmem:[#allocation3 + $0x78] sm:$0xff] %vm1006, %v997
  %1023 = vst.msk [vmem:[#allocation3 + $0x80] sm:$0xff] %vm1006, %v998
  %1024 = vst.msk [vmem:[#allocation3 + $0x88] sm:$0xff] %vm1006, %v999
  %1025 = vst.msk [vmem:[#allocation3 + $0x90] sm:$0xff] %vm1006, %v1000
  %1026 = vst.msk [vmem:[#allocation3 + $0x98] sm:$0xff] %vm1006, %v1001
  %1027 = vst.msk [vmem:[#allocation3 + $0xa0] sm:$0xff] %vm1006, %v1002
  %1028 = vst.msk [vmem:[#allocation3 + $0xa8] sm:$0xff] %vm1006, %v1003
  %1029 = vst.msk [vmem:[#allocation3 + $0xb0] sm:$0xff] %vm1006, %v1004
  %1030 = vst.msk [vmem:[#allocation3 + $0xb8] sm:$0xff] %vm1006, %v1005
  %v1031 = vld [vmem:[#allocation4] sm:$0xff]
  %v1032 = vld [vmem:[#allocation4 + $0x8] sm:$0xff]
  %v1033 = vld [vmem:[#allocation4 + $0x10] sm:$0xff]
  %v1034 = vld [vmem:[#allocation4 + $0x18] sm:$0xff]
  %v1035 = vld [vmem:[#allocation4 + $0x20] sm:$0xff]
  %v1036 = vld [vmem:[#allocation4 + $0x28] sm:$0xff]
  %v1037 = vld [vmem:[#allocation4 + $0x30] sm:$0xff]
  %v1038 = vld [vmem:[#allocation4 + $0x38] sm:$0xff]
  %v1039 = vld [vmem:[#allocation4 + $0x40] sm:$0xff]
  %v1040 = vld [vmem:[#allocation4 + $0x48] sm:$0xff]
  %v1041 = vld [vmem:[#allocation4 + $0x50] sm:$0xff]
  %v1042 = vld [vmem:[#allocation4 + $0x58] sm:$0xff]
  %v1043 = vld [vmem:[#allocation4 + $0x60] sm:$0xff]
  %v1044 = vld [vmem:[#allocation4 + $0x68] sm:$0xff]
  %v1045 = vld [vmem:[#allocation4 + $0x70] sm:$0xff]
  %v1046 = vld [vmem:[#allocation4 + $0x78] sm:$0xff]
  %v1047 = vld [vmem:[#allocation4 + $0x80] sm:$0xff]
  %v1048 = vld [vmem:[#allocation4 + $0x88] sm:$0xff]
  %v1049 = vld [vmem:[#allocation4 + $0x90] sm:$0xff]
  %v1050 = vld [vmem:[#allocation4 + $0x98] sm:$0xff]
  %v1051 = vld [vmem:[#allocation4 + $0xa0] sm:$0xff]
  %v1052 = vld [vmem:[#allocation4 + $0xa8] sm:$0xff]
  %v1053 = vld [vmem:[#allocation4 + $0xb0] sm:$0xff]
  %v1054 = vld [vmem:[#allocation4 + $0xb8] sm:$0xff]
  %1056 = vset.pattern.permute.xlu0 0
  %1057 = vperm.xlu0 %1056, %v623
  %v1058 = vpop.permute.xlu0 %1057
  %1061 = vset.pattern.permute.xlu0 0
  %1062 = vperm.xlu0 %1061, %v625
  %v1063 = vpop.permute.xlu0 %1062
  %1066 = vset.pattern.permute.xlu0 0
  %1067 = vperm.xlu0 %1066, %v627
  %v1068 = vpop.permute.xlu0 %1067
  %1071 = vset.pattern.permute.xlu0 0
  %1072 = vperm.xlu0 %1071, %v629
  %v1073 = vpop.permute.xlu0 %1072
  %1076 = vset.pattern.permute.xlu0 0
  %1077 = vperm.xlu0 %1076, %v631
  %v1078 = vpop.permute.xlu0 %1077
  %1081 = vset.pattern.permute.xlu0 0
  %1082 = vperm.xlu0 %1081, %v633
  %v1083 = vpop.permute.xlu0 %1082
  %1086 = vset.pattern.permute.xlu0 0
  %1087 = vperm.xlu0 %1086, %v635
  %v1088 = vpop.permute.xlu0 %1087
  %1091 = vset.pattern.permute.xlu0 0
  %1092 = vperm.xlu0 %1091, %v637
  %v1093 = vpop.permute.xlu0 %1092
  %1096 = vset.pattern.permute.xlu0 0
  %1097 = vperm.xlu0 %1096, %v639
  %v1098 = vpop.permute.xlu0 %1097
  %1101 = vset.pattern.permute.xlu0 0
  %1102 = vperm.xlu0 %1101, %v641
  %v1103 = vpop.permute.xlu0 %1102
  %1106 = vset.pattern.permute.xlu0 0
  %1107 = vperm.xlu0 %1106, %v643
  %v1108 = vpop.permute.xlu0 %1107
  %1111 = vset.pattern.permute.xlu0 0
  %1112 = vperm.xlu0 %1111, %v645
  %v1113 = vpop.permute.xlu0 %1112
  %1116 = vset.pattern.permute.xlu0 0
  %1117 = vperm.xlu0 %1116, %v647
  %v1118 = vpop.permute.xlu0 %1117
  %1121 = vset.pattern.permute.xlu0 0
  %1122 = vperm.xlu0 %1121, %v649
  %v1123 = vpop.permute.xlu0 %1122
  %1126 = vset.pattern.permute.xlu0 0
  %1127 = vperm.xlu0 %1126, %v651
  %v1128 = vpop.permute.xlu0 %1127
  %1131 = vset.pattern.permute.xlu0 0
  %1132 = vperm.xlu0 %1131, %v653
  %v1133 = vpop.permute.xlu0 %1132
  %1136 = vset.pattern.permute.xlu0 0
  %1137 = vperm.xlu0 %1136, %v655
  %v1138 = vpop.permute.xlu0 %1137
  %1141 = vset.pattern.permute.xlu0 0
  %1142 = vperm.xlu0 %1141, %v657
  %v1143 = vpop.permute.xlu0 %1142
  %1146 = vset.pattern.permute.xlu0 0
  %1147 = vperm.xlu0 %1146, %v659
  %v1148 = vpop.permute.xlu0 %1147
  %1151 = vset.pattern.permute.xlu0 0
  %1152 = vperm.xlu0 %1151, %v661
  %v1153 = vpop.permute.xlu0 %1152
  %1156 = vset.pattern.permute.xlu0 0
  %1157 = vperm.xlu0 %1156, %v663
  %v1158 = vpop.permute.xlu0 %1157
  %1161 = vset.pattern.permute.xlu0 0
  %1162 = vperm.xlu0 %1161, %v665
  %v1163 = vpop.permute.xlu0 %1162
  %1166 = vset.pattern.permute.xlu0 0
  %1167 = vperm.xlu0 %1166, %v667
  %v1168 = vpop.permute.xlu0 %1167
  %1171 = vset.pattern.permute.xlu0 0
  %1172 = vperm.xlu0 %1171, %v669
  %v1173 = vpop.permute.xlu0 %1172
  %v1175 = vmul.f32 %v1058, %v1031
  %v1176 = vmul.f32 %v1063, %v1032
  %v1177 = vmul.f32 %v1068, %v1033
  %v1178 = vmul.f32 %v1073, %v1034
  %v1179 = vmul.f32 %v1078, %v1035
  %v1180 = vmul.f32 %v1083, %v1036
  %v1181 = vmul.f32 %v1088, %v1037
  %v1182 = vmul.f32 %v1093, %v1038
  %v1183 = vmul.f32 %v1098, %v1039
  %v1184 = vmul.f32 %v1103, %v1040
  %v1185 = vmul.f32 %v1108, %v1041
  %v1186 = vmul.f32 %v1113, %v1042
  %v1187 = vmul.f32 %v1118, %v1043
  %v1188 = vmul.f32 %v1123, %v1044
  %v1189 = vmul.f32 %v1128, %v1045
  %v1190 = vmul.f32 %v1133, %v1046
  %v1191 = vmul.f32 %v1138, %v1047
  %v1192 = vmul.f32 %v1143, %v1048
  %v1193 = vmul.f32 %v1148, %v1049
  %v1194 = vmul.f32 %v1153, %v1050
  %v1195 = vmul.f32 %v1158, %v1051
  %v1196 = vmul.f32 %v1163, %v1052
  %v1197 = vmul.f32 %v1168, %v1053
  %v1198 = vmul.f32 %v1173, %v1054
  %v1199 = vpack.c.bf16 %v815, %v815
  %v1200 = vpack.c.bf16 %v817, %v817
  %v1201 = vpack.c.bf16 %v819, %v819
  %v1202 = vpack.c.bf16 %v821, %v821
  %v1203 = vpack.c.bf16 %v823, %v823
  %v1204 = vpack.c.bf16 %v825, %v825
  %v1205 = vpack.c.bf16 %v827, %v827
  %v1206 = vpack.c.bf16 %v829, %v829
  %v1207 = vpack.c.bf16 %v831, %v831
  %v1208 = vpack.c.bf16 %v833, %v833
  %v1209 = vpack.c.bf16 %v835, %v835
  %v1210 = vpack.c.bf16 %v837, %v837
  %v1211 = vpack.c.bf16 %v839, %v839
  %v1212 = vpack.c.bf16 %v841, %v841
  %v1213 = vpack.c.bf16 %v843, %v843
  %v1214 = vpack.c.bf16 %v845, %v845
  %v1215 = vpack.c.bf16 %v847, %v847
  %v1216 = vpack.c.bf16 %v849, %v849
  %v1217 = vpack.c.bf16 %v851, %v851
  %v1218 = vpack.c.bf16 %v853, %v853
  %v1219 = vpack.c.bf16 %v855, %v855
  %v1220 = vpack.c.bf16 %v857, %v857
  %v1221 = vpack.c.bf16 %v859, %v859
  %v1222 = vpack.c.bf16 %v861, %v861
  %v1223 = vld [vmem:[%s2] sm:$0xf]
  %v1224 = vld [vmem:[%s2 + $0x4] sm:$0xf]
  %v1225 = vld [vmem:[%s2 + $0x8] sm:$0xf]
  %v1226 = vld [vmem:[%s2 + $0xc] sm:$0xf]
  %v1227 = vld [vmem:[%s2 + $0x10] sm:$0xf]
  %v1228 = vld [vmem:[%s2 + $0x14] sm:$0xf]
  %v1229 = vld [vmem:[%s2 + $0x18] sm:$0xf]
  %v1230 = vld [vmem:[%s2 + $0x1c] sm:$0xf]
  %v1231 = vld [vmem:[%s2 + $0x20] sm:$0xf]
  %v1232 = vld [vmem:[%s2 + $0x24] sm:$0xf]
  %v1233 = vld [vmem:[%s2 + $0x28] sm:$0xf]
  %v1234 = vld [vmem:[%s2 + $0x2c] sm:$0xf]
  %v1235 = vld [vmem:[%s2 + $0x30] sm:$0xf]
  %v1236 = vld [vmem:[%s2 + $0x34] sm:$0xf]
  %v1237 = vld [vmem:[%s2 + $0x38] sm:$0xf]
  %v1238 = vld [vmem:[%s2 + $0x3c] sm:$0xf]
  %v1242 = vunpack.c.l.b16 %v1199
  %v1243 = vunpack.c.l.b16 %v1200
  %v1244 = vunpack.c.l.b16 %v1201
  %v1245 = vpack.c.b16 %v1243, %v1242
  %v1246 = vpack.c.b16 %v1244, %v1244
  %v1249 = vunpack.c.l.b16 %v1223
  %v1250 = vunpack.c.l.b16 %v1224
  %v1251 = vpack.c.b16 %v1250, %v1249
  %v1254 = vsel %vm146, %v1245, 0
  %v1257 = vsel %vm146, %v1246, 0
  %1259 = vmatpush.bf16.msra.mxu0 0
  %1260 = vmatpush.bf16.msra.mxu0 0
  %1261 = vmatpush.bf16.msra.mxu0 0
  %1262 = vmatpush.bf16.msra.mxu0 0
  %1263 = vmatpush.bf16.msra.mxu0 0
  %1264 = vmatpush.bf16.msra.mxu0 0
  %1265 = vmatpush.bf16.msra.mxu0 0
  %1266 = vmatpush.bf16.msra.mxu0 %v1251
  %1267 = vmatmul.bf16.gmra.mxu0 %v1254
  %v1268 = vpop.f32.mrf.mxu0
  %v1269 = vadd.f32 0.0, %v1268
  %v1270 = vpop.f32.mrf.mxu0
  %v1271 = vadd.f32 0.0, %v1270
  %1272 = vmatmul.bf16.gmra.mxu0 %v1257
  %v1273 = vpop.f32.mrf.mxu0
  %v1274 = vadd.f32 0.0, %v1273
  %v1275 = vpop.f32.mrf.mxu0
  %1276 = vdwg.mxu0
  %v1280 = vunpack.c.l.b16 %v1202
  %v1281 = vunpack.c.l.b16 %v1203
  %v1282 = vunpack.c.l.b16 %v1204
  %v1283 = vpack.c.b16 %v1281, %v1280
  %v1284 = vpack.c.b16 %v1282, %v1282
  %v1287 = vunpack.c.l.b16 %v1225
  %v1288 = vunpack.c.l.b16 %v1226
  %v1289 = vpack.c.b16 %v1288, %v1287
  %v1292 = vsel %vm146, %v1283, 0
  %v1295 = vsel %vm146, %v1284, 0
  %1297 = vmatpush.bf16.msra.mxu0 0
  %1298 = vmatpush.bf16.msra.mxu0 0
  %1299 = vmatpush.bf16.msra.mxu0 0
  %1300 = vmatpush.bf16.msra.mxu0 0
  %1301 = vmatpush.bf16.msra.mxu0 0
  %1302 = vmatpush.bf16.msra.mxu0 0
  %1303 = vmatpush.bf16.msra.mxu0 0
  %1304 = vmatpush.bf16.msra.mxu0 %v1289
  %1305 = vmatmul.bf16.gmra.mxu0 %v1292
  %v1306 = vpop.f32.mrf.mxu0
  %v1307 = vadd.f32 0.0, %v1306
  %v1308 = vpop.f32.mrf.mxu0
  %v1309 = vadd.f32 0.0, %v1308
  %1310 = vmatmul.bf16.gmra.mxu0 %v1295
  %v1311 = vpop.f32.mrf.mxu0
  %v1312 = vadd.f32 0.0, %v1311
  %v1313 = vpop.f32.mrf.mxu0
  %1314 = vdwg.mxu0
  %v1318 = vunpack.c.l.b16 %v1205
  %v1319 = vunpack.c.l.b16 %v1206
  %v1320 = vunpack.c.l.b16 %v1207
  %v1321 = vpack.c.b16 %v1319, %v1318
  %v1322 = vpack.c.b16 %v1320, %v1320
  %v1325 = vunpack.c.l.b16 %v1227
  %v1326 = vunpack.c.l.b16 %v1228
  %v1327 = vpack.c.b16 %v1326, %v1325
  %v1330 = vsel %vm146, %v1321, 0
  %v1333 = vsel %vm146, %v1322, 0
  %1335 = vmatpush.bf16.msra.mxu0 0
  %1336 = vmatpush.bf16.msra.mxu0 0
  %1337 = vmatpush.bf16.msra.mxu0 0
  %1338 = vmatpush.bf16.msra.mxu0 0
  %1339 = vmatpush.bf16.msra.mxu0 0
  %1340 = vmatpush.bf16.msra.mxu0 0
  %1341 = vmatpush.bf16.msra.mxu0 0
  %1342 = vmatpush.bf16.msra.mxu0 %v1327
  %1343 = vmatmul.bf16.gmra.mxu0 %v1330
  %v1344 = vpop.f32.mrf.mxu0
  %v1345 = vadd.f32 0.0, %v1344
  %v1346 = vpop.f32.mrf.mxu0
  %v1347 = vadd.f32 0.0, %v1346
  %1348 = vmatmul.bf16.gmra.mxu0 %v1333
  %v1349 = vpop.f32.mrf.mxu0
  %v1350 = vadd.f32 0.0, %v1349
  %v1351 = vpop.f32.mrf.mxu0
  %1352 = vdwg.mxu0
  %v1356 = vunpack.c.l.b16 %v1208
  %v1357 = vunpack.c.l.b16 %v1209
  %v1358 = vunpack.c.l.b16 %v1210
  %v1359 = vpack.c.b16 %v1357, %v1356
  %v1360 = vpack.c.b16 %v1358, %v1358
  %v1363 = vunpack.c.l.b16 %v1229
  %v1364 = vunpack.c.l.b16 %v1230
  %v1365 = vpack.c.b16 %v1364, %v1363
  %v1368 = vsel %vm146, %v1359, 0
  %v1371 = vsel %vm146, %v1360, 0
  %1373 = vmatpush.bf16.msra.mxu0 0
  %1374 = vmatpush.bf16.msra.mxu0 0
  %1375 = vmatpush.bf16.msra.mxu0 0
  %1376 = vmatpush.bf16.msra.mxu0 0
  %1377 = vmatpush.bf16.msra.mxu0 0
  %1378 = vmatpush.bf16.msra.mxu0 0
  %1379 = vmatpush.bf16.msra.mxu0 0
  %1380 = vmatpush.bf16.msra.mxu0 %v1365
  %1381 = vmatmul.bf16.gmra.mxu0 %v1368
  %v1382 = vpop.f32.mrf.mxu0
  %v1383 = vadd.f32 0.0, %v1382
  %v1384 = vpop.f32.mrf.mxu0
  %v1385 = vadd.f32 0.0, %v1384
  %1386 = vmatmul.bf16.gmra.mxu0 %v1371
  %v1387 = vpop.f32.mrf.mxu0
  %v1388 = vadd.f32 0.0, %v1387
  %v1389 = vpop.f32.mrf.mxu0
  %1390 = vdwg.mxu0
  %v1394 = vunpack.c.l.b16 %v1211
  %v1395 = vunpack.c.l.b16 %v1212
  %v1396 = vunpack.c.l.b16 %v1213
  %v1397 = vpack.c.b16 %v1395, %v1394
  %v1398 = vpack.c.b16 %v1396, %v1396
  %v1401 = vunpack.c.l.b16 %v1231
  %v1402 = vunpack.c.l.b16 %v1232
  %v1403 = vpack.c.b16 %v1402, %v1401
  %v1406 = vsel %vm146, %v1397, 0
  %v1409 = vsel %vm146, %v1398, 0
  %1411 = vmatpush.bf16.msra.mxu0 0
  %1412 = vmatpush.bf16.msra.mxu0 0
  %1413 = vmatpush.bf16.msra.mxu0 0
  %1414 = vmatpush.bf16.msra.mxu0 0
  %1415 = vmatpush.bf16.msra.mxu0 0
  %1416 = vmatpush.bf16.msra.mxu0 0
  %1417 = vmatpush.bf16.msra.mxu0 0
  %1418 = vmatpush.bf16.msra.mxu0 %v1403
  %1419 = vmatmul.bf16.gmra.mxu0 %v1406
  %v1420 = vpop.f32.mrf.mxu0
  %v1421 = vadd.f32 0.0, %v1420
  %v1422 = vpop.f32.mrf.mxu0
  %v1423 = vadd.f32 0.0, %v1422
  %1424 = vmatmul.bf16.gmra.mxu0 %v1409
  %v1425 = vpop.f32.mrf.mxu0
  %v1426 = vadd.f32 0.0, %v1425
  %v1427 = vpop.f32.mrf.mxu0
  %1428 = vdwg.mxu0
  %v1432 = vunpack.c.l.b16 %v1214
  %v1433 = vunpack.c.l.b16 %v1215
  %v1434 = vunpack.c.l.b16 %v1216
  %v1435 = vpack.c.b16 %v1433, %v1432
  %v1436 = vpack.c.b16 %v1434, %v1434
  %v1439 = vunpack.c.l.b16 %v1233
  %v1440 = vunpack.c.l.b16 %v1234
  %v1441 = vpack.c.b16 %v1440, %v1439
  %v1444 = vsel %vm146, %v1435, 0
  %v1447 = vsel %vm146, %v1436, 0
  %1449 = vmatpush.bf16.msra.mxu0 0
  %1450 = vmatpush.bf16.msra.mxu0 0
  %1451 = vmatpush.bf16.msra.mxu0 0
  %1452 = vmatpush.bf16.msra.mxu0 0
  %1453 = vmatpush.bf16.msra.mxu0 0
  %1454 = vmatpush.bf16.msra.mxu0 0
  %1455 = vmatpush.bf16.msra.mxu0 0
  %1456 = vmatpush.bf16.msra.mxu0 %v1441
  %1457 = vmatmul.bf16.gmra.mxu0 %v1444
  %v1458 = vpop.f32.mrf.mxu0
  %v1459 = vadd.f32 0.0, %v1458
  %v1460 = vpop.f32.mrf.mxu0
  %v1461 = vadd.f32 0.0, %v1460
  %1462 = vmatmul.bf16.gmra.mxu0 %v1447
  %v1463 = vpop.f32.mrf.mxu0
  %v1464 = vadd.f32 0.0, %v1463
  %v1465 = vpop.f32.mrf.mxu0
  %1466 = vdwg.mxu0
  %v1470 = vunpack.c.l.b16 %v1217
  %v1471 = vunpack.c.l.b16 %v1218
  %v1472 = vunpack.c.l.b16 %v1219
  %v1473 = vpack.c.b16 %v1471, %v1470
  %v1474 = vpack.c.b16 %v1472, %v1472
  %v1477 = vunpack.c.l.b16 %v1235
  %v1478 = vunpack.c.l.b16 %v1236
  %v1479 = vpack.c.b16 %v1478, %v1477
  %v1482 = vsel %vm146, %v1473, 0
  %v1485 = vsel %vm146, %v1474, 0
  %1487 = vmatpush.bf16.msra.mxu0 0
  %1488 = vmatpush.bf16.msra.mxu0 0
  %1489 = vmatpush.bf16.msra.mxu0 0
  %1490 = vmatpush.bf16.msra.mxu0 0
  %1491 = vmatpush.bf16.msra.mxu0 0
  %1492 = vmatpush.bf16.msra.mxu0 0
  %1493 = vmatpush.bf16.msra.mxu0 0
  %1494 = vmatpush.bf16.msra.mxu0 %v1479
  %1495 = vmatmul.bf16.gmra.mxu0 %v1482
  %v1496 = vpop.f32.mrf.mxu0
  %v1497 = vadd.f32 0.0, %v1496
  %v1498 = vpop.f32.mrf.mxu0
  %v1499 = vadd.f32 0.0, %v1498
  %1500 = vmatmul.bf16.gmra.mxu0 %v1485
  %v1501 = vpop.f32.mrf.mxu0
  %v1502 = vadd.f32 0.0, %v1501
  %v1503 = vpop.f32.mrf.mxu0
  %1504 = vdwg.mxu0
  %v1508 = vunpack.c.l.b16 %v1220
  %v1509 = vunpack.c.l.b16 %v1221
  %v1510 = vunpack.c.l.b16 %v1222
  %v1511 = vpack.c.b16 %v1509, %v1508
  %v1512 = vpack.c.b16 %v1510, %v1510
  %v1515 = vunpack.c.l.b16 %v1237
  %v1516 = vunpack.c.l.b16 %v1238
  %v1517 = vpack.c.b16 %v1516, %v1515
  %v1520 = vsel %vm146, %v1511, 0
  %v1523 = vsel %vm146, %v1512, 0
  %1525 = vmatpush.bf16.msra.mxu0 0
  %1526 = vmatpush.bf16.msra.mxu0 0
  %1527 = vmatpush.bf16.msra.mxu0 0
  %1528 = vmatpush.bf16.msra.mxu0 0
  %1529 = vmatpush.bf16.msra.mxu0 0
  %1530 = vmatpush.bf16.msra.mxu0 0
  %1531 = vmatpush.bf16.msra.mxu0 0
  %1532 = vmatpush.bf16.msra.mxu0 %v1517
  %1533 = vmatmul.bf16.gmra.mxu0 %v1520
  %v1534 = vpop.f32.mrf.mxu0
  %v1535 = vadd.f32 0.0, %v1534
  %v1536 = vpop.f32.mrf.mxu0
  %v1537 = vadd.f32 0.0, %v1536
  %1538 = vmatmul.bf16.gmra.mxu0 %v1523
  %v1539 = vpop.f32.mrf.mxu0
  %v1540 = vadd.f32 0.0, %v1539
  %v1541 = vpop.f32.mrf.mxu0
  %1542 = vdwg.mxu0
  %v1543 = vadd.f32 %v1175, %v1269
  %v1544 = vadd.f32 %v1176, %v1271
  %v1545 = vadd.f32 %v1177, %v1274
  %v1546 = vadd.f32 %v1178, %v1307
  %v1547 = vadd.f32 %v1179, %v1309
  %v1548 = vadd.f32 %v1180, %v1312
  %v1549 = vadd.f32 %v1181, %v1345
  %v1550 = vadd.f32 %v1182, %v1347
  %v1551 = vadd.f32 %v1183, %v1350
  %v1552 = vadd.f32 %v1184, %v1383
  %v1553 = vadd.f32 %v1185, %v1385
  %v1554 = vadd.f32 %v1186, %v1388
  %v1555 = vadd.f32 %v1187, %v1421
  %v1556 = vadd.f32 %v1188, %v1423
  %v1557 = vadd.f32 %v1189, %v1426
  %v1558 = vadd.f32 %v1190, %v1459
  %v1559 = vadd.f32 %v1191, %v1461
  %v1560 = vadd.f32 %v1192, %v1464
  %v1561 = vadd.f32 %v1193, %v1497
  %v1562 = vadd.f32 %v1194, %v1499
  %v1563 = vadd.f32 %v1195, %v1502
  %v1564 = vadd.f32 %v1196, %v1535
  %v1565 = vadd.f32 %v1197, %v1537
  %v1566 = vadd.f32 %v1198, %v1540
  %1567 = vst.msk [vmem:[#allocation4] sm:$0xff] %vm146, %v1543
  %1568 = vst.msk [vmem:[#allocation4 + $0x8] sm:$0xff] %vm146, %v1544
  %1569 = vst.msk [vmem:[#allocation4 + $0x10] sm:$0xff] %vm146, %v1545
  %1570 = vst.msk [vmem:[#allocation4 + $0x18] sm:$0xff] %vm146, %v1546
  %1571 = vst.msk [vmem:[#allocation4 + $0x20] sm:$0xff] %vm146, %v1547
  %1572 = vst.msk [vmem:[#allocation4 + $0x28] sm:$0xff] %vm146, %v1548
  %1573 = vst.msk [vmem:[#allocation4 + $0x30] sm:$0xff] %vm146, %v1549
  %1574 = vst.msk [vmem:[#allocation4 + $0x38] sm:$0xff] %vm146, %v1550
  %1575 = vst.msk [vmem:[#allocation4 + $0x40] sm:$0xff] %vm146, %v1551
  %1576 = vst.msk [vmem:[#allocation4 + $0x48] sm:$0xff] %vm146, %v1552
  %1577 = vst.msk [vmem:[#allocation4 + $0x50] sm:$0xff] %vm146, %v1553
  %1578 = vst.msk [vmem:[#allocation4 + $0x58] sm:$0xff] %vm146, %v1554
  %1579 = vst.msk [vmem:[#allocation4 + $0x60] sm:$0xff] %vm146, %v1555
  %1580 = vst.msk [vmem:[#allocation4 + $0x68] sm:$0xff] %vm146, %v1556
  %1581 = vst.msk [vmem:[#allocation4 + $0x70] sm:$0xff] %vm146, %v1557
  %1582 = vst.msk [vmem:[#allocation4 + $0x78] sm:$0xff] %vm146, %v1558
  %1583 = vst.msk [vmem:[#allocation4 + $0x80] sm:$0xff] %vm146, %v1559
  %1584 = vst.msk [vmem:[#allocation4 + $0x88] sm:$0xff] %vm146, %v1560
  %1585 = vst.msk [vmem:[#allocation4 + $0x90] sm:$0xff] %vm146, %v1561
  %1586 = vst.msk [vmem:[#allocation4 + $0x98] sm:$0xff] %vm146, %v1562
  %1587 = vst.msk [vmem:[#allocation4 + $0xa0] sm:$0xff] %vm146, %v1563
  %1588 = vst.msk [vmem:[#allocation4 + $0xa8] sm:$0xff] %vm146, %v1564
  %1589 = vst.msk [vmem:[#allocation4 + $0xb0] sm:$0xff] %vm146, %v1565
  %1590 = vst.msk [vmem:[#allocation4 + $0xb8] sm:$0xff] %vm146, %v1566
  %1591 = vst.msk [vmem:[#allocation2] sm:$0xff] %vm1006, %v574
  %1592 = vst.msk [vmem:[#allocation2 + $0x8] sm:$0xff] %vm1006, %v575
  %1593 = vst.msk [vmem:[#allocation2 + $0x10] sm:$0xff] %vm1006, %v576
  %1594 = vst.msk [vmem:[#allocation2 + $0x18] sm:$0xff] %vm1006, %v577
  %1595 = vst.msk [vmem:[#allocation2 + $0x20] sm:$0xff] %vm1006, %v578
  %1596 = vst.msk [vmem:[#allocation2 + $0x28] sm:$0xff] %vm1006, %v579
  %1597 = vst.msk [vmem:[#allocation2 + $0x30] sm:$0xff] %vm1006, %v580
  %1598 = vst.msk [vmem:[#allocation2 + $0x38] sm:$0xff] %vm1006, %v581
  %1599 = vst.msk [vmem:[#allocation2 + $0x40] sm:$0xff] %vm1006, %v582
  %1600 = vst.msk [vmem:[#allocation2 + $0x48] sm:$0xff] %vm1006, %v583
  %1601 = vst.msk [vmem:[#allocation2 + $0x50] sm:$0xff] %vm1006, %v584
  %1602 = vst.msk [vmem:[#allocation2 + $0x58] sm:$0xff] %vm1006, %v585
  %1603 = vst.msk [vmem:[#allocation2 + $0x60] sm:$0xff] %vm1006, %v586
  %1604 = vst.msk [vmem:[#allocation2 + $0x68] sm:$0xff] %vm1006, %v587
  %1605 = vst.msk [vmem:[#allocation2 + $0x70] sm:$0xff] %vm1006, %v588
  %1606 = vst.msk [vmem:[#allocation2 + $0x78] sm:$0xff] %vm1006, %v589
  %1607 = vst.msk [vmem:[#allocation2 + $0x80] sm:$0xff] %vm1006, %v590
  %1608 = vst.msk [vmem:[#allocation2 + $0x88] sm:$0xff] %vm1006, %v591
  %1609 = vst.msk [vmem:[#allocation2 + $0x90] sm:$0xff] %vm1006, %v592
  %1610 = vst.msk [vmem:[#allocation2 + $0x98] sm:$0xff] %vm1006, %v593
  %1611 = vst.msk [vmem:[#allocation2 + $0xa0] sm:$0xff] %vm1006, %v594
  %1612 = vst.msk [vmem:[#allocation2 + $0xa8] sm:$0xff] %vm1006, %v595
  %1613 = vst.msk [vmem:[#allocation2 + $0xb0] sm:$0xff] %vm1006, %v596
  %1614 = vst.msk [vmem:[#allocation2 + $0xb8] sm:$0xff] %vm1006, %v597
  // Predicated region
  $region18: #{transformer_forward.53} parent=0 // pred_check
    %p1615 = pneg %p15
  $region19: #{transformer_forward.53} parent=0 // pred_check_branch
    %1617 = sbr.rel (%p1615) target = $region21
  $region20: #{transformer_forward.53} parent=0 // pred_region
    %v1618 = vld [vmem:[#allocation3] sm:$0xff]
    %v1619 = vld [vmem:[#allocation3 + $0x8] sm:$0xff]
    %v1620 = vld [vmem:[#allocation3 + $0x10] sm:$0xff]
    %v1621 = vld [vmem:[#allocation3 + $0x18] sm:$0xff]
    %v1622 = vld [vmem:[#allocation3 + $0x20] sm:$0xff]
    %v1623 = vld [vmem:[#allocation3 + $0x28] sm:$0xff]
    %v1624 = vld [vmem:[#allocation3 + $0x30] sm:$0xff]
    %v1625 = vld [vmem:[#allocation3 + $0x38] sm:$0xff]
    %v1626 = vld [vmem:[#allocation3 + $0x40] sm:$0xff]
    %v1627 = vld [vmem:[#allocation3 + $0x48] sm:$0xff]
    %v1628 = vld [vmem:[#allocation3 + $0x50] sm:$0xff]
    %v1629 = vld [vmem:[#allocation3 + $0x58] sm:$0xff]
    %v1630 = vld [vmem:[#allocation3 + $0x60] sm:$0xff]
    %v1631 = vld [vmem:[#allocation3 + $0x68] sm:$0xff]
    %v1632 = vld [vmem:[#allocation3 + $0x70] sm:$0xff]
    %v1633 = vld [vmem:[#allocation3 + $0x78] sm:$0xff]
    %v1634 = vld [vmem:[#allocation3 + $0x80] sm:$0xff]
    %v1635 = vld [vmem:[#allocation3 + $0x88] sm:$0xff]
    %v1636 = vld [vmem:[#allocation3 + $0x90] sm:$0xff]
    %v1637 = vld [vmem:[#allocation3 + $0x98] sm:$0xff]
    %v1638 = vld [vmem:[#allocation3 + $0xa0] sm:$0xff]
    %v1639 = vld [vmem:[#allocation3 + $0xa8] sm:$0xff]
    %v1640 = vld [vmem:[#allocation3 + $0xb0] sm:$0xff]
    %v1641 = vld [vmem:[#allocation3 + $0xb8] sm:$0xff]
    %v1642 = vrcp.pop %v1618
    %v1643 = vrcp.pop %v1619
    %v1644 = vrcp.pop %v1620
    %v1645 = vrcp.pop %v1621
    %v1646 = vrcp.pop %v1622
    %v1647 = vrcp.pop %v1623
    %v1648 = vrcp.pop %v1624
    %v1649 = vrcp.pop %v1625
    %v1650 = vrcp.pop %v1626
    %v1651 = vrcp.pop %v1627
    %v1652 = vrcp.pop %v1628
    %v1653 = vrcp.pop %v1629
    %v1654 = vrcp.pop %v1630
    %v1655 = vrcp.pop %v1631
    %v1656 = vrcp.pop %v1632
    %v1657 = vrcp.pop %v1633
    %v1658 = vrcp.pop %v1634
    %v1659 = vrcp.pop %v1635
    %v1660 = vrcp.pop %v1636
    %v1661 = vrcp.pop %v1637
    %v1662 = vrcp.pop %v1638
    %v1663 = vrcp.pop %v1639
    %v1664 = vrcp.pop %v1640
    %v1665 = vrcp.pop %v1641
    %v1666 = vld [vmem:[#allocation4] sm:$0xff]
    %v1667 = vld [vmem:[#allocation4 + $0x8] sm:$0xff]
    %v1668 = vld [vmem:[#allocation4 + $0x10] sm:$0xff]
    %v1669 = vld [vmem:[#allocation4 + $0x18] sm:$0xff]
    %v1670 = vld [vmem:[#allocation4 + $0x20] sm:$0xff]
    %v1671 = vld [vmem:[#allocation4 + $0x28] sm:$0xff]
    %v1672 = vld [vmem:[#allocation4 + $0x30] sm:$0xff]
    %v1673 = vld [vmem:[#allocation4 + $0x38] sm:$0xff]
    %v1674 = vld [vmem:[#allocation4 + $0x40] sm:$0xff]
    %v1675 = vld [vmem:[#allocation4 + $0x48] sm:$0xff]
    %v1676 = vld [vmem:[#allocation4 + $0x50] sm:$0xff]
    %v1677 = vld [vmem:[#allocation4 + $0x58] sm:$0xff]
    %v1678 = vld [vmem:[#allocation4 + $0x60] sm:$0xff]
    %v1679 = vld [vmem:[#allocation4 + $0x68] sm:$0xff]
    %v1680 = vld [vmem:[#allocation4 + $0x70] sm:$0xff]
    %v1681 = vld [vmem:[#allocation4 + $0x78] sm:$0xff]
    %v1682 = vld [vmem:[#allocation4 + $0x80] sm:$0xff]
    %v1683 = vld [vmem:[#allocation4 + $0x88] sm:$0xff]
    %v1684 = vld [vmem:[#allocation4 + $0x90] sm:$0xff]
    %v1685 = vld [vmem:[#allocation4 + $0x98] sm:$0xff]
    %v1686 = vld [vmem:[#allocation4 + $0xa0] sm:$0xff]
    %v1687 = vld [vmem:[#allocation4 + $0xa8] sm:$0xff]
    %v1688 = vld [vmem:[#allocation4 + $0xb0] sm:$0xff]
    %v1689 = vld [vmem:[#allocation4 + $0xb8] sm:$0xff]
    %1691 = vset.pattern.permute.xlu0 0
    %1692 = vperm.xlu0 %1691, %v1642
    %v1693 = vpop.permute.xlu0 %1692
    %1696 = vset.pattern.permute.xlu0 0
    %1697 = vperm.xlu0 %1696, %v1643
    %v1698 = vpop.permute.xlu0 %1697
    %1701 = vset.pattern.permute.xlu0 0
    %1702 = vperm.xlu0 %1701, %v1644
    %v1703 = vpop.permute.xlu0 %1702
    %1706 = vset.pattern.permute.xlu0 0
    %1707 = vperm.xlu0 %1706, %v1645
    %v1708 = vpop.permute.xlu0 %1707
    %1711 = vset.pattern.permute.xlu0 0
    %1712 = vperm.xlu0 %1711, %v1646
    %v1713 = vpop.permute.xlu0 %1712
    %1716 = vset.pattern.permute.xlu0 0
    %1717 = vperm.xlu0 %1716, %v1647
    %v1718 = vpop.permute.xlu0 %1717
    %1721 = vset.pattern.permute.xlu0 0
    %1722 = vperm.xlu0 %1721, %v1648
    %v1723 = vpop.permute.xlu0 %1722
    %1726 = vset.pattern.permute.xlu0 0
    %1727 = vperm.xlu0 %1726, %v1649
    %v1728 = vpop.permute.xlu0 %1727
    %1731 = vset.pattern.permute.xlu0 0
    %1732 = vperm.xlu0 %1731, %v1650
    %v1733 = vpop.permute.xlu0 %1732
    %1736 = vset.pattern.permute.xlu0 0
    %1737 = vperm.xlu0 %1736, %v1651
    %v1738 = vpop.permute.xlu0 %1737
    %1741 = vset.pattern.permute.xlu0 0
    %1742 = vperm.xlu0 %1741, %v1652
    %v1743 = vpop.permute.xlu0 %1742
    %1746 = vset.pattern.permute.xlu0 0
    %1747 = vperm.xlu0 %1746, %v1653
    %v1748 = vpop.permute.xlu0 %1747
    %1751 = vset.pattern.permute.xlu0 0
    %1752 = vperm.xlu0 %1751, %v1654
    %v1753 = vpop.permute.xlu0 %1752
    %1756 = vset.pattern.permute.xlu0 0
    %1757 = vperm.xlu0 %1756, %v1655
    %v1758 = vpop.permute.xlu0 %1757
    %1761 = vset.pattern.permute.xlu0 0
    %1762 = vperm.xlu0 %1761, %v1656
    %v1763 = vpop.permute.xlu0 %1762
    %1766 = vset.pattern.permute.xlu0 0
    %1767 = vperm.xlu0 %1766, %v1657
    %v1768 = vpop.permute.xlu0 %1767
    %1771 = vset.pattern.permute.xlu0 0
    %1772 = vperm.xlu0 %1771, %v1658
    %v1773 = vpop.permute.xlu0 %1772
    %1776 = vset.pattern.permute.xlu0 0
    %1777 = vperm.xlu0 %1776, %v1659
    %v1778 = vpop.permute.xlu0 %1777
    %1781 = vset.pattern.permute.xlu0 0
    %1782 = vperm.xlu0 %1781, %v1660
    %v1783 = vpop.permute.xlu0 %1782
    %1786 = vset.pattern.permute.xlu0 0
    %1787 = vperm.xlu0 %1786, %v1661
    %v1788 = vpop.permute.xlu0 %1787
    %1791 = vset.pattern.permute.xlu0 0
    %1792 = vperm.xlu0 %1791, %v1662
    %v1793 = vpop.permute.xlu0 %1792
    %1796 = vset.pattern.permute.xlu0 0
    %1797 = vperm.xlu0 %1796, %v1663
    %v1798 = vpop.permute.xlu0 %1797
    %1801 = vset.pattern.permute.xlu0 0
    %1802 = vperm.xlu0 %1801, %v1664
    %v1803 = vpop.permute.xlu0 %1802
    %1806 = vset.pattern.permute.xlu0 0
    %1807 = vperm.xlu0 %1806, %v1665
    %v1808 = vpop.permute.xlu0 %1807
    %v1810 = vmul.f32 %v1666, %v1693
    %v1811 = vmul.f32 %v1667, %v1698
    %v1812 = vmul.f32 %v1668, %v1703
    %v1813 = vmul.f32 %v1669, %v1708
    %v1814 = vmul.f32 %v1670, %v1713
    %v1815 = vmul.f32 %v1671, %v1718
    %v1816 = vmul.f32 %v1672, %v1723
    %v1817 = vmul.f32 %v1673, %v1728
    %v1818 = vmul.f32 %v1674, %v1733
    %v1819 = vmul.f32 %v1675, %v1738
    %v1820 = vmul.f32 %v1676, %v1743
    %v1821 = vmul.f32 %v1677, %v1748
    %v1822 = vmul.f32 %v1678, %v1753
    %v1823 = vmul.f32 %v1679, %v1758
    %v1824 = vmul.f32 %v1680, %v1763
    %v1825 = vmul.f32 %v1681, %v1768
    %v1826 = vmul.f32 %v1682, %v1773
    %v1827 = vmul.f32 %v1683, %v1778
    %v1828 = vmul.f32 %v1684, %v1783
    %v1829 = vmul.f32 %v1685, %v1788
    %v1830 = vmul.f32 %v1686, %v1793
    %v1831 = vmul.f32 %v1687, %v1798
    %v1832 = vmul.f32 %v1688, %v1803
    %v1833 = vmul.f32 %v1689, %v1808
    %v1834 = vpack.c.bf16 %v1810, %v1810
    %v1835 = vpack.c.bf16 %v1811, %v1811
    %v1836 = vpack.c.bf16 %v1812, %v1812
    %v1837 = vpack.c.bf16 %v1813, %v1813
    %v1838 = vpack.c.bf16 %v1814, %v1814
    %v1839 = vpack.c.bf16 %v1815, %v1815
    %v1840 = vpack.c.bf16 %v1816, %v1816
    %v1841 = vpack.c.bf16 %v1817, %v1817
    %v1842 = vpack.c.bf16 %v1818, %v1818
    %v1843 = vpack.c.bf16 %v1819, %v1819
    %v1844 = vpack.c.bf16 %v1820, %v1820
    %v1845 = vpack.c.bf16 %v1821, %v1821
    %v1846 = vpack.c.bf16 %v1822, %v1822
    %v1847 = vpack.c.bf16 %v1823, %v1823
    %v1848 = vpack.c.bf16 %v1824, %v1824
    %v1849 = vpack.c.bf16 %v1825, %v1825
    %v1850 = vpack.c.bf16 %v1826, %v1826
    %v1851 = vpack.c.bf16 %v1827, %v1827
    %v1852 = vpack.c.bf16 %v1828, %v1828
    %v1853 = vpack.c.bf16 %v1829, %v1829
    %v1854 = vpack.c.bf16 %v1830, %v1830
    %v1855 = vpack.c.bf16 %v1831, %v1831
    %v1856 = vpack.c.bf16 %v1832, %v1832
    %v1857 = vpack.c.bf16 %v1833, %v1833
    %vm1858 = vcmask 125952
    %1859 = vst.msk [vmem:[%s3] sm:$0xf] %vm1858, %v1834
    %1860 = vst.msk [vmem:[%s3 + $0x4] sm:$0xf] %vm1858, %v1835
    %1861 = vst.msk [vmem:[%s3 + $0x8] sm:$0xf] %vm1858, %v1836
    %1862 = vst.msk [vmem:[%s3 + $0xc] sm:$0xf] %vm1858, %v1837
    %1863 = vst.msk [vmem:[%s3 + $0x10] sm:$0xf] %vm1858, %v1838
    %1864 = vst.msk [vmem:[%s3 + $0x14] sm:$0xf] %vm1858, %v1839
    %1865 = vst.msk [vmem:[%s3 + $0x18] sm:$0xf] %vm1858, %v1840
    %1866 = vst.msk [vmem:[%s3 + $0x1c] sm:$0xf] %vm1858, %v1841
    %1867 = vst.msk [vmem:[%s3 + $0x20] sm:$0xf] %vm1858, %v1842
    %1868 = vst.msk [vmem:[%s3 + $0x24] sm:$0xf] %vm1858, %v1843
    %1869 = vst.msk [vmem:[%s3 + $0x28] sm:$0xf] %vm1858, %v1844
    %1870 = vst.msk [vmem:[%s3 + $0x2c] sm:$0xf] %vm1858, %v1845
    %1871 = vst.msk [vmem:[%s3 + $0x30] sm:$0xf] %vm1858, %v1846
    %1872 = vst.msk [vmem:[%s3 + $0x34] sm:$0xf] %vm1858, %v1847
    %1873 = vst.msk [vmem:[%s3 + $0x38] sm:$0xf] %vm1858, %v1848
    %1874 = vst.msk [vmem:[%s3 + $0x3c] sm:$0xf] %vm1858, %v1849
    %1875 = vst.msk [vmem:[%s3 + $0x40] sm:$0xf] %vm1858, %v1850
    %1876 = vst.msk [vmem:[%s3 + $0x44] sm:$0xf] %vm1858, %v1851
    %1877 = vst.msk [vmem:[%s3 + $0x48] sm:$0xf] %vm1858, %v1852
    %1878 = vst.msk [vmem:[%s3 + $0x4c] sm:$0xf] %vm1858, %v1853
    %1879 = vst.msk [vmem:[%s3 + $0x50] sm:$0xf] %vm1858, %v1854
    %1880 = vst.msk [vmem:[%s3 + $0x54] sm:$0xf] %vm1858, %v1855
    %1881 = vst.msk [vmem:[%s3 + $0x58] sm:$0xf] %vm1858, %v1856
    %1882 = vst.msk [vmem:[%s3 + $0x5c] sm:$0xf] %vm1858, %v1857
  $region21: #{transformer_forward.53} parent=0 // pred_fallthru
    _
  // Predicated region
  $region22: #{transformer_forward.53} parent=0 // pred_check
    _
  $region23: #{transformer_forward.53} parent=0 // pred_check_branch
    %1884 = sbr.rel (0) target = $region25
  $region24: #{transformer_forward.53} parent=0 // pred_region
    _
  $region25: #{transformer_forward.53} parent=0 // pred_fallthru
    _
  // Predicated region
  $region26: #{transformer_forward.53} parent=0 // pred_check
    _
  $region27: #{transformer_forward.53} parent=0 // pred_check_branch
    %1886 = sbr.rel (0) target = $region29
  $region28: #{transformer_forward.53} parent=0 // pred_region
    _
  $region29: #{transformer_forward.53} parent=0 // pred_fallthru
    _

</llo_original>
